<compile_context>
chip_gen: v7x
topology: tpu7x:2x2x1
jax: 0.10.0
libtpu: 0.0.40
codegen_flags: <defaults>
</compile_context>

<pallas_src>
import jax
import jax.numpy as jnp
from jax.experimental import pallas as pl
from jax.experimental.pallas import tpu as pltpu

B = 2                 # batch (must be > 1 because of BatchNorm1d, like the module asserts)
C, H, W = 3, 16, 16   # image_size = 16
IN_DIM = C * H * W    # 768 (multiple of 128 -> lane aligned)
FEAT_DIM = 256        # representation dim produced by the backbone stand-in
PROJ_SIZE = 1024      # projection_size        (hard-coded in BYOLLearner.__init__)
PROJ_HIDDEN = 512     # projection_hidden_size (hard-coded in BYOLLearner.__init__)
BN_EPS = 1e-5
NORM_EPS = 1e-12
MOVING_AVERAGE_DECAY = 0.99

IMG_MEAN = jnp.array([0.485, 0.456, 0.406], jnp.float32).reshape(1, 3, 1, 1)
IMG_STD = jnp.array([0.229, 0.224, 0.225], jnp.float32).reshape(1, 3, 1, 1)


def _vmem():
    return pl.BlockSpec(memory_space=pltpu.MemorySpace.VMEM)


# --------------------------------------------------------- in-kernel helpers --
def _dot(x_f32, w_bf16):
    # bf16 operands on the MXU, f32 accumulation.
    return jnp.dot(x_f32.astype(jnp.bfloat16), w_bf16,
                   preferred_element_type=jnp.float32)


def _bn_relu_per_view(h, g, beta):
    # BatchNorm1d (training-mode, biased variance) computed with PER-VIEW batch
    # statistics: the PyTorch module runs each augmented view through the
    # encoder in a separate call, so BN sees B rows at a time.  Rows [0:B] are
    # view one, rows [B:2B] are view two.  Mask-based (no slices/reshapes).
    rows = jax.lax.broadcasted_iota(jnp.int32, h.shape, 0)
    m1 = (rows < B).astype(jnp.float32)
    m2 = 1.0 - m1
    inv_b = 1.0 / B
    mean1 = jnp.sum(h * m1, axis=0, keepdims=True) * inv_b
    mean2 = jnp.sum(h * m2, axis=0, keepdims=True) * inv_b
    mean = m1 * mean1 + m2 * mean2
    var1 = jnp.sum(((h - mean1) ** 2) * m1, axis=0, keepdims=True) * inv_b
    var2 = jnp.sum(((h - mean2) ** 2) * m2, axis=0, keepdims=True) * inv_b
    var = m1 * var1 + m2 * var2
    hn = (h - mean) * jax.lax.rsqrt(var + BN_EPS) * g + beta
    return jnp.maximum(hn, 0.0)
    # TODO(synk): BatchNorm1d running_mean/var buffers are not updated (stateful
    # PyTorch training-mode side effect); forward normalization matches.


def _mlp(x, w1, b1, g, beta, w2, b2):
    # MLP(dim, projection_size, hidden_size) = Linear -> BN -> ReLU -> Linear
    h = _dot(x, w1) + b1
    hr = _bn_relu_per_view(h, g, beta)
    return _dot(hr, w2) + b2


def _l2norm(v):
    # F.normalize(x, dim=-1, p=2): x / max(||x||_2, eps)
    n = jnp.sqrt(jnp.sum(v * v, axis=-1, keepdims=True))
    return v / jnp.maximum(n, NORM_EPS)


# ------------------------------------------------------------------ kernels --
def target_chain_kernel(x_ref, fw_ref, fb_ref,
                        pw1_ref, pb1_ref, pg_ref, pbeta_ref, pw2_ref, pb2_ref,
                        proj_ref, feat_ref):
    # NetWrapper.forward for both views at once:
    #   representation = net.features(x); projection = projector(representation)
    feat = _dot(x_ref[...], fw_ref[...]) + fb_ref[...]
    feat_ref[...] = feat
    proj_ref[...] = _mlp(feat, pw1_ref[...], pb1_ref[...], pg_ref[...],
                         pbeta_ref[...], pw2_ref[...], pb2_ref[...])


def online_chain_kernel(x_ref, fw_ref, fb_ref,
                        pw1_ref, pb1_ref, pg_ref, pbeta_ref, pw2_ref, pb2_ref,
                        qw1_ref, qb1_ref, qg_ref, qbeta_ref, qw2_ref, qb2_ref,
                        tgt_sw_ref,
                        feat_ref, loss_ref):
    # online encoder -> online predictor -> BYOL loss, fused.
    feat = _dot(x_ref[...], fw_ref[...]) + fb_ref[...]
    feat_ref[...] = feat
    proj = _mlp(feat, pw1_ref[...], pb1_ref[...], pg_ref[...], pbeta_ref[...],
                pw2_ref[...], pb2_ref[...])
    pred = _mlp(proj, qw1_ref[...], qb1_ref[...], qg_ref[...], qbeta_ref[...],
                qw2_ref[...], qb2_ref[...])
    # tgt_sw holds [target_proj_two ; target_proj_one] (views pre-swapped), so
    # row i of pred pairs with row i of tgt_sw.
    pn = _l2norm(pred)
    tn = _l2norm(tgt_sw_ref[...])
    per_pair = 2.0 - 2.0 * jnp.sum(pn * tn, axis=-1, keepdims=True)   # (2B, 1)
    # loss = (loss_one + loss_two).mean() over B samples = sum(per_pair) / B
    loss_ref[0, 0] = jnp.sum(per_pair) * (1.0 / B)


# ----------------------------------------------------------------- wrappers --
_COMPILER_PARAMS = pltpu.CompilerParams(vmem_limit_bytes=32 * 1024 * 1024)


def _bytes_of(args, extra=0):
    return int(sum(int(a.size) * int(a.dtype.itemsize) for a in args) + extra)


def target_chain(x_flat, enc):
    fw, fb = enc["feat"]
    pw1, pb1, pg, pbeta, pw2, pb2 = enc["proj"]
    m = x_flat.shape[0]
    args = (x_flat, fw, fb.reshape(1, -1),
            pw1, pb1.reshape(1, -1), pg.reshape(1, -1), pbeta.reshape(1, -1),
            pw2, pb2.reshape(1, -1))
    flops = 2 * m * (IN_DIM * FEAT_DIM + FEAT_DIM * PROJ_HIDDEN
                     + PROJ_HIDDEN * PROJ_SIZE)
    cost = pl.CostEstimate(
        flops=flops, transcendentals=2 * PROJ_HIDDEN,
        bytes_accessed=_bytes_of(args, extra=m * (PROJ_SIZE + FEAT_DIM) * 4))
    proj, feat = pl.pallas_call(
        target_chain_kernel,
        out_shape=(jax.ShapeDtypeStruct((m, PROJ_SIZE), jnp.float32),
                   jax.ShapeDtypeStruct((m, FEAT_DIM), jnp.float32)),
        in_specs=[_vmem() for _ in args],
        out_specs=(_vmem(), _vmem()),
        compiler_params=_COMPILER_PARAMS,
        cost_estimate=cost,
    )(*args)
    return proj, feat


def online_chain(x_flat, enc, predictor, target_proj_swapped):
    fw, fb = enc["feat"]
    pw1, pb1, pg, pbeta, pw2, pb2 = enc["proj"]
    qw1, qb1, qg, qbeta, qw2, qb2 = predictor
    m = x_flat.shape[0]
    args = (x_flat, fw, fb.reshape(1, -1),
            pw1, pb1.reshape(1, -1), pg.reshape(1, -1), pbeta.reshape(1, -1),
            pw2, pb2.reshape(1, -1),
            qw1, qb1.reshape(1, -1), qg.reshape(1, -1), qbeta.reshape(1, -1),
            qw2, qb2.reshape(1, -1),
            target_proj_swapped)
    flops = 2 * m * (IN_DIM * FEAT_DIM + FEAT_DIM * PROJ_HIDDEN
                     + PROJ_HIDDEN * PROJ_SIZE + PROJ_SIZE * PROJ_HIDDEN
                     + PROJ_HIDDEN * PROJ_SIZE)
    cost = pl.CostEstimate(
        flops=flops, transcendentals=4 * PROJ_HIDDEN + 2 * m,
        bytes_accessed=_bytes_of(args, extra=m * FEAT_DIM * 4 + 4))
    feat, loss = pl.pallas_call(
        online_chain_kernel,
        out_shape=(jax.ShapeDtypeStruct((m, FEAT_DIM), jnp.float32),
                   jax.ShapeDtypeStruct((1, 1), jnp.float32)),
        in_specs=[_vmem() for _ in args],
        out_specs=(_vmem(),
                   pl.BlockSpec(memory_space=pltpu.MemorySpace.SMEM)),
        compiler_params=_COMPILER_PARAMS,
        cost_estimate=cost,
    )(*args)
    return feat, loss[0, 0]


# ------------------------------------------------------------------- params --
def _init_linear(key, din, dout):
    kw, kb = jax.random.split(key)
    lim = 1.0 / jnp.sqrt(jnp.float32(din))
    # weights stored bf16 (halves HBM traffic; f32 accumulation in-kernel),
    # biases / BN params stay f32.
    w = jax.random.uniform(kw, (din, dout), jnp.float32, -lim, lim).astype(jnp.bfloat16)
    b = jax.random.uniform(kb, (dout,), jnp.float32, -lim, lim)
    return w, b


def init_params(key):
    ks = jax.random.split(key, 5)
    # backbone net.features stand-in: flatten + Linear(C*H*W -> FEAT_DIM)
    fw, fb = _init_linear(ks[0], IN_DIM, FEAT_DIM)
    # projector MLP: FEAT_DIM -> 512 -> BN -> ReLU -> 1024
    pw1, pb1 = _init_linear(ks[1], FEAT_DIM, PROJ_HIDDEN)
    pg = jnp.ones((PROJ_HIDDEN,), jnp.float32)
    pbeta = jnp.zeros((PROJ_HIDDEN,), jnp.float32)
    pw2, pb2 = _init_linear(ks[2], PROJ_HIDDEN, PROJ_SIZE)
    # online predictor MLP: 1024 -> 512 -> BN -> ReLU -> 1024
    qw1, qb1 = _init_linear(ks[3], PROJ_SIZE, PROJ_HIDDEN)
    qg = jnp.ones((PROJ_HIDDEN,), jnp.float32)
    qbeta = jnp.zeros((PROJ_HIDDEN,), jnp.float32)
    qw2, qb2 = _init_linear(ks[4], PROJ_HIDDEN, PROJ_SIZE)
    online_encoder = {"feat": (fw, fb), "proj": (pw1, pb1, pg, pbeta, pw2, pb2)}
    online_predictor = (qw1, qb1, qg, qbeta, qw2, qb2)
    return online_encoder, online_predictor


# ------------------------------------------------------------------ forward --
def ema_update(target, online, beta):
    # update_target(): ma = beta * ma + (1 - beta) * current (done in f32)
    return jax.tree_util.tree_map(
        lambda t, o: (beta * t.astype(jnp.float32)
                      + (1.0 - beta) * o.astype(jnp.float32)).astype(t.dtype),
        target, online)


def augment1(x):
    # TODO(synk): stochastic ColorJitter / RandomGrayscale / GaussianBlur /
    # RandomResizedCrop have no clean deterministic Pallas equivalent; only the
    # (always-applied) Normalize stage is reproduced here.
    return (x - IMG_MEAN) / IMG_STD


def augment2(x):
    # deterministic horizontal flip as a stand-in for RandomHorizontalFlip, + Normalize
    return (x[..., ::-1] - IMG_MEAN) / IMG_STD


@jax.jit
def byol_forward(online_encoder, online_predictor, target_encoder, x):
    image_one, image_two = augment1(x), augment2(x)
    images = jnp.concatenate([image_one, image_two], axis=0)       # (2B, C, H, W)
    x_flat = images.reshape(2 * B, -1)                             # view-major rows

    # no-grad block: EMA update of target encoder, then target projections
    target_encoder = ema_update(target_encoder, online_encoder, MOVING_AVERAGE_DECAY)
    target_proj, target_feat = target_chain(x_flat, target_encoder)
    # pair view-one predictions with view-two targets and vice versa
    target_proj_swapped = jnp.concatenate([target_proj[B:], target_proj[:B]], axis=0)

    # online encoder + predictor + BYOL loss, fused in a single kernel
    online_feat, loss = online_chain(x_flat, online_encoder, online_predictor,
                                     target_proj_swapped)

    return (loss,
            online_feat,      # == cat([online_feat_one, online_feat_two])
            target_feat,      # == cat([target_feat_one, target_feat_two])
            images,           # == cat([image_one, image_two])
            target_encoder)


if __name__ == "__main__":
    key = jax.random.PRNGKey(0)
    kp, kx = jax.random.split(key)

    online_encoder, online_predictor = init_params(kp)
    # _get_target_encoder(): deepcopy of the online encoder
    target_encoder = jax.tree_util.tree_map(lambda a: a, online_encoder)

    x = jax.random.normal(kx, (B, C, H, W), jnp.float32)

    loss, online_feats, target_feats, images, target_encoder = byol_forward(
        online_encoder, online_predictor, target_encoder, x)

    jax.block_until_ready((loss, online_feats, target_feats, images, target_encoder))

    assert loss.shape == ()
    assert online_feats.shape == (2 * B, FEAT_DIM)
    assert target_feats.shape == (2 * B, FEAT_DIM)
    assert images.shape == (2 * B, C, H, W)
    assert bool(jnp.isfinite(loss))
    print("KERNEL_OK")
</pallas_src>

<mosaic_0001>
module attributes {stable_mosaic.version = 11 : i64} {
  func.func @target_chain_kernel(%arg0: memref<4x768xf32, #tpu.memory_space<vmem>>, %arg1: memref<768x256xbf16, #tpu.memory_space<vmem>>, %arg2: memref<1x256xf32, #tpu.memory_space<vmem>>, %arg3: memref<256x512xbf16, #tpu.memory_space<vmem>>, %arg4: memref<1x512xf32, #tpu.memory_space<vmem>>, %arg5: memref<1x512xf32, #tpu.memory_space<vmem>>, %arg6: memref<1x512xf32, #tpu.memory_space<vmem>>, %arg7: memref<512x1024xbf16, #tpu.memory_space<vmem>>, %arg8: memref<1x1024xf32, #tpu.memory_space<vmem>>, %arg9: memref<4x1024xf32, #tpu.memory_space<vmem>>, %arg10: memref<4x256xf32, #tpu.memory_space<vmem>>) attributes {dimension_semantics = [], scalar_prefetch = 0 : i64, scratch_operands = 0 : i64, tpu.core_type = #tpu.core_type<tc>} {
    %c0 = arith.constant 0 : index
    %c0_0 = arith.constant 0 : index
    %0 = vector.load %arg0[%c0, %c0_0] : memref<4x768xf32, #tpu.memory_space<vmem>>, vector<4x768xf32>
    %c0_1 = arith.constant 0 : index
    %c0_2 = arith.constant 0 : index
    %1 = vector.load %arg1[%c0_1, %c0_2] : memref<768x256xbf16, #tpu.memory_space<vmem>>, vector<768x256xbf16>
    %2 = arith.truncf %0 : vector<4x768xf32> to vector<4x768xbf16>
    %cst = arith.constant dense<0.000000e+00> : vector<4x256xf32>
    %3 = tpu.matmul %2, %1, %cst {dimension_numbers = #tpu.dot_dimension_numbers<[1], [0], [0], [1], [0, 0, 1, 1], [], []>} : vector<4x768xbf16>, vector<768x256xbf16>, vector<4x256xf32> -> vector<4x256xf32>
    %c0_3 = arith.constant 0 : index
    %c0_4 = arith.constant 0 : index
    %4 = vector.load %arg2[%c0_3, %c0_4] : memref<1x256xf32, #tpu.memory_space<vmem>>, vector<1x256xf32>
    %5 = vector.broadcast %4 : vector<1x256xf32> to vector<4x256xf32>
    %6 = arith.addf %3, %5 : vector<4x256xf32>
    %c0_5 = arith.constant 0 : index
    %c0_6 = arith.constant 0 : index
    %7 = vector.load %arg10[%c0_5, %c0_6] : memref<4x256xf32, #tpu.memory_space<vmem>>, vector<4x256xf32>
    tpu.vector_store %arg10[%c0_5, %c0_6], %6 {strides = array<i32>} : memref<4x256xf32, #tpu.memory_space<vmem>>, vector<4x256xf32>,
    %c0_7 = arith.constant 0 : index
    %c0_8 = arith.constant 0 : index
    %8 = vector.load %arg3[%c0_7, %c0_8] : memref<256x512xbf16, #tpu.memory_space<vmem>>, vector<256x512xbf16>
    %c0_9 = arith.constant 0 : index
    %c0_10 = arith.constant 0 : index
    %9 = vector.load %arg4[%c0_9, %c0_10] : memref<1x512xf32, #tpu.memory_space<vmem>>, vector<1x512xf32>
    %c0_11 = arith.constant 0 : index
    %c0_12 = arith.constant 0 : index
    %10 = vector.load %arg5[%c0_11, %c0_12] : memref<1x512xf32, #tpu.memory_space<vmem>>, vector<1x512xf32>
    %c0_13 = arith.constant 0 : index
    %c0_14 = arith.constant 0 : index
    %11 = vector.load %arg6[%c0_13, %c0_14] : memref<1x512xf32, #tpu.memory_space<vmem>>, vector<1x512xf32>
    %c0_15 = arith.constant 0 : index
    %c0_16 = arith.constant 0 : index
    %12 = vector.load %arg7[%c0_15, %c0_16] : memref<512x1024xbf16, #tpu.memory_space<vmem>>, vector<512x1024xbf16>
    %c0_17 = arith.constant 0 : index
    %c0_18 = arith.constant 0 : index
    %13 = vector.load %arg8[%c0_17, %c0_18] : memref<1x1024xf32, #tpu.memory_space<vmem>>, vector<1x1024xf32>
    %14 = arith.truncf %6 : vector<4x256xf32> to vector<4x256xbf16>
    %cst_19 = arith.constant dense<0.000000e+00> : vector<4x512xf32>
    %15 = tpu.matmul %14, %8, %cst_19 {dimension_numbers = #tpu.dot_dimension_numbers<[1], [0], [0], [1], [0, 0, 1, 1], [], []>} : vector<4x256xbf16>, vector<256x512xbf16>, vector<4x512xf32> -> vector<4x512xf32>
    %16 = vector.broadcast %9 : vector<1x512xf32> to vector<4x512xf32>
    %17 = arith.addf %15, %16 : vector<4x512xf32>
    %18 = tpu.iota {dimensions = array<i32: 0>} : vector<4x512xi32>
    %c2_i32 = arith.constant 2 : i32
    %19 = vector.broadcast %c2_i32 : i32 to vector<4x512xi32>
    %20 = arith.cmpi slt, %18, %19 : vector<4x512xi32>
    %21 = arith.extui %20 : vector<4x512xi1> to vector<4x512xi32>
    %22 = arith.sitofp %21 : vector<4x512xi32> to vector<4x512xf32>
    %cst_20 = arith.constant 1.000000e+00 : f32
    %23 = vector.broadcast %cst_20 : f32 to vector<4x512xf32>
    %24 = arith.subf %23, %22 : vector<4x512xf32>
    %25 = arith.mulf %17, %22 : vector<4x512xf32>
    %cst_21 = arith.constant dense<0.000000e+00> : vector<512xf32>
    %26 = vector.multi_reduction <add>, %25, %cst_21 [0] : vector<4x512xf32> to vector<512xf32>
    %27 = vector.shape_cast %26 : vector<512xf32> to vector<1x512xf32>
    %cst_22 = arith.constant 5.000000e-01 : f32
    %28 = vector.broadcast %cst_22 : f32 to vector<1x512xf32>
    %29 = arith.mulf %27, %28 : vector<1x512xf32>
    %30 = arith.mulf %17, %24 : vector<4x512xf32>
    %cst_23 = arith.constant dense<0.000000e+00> : vector<512xf32>
    %31 = vector.multi_reduction <add>, %30, %cst_23 [0] : vector<4x512xf32> to vector<512xf32>
    %32 = vector.shape_cast %31 : vector<512xf32> to vector<1x512xf32>
    %cst_24 = arith.constant 5.000000e-01 : f32
    %33 = vector.broadcast %cst_24 : f32 to vector<1x512xf32>
    %34 = arith.mulf %32, %33 : vector<1x512xf32>
    %35 = vector.broadcast %29 : vector<1x512xf32> to vector<4x512xf32>
    %36 = arith.mulf %22, %35 : vector<4x512xf32>
    %37 = vector.broadcast %34 : vector<1x512xf32> to vector<4x512xf32>
    %38 = arith.mulf %24, %37 : vector<4x512xf32>
    %39 = arith.addf %36, %38 : vector<4x512xf32>
    %40 = vector.broadcast %29 : vector<1x512xf32> to vector<4x512xf32>
    %41 = arith.subf %17, %40 : vector<4x512xf32>
    %42 = arith.mulf %41, %41 : vector<4x512xf32>
    %43 = arith.mulf %42, %22 : vector<4x512xf32>
    %cst_25 = arith.constant dense<0.000000e+00> : vector<512xf32>
    %44 = vector.multi_reduction <add>, %43, %cst_25 [0] : vector<4x512xf32> to vector<512xf32>
    %45 = vector.shape_cast %44 : vector<512xf32> to vector<1x512xf32>
    %cst_26 = arith.constant 5.000000e-01 : f32
    %46 = vector.broadcast %cst_26 : f32 to vector<1x512xf32>
    %47 = arith.mulf %45, %46 : vector<1x512xf32>
    %48 = vector.broadcast %34 : vector<1x512xf32> to vector<4x512xf32>
    %49 = arith.subf %17, %48 : vector<4x512xf32>
    %50 = arith.mulf %49, %49 : vector<4x512xf32>
    %51 = arith.mulf %50, %24 : vector<4x512xf32>
    %cst_27 = arith.constant dense<0.000000e+00> : vector<512xf32>
    %52 = vector.multi_reduction <add>, %51, %cst_27 [0] : vector<4x512xf32> to vector<512xf32>
    %53 = vector.shape_cast %52 : vector<512xf32> to vector<1x512xf32>
    %cst_28 = arith.constant 5.000000e-01 : f32
    %54 = vector.broadcast %cst_28 : f32 to vector<1x512xf32>
    %55 = arith.mulf %53, %54 : vector<1x512xf32>
    %56 = vector.broadcast %47 : vector<1x512xf32> to vector<4x512xf32>
    %57 = arith.mulf %22, %56 : vector<4x512xf32>
    %58 = vector.broadcast %55 : vector<1x512xf32> to vector<4x512xf32>
    %59 = arith.mulf %24, %58 : vector<4x512xf32>
    %60 = arith.addf %57, %59 : vector<4x512xf32>
    %61 = arith.subf %17, %39 : vector<4x512xf32>
    %cst_29 = arith.constant 9.99999974E-6 : f32
    %62 = vector.broadcast %cst_29 : f32 to vector<4x512xf32>
    %63 = arith.addf %60, %62 : vector<4x512xf32>
    %64 = math.rsqrt %63 : vector<4x512xf32>
    %65 = arith.mulf %61, %64 : vector<4x512xf32>
    %66 = vector.broadcast %10 : vector<1x512xf32> to vector<4x512xf32>
    %67 = arith.mulf %65, %66 : vector<4x512xf32>
    %68 = vector.broadcast %11 : vector<1x512xf32> to vector<4x512xf32>
    %69 = arith.addf %67, %68 : vector<4x512xf32>
    %cst_30 = arith.constant 0.000000e+00 : f32
    %70 = vector.broadcast %cst_30 : f32 to vector<4x512xf32>
    %71 = arith.maximumf %69, %70 : vector<4x512xf32>
    %72 = arith.truncf %71 : vector<4x512xf32> to vector<4x512xbf16>
    %cst_31 = arith.constant dense<0.000000e+00> : vector<4x1024xf32>
    %73 = tpu.matmul %72, %12, %cst_31 {dimension_numbers = #tpu.dot_dimension_numbers<[1], [0], [0], [1], [0, 0, 1, 1], [], []>} : vector<4x512xbf16>, vector<512x1024xbf16>, vector<4x1024xf32> -> vector<4x1024xf32>
    %74 = vector.broadcast %13 : vector<1x1024xf32> to vector<4x1024xf32>
    %75 = arith.addf %73, %74 : vector<4x1024xf32>
    %c0_32 = arith.constant 0 : index
    %c0_33 = arith.constant 0 : index
    %76 = vector.load %arg9[%c0_32, %c0_33] : memref<4x1024xf32, #tpu.memory_space<vmem>>, vector<4x1024xf32>
    tpu.vector_store %arg9[%c0_32, %c0_33], %75 {strides = array<i32>} : memref<4x1024xf32, #tpu.memory_space<vmem>>, vector<4x1024xf32>,
    return
  }
}

module attributes {stable_mosaic.version = 11 : i64} {
  func.func @online_chain_kernel(%arg0: memref<4x768xf32, #tpu.memory_space<vmem>>, %arg1: memref<768x256xbf16, #tpu.memory_space<vmem>>, %arg2: memref<1x256xf32, #tpu.memory_space<vmem>>, %arg3: memref<256x512xbf16, #tpu.memory_space<vmem>>, %arg4: memref<1x512xf32, #tpu.memory_space<vmem>>, %arg5: memref<1x512xf32, #tpu.memory_space<vmem>>, %arg6: memref<1x512xf32, #tpu.memory_space<vmem>>, %arg7: memref<512x1024xbf16, #tpu.memory_space<vmem>>, %arg8: memref<1x1024xf32, #tpu.memory_space<vmem>>, %arg9: memref<1024x512xbf16, #tpu.memory_space<vmem>>, %arg10: memref<1x512xf32, #tpu.memory_space<vmem>>, %arg11: memref<1x512xf32, #tpu.memory_space<vmem>>, %arg12: memref<1x512xf32, #tpu.memory_space<vmem>>, %arg13: memref<512x1024xbf16, #tpu.memory_space<vmem>>, %arg14: memref<1x1024xf32, #tpu.memory_space<vmem>>, %arg15: memref<4x1024xf32, #tpu.memory_space<vmem>>, %arg16: memref<4x256xf32, #tpu.memory_space<vmem>>, %arg17: memref<1x1xf32, #tpu.memory_space<smem>>) attributes {dimension_semantics = [], scalar_prefetch = 0 : i64, scratch_operands = 0 : i64, tpu.core_type = #tpu.core_type<tc>} {
    %c0 = arith.constant 0 : index
    %c0_0 = arith.constant 0 : index
    %0 = vector.load %arg0[%c0, %c0_0] : memref<4x768xf32, #tpu.memory_space<vmem>>, vector<4x768xf32>
    %c0_1 = arith.constant 0 : index
    %c0_2 = arith.constant 0 : index
    %1 = vector.load %arg1[%c0_1, %c0_2] : memref<768x256xbf16, #tpu.memory_space<vmem>>, vector<768x256xbf16>
    %2 = arith.truncf %0 : vector<4x768xf32> to vector<4x768xbf16>
    %cst = arith.constant dense<0.000000e+00> : vector<4x256xf32>
    %3 = tpu.matmul %2, %1, %cst {dimension_numbers = #tpu.dot_dimension_numbers<[1], [0], [0], [1], [0, 0, 1, 1], [], []>} : vector<4x768xbf16>, vector<768x256xbf16>, vector<4x256xf32> -> vector<4x256xf32>
    %c0_3 = arith.constant 0 : index
    %c0_4 = arith.constant 0 : index
    %4 = vector.load %arg2[%c0_3, %c0_4] : memref<1x256xf32, #tpu.memory_space<vmem>>, vector<1x256xf32>
    %5 = vector.broadcast %4 : vector<1x256xf32> to vector<4x256xf32>
    %6 = arith.addf %3, %5 : vector<4x256xf32>
    %c0_5 = arith.constant 0 : index
    %c0_6 = arith.constant 0 : index
    %7 = vector.load %arg16[%c0_5, %c0_6] : memref<4x256xf32, #tpu.memory_space<vmem>>, vector<4x256xf32>
    tpu.vector_store %arg16[%c0_5, %c0_6], %6 {strides = array<i32>} : memref<4x256xf32, #tpu.memory_space<vmem>>, vector<4x256xf32>,
    %c0_7 = arith.constant 0 : index
    %c0_8 = arith.constant 0 : index
    %8 = vector.load %arg3[%c0_7, %c0_8] : memref<256x512xbf16, #tpu.memory_space<vmem>>, vector<256x512xbf16>
    %c0_9 = arith.constant 0 : index
    %c0_10 = arith.constant 0 : index
    %9 = vector.load %arg4[%c0_9, %c0_10] : memref<1x512xf32, #tpu.memory_space<vmem>>, vector<1x512xf32>
    %c0_11 = arith.constant 0 : index
    %c0_12 = arith.constant 0 : index
    %10 = vector.load %arg5[%c0_11, %c0_12] : memref<1x512xf32, #tpu.memory_space<vmem>>, vector<1x512xf32>
    %c0_13 = arith.constant 0 : index
    %c0_14 = arith.constant 0 : index
    %11 = vector.load %arg6[%c0_13, %c0_14] : memref<1x512xf32, #tpu.memory_space<vmem>>, vector<1x512xf32>
    %c0_15 = arith.constant 0 : index
    %c0_16 = arith.constant 0 : index
    %12 = vector.load %arg7[%c0_15, %c0_16] : memref<512x1024xbf16, #tpu.memory_space<vmem>>, vector<512x1024xbf16>
    %c0_17 = arith.constant 0 : index
    %c0_18 = arith.constant 0 : index
    %13 = vector.load %arg8[%c0_17, %c0_18] : memref<1x1024xf32, #tpu.memory_space<vmem>>, vector<1x1024xf32>
    %14 = arith.truncf %6 : vector<4x256xf32> to vector<4x256xbf16>
    %cst_19 = arith.constant dense<0.000000e+00> : vector<4x512xf32>
    %15 = tpu.matmul %14, %8, %cst_19 {dimension_numbers = #tpu.dot_dimension_numbers<[1], [0], [0], [1], [0, 0, 1, 1], [], []>} : vector<4x256xbf16>, vector<256x512xbf16>, vector<4x512xf32> -> vector<4x512xf32>
    %16 = vector.broadcast %9 : vector<1x512xf32> to vector<4x512xf32>
    %17 = arith.addf %15, %16 : vector<4x512xf32>
    %18 = tpu.iota {dimensions = array<i32: 0>} : vector<4x512xi32>
    %c2_i32 = arith.constant 2 : i32
    %19 = vector.broadcast %c2_i32 : i32 to vector<4x512xi32>
    %20 = arith.cmpi slt, %18, %19 : vector<4x512xi32>
    %21 = arith.extui %20 : vector<4x512xi1> to vector<4x512xi32>
    %22 = arith.sitofp %21 : vector<4x512xi32> to vector<4x512xf32>
    %cst_20 = arith.constant 1.000000e+00 : f32
    %23 = vector.broadcast %cst_20 : f32 to vector<4x512xf32>
    %24 = arith.subf %23, %22 : vector<4x512xf32>
    %25 = arith.mulf %17, %22 : vector<4x512xf32>
    %cst_21 = arith.constant dense<0.000000e+00> : vector<512xf32>
    %26 = vector.multi_reduction <add>, %25, %cst_21 [0] : vector<4x512xf32> to vector<512xf32>
    %27 = vector.shape_cast %26 : vector<512xf32> to vector<1x512xf32>
    %cst_22 = arith.constant 5.000000e-01 : f32
    %28 = vector.broadcast %cst_22 : f32 to vector<1x512xf32>
    %29 = arith.mulf %27, %28 : vector<1x512xf32>
    %30 = arith.mulf %17, %24 : vector<4x512xf32>
    %cst_23 = arith.constant dense<0.000000e+00> : vector<512xf32>
    %31 = vector.multi_reduction <add>, %30, %cst_23 [0] : vector<4x512xf32> to vector<512xf32>
    %32 = vector.shape_cast %31 : vector<512xf32> to vector<1x512xf32>
    %cst_24 = arith.constant 5.000000e-01 : f32
    %33 = vector.broadcast %cst_24 : f32 to vector<1x512xf32>
    %34 = arith.mulf %32, %33 : vector<1x512xf32>
    %35 = vector.broadcast %29 : vector<1x512xf32> to vector<4x512xf32>
    %36 = arith.mulf %22, %35 : vector<4x512xf32>
    %37 = vector.broadcast %34 : vector<1x512xf32> to vector<4x512xf32>
    %38 = arith.mulf %24, %37 : vector<4x512xf32>
    %39 = arith.addf %36, %38 : vector<4x512xf32>
    %40 = vector.broadcast %29 : vector<1x512xf32> to vector<4x512xf32>
    %41 = arith.subf %17, %40 : vector<4x512xf32>
    %42 = arith.mulf %41, %41 : vector<4x512xf32>
    %43 = arith.mulf %42, %22 : vector<4x512xf32>
    %cst_25 = arith.constant dense<0.000000e+00> : vector<512xf32>
    %44 = vector.multi_reduction <add>, %43, %cst_25 [0] : vector<4x512xf32> to vector<512xf32>
    %45 = vector.shape_cast %44 : vector<512xf32> to vector<1x512xf32>
    %cst_26 = arith.constant 5.000000e-01 : f32
    %46 = vector.broadcast %cst_26 : f32 to vector<1x512xf32>
    %47 = arith.mulf %45, %46 : vector<1x512xf32>
    %48 = vector.broadcast %34 : vector<1x512xf32> to vector<4x512xf32>
    %49 = arith.subf %17, %48 : vector<4x512xf32>
    %50 = arith.mulf %49, %49 : vector<4x512xf32>
    %51 = arith.mulf %50, %24 : vector<4x512xf32>
    %cst_27 = arith.constant dense<0.000000e+00> : vector<512xf32>
    %52 = vector.multi_reduction <add>, %51, %cst_27 [0] : vector<4x512xf32> to vector<512xf32>
    %53 = vector.shape_cast %52 : vector<512xf32> to vector<1x512xf32>
    %cst_28 = arith.constant 5.000000e-01 : f32
    %54 = vector.broadcast %cst_28 : f32 to vector<1x512xf32>
    %55 = arith.mulf %53, %54 : vector<1x512xf32>
    %56 = vector.broadcast %47 : vector<1x512xf32> to vector<4x512xf32>
    %57 = arith.mulf %22, %56 : vector<4x512xf32>
    %58 = vector.broadcast %55 : vector<1x512xf32> to vector<4x512xf32>
    %59 = arith.mulf %24, %58 : vector<4x512xf32>
    %60 = arith.addf %57, %59 : vector<4x512xf32>
    %61 = arith.subf %17, %39 : vector<4x512xf32>
    %cst_29 = arith.constant 9.99999974E-6 : f32
    %62 = vector.broadcast %cst_29 : f32 to vector<4x512xf32>
    %63 = arith.addf %60, %62 : vector<4x512xf32>
    %64 = math.rsqrt %63 : vector<4x512xf32>
    %65 = arith.mulf %61, %64 : vector<4x512xf32>
    %66 = vector.broadcast %10 : vector<1x512xf32> to vector<4x512xf32>
    %67 = arith.mulf %65, %66 : vector<4x512xf32>
    %68 = vector.broadcast %11 : vector<1x512xf32> to vector<4x512xf32>
    %69 = arith.addf %67, %68 : vector<4x512xf32>
    %cst_30 = arith.constant 0.000000e+00 : f32
    %70 = vector.broadcast %cst_30 : f32 to vector<4x512xf32>
    %71 = arith.maximumf %69, %70 : vector<4x512xf32>
    %72 = arith.truncf %71 : vector<4x512xf32> to vector<4x512xbf16>
    %cst_31 = arith.constant dense<0.000000e+00> : vector<4x1024xf32>
    %73 = tpu.matmul %72, %12, %cst_31 {dimension_numbers = #tpu.dot_dimension_numbers<[1], [0], [0], [1], [0, 0, 1, 1], [], []>} : vector<4x512xbf16>, vector<512x1024xbf16>, vector<4x1024xf32> -> vector<4x1024xf32>
    %74 = vector.broadcast %13 : vector<1x1024xf32> to vector<4x1024xf32>
    %75 = arith.addf %73, %74 : vector<4x1024xf32>
    %c0_32 = arith.constant 0 : index
    %c0_33 = arith.constant 0 : index
    %76 = vector.load %arg9[%c0_32, %c0_33] : memref<1024x512xbf16, #tpu.memory_space<vmem>>, vector<1024x512xbf16>
    %c0_34 = arith.constant 0 : index
    %c0_35 = arith.constant 0 : index
    %77 = vector.load %arg10[%c0_34, %c0_35] : memref<1x512xf32, #tpu.memory_space<vmem>>, vector<1x512xf32>
    %c0_36 = arith.constant 0 : index
    %c0_37 = arith.constant 0 : index
    %78 = vector.load %arg11[%c0_36, %c0_37] : memref<1x512xf32, #tpu.memory_space<vmem>>, vector<1x512xf32>
    %c0_38 = arith.constant 0 : index
    %c0_39 = arith.constant 0 : index
    %79 = vector.load %arg12[%c0_38, %c0_39] : memref<1x512xf32, #tpu.memory_space<vmem>>, vector<1x512xf32>
    %c0_40 = arith.constant 0 : index
    %c0_41 = arith.constant 0 : index
    %80 = vector.load %arg13[%c0_40, %c0_41] : memref<512x1024xbf16, #tpu.memory_space<vmem>>, vector<512x1024xbf16>
    %c0_42 = arith.constant 0 : index
    %c0_43 = arith.constant 0 : index
    %81 = vector.load %arg14[%c0_42, %c0_43] : memref<1x1024xf32, #tpu.memory_space<vmem>>, vector<1x1024xf32>
    %82 = arith.truncf %75 : vector<4x1024xf32> to vector<4x1024xbf16>
    %cst_44 = arith.constant dense<0.000000e+00> : vector<4x512xf32>
    %83 = tpu.matmul %82, %76, %cst_44 {dimension_numbers = #tpu.dot_dimension_numbers<[1], [0], [0], [1], [0, 0, 1, 1], [], []>} : vector<4x1024xbf16>, vector<1024x512xbf16>, vector<4x512xf32> -> vector<4x512xf32>
    %84 = vector.broadcast %77 : vector<1x512xf32> to vector<4x512xf32>
    %85 = arith.addf %83, %84 : vector<4x512xf32>
    %86 = tpu.iota {dimensions = array<i32: 0>} : vector<4x512xi32>
    %c2_i32_45 = arith.constant 2 : i32
    %87 = vector.broadcast %c2_i32_45 : i32 to vector<4x512xi32>
    %88 = arith.cmpi slt, %86, %87 : vector<4x512xi32>
    %89 = arith.extui %88 : vector<4x512xi1> to vector<4x512xi32>
    %90 = arith.sitofp %89 : vector<4x512xi32> to vector<4x512xf32>
    %cst_46 = arith.constant 1.000000e+00 : f32
    %91 = vector.broadcast %cst_46 : f32 to vector<4x512xf32>
    %92 = arith.subf %91, %90 : vector<4x512xf32>
    %93 = arith.mulf %85, %90 : vector<4x512xf32>
    %cst_47 = arith.constant dense<0.000000e+00> : vector<512xf32>
    %94 = vector.multi_reduction <add>, %93, %cst_47 [0] : vector<4x512xf32> to vector<512xf32>
    %95 = vector.shape_cast %94 : vector<512xf32> to vector<1x512xf32>
    %cst_48 = arith.constant 5.000000e-01 : f32
    %96 = vector.broadcast %cst_48 : f32 to vector<1x512xf32>
    %97 = arith.mulf %95, %96 : vector<1x512xf32>
    %98 = arith.mulf %85, %92 : vector<4x512xf32>
    %cst_49 = arith.constant dense<0.000000e+00> : vector<512xf32>
    %99 = vector.multi_reduction <add>, %98, %cst_49 [0] : vector<4x512xf32> to vector<512xf32>
    %100 = vector.shape_cast %99 : vector<512xf32> to vector<1x512xf32>
    %cst_50 = arith.constant 5.000000e-01 : f32
    %101 = vector.broadcast %cst_50 : f32 to vector<1x512xf32>
    %102 = arith.mulf %100, %101 : vector<1x512xf32>
    %103 = vector.broadcast %97 : vector<1x512xf32> to vector<4x512xf32>
    %104 = arith.mulf %90, %103 : vector<4x512xf32>
    %105 = vector.broadcast %102 : vector<1x512xf32> to vector<4x512xf32>
    %106 = arith.mulf %92, %105 : vector<4x512xf32>
    %107 = arith.addf %104, %106 : vector<4x512xf32>
    %108 = vector.broadcast %97 : vector<1x512xf32> to vector<4x512xf32>
    %109 = arith.subf %85, %108 : vector<4x512xf32>
    %110 = arith.mulf %109, %109 : vector<4x512xf32>
    %111 = arith.mulf %110, %90 : vector<4x512xf32>
    %cst_51 = arith.constant dense<0.000000e+00> : vector<512xf32>
    %112 = vector.multi_reduction <add>, %111, %cst_51 [0] : vector<4x512xf32> to vector<512xf32>
    %113 = vector.shape_cast %112 : vector<512xf32> to vector<1x512xf32>
    %cst_52 = arith.constant 5.000000e-01 : f32
    %114 = vector.broadcast %cst_52 : f32 to vector<1x512xf32>
    %115 = arith.mulf %113, %114 : vector<1x512xf32>
    %116 = vector.broadcast %102 : vector<1x512xf32> to vector<4x512xf32>
    %117 = arith.subf %85, %116 : vector<4x512xf32>
    %118 = arith.mulf %117, %117 : vector<4x512xf32>
    %119 = arith.mulf %118, %92 : vector<4x512xf32>
    %cst_53 = arith.constant dense<0.000000e+00> : vector<512xf32>
    %120 = vector.multi_reduction <add>, %119, %cst_53 [0] : vector<4x512xf32> to vector<512xf32>
    %121 = vector.shape_cast %120 : vector<512xf32> to vector<1x512xf32>
    %cst_54 = arith.constant 5.000000e-01 : f32
    %122 = vector.broadcast %cst_54 : f32 to vector<1x512xf32>
    %123 = arith.mulf %121, %122 : vector<1x512xf32>
    %124 = vector.broadcast %115 : vector<1x512xf32> to vector<4x512xf32>
    %125 = arith.mulf %90, %124 : vector<4x512xf32>
    %126 = vector.broadcast %123 : vector<1x512xf32> to vector<4x512xf32>
    %127 = arith.mulf %92, %126 : vector<4x512xf32>
    %128 = arith.addf %125, %127 : vector<4x512xf32>
    %129 = arith.subf %85, %107 : vector<4x512xf32>
    %cst_55 = arith.constant 9.99999974E-6 : f32
    %130 = vector.broadcast %cst_55 : f32 to vector<4x512xf32>
    %131 = arith.addf %128, %130 : vector<4x512xf32>
    %132 = math.rsqrt %131 : vector<4x512xf32>
    %133 = arith.mulf %129, %132 : vector<4x512xf32>
    %134 = vector.broadcast %78 : vector<1x512xf32> to vector<4x512xf32>
    %135 = arith.mulf %133, %134 : vector<4x512xf32>
    %136 = vector.broadcast %79 : vector<1x512xf32> to vector<4x512xf32>
    %137 = arith.addf %135, %136 : vector<4x512xf32>
    %cst_56 = arith.constant 0.000000e+00 : f32
    %138 = vector.broadcast %cst_56 : f32 to vector<4x512xf32>
    %139 = arith.maximumf %137, %138 : vector<4x512xf32>
    %140 = arith.truncf %139 : vector<4x512xf32> to vector<4x512xbf16>
    %cst_57 = arith.constant dense<0.000000e+00> : vector<4x1024xf32>
    %141 = tpu.matmul %140, %80, %cst_57 {dimension_numbers = #tpu.dot_dimension_numbers<[1], [0], [0], [1], [0, 0, 1, 1], [], []>} : vector<4x512xbf16>, vector<512x1024xbf16>, vector<4x1024xf32> -> vector<4x1024xf32>
    %142 = vector.broadcast %81 : vector<1x1024xf32> to vector<4x1024xf32>
    %143 = arith.addf %141, %142 : vector<4x1024xf32>
    %144 = arith.mulf %143, %143 : vector<4x1024xf32>
    %cst_58 = arith.constant dense<0.000000e+00> : vector<4xf32>
    %145 = vector.multi_reduction <add>, %144, %cst_58 [1] : vector<4x1024xf32> to vector<4xf32>
    %146 = vector.shape_cast %145 : vector<4xf32> to vector<4x1xf32>
    %147 = math.sqrt %146 : vector<4x1xf32>
    %cst_59 = arith.constant 9.99999996E-13 : f32
    %148 = vector.broadcast %cst_59 : f32 to vector<4x1xf32>
    %149 = arith.maximumf %147, %148 : vector<4x1xf32>
    %150 = vector.broadcast %149 : vector<4x1xf32> to vector<4x1024xf32>
    %151 = arith.divf %143, %150 : vector<4x1024xf32>
    %c0_60 = arith.constant 0 : index
    %c0_61 = arith.constant 0 : index
    %152 = vector.load %arg15[%c0_60, %c0_61] : memref<4x1024xf32, #tpu.memory_space<vmem>>, vector<4x1024xf32>
    %153 = arith.mulf %152, %152 : vector<4x1024xf32>
    %cst_62 = arith.constant dense<0.000000e+00> : vector<4xf32>
    %154 = vector.multi_reduction <add>, %153, %cst_62 [1] : vector<4x1024xf32> to vector<4xf32>
    %155 = vector.shape_cast %154 : vector<4xf32> to vector<4x1xf32>
    %156 = math.sqrt %155 : vector<4x1xf32>
    %cst_63 = arith.constant 9.99999996E-13 : f32
    %157 = vector.broadcast %cst_63 : f32 to vector<4x1xf32>
    %158 = arith.maximumf %156, %157 : vector<4x1xf32>
    %159 = vector.broadcast %158 : vector<4x1xf32> to vector<4x1024xf32>
    %160 = arith.divf %152, %159 : vector<4x1024xf32>
    %161 = arith.mulf %151, %160 : vector<4x1024xf32>
    %cst_64 = arith.constant dense<0.000000e+00> : vector<4xf32>
    %162 = vector.multi_reduction <add>, %161, %cst_64 [1] : vector<4x1024xf32> to vector<4xf32>
    %163 = vector.shape_cast %162 : vector<4xf32> to vector<4x1xf32>
    %cst_65 = arith.constant 2.000000e+00 : f32
    %164 = vector.broadcast %cst_65 : f32 to vector<4x1xf32>
    %165 = arith.mulf %164, %163 : vector<4x1xf32>
    %cst_66 = arith.constant 2.000000e+00 : f32
    %166 = vector.broadcast %cst_66 : f32 to vector<4x1xf32>
    %167 = arith.subf %166, %165 : vector<4x1xf32>
    %168 = vector.shape_cast %167 : vector<4x1xf32> to vector<1x4x1xf32>
    %cst_67 = arith.constant dense<0.000000e+00> : vector<1xf32>
    %169 = vector.multi_reduction <add>, %168, %cst_67 [1, 2] : vector<1x4x1xf32> to vector<1xf32>
    %170 = vector.shape_cast %169 : vector<1xf32> to vector<1x1x1xf32>
    %171 = vector.extract %170[0, 0, 0] : f32 from vector<1x1x1xf32>
    %cst_68 = arith.constant 5.000000e-01 : f32
    %172 = arith.mulf %171, %cst_68 : f32
    %c0_69 = arith.constant 0 : index
    %c0_70 = arith.constant 0 : index
    %173 = memref.load %arg17[%c0_69, %c0_70] : memref<1x1xf32, #tpu.memory_space<smem>>
    memref.store %172, %arg17[%c0_69, %c0_70] : memref<1x1xf32, #tpu.memory_space<smem>>
    return
  }
}

</mosaic_0001>

<llo_original>
// kernel: byol_forward.2
$region0: #{byol_forward.2}
  #allocation0 [shape = 'u32[]', space=smem, size = 0x4, offset = 0x4, fixed_abs, tag = 'smem constant byte address 0x4 - core index']
  #allocation1 [shape = 'u32[144,128]{1,0:T(1,128)}', space=vmem, size = 0x12000, scoped, tag = 'internal scratch']
  %s0 = inlined_call_operand.vmem [shape: f32[4,768], index: 0, kind: input, shape index: {}]
  %s1 = inlined_call_operand.vmem [shape: bf16[768,256], index: 1, kind: input, shape index: {}]
  %s2 = inlined_call_operand.vmem [shape: f32[1,256], index: 2, kind: input, shape index: {}]
  %s3 = inlined_call_operand.vmem [shape: bf16[256,512], index: 3, kind: input, shape index: {}]
  %s4 = inlined_call_operand.vmem [shape: f32[1,512], index: 4, kind: input, shape index: {}]
  %s5 = inlined_call_operand.vmem [shape: f32[1,512], index: 5, kind: input, shape index: {}]
  %s6 = inlined_call_operand.vmem [shape: f32[1,512], index: 6, kind: input, shape index: {}]
  %s7 = inlined_call_operand.vmem [shape: bf16[512,1024], index: 7, kind: input, shape index: {}]
  %s8 = inlined_call_operand.vmem [shape: f32[1,1024], index: 8, kind: input, shape index: {}]
  %s9 = inlined_call_operand.vmem [shape: f32[4,1024], index: 9, kind: output, shape index: {0}]
  %s10 = inlined_call_operand.hbm [shape: f32[4,256], index: 10, kind: output, shape index: {1}]
  %11 = xla_tuple %s9, %s10
  %s12 = sld [smem:[#allocation0]]
  $region54: #{byol_forward.2} parent=0
    _
  %s14 = ssub.s32 1, %s12
  %s15 = scalar_select 0, %s14, %s12
  $region1: #{byol_forward.2} parent=0
    #allocation2 [shape = 'u8[4096]{0}', space=vmem, size = 0x1000, scoped, tag = 'output window, operand 1, single buffered']
    #allocation3 [shape = 's32[1]{0}', space=sflag, size = 0x4, scoped, tag = 'scoped memory for byol_forward.2']
    %16 = vsyncpa [#allocation3], 0
    // Predicated region
    $region2: #{byol_forward.2} parent=1 // pred_check
      _
    $region3: #{byol_forward.2} parent=1 // pred_check_branch
      %18 = sbr.rel (0) target = $region5
    $region4: #{byol_forward.2} parent=1 // pred_region
      _
    $region5: #{byol_forward.2} parent=1 // pred_fallthru
      _
    // Predicated region
    $region6: #{byol_forward.2} parent=1 // pred_check
      _
    $region7: #{byol_forward.2} parent=1 // pred_check_branch
      %20 = sbr.rel (0) target = $region9
    $region8: #{byol_forward.2} parent=1 // pred_region
      _
    $region9: #{byol_forward.2} parent=1 // pred_fallthru
      _
    // Predicated region
    $region10: #{byol_forward.2} parent=1 // pred_check
      _
    $region11: #{byol_forward.2} parent=1 // pred_check_branch
      %22 = sbr.rel (0) target = $region13
    $region12: #{byol_forward.2} parent=1 // pred_region
      _
    $region13: #{byol_forward.2} parent=1 // pred_fallthru
      _
    // Predicated region
    $region14: #{byol_forward.2} parent=1 // pred_check
      _
    $region15: #{byol_forward.2} parent=1 // pred_check_branch
      %24 = sbr.rel (0) target = $region17
    $region16: #{byol_forward.2} parent=1 // pred_region
      _
    $region17: #{byol_forward.2} parent=1 // pred_fallthru
      _
    // Predicated region
    $region18: #{byol_forward.2} parent=1 // pred_check
      _
    $region19: #{byol_forward.2} parent=1 // pred_check_branch
      %26 = sbr.rel (0) target = $region21
    $region20: #{byol_forward.2} parent=1 // pred_region
      _
    $region21: #{byol_forward.2} parent=1 // pred_fallthru
      _
    // Predicated region
    $region22: #{byol_forward.2} parent=1 // pred_check
      _
    $region23: #{byol_forward.2} parent=1 // pred_check_branch
      %28 = sbr.rel (0) target = $region25
    $region24: #{byol_forward.2} parent=1 // pred_region
      _
    $region25: #{byol_forward.2} parent=1 // pred_fallthru
      _
    // Predicated region
    $region26: #{byol_forward.2} parent=1 // pred_check
      _
    $region27: #{byol_forward.2} parent=1 // pred_check_branch
      %30 = sbr.rel (0) target = $region29
    $region28: #{byol_forward.2} parent=1 // pred_region
      _
    $region29: #{byol_forward.2} parent=1 // pred_fallthru
      _
    // Predicated region
    $region30: #{byol_forward.2} parent=1 // pred_check
      _
    $region31: #{byol_forward.2} parent=1 // pred_check_branch
      %32 = sbr.rel (0) target = $region33
    $region32: #{byol_forward.2} parent=1 // pred_region
      _
    $region33: #{byol_forward.2} parent=1 // pred_fallthru
      _
    // Predicated region
    $region34: #{byol_forward.2} parent=1 // pred_check
      _
    $region35: #{byol_forward.2} parent=1 // pred_check_branch
      %34 = sbr.rel (0) target = $region37
    $region36: #{byol_forward.2} parent=1 // pred_region
      _
    $region37: #{byol_forward.2} parent=1 // pred_fallthru
      _
    %v35 = vld [vmem:[%s0] sm:$0xff]
    %v36 = vld [vmem:[%s0 + $0x8] sm:$0xff]
    %v37 = vld [vmem:[%s0 + $0x10] sm:$0xff]
    %v38 = vld [vmem:[%s1] sm:$0xff]
    %v39 = vld [vmem:[%s1 + $0x8] sm:$0xff]
    %v40 = vld [vmem:[%s1 + $0x10] sm:$0xff]
    %v41 = vld [vmem:[%s1 + $0x18] sm:$0xff]
    %v42 = vld [vmem:[%s1 + $0x20] sm:$0xff]
    %v43 = vld [vmem:[%s1 + $0x28] sm:$0xff]
    %v44 = vld [vmem:[%s1 + $0x30] sm:$0xff]
    %v45 = vld [vmem:[%s1 + $0x38] sm:$0xff]
    %v46 = vld [vmem:[%s1 + $0x40] sm:$0xff]
    %v47 = vld [vmem:[%s1 + $0x48] sm:$0xff]
    %v48 = vld [vmem:[%s1 + $0x50] sm:$0xff]
    %v49 = vld [vmem:[%s1 + $0x58] sm:$0xff]
    %v50 = vld [vmem:[%s1 + $0x60] sm:$0xff]
    %v51 = vld [vmem:[%s1 + $0x68] sm:$0xff]
    %v52 = vld [vmem:[%s1 + $0x70] sm:$0xff]
    %v53 = vld [vmem:[%s1 + $0x78] sm:$0xff]
    %v54 = vld [vmem:[%s1 + $0x80] sm:$0xff]
    %v55 = vld [vmem:[%s1 + $0x88] sm:$0xff]
    %v56 = vld [vmem:[%s1 + $0x90] sm:$0xff]
    %v57 = vld [vmem:[%s1 + $0x98] sm:$0xff]
    %v58 = vld [vmem:[%s1 + $0xa0] sm:$0xff]
    %v59 = vld [vmem:[%s1 + $0xa8] sm:$0xff]
    %v60 = vld [vmem:[%s1 + $0xb0] sm:$0xff]
    %v61 = vld [vmem:[%s1 + $0xb8] sm:$0xff]
    %v62 = vld [vmem:[%s1 + $0xc0] sm:$0xff]
    %v63 = vld [vmem:[%s1 + $0xc8] sm:$0xff]
    %v64 = vld [vmem:[%s1 + $0xd0] sm:$0xff]
    %v65 = vld [vmem:[%s1 + $0xd8] sm:$0xff]
    %v66 = vld [vmem:[%s1 + $0xe0] sm:$0xff]
    %v67 = vld [vmem:[%s1 + $0xe8] sm:$0xff]
    %v68 = vld [vmem:[%s1 + $0xf0] sm:$0xff]
    %v69 = vld [vmem:[%s1 + $0xf8] sm:$0xff]
    %v70 = vld [vmem:[%s1 + $0x100] sm:$0xff]
    %v71 = vld [vmem:[%s1 + $0x108] sm:$0xff]
    %v72 = vld [vmem:[%s1 + $0x110] sm:$0xff]
    %v73 = vld [vmem:[%s1 + $0x118] sm:$0xff]
    %v74 = vld [vmem:[%s1 + $0x120] sm:$0xff]
    %v75 = vld [vmem:[%s1 + $0x128] sm:$0xff]
    %v76 = vld [vmem:[%s1 + $0x130] sm:$0xff]
    %v77 = vld [vmem:[%s1 + $0x138] sm:$0xff]
    %v78 = vld [vmem:[%s1 + $0x140] sm:$0xff]
    %v79 = vld [vmem:[%s1 + $0x148] sm:$0xff]
    %v80 = vld [vmem:[%s1 + $0x150] sm:$0xff]
    %v81 = vld [vmem:[%s1 + $0x158] sm:$0xff]
    %v82 = vld [vmem:[%s1 + $0x160] sm:$0xff]
    %v83 = vld [vmem:[%s1 + $0x168] sm:$0xff]
    %v84 = vld [vmem:[%s1 + $0x170] sm:$0xff]
    %v85 = vld [vmem:[%s1 + $0x178] sm:$0xff]
    %v86 = vld [vmem:[%s1 + $0x180] sm:$0xff]
    %v87 = vld [vmem:[%s1 + $0x188] sm:$0xff]
    %v88 = vld [vmem:[%s1 + $0x190] sm:$0xff]
    %v89 = vld [vmem:[%s1 + $0x198] sm:$0xff]
    %v90 = vld [vmem:[%s1 + $0x1a0] sm:$0xff]
    %v91 = vld [vmem:[%s1 + $0x1a8] sm:$0xff]
    %v92 = vld [vmem:[%s1 + $0x1b0] sm:$0xff]
    %v93 = vld [vmem:[%s1 + $0x1b8] sm:$0xff]
    %v94 = vld [vmem:[%s1 + $0x1c0] sm:$0xff]
    %v95 = vld [vmem:[%s1 + $0x1c8] sm:$0xff]
    %v96 = vld [vmem:[%s1 + $0x1d0] sm:$0xff]
    %v97 = vld [vmem:[%s1 + $0x1d8] sm:$0xff]
    %v98 = vld [vmem:[%s1 + $0x1e0] sm:$0xff]
    %v99 = vld [vmem:[%s1 + $0x1e8] sm:$0xff]
    %v100 = vld [vmem:[%s1 + $0x1f0] sm:$0xff]
    %v101 = vld [vmem:[%s1 + $0x1f8] sm:$0xff]
    %v102 = vld [vmem:[%s1 + $0x200] sm:$0xff]
    %v103 = vld [vmem:[%s1 + $0x208] sm:$0xff]
    %v104 = vld [vmem:[%s1 + $0x210] sm:$0xff]
    %v105 = vld [vmem:[%s1 + $0x218] sm:$0xff]
    %v106 = vld [vmem:[%s1 + $0x220] sm:$0xff]
    %v107 = vld [vmem:[%s1 + $0x228] sm:$0xff]
    %v108 = vld [vmem:[%s1 + $0x230] sm:$0xff]
    %v109 = vld [vmem:[%s1 + $0x238] sm:$0xff]
    %v110 = vld [vmem:[%s1 + $0x240] sm:$0xff]
    %v111 = vld [vmem:[%s1 + $0x248] sm:$0xff]
    %v112 = vld [vmem:[%s1 + $0x250] sm:$0xff]
    %v113 = vld [vmem:[%s1 + $0x258] sm:$0xff]
    %v114 = vld [vmem:[%s1 + $0x260] sm:$0xff]
    %v115 = vld [vmem:[%s1 + $0x268] sm:$0xff]
    %v116 = vld [vmem:[%s1 + $0x270] sm:$0xff]
    %v117 = vld [vmem:[%s1 + $0x278] sm:$0xff]
    %v118 = vld [vmem:[%s1 + $0x280] sm:$0xff]
    %v119 = vld [vmem:[%s1 + $0x288] sm:$0xff]
    %v120 = vld [vmem:[%s1 + $0x290] sm:$0xff]
    %v121 = vld [vmem:[%s1 + $0x298] sm:$0xff]
    %v122 = vld [vmem:[%s1 + $0x2a0] sm:$0xff]
    %v123 = vld [vmem:[%s1 + $0x2a8] sm:$0xff]
    %v124 = vld [vmem:[%s1 + $0x2b0] sm:$0xff]
    %v125 = vld [vmem:[%s1 + $0x2b8] sm:$0xff]
    %v126 = vld [vmem:[%s1 + $0x2c0] sm:$0xff]
    %v127 = vld [vmem:[%s1 + $0x2c8] sm:$0xff]
    %v128 = vld [vmem:[%s1 + $0x2d0] sm:$0xff]
    %v129 = vld [vmem:[%s1 + $0x2d8] sm:$0xff]
    %v130 = vld [vmem:[%s1 + $0x2e0] sm:$0xff]
    %v131 = vld [vmem:[%s1 + $0x2e8] sm:$0xff]
    %v132 = vld [vmem:[%s1 + $0x2f0] sm:$0xff]
    %v133 = vld [vmem:[%s1 + $0x2f8] sm:$0xff]
    %v137 = vcombine.high %v35, %v35
    %v138 = vcombine.high %v36, %v36
    %v139 = vcombine.high %v37, %v37
    %v143 = vpack.c.bf16 %v35, %v35
    %v144 = vpack.c.bf16 %v137, %v137
    %v145 = vpack.c.bf16 %v36, %v36
    %v146 = vpack.c.bf16 %v138, %v138
    %v147 = vpack.c.bf16 %v37, %v37
    %v148 = vpack.c.bf16 %v139, %v139
    %v149 = vld [vmem:[%s2] sm:$0x3]
    %v151 = vlaneseq
    %v152 = vshrl.u32 %v151, 7
    %v153 = vsub.s32 0, %v152
    %v154 = vrot.slane %v149, %v153
    %v155 = vlaneseq
    %v156 = vshrl.u32 %v155, 7
    %v157 = vsub.s32 1, %v156
    %v158 = vrot.slane %v149, %v157
    %v257 = vunpack.c.l.b16 %v38
    %v258 = vunpack.c.h.b16 %v38
    %v259 = vunpack.c.l.b16 %v39
    %v260 = vunpack.c.h.b16 %v39
    %v261 = vunpack.c.l.b16 %v40
    %v262 = vunpack.c.h.b16 %v40
    %v263 = vunpack.c.l.b16 %v41
    %v264 = vunpack.c.h.b16 %v41
    %v265 = vunpack.c.l.b16 %v42
    %v266 = vunpack.c.h.b16 %v42
    %v267 = vunpack.c.l.b16 %v43
    %v268 = vunpack.c.h.b16 %v43
    %v269 = vunpack.c.l.b16 %v44
    %v270 = vunpack.c.h.b16 %v44
    %v271 = vunpack.c.l.b16 %v45
    %v272 = vunpack.c.h.b16 %v45
    %v273 = vunpack.c.l.b16 %v46
    %v274 = vunpack.c.h.b16 %v46
    %v275 = vunpack.c.l.b16 %v47
    %v276 = vunpack.c.h.b16 %v47
    %v277 = vunpack.c.l.b16 %v48
    %v278 = vunpack.c.h.b16 %v48
    %v279 = vunpack.c.l.b16 %v49
    %v280 = vunpack.c.h.b16 %v49
    %v281 = vunpack.c.l.b16 %v50
    %v282 = vunpack.c.h.b16 %v50
    %v283 = vunpack.c.l.b16 %v51
    %v284 = vunpack.c.h.b16 %v51
    %v285 = vunpack.c.l.b16 %v52
    %v286 = vunpack.c.h.b16 %v52
    %v287 = vunpack.c.l.b16 %v53
    %v288 = vunpack.c.h.b16 %v53
    %v289 = vunpack.c.l.b16 %v54
    %v290 = vunpack.c.h.b16 %v54
    %v291 = vunpack.c.l.b16 %v55
    %v292 = vunpack.c.h.b16 %v55
    %v293 = vunpack.c.l.b16 %v56
    %v294 = vunpack.c.h.b16 %v56
    %v295 = vunpack.c.l.b16 %v57
    %v296 = vunpack.c.h.b16 %v57
    %v297 = vunpack.c.l.b16 %v58
    %v298 = vunpack.c.h.b16 %v58
    %v299 = vunpack.c.l.b16 %v59
    %v300 = vunpack.c.h.b16 %v59
    %v301 = vunpack.c.l.b16 %v60
    %v302 = vunpack.c.h.b16 %v60
    %v303 = vunpack.c.l.b16 %v61
    %v304 = vunpack.c.h.b16 %v61
    %v305 = vunpack.c.l.b16 %v62
    %v306 = vunpack.c.h.b16 %v62
    %v307 = vunpack.c.l.b16 %v63
    %v308 = vunpack.c.h.b16 %v63
    %v309 = vunpack.c.l.b16 %v64
    %v310 = vunpack.c.h.b16 %v64
    %v311 = vunpack.c.l.b16 %v65
    %v312 = vunpack.c.h.b16 %v65
    %v313 = vunpack.c.l.b16 %v66
    %v314 = vunpack.c.h.b16 %v66
    %v315 = vunpack.c.l.b16 %v67
    %v316 = vunpack.c.h.b16 %v67
    %v317 = vunpack.c.l.b16 %v68
    %v318 = vunpack.c.h.b16 %v68
    %v319 = vunpack.c.l.b16 %v69
    %v320 = vunpack.c.h.b16 %v69
    %v321 = vunpack.c.l.b16 %v70
    %v322 = vunpack.c.h.b16 %v70
    %v323 = vunpack.c.l.b16 %v71
    %v324 = vunpack.c.h.b16 %v71
    %v325 = vunpack.c.l.b16 %v72
    %v326 = vunpack.c.h.b16 %v72
    %v327 = vunpack.c.l.b16 %v73
    %v328 = vunpack.c.h.b16 %v73
    %v329 = vunpack.c.l.b16 %v74
    %v330 = vunpack.c.h.b16 %v74
    %v331 = vunpack.c.l.b16 %v75
    %v332 = vunpack.c.h.b16 %v75
    %v333 = vunpack.c.l.b16 %v76
    %v334 = vunpack.c.h.b16 %v76
    %v335 = vunpack.c.l.b16 %v77
    %v336 = vunpack.c.h.b16 %v77
    %v337 = vunpack.c.l.b16 %v78
    %v338 = vunpack.c.h.b16 %v78
    %v339 = vunpack.c.l.b16 %v79
    %v340 = vunpack.c.h.b16 %v79
    %v341 = vunpack.c.l.b16 %v80
    %v342 = vunpack.c.h.b16 %v80
    %v343 = vunpack.c.l.b16 %v81
    %v344 = vunpack.c.h.b16 %v81
    %v345 = vunpack.c.l.b16 %v82
    %v346 = vunpack.c.h.b16 %v82
    %v347 = vunpack.c.l.b16 %v83
    %v348 = vunpack.c.h.b16 %v83
    %v349 = vunpack.c.l.b16 %v84
    %v350 = vunpack.c.h.b16 %v84
    %v351 = vunpack.c.l.b16 %v85
    %v352 = vunpack.c.h.b16 %v85
    %v353 = vunpack.c.l.b16 %v86
    %v354 = vunpack.c.h.b16 %v86
    %v355 = vunpack.c.l.b16 %v87
    %v356 = vunpack.c.h.b16 %v87
    %v357 = vunpack.c.l.b16 %v88
    %v358 = vunpack.c.h.b16 %v88
    %v359 = vunpack.c.l.b16 %v89
    %v360 = vunpack.c.h.b16 %v89
    %v361 = vunpack.c.l.b16 %v90
    %v362 = vunpack.c.h.b16 %v90
    %v363 = vunpack.c.l.b16 %v91
    %v364 = vunpack.c.h.b16 %v91
    %v365 = vunpack.c.l.b16 %v92
    %v366 = vunpack.c.h.b16 %v92
    %v367 = vunpack.c.l.b16 %v93
    %v368 = vunpack.c.h.b16 %v93
    %v369 = vunpack.c.l.b16 %v94
    %v370 = vunpack.c.h.b16 %v94
    %v371 = vunpack.c.l.b16 %v95
    %v372 = vunpack.c.h.b16 %v95
    %v373 = vunpack.c.l.b16 %v96
    %v374 = vunpack.c.h.b16 %v96
    %v375 = vunpack.c.l.b16 %v97
    %v376 = vunpack.c.h.b16 %v97
    %v377 = vunpack.c.l.b16 %v98
    %v378 = vunpack.c.h.b16 %v98
    %v379 = vunpack.c.l.b16 %v99
    %v380 = vunpack.c.h.b16 %v99
    %v381 = vunpack.c.l.b16 %v100
    %v382 = vunpack.c.h.b16 %v100
    %v383 = vunpack.c.l.b16 %v101
    %v384 = vunpack.c.h.b16 %v101
    %v385 = vunpack.c.l.b16 %v102
    %v386 = vunpack.c.h.b16 %v102
    %v387 = vunpack.c.l.b16 %v103
    %v388 = vunpack.c.h.b16 %v103
    %v389 = vunpack.c.l.b16 %v104
    %v390 = vunpack.c.h.b16 %v104
    %v391 = vunpack.c.l.b16 %v105
    %v392 = vunpack.c.h.b16 %v105
    %v393 = vunpack.c.l.b16 %v106
    %v394 = vunpack.c.h.b16 %v106
    %v395 = vunpack.c.l.b16 %v107
    %v396 = vunpack.c.h.b16 %v107
    %v397 = vunpack.c.l.b16 %v108
    %v398 = vunpack.c.h.b16 %v108
    %v399 = vunpack.c.l.b16 %v109
    %v400 = vunpack.c.h.b16 %v109
    %v401 = vunpack.c.l.b16 %v110
    %v402 = vunpack.c.h.b16 %v110
    %v403 = vunpack.c.l.b16 %v111
    %v404 = vunpack.c.h.b16 %v111
    %v405 = vunpack.c.l.b16 %v112
    %v406 = vunpack.c.h.b16 %v112
    %v407 = vunpack.c.l.b16 %v113
    %v408 = vunpack.c.h.b16 %v113
    %v409 = vunpack.c.l.b16 %v114
    %v410 = vunpack.c.h.b16 %v114
    %v411 = vunpack.c.l.b16 %v115
    %v412 = vunpack.c.h.b16 %v115
    %v413 = vunpack.c.l.b16 %v116
    %v414 = vunpack.c.h.b16 %v116
    %v415 = vunpack.c.l.b16 %v117
    %v416 = vunpack.c.h.b16 %v117
    %v417 = vunpack.c.l.b16 %v118
    %v418 = vunpack.c.h.b16 %v118
    %v419 = vunpack.c.l.b16 %v119
    %v420 = vunpack.c.h.b16 %v119
    %v421 = vunpack.c.l.b16 %v120
    %v422 = vunpack.c.h.b16 %v120
    %v423 = vunpack.c.l.b16 %v121
    %v424 = vunpack.c.h.b16 %v121
    %v425 = vunpack.c.l.b16 %v122
    %v426 = vunpack.c.h.b16 %v122
    %v427 = vunpack.c.l.b16 %v123
    %v428 = vunpack.c.h.b16 %v123
    %v429 = vunpack.c.l.b16 %v124
    %v430 = vunpack.c.h.b16 %v124
    %v431 = vunpack.c.l.b16 %v125
    %v432 = vunpack.c.h.b16 %v125
    %v433 = vunpack.c.l.b16 %v126
    %v434 = vunpack.c.h.b16 %v126
    %v435 = vunpack.c.l.b16 %v127
    %v436 = vunpack.c.h.b16 %v127
    %v437 = vunpack.c.l.b16 %v128
    %v438 = vunpack.c.h.b16 %v128
    %v439 = vunpack.c.l.b16 %v129
    %v440 = vunpack.c.h.b16 %v129
    %v441 = vunpack.c.l.b16 %v130
    %v442 = vunpack.c.h.b16 %v130
    %v443 = vunpack.c.l.b16 %v131
    %v444 = vunpack.c.h.b16 %v131
    %v445 = vunpack.c.l.b16 %v132
    %v446 = vunpack.c.h.b16 %v132
    %v447 = vunpack.c.l.b16 %v133
    %v448 = vunpack.c.h.b16 %v133
    %v449 = vpack.c.b16 %v259, %v257
    %v450 = vpack.c.b16 %v260, %v258
    %v451 = vpack.c.b16 %v263, %v261
    %v452 = vpack.c.b16 %v264, %v262
    %v453 = vpack.c.b16 %v267, %v265
    %v454 = vpack.c.b16 %v268, %v266
    %v455 = vpack.c.b16 %v271, %v269
    %v456 = vpack.c.b16 %v272, %v270
    %v457 = vpack.c.b16 %v275, %v273
    %v458 = vpack.c.b16 %v276, %v274
    %v459 = vpack.c.b16 %v279, %v277
    %v460 = vpack.c.b16 %v280, %v278
    %v461 = vpack.c.b16 %v283, %v281
    %v462 = vpack.c.b16 %v284, %v282
    %v463 = vpack.c.b16 %v287, %v285
    %v464 = vpack.c.b16 %v288, %v286
    %v465 = vpack.c.b16 %v291, %v289
    %v466 = vpack.c.b16 %v292, %v290
    %v467 = vpack.c.b16 %v295, %v293
    %v468 = vpack.c.b16 %v296, %v294
    %v469 = vpack.c.b16 %v299, %v297
    %v470 = vpack.c.b16 %v300, %v298
    %v471 = vpack.c.b16 %v303, %v301
    %v472 = vpack.c.b16 %v304, %v302
    %v473 = vpack.c.b16 %v307, %v305
    %v474 = vpack.c.b16 %v308, %v306
    %v475 = vpack.c.b16 %v311, %v309
    %v476 = vpack.c.b16 %v312, %v310
    %v477 = vpack.c.b16 %v315, %v313
    %v478 = vpack.c.b16 %v316, %v314
    %v479 = vpack.c.b16 %v319, %v317
    %v480 = vpack.c.b16 %v320, %v318
    %v481 = vpack.c.b16 %v323, %v321
    %v482 = vpack.c.b16 %v324, %v322
    %v483 = vpack.c.b16 %v327, %v325
    %v484 = vpack.c.b16 %v328, %v326
    %v485 = vpack.c.b16 %v331, %v329
    %v486 = vpack.c.b16 %v332, %v330
    %v487 = vpack.c.b16 %v335, %v333
    %v488 = vpack.c.b16 %v336, %v334
    %v489 = vpack.c.b16 %v339, %v337
    %v490 = vpack.c.b16 %v340, %v338
    %v491 = vpack.c.b16 %v343, %v341
    %v492 = vpack.c.b16 %v344, %v342
    %v493 = vpack.c.b16 %v347, %v345
    %v494 = vpack.c.b16 %v348, %v346
    %v495 = vpack.c.b16 %v351, %v349
    %v496 = vpack.c.b16 %v352, %v350
    %v497 = vpack.c.b16 %v355, %v353
    %v498 = vpack.c.b16 %v356, %v354
    %v499 = vpack.c.b16 %v359, %v357
    %v500 = vpack.c.b16 %v360, %v358
    %v501 = vpack.c.b16 %v363, %v361
    %v502 = vpack.c.b16 %v364, %v362
    %v503 = vpack.c.b16 %v367, %v365
    %v504 = vpack.c.b16 %v368, %v366
    %v505 = vpack.c.b16 %v371, %v369
    %v506 = vpack.c.b16 %v372, %v370
    %v507 = vpack.c.b16 %v375, %v373
    %v508 = vpack.c.b16 %v376, %v374
    %v509 = vpack.c.b16 %v379, %v377
    %v510 = vpack.c.b16 %v380, %v378
    %v511 = vpack.c.b16 %v383, %v381
    %v512 = vpack.c.b16 %v384, %v382
    %v513 = vpack.c.b16 %v387, %v385
    %v514 = vpack.c.b16 %v388, %v386
    %v515 = vpack.c.b16 %v391, %v389
    %v516 = vpack.c.b16 %v392, %v390
    %v517 = vpack.c.b16 %v395, %v393
    %v518 = vpack.c.b16 %v396, %v394
    %v519 = vpack.c.b16 %v399, %v397
    %v520 = vpack.c.b16 %v400, %v398
    %v521 = vpack.c.b16 %v403, %v401
    %v522 = vpack.c.b16 %v404, %v402
    %v523 = vpack.c.b16 %v407, %v405
    %v524 = vpack.c.b16 %v408, %v406
    %v525 = vpack.c.b16 %v411, %v409
    %v526 = vpack.c.b16 %v412, %v410
    %v527 = vpack.c.b16 %v415, %v413
    %v528 = vpack.c.b16 %v416, %v414
    %v529 = vpack.c.b16 %v419, %v417
    %v530 = vpack.c.b16 %v420, %v418
    %v531 = vpack.c.b16 %v423, %v421
    %v532 = vpack.c.b16 %v424, %v422
    %v533 = vpack.c.b16 %v427, %v425
    %v534 = vpack.c.b16 %v428, %v426
    %v535 = vpack.c.b16 %v431, %v429
    %v536 = vpack.c.b16 %v432, %v430
    %v537 = vpack.c.b16 %v435, %v433
    %v538 = vpack.c.b16 %v436, %v434
    %v539 = vpack.c.b16 %v439, %v437
    %v540 = vpack.c.b16 %v440, %v438
    %v541 = vpack.c.b16 %v443, %v441
    %v542 = vpack.c.b16 %v444, %v442
    %v543 = vpack.c.b16 %v447, %v445
    %v544 = vpack.c.b16 %v448, %v446
    %641 = vmatprep.subr.bf16.mxu0 %v450
    %642 = vmatpush1.bf16.msra.mxu0 %v449
    %643 = vmatprep.subr.bf16.mxu0 %v452
    %644 = vmatpush1.bf16.msra.mxu0 %v451
    %645 = vmatprep.subr.bf16.mxu0 %v454
    %646 = vmatpush1.bf16.msra.mxu0 %v453
    %647 = vmatprep.subr.bf16.mxu0 %v456
    %648 = vmatpush1.bf16.msra.mxu0 %v455
    %649 = vmatprep.subr.bf16.mxu0 %v458
    %650 = vmatpush1.bf16.msra.mxu0 %v457
    %651 = vmatprep.subr.bf16.mxu0 %v460
    %652 = vmatpush1.bf16.msra.mxu0 %v459
    %653 = vmatprep.subr.bf16.mxu0 %v462
    %654 = vmatpush1.bf16.msra.mxu0 %v461
    %655 = vmatprep.subr.bf16.mxu0 %v464
    %656 = vmatpush1.bf16.msra.mxu0 %v463
    %657 = vmatprep.subr.bf16.mxu0 %v466
    %658 = vmatpush1.bf16.msra.mxu0 %v465
    %659 = vmatprep.subr.bf16.mxu0 %v468
    %660 = vmatpush1.bf16.msra.mxu0 %v467
    %661 = vmatprep.subr.bf16.mxu0 %v470
    %662 = vmatpush1.bf16.msra.mxu0 %v469
    %663 = vmatprep.subr.bf16.mxu0 %v472
    %664 = vmatpush1.bf16.msra.mxu0 %v471
    %665 = vmatprep.subr.bf16.mxu0 %v474
    %666 = vmatpush1.bf16.msra.mxu0 %v473
    %667 = vmatprep.subr.bf16.mxu0 %v476
    %668 = vmatpush1.bf16.msra.mxu0 %v475
    %669 = vmatprep.subr.bf16.mxu0 %v478
    %670 = vmatpush1.bf16.msra.mxu0 %v477
    %671 = vmatprep.subr.bf16.mxu0 %v480
    %672 = vmatpush1.bf16.msra.mxu0 %v479
    %673 = vmatprep.mubr.bf16.mxu0 %v144
    %674 = vmatmul.mubr.bf16.gmra.mrb[0].mxu0 %v143
    %v675 = vpop.f32.mrb[0].mxu0
    %v676 = vadd.f32 %v154, %v675
    %v677 = vpop.f32.mrb[0].mxu0
    %v678 = vadd.f32 %v158, %v677
    %v679 = vpop.f32.mrb[0].mxu0
    %v680 = vpop.f32.mrb[0].mxu0
    %681 = vdwg.mxu0
    %682 = vmatprep.subr.bf16.mxu0 %v482
    %683 = vmatpush1.bf16.msra.mxu0 %v481
    %684 = vmatprep.subr.bf16.mxu0 %v484
    %685 = vmatpush1.bf16.msra.mxu0 %v483
    %686 = vmatprep.subr.bf16.mxu0 %v486
    %687 = vmatpush1.bf16.msra.mxu0 %v485
    %688 = vmatprep.subr.bf16.mxu0 %v488
    %689 = vmatpush1.bf16.msra.mxu0 %v487
    %690 = vmatprep.subr.bf16.mxu0 %v490
    %691 = vmatpush1.bf16.msra.mxu0 %v489
    %692 = vmatprep.subr.bf16.mxu0 %v492
    %693 = vmatpush1.bf16.msra.mxu0 %v491
    %694 = vmatprep.subr.bf16.mxu0 %v494
    %695 = vmatpush1.bf16.msra.mxu0 %v493
    %696 = vmatprep.subr.bf16.mxu0 %v496
    %697 = vmatpush1.bf16.msra.mxu0 %v495
    %698 = vmatprep.subr.bf16.mxu0 %v498
    %699 = vmatpush1.bf16.msra.mxu0 %v497
    %700 = vmatprep.subr.bf16.mxu0 %v500
    %701 = vmatpush1.bf16.msra.mxu0 %v499
    %702 = vmatprep.subr.bf16.mxu0 %v502
    %703 = vmatpush1.bf16.msra.mxu0 %v501
    %704 = vmatprep.subr.bf16.mxu0 %v504
    %705 = vmatpush1.bf16.msra.mxu0 %v503
    %706 = vmatprep.subr.bf16.mxu0 %v506
    %707 = vmatpush1.bf16.msra.mxu0 %v505
    %708 = vmatprep.subr.bf16.mxu0 %v508
    %709 = vmatpush1.bf16.msra.mxu0 %v507
    %710 = vmatprep.subr.bf16.mxu0 %v510
    %711 = vmatpush1.bf16.msra.mxu0 %v509
    %712 = vmatprep.subr.bf16.mxu0 %v512
    %713 = vmatpush1.bf16.msra.mxu0 %v511
    %714 = vmatprep.mubr.bf16.mxu0 %v146
    %715 = vmatmul.mubr.bf16.gmra.mrb[0].mxu0 %v145
    %v716 = vpop.f32.mrb[0].mxu0
    %v717 = vadd.f32 %v676, %v716
    %v718 = vpop.f32.mrb[0].mxu0
    %v719 = vadd.f32 %v678, %v718
    %v720 = vpop.f32.mrb[0].mxu0
    %v721 = vpop.f32.mrb[0].mxu0
    %722 = vdwg.mxu0
    %723 = vmatprep.subr.bf16.mxu0 %v514
    %724 = vmatpush1.bf16.msra.mxu0 %v513
    %725 = vmatprep.subr.bf16.mxu0 %v516
    %726 = vmatpush1.bf16.msra.mxu0 %v515
    %727 = vmatprep.subr.bf16.mxu0 %v518
    %728 = vmatpush1.bf16.msra.mxu0 %v517
    %729 = vmatprep.subr.bf16.mxu0 %v520
    %730 = vmatpush1.bf16.msra.mxu0 %v519
    %731 = vmatprep.subr.bf16.mxu0 %v522
    %732 = vmatpush1.bf16.msra.mxu0 %v521
    %733 = vmatprep.subr.bf16.mxu0 %v524
    %734 = vmatpush1.bf16.msra.mxu0 %v523
    %735 = vmatprep.subr.bf16.mxu0 %v526
    %736 = vmatpush1.bf16.msra.mxu0 %v525
    %737 = vmatprep.subr.bf16.mxu0 %v528
    %738 = vmatpush1.bf16.msra.mxu0 %v527
    %739 = vmatprep.subr.bf16.mxu0 %v530
    %740 = vmatpush1.bf16.msra.mxu0 %v529
    %741 = vmatprep.subr.bf16.mxu0 %v532
    %742 = vmatpush1.bf16.msra.mxu0 %v531
    %743 = vmatprep.subr.bf16.mxu0 %v534
    %744 = vmatpush1.bf16.msra.mxu0 %v533
    %745 = vmatprep.subr.bf16.mxu0 %v536
    %746 = vmatpush1.bf16.msra.mxu0 %v535
    %747 = vmatprep.subr.bf16.mxu0 %v538
    %748 = vmatpush1.bf16.msra.mxu0 %v537
    %749 = vmatprep.subr.bf16.mxu0 %v540
    %750 = vmatpush1.bf16.msra.mxu0 %v539
    %751 = vmatprep.subr.bf16.mxu0 %v542
    %752 = vmatpush1.bf16.msra.mxu0 %v541
    %753 = vmatprep.subr.bf16.mxu0 %v544
    %754 = vmatpush1.bf16.msra.mxu0 %v543
    %755 = vmatprep.mubr.bf16.mxu0 %v148
    %756 = vmatmul.mubr.bf16.gmra.mrb[0].mxu0 %v147
    %v757 = vpop.f32.mrb[0].mxu0
    %v758 = vadd.f32 %v717, %v757
    %v759 = vpop.f32.mrb[0].mxu0
    %v760 = vadd.f32 %v719, %v759
    %v761 = vpop.f32.mrb[0].mxu0
    %v762 = vpop.f32.mrb[0].mxu0
    %763 = vdwg.mxu0
    %v766 = vcombine.low %v758, %v760
    %768 = vst [vmem:[#allocation2] sm:$0xff] %v766
    %v769 = vld [vmem:[%s3] sm:$0xff]
    %v770 = vld [vmem:[%s3 + $0x8] sm:$0xff]
    %v771 = vld [vmem:[%s3 + $0x10] sm:$0xff]
    %v772 = vld [vmem:[%s3 + $0x18] sm:$0xff]
    %v773 = vld [vmem:[%s3 + $0x20] sm:$0xff]
    %v774 = vld [vmem:[%s3 + $0x28] sm:$0xff]
    %v775 = vld [vmem:[%s3 + $0x30] sm:$0xff]
    %v776 = vld [vmem:[%s3 + $0x38] sm:$0xff]
    %v777 = vld [vmem:[%s3 + $0x40] sm:$0xff]
    %v778 = vld [vmem:[%s3 + $0x48] sm:$0xff]
    %v779 = vld [vmem:[%s3 + $0x50] sm:$0xff]
    %v780 = vld [vmem:[%s3 + $0x58] sm:$0xff]
    %v781 = vld [vmem:[%s3 + $0x60] sm:$0xff]
    %v782 = vld [vmem:[%s3 + $0x68] sm:$0xff]
    %v783 = vld [vmem:[%s3 + $0x70] sm:$0xff]
    %v784 = vld [vmem:[%s3 + $0x78] sm:$0xff]
    %v785 = vld [vmem:[%s3 + $0x80] sm:$0xff]
    %v786 = vld [vmem:[%s3 + $0x88] sm:$0xff]
    %v787 = vld [vmem:[%s3 + $0x90] sm:$0xff]
    %v788 = vld [vmem:[%s3 + $0x98] sm:$0xff]
    %v789 = vld [vmem:[%s3 + $0xa0] sm:$0xff]
    %v790 = vld [vmem:[%s3 + $0xa8] sm:$0xff]
    %v791 = vld [vmem:[%s3 + $0xb0] sm:$0xff]
    %v792 = vld [vmem:[%s3 + $0xb8] sm:$0xff]
    %v793 = vld [vmem:[%s3 + $0xc0] sm:$0xff]
    %v794 = vld [vmem:[%s3 + $0xc8] sm:$0xff]
    %v795 = vld [vmem:[%s3 + $0xd0] sm:$0xff]
    %v796 = vld [vmem:[%s3 + $0xd8] sm:$0xff]
    %v797 = vld [vmem:[%s3 + $0xe0] sm:$0xff]
    %v798 = vld [vmem:[%s3 + $0xe8] sm:$0xff]
    %v799 = vld [vmem:[%s3 + $0xf0] sm:$0xff]
    %v800 = vld [vmem:[%s3 + $0xf8] sm:$0xff]
    %v801 = vld [vmem:[%s3 + $0x100] sm:$0xff]
    %v802 = vld [vmem:[%s3 + $0x108] sm:$0xff]
    %v803 = vld [vmem:[%s3 + $0x110] sm:$0xff]
    %v804 = vld [vmem:[%s3 + $0x118] sm:$0xff]
    %v805 = vld [vmem:[%s3 + $0x120] sm:$0xff]
    %v806 = vld [vmem:[%s3 + $0x128] sm:$0xff]
    %v807 = vld [vmem:[%s3 + $0x130] sm:$0xff]
    %v808 = vld [vmem:[%s3 + $0x138] sm:$0xff]
    %v809 = vld [vmem:[%s3 + $0x140] sm:$0xff]
    %v810 = vld [vmem:[%s3 + $0x148] sm:$0xff]
    %v811 = vld [vmem:[%s3 + $0x150] sm:$0xff]
    %v812 = vld [vmem:[%s3 + $0x158] sm:$0xff]
    %v813 = vld [vmem:[%s3 + $0x160] sm:$0xff]
    %v814 = vld [vmem:[%s3 + $0x168] sm:$0xff]
    %v815 = vld [vmem:[%s3 + $0x170] sm:$0xff]
    %v816 = vld [vmem:[%s3 + $0x178] sm:$0xff]
    %v817 = vld [vmem:[%s3 + $0x180] sm:$0xff]
    %v818 = vld [vmem:[%s3 + $0x188] sm:$0xff]
    %v819 = vld [vmem:[%s3 + $0x190] sm:$0xff]
    %v820 = vld [vmem:[%s3 + $0x198] sm:$0xff]
    %v821 = vld [vmem:[%s3 + $0x1a0] sm:$0xff]
    %v822 = vld [vmem:[%s3 + $0x1a8] sm:$0xff]
    %v823 = vld [vmem:[%s3 + $0x1b0] sm:$0xff]
    %v824 = vld [vmem:[%s3 + $0x1b8] sm:$0xff]
    %v825 = vld [vmem:[%s3 + $0x1c0] sm:$0xff]
    %v826 = vld [vmem:[%s3 + $0x1c8] sm:$0xff]
    %v827 = vld [vmem:[%s3 + $0x1d0] sm:$0xff]
    %v828 = vld [vmem:[%s3 + $0x1d8] sm:$0xff]
    %v829 = vld [vmem:[%s3 + $0x1e0] sm:$0xff]
    %v830 = vld [vmem:[%s3 + $0x1e8] sm:$0xff]
    %v831 = vld [vmem:[%s3 + $0x1f0] sm:$0xff]
    %v832 = vld [vmem:[%s3 + $0x1f8] sm:$0xff]
    %v833 = vld [vmem:[%s4] sm:$0xf]
    %v834 = vld [vmem:[%s5] sm:$0xf]
    %v835 = vld [vmem:[%s6] sm:$0xf]
    %v836 = vld [vmem:[%s7] sm:$0xff]
    %v837 = vld [vmem:[%s7 + $0x8] sm:$0xff]
    %v838 = vld [vmem:[%s7 + $0x10] sm:$0xff]
    %v839 = vld [vmem:[%s7 + $0x18] sm:$0xff]
    %v840 = vld [vmem:[%s7 + $0x20] sm:$0xff]
    %v841 = vld [vmem:[%s7 + $0x28] sm:$0xff]
    %v842 = vld [vmem:[%s7 + $0x30] sm:$0xff]
    %v843 = vld [vmem:[%s7 + $0x38] sm:$0xff]
    %v844 = vld [vmem:[%s7 + $0x40] sm:$0xff]
    %v845 = vld [vmem:[%s7 + $0x48] sm:$0xff]
    %v846 = vld [vmem:[%s7 + $0x50] sm:$0xff]
    %v847 = vld [vmem:[%s7 + $0x58] sm:$0xff]
    %v848 = vld [vmem:[%s7 + $0x60] sm:$0xff]
    %v849 = vld [vmem:[%s7 + $0x68] sm:$0xff]
    %v850 = vld [vmem:[%s7 + $0x70] sm:$0xff]
    %v851 = vld [vmem:[%s7 + $0x78] sm:$0xff]
    %v852 = vld [vmem:[%s7 + $0x80] sm:$0xff]
    %v853 = vld [vmem:[%s7 + $0x88] sm:$0xff]
    %v854 = vld [vmem:[%s7 + $0x90] sm:$0xff]
    %v855 = vld [vmem:[%s7 + $0x98] sm:$0xff]
    %v856 = vld [vmem:[%s7 + $0xa0] sm:$0xff]
    %v857 = vld [vmem:[%s7 + $0xa8] sm:$0xff]
    %v858 = vld [vmem:[%s7 + $0xb0] sm:$0xff]
    %v859 = vld [vmem:[%s7 + $0xb8] sm:$0xff]
    %v860 = vld [vmem:[%s7 + $0xc0] sm:$0xff]
    %v861 = vld [vmem:[%s7 + $0xc8] sm:$0xff]
    %v862 = vld [vmem:[%s7 + $0xd0] sm:$0xff]
    %v863 = vld [vmem:[%s7 + $0xd8] sm:$0xff]
    %v864 = vld [vmem:[%s7 + $0xe0] sm:$0xff]
    %v865 = vld [vmem:[%s7 + $0xe8] sm:$0xff]
    %v866 = vld [vmem:[%s7 + $0xf0] sm:$0xff]
    %v867 = vld [vmem:[%s7 + $0xf8] sm:$0xff]
    %v868 = vld [vmem:[%s7 + $0x100] sm:$0xff]
    %v869 = vld [vmem:[%s7 + $0x108] sm:$0xff]
    %v870 = vld [vmem:[%s7 + $0x110] sm:$0xff]
    %v871 = vld [vmem:[%s7 + $0x118] sm:$0xff]
    %v872 = vld [vmem:[%s7 + $0x120] sm:$0xff]
    %v873 = vld [vmem:[%s7 + $0x128] sm:$0xff]
    %v874 = vld [vmem:[%s7 + $0x130] sm:$0xff]
    %v875 = vld [vmem:[%s7 + $0x138] sm:$0xff]
    %v876 = vld [vmem:[%s7 + $0x140] sm:$0xff]
    %v877 = vld [vmem:[%s7 + $0x148] sm:$0xff]
    %v878 = vld [vmem:[%s7 + $0x150] sm:$0xff]
    %v879 = vld [vmem:[%s7 + $0x158] sm:$0xff]
    %v880 = vld [vmem:[%s7 + $0x160] sm:$0xff]
    %v881 = vld [vmem:[%s7 + $0x168] sm:$0xff]
    %v882 = vld [vmem:[%s7 + $0x170] sm:$0xff]
    %v883 = vld [vmem:[%s7 + $0x178] sm:$0xff]
    %v884 = vld [vmem:[%s7 + $0x180] sm:$0xff]
    %v885 = vld [vmem:[%s7 + $0x188] sm:$0xff]
    %v886 = vld [vmem:[%s7 + $0x190] sm:$0xff]
    %v887 = vld [vmem:[%s7 + $0x198] sm:$0xff]
    %v888 = vld [vmem:[%s7 + $0x1a0] sm:$0xff]
    %v889 = vld [vmem:[%s7 + $0x1a8] sm:$0xff]
    %v890 = vld [vmem:[%s7 + $0x1b0] sm:$0xff]
    %v891 = vld [vmem:[%s7 + $0x1b8] sm:$0xff]
    %v892 = vld [vmem:[%s7 + $0x1c0] sm:$0xff]
    %v893 = vld [vmem:[%s7 + $0x1c8] sm:$0xff]
    %v894 = vld [vmem:[%s7 + $0x1d0] sm:$0xff]
    %v895 = vld [vmem:[%s7 + $0x1d8] sm:$0xff]
    %v896 = vld [vmem:[%s7 + $0x1e0] sm:$0xff]
    %v897 = vld [vmem:[%s7 + $0x1e8] sm:$0xff]
    %v898 = vld [vmem:[%s7 + $0x1f0] sm:$0xff]
    %v899 = vld [vmem:[%s7 + $0x1f8] sm:$0xff]
    %v900 = vld [vmem:[%s7 + $0x200] sm:$0xff]
    %v901 = vld [vmem:[%s7 + $0x208] sm:$0xff]
    %v902 = vld [vmem:[%s7 + $0x210] sm:$0xff]
    %v903 = vld [vmem:[%s7 + $0x218] sm:$0xff]
    %v904 = vld [vmem:[%s7 + $0x220] sm:$0xff]
    %v905 = vld [vmem:[%s7 + $0x228] sm:$0xff]
    %v906 = vld [vmem:[%s7 + $0x230] sm:$0xff]
    %v907 = vld [vmem:[%s7 + $0x238] sm:$0xff]
    %v908 = vld [vmem:[%s7 + $0x240] sm:$0xff]
    %v909 = vld [vmem:[%s7 + $0x248] sm:$0xff]
    %v910 = vld [vmem:[%s7 + $0x250] sm:$0xff]
    %v911 = vld [vmem:[%s7 + $0x258] sm:$0xff]
    %v912 = vld [vmem:[%s7 + $0x260] sm:$0xff]
    %v913 = vld [vmem:[%s7 + $0x268] sm:$0xff]
    %v914 = vld [vmem:[%s7 + $0x270] sm:$0xff]
    %v915 = vld [vmem:[%s7 + $0x278] sm:$0xff]
    %v916 = vld [vmem:[%s7 + $0x280] sm:$0xff]
    %v917 = vld [vmem:[%s7 + $0x288] sm:$0xff]
    %v918 = vld [vmem:[%s7 + $0x290] sm:$0xff]
    %v919 = vld [vmem:[%s7 + $0x298] sm:$0xff]
    %v920 = vld [vmem:[%s7 + $0x2a0] sm:$0xff]
    %v921 = vld [vmem:[%s7 + $0x2a8] sm:$0xff]
    %v922 = vld [vmem:[%s7 + $0x2b0] sm:$0xff]
    %v923 = vld [vmem:[%s7 + $0x2b8] sm:$0xff]
    %v924 = vld [vmem:[%s7 + $0x2c0] sm:$0xff]
    %v925 = vld [vmem:[%s7 + $0x2c8] sm:$0xff]
    %v926 = vld [vmem:[%s7 + $0x2d0] sm:$0xff]
    %v927 = vld [vmem:[%s7 + $0x2d8] sm:$0xff]
    %v928 = vld [vmem:[%s7 + $0x2e0] sm:$0xff]
    %v929 = vld [vmem:[%s7 + $0x2e8] sm:$0xff]
    %v930 = vld [vmem:[%s7 + $0x2f0] sm:$0xff]
    %v931 = vld [vmem:[%s7 + $0x2f8] sm:$0xff]
    %v932 = vld [vmem:[%s7 + $0x300] sm:$0xff]
    %v933 = vld [vmem:[%s7 + $0x308] sm:$0xff]
    %v934 = vld [vmem:[%s7 + $0x310] sm:$0xff]
    %v935 = vld [vmem:[%s7 + $0x318] sm:$0xff]
    %v936 = vld [vmem:[%s7 + $0x320] sm:$0xff]
    %v937 = vld [vmem:[%s7 + $0x328] sm:$0xff]
    %v938 = vld [vmem:[%s7 + $0x330] sm:$0xff]
    %v939 = vld [vmem:[%s7 + $0x338] sm:$0xff]
    %v940 = vld [vmem:[%s7 + $0x340] sm:$0xff]
    %v941 = vld [vmem:[%s7 + $0x348] sm:$0xff]
    %v942 = vld [vmem:[%s7 + $0x350] sm:$0xff]
    %v943 = vld [vmem:[%s7 + $0x358] sm:$0xff]
    %v944 = vld [vmem:[%s7 + $0x360] sm:$0xff]
    %v945 = vld [vmem:[%s7 + $0x368] sm:$0xff]
    %v946 = vld [vmem:[%s7 + $0x370] sm:$0xff]
    %v947 = vld [vmem:[%s7 + $0x378] sm:$0xff]
    %v948 = vld [vmem:[%s7 + $0x380] sm:$0xff]
    %v949 = vld [vmem:[%s7 + $0x388] sm:$0xff]
    %v950 = vld [vmem:[%s7 + $0x390] sm:$0xff]
    %v951 = vld [vmem:[%s7 + $0x398] sm:$0xff]
    %v952 = vld [vmem:[%s7 + $0x3a0] sm:$0xff]
    %v953 = vld [vmem:[%s7 + $0x3a8] sm:$0xff]
    %v954 = vld [vmem:[%s7 + $0x3b0] sm:$0xff]
    %v955 = vld [vmem:[%s7 + $0x3b8] sm:$0xff]
    %v956 = vld [vmem:[%s7 + $0x3c0] sm:$0xff]
    %v957 = vld [vmem:[%s7 + $0x3c8] sm:$0xff]
    %v958 = vld [vmem:[%s7 + $0x3d0] sm:$0xff]
    %v959 = vld [vmem:[%s7 + $0x3d8] sm:$0xff]
    %v960 = vld [vmem:[%s7 + $0x3e0] sm:$0xff]
    %v961 = vld [vmem:[%s7 + $0x3e8] sm:$0xff]
    %v962 = vld [vmem:[%s7 + $0x3f0] sm:$0xff]
    %v963 = vld [vmem:[%s7 + $0x3f8] sm:$0xff]
    %v964 = vld [vmem:[%s7 + $0x400] sm:$0xff]
    %v965 = vld [vmem:[%s7 + $0x408] sm:$0xff]
    %v966 = vld [vmem:[%s7 + $0x410] sm:$0xff]
    %v967 = vld [vmem:[%s7 + $0x418] sm:$0xff]
    %v968 = vld [vmem:[%s7 + $0x420] sm:$0xff]
    %v969 = vld [vmem:[%s7 + $0x428] sm:$0xff]
    %v970 = vld [vmem:[%s7 + $0x430] sm:$0xff]
    %v971 = vld [vmem:[%s7 + $0x438] sm:$0xff]
    %v972 = vld [vmem:[%s7 + $0x440] sm:$0xff]
    %v973 = vld [vmem:[%s7 + $0x448] sm:$0xff]
    %v974 = vld [vmem:[%s7 + $0x450] sm:$0xff]
    %v975 = vld [vmem:[%s7 + $0x458] sm:$0xff]
    %v976 = vld [vmem:[%s7 + $0x460] sm:$0xff]
    %v977 = vld [vmem:[%s7 + $0x468] sm:$0xff]
    %v978 = vld [vmem:[%s7 + $0x470] sm:$0xff]
    %v979 = vld [vmem:[%s7 + $0x478] sm:$0xff]
    %v980 = vld [vmem:[%s7 + $0x480] sm:$0xff]
    %v981 = vld [vmem:[%s7 + $0x488] sm:$0xff]
    %v982 = vld [vmem:[%s7 + $0x490] sm:$0xff]
    %v983 = vld [vmem:[%s7 + $0x498] sm:$0xff]
    %v984 = vld [vmem:[%s7 + $0x4a0] sm:$0xff]
    %v985 = vld [vmem:[%s7 + $0x4a8] sm:$0xff]
    %v986 = vld [vmem:[%s7 + $0x4b0] sm:$0xff]
    %v987 = vld [vmem:[%s7 + $0x4b8] sm:$0xff]
    %v988 = vld [vmem:[%s7 + $0x4c0] sm:$0xff]
    %v989 = vld [vmem:[%s7 + $0x4c8] sm:$0xff]
    %v990 = vld [vmem:[%s7 + $0x4d0] sm:$0xff]
    %v991 = vld [vmem:[%s7 + $0x4d8] sm:$0xff]
    %v992 = vld [vmem:[%s7 + $0x4e0] sm:$0xff]
    %v993 = vld [vmem:[%s7 + $0x4e8] sm:$0xff]
    %v994 = vld [vmem:[%s7 + $0x4f0] sm:$0xff]
    %v995 = vld [vmem:[%s7 + $0x4f8] sm:$0xff]
    %v996 = vld [vmem:[%s7 + $0x500] sm:$0xff]
    %v997 = vld [vmem:[%s7 + $0x508] sm:$0xff]
    %v998 = vld [vmem:[%s7 + $0x510] sm:$0xff]
    %v999 = vld [vmem:[%s7 + $0x518] sm:$0xff]
    %v1000 = vld [vmem:[%s7 + $0x520] sm:$0xff]
    %v1001 = vld [vmem:[%s7 + $0x528] sm:$0xff]
    %v1002 = vld [vmem:[%s7 + $0x530] sm:$0xff]
    %v1003 = vld [vmem:[%s7 + $0x538] sm:$0xff]
    %v1004 = vld [vmem:[%s7 + $0x540] sm:$0xff]
    %v1005 = vld [vmem:[%s7 + $0x548] sm:$0xff]
    %v1006 = vld [vmem:[%s7 + $0x550] sm:$0xff]
    %v1007 = vld [vmem:[%s7 + $0x558] sm:$0xff]
    %v1008 = vld [vmem:[%s7 + $0x560] sm:$0xff]
    %v1009 = vld [vmem:[%s7 + $0x568] sm:$0xff]
    %v1010 = vld [vmem:[%s7 + $0x570] sm:$0xff]
    %v1011 = vld [vmem:[%s7 + $0x578] sm:$0xff]
    %v1012 = vld [vmem:[%s7 + $0x580] sm:$0xff]
    %v1013 = vld [vmem:[%s7 + $0x588] sm:$0xff]
    %v1014 = vld [vmem:[%s7 + $0x590] sm:$0xff]
    %v1015 = vld [vmem:[%s7 + $0x598] sm:$0xff]
    %v1016 = vld [vmem:[%s7 + $0x5a0] sm:$0xff]
    %v1017 = vld [vmem:[%s7 + $0x5a8] sm:$0xff]
    %v1018 = vld [vmem:[%s7 + $0x5b0] sm:$0xff]
    %v1019 = vld [vmem:[%s7 + $0x5b8] sm:$0xff]
    %v1020 = vld [vmem:[%s7 + $0x5c0] sm:$0xff]
    %v1021 = vld [vmem:[%s7 + $0x5c8] sm:$0xff]
    %v1022 = vld [vmem:[%s7 + $0x5d0] sm:$0xff]
    %v1023 = vld [vmem:[%s7 + $0x5d8] sm:$0xff]
    %v1024 = vld [vmem:[%s7 + $0x5e0] sm:$0xff]
    %v1025 = vld [vmem:[%s7 + $0x5e8] sm:$0xff]
    %v1026 = vld [vmem:[%s7 + $0x5f0] sm:$0xff]
    %v1027 = vld [vmem:[%s7 + $0x5f8] sm:$0xff]
    %v1028 = vld [vmem:[%s7 + $0x600] sm:$0xff]
    %v1029 = vld [vmem:[%s7 + $0x608] sm:$0xff]
    %v1030 = vld [vmem:[%s7 + $0x610] sm:$0xff]
    %v1031 = vld [vmem:[%s7 + $0x618] sm:$0xff]
    %v1032 = vld [vmem:[%s7 + $0x620] sm:$0xff]
    %v1033 = vld [vmem:[%s7 + $0x628] sm:$0xff]
    %v1034 = vld [vmem:[%s7 + $0x630] sm:$0xff]
    %v1035 = vld [vmem:[%s7 + $0x638] sm:$0xff]
    %v1036 = vld [vmem:[%s7 + $0x640] sm:$0xff]
    %v1037 = vld [vmem:[%s7 + $0x648] sm:$0xff]
    %v1038 = vld [vmem:[%s7 + $0x650] sm:$0xff]
    %v1039 = vld [vmem:[%s7 + $0x658] sm:$0xff]
    %v1040 = vld [vmem:[%s7 + $0x660] sm:$0xff]
    %v1041 = vld [vmem:[%s7 + $0x668] sm:$0xff]
    %v1042 = vld [vmem:[%s7 + $0x670] sm:$0xff]
    %v1043 = vld [vmem:[%s7 + $0x678] sm:$0xff]
    %v1044 = vld [vmem:[%s7 + $0x680] sm:$0xff]
    %v1045 = vld [vmem:[%s7 + $0x688] sm:$0xff]
    %v1046 = vld [vmem:[%s7 + $0x690] sm:$0xff]
    %v1047 = vld [vmem:[%s7 + $0x698] sm:$0xff]
    %v1048 = vld [vmem:[%s7 + $0x6a0] sm:$0xff]
    %v1049 = vld [vmem:[%s7 + $0x6a8] sm:$0xff]
    %v1050 = vld [vmem:[%s7 + $0x6b0] sm:$0xff]
    %v1051 = vld [vmem:[%s7 + $0x6b8] sm:$0xff]
    %v1052 = vld [vmem:[%s7 + $0x6c0] sm:$0xff]
    %v1053 = vld [vmem:[%s7 + $0x6c8] sm:$0xff]
    %v1054 = vld [vmem:[%s7 + $0x6d0] sm:$0xff]
    %v1055 = vld [vmem:[%s7 + $0x6d8] sm:$0xff]
    %v1056 = vld [vmem:[%s7 + $0x6e0] sm:$0xff]
    %v1057 = vld [vmem:[%s7 + $0x6e8] sm:$0xff]
    %v1058 = vld [vmem:[%s7 + $0x6f0] sm:$0xff]
    %v1059 = vld [vmem:[%s7 + $0x6f8] sm:$0xff]
    %v1060 = vld [vmem:[%s7 + $0x700] sm:$0xff]
    %v1061 = vld [vmem:[%s7 + $0x708] sm:$0xff]
    %v1062 = vld [vmem:[%s7 + $0x710] sm:$0xff]
    %v1063 = vld [vmem:[%s7 + $0x718] sm:$0xff]
    %v1064 = vld [vmem:[%s7 + $0x720] sm:$0xff]
    %v1065 = vld [vmem:[%s7 + $0x728] sm:$0xff]
    %v1066 = vld [vmem:[%s7 + $0x730] sm:$0xff]
    %v1067 = vld [vmem:[%s7 + $0x738] sm:$0xff]
    %v1068 = vld [vmem:[%s7 + $0x740] sm:$0xff]
    %v1069 = vld [vmem:[%s7 + $0x748] sm:$0xff]
    %v1070 = vld [vmem:[%s7 + $0x750] sm:$0xff]
    %v1071 = vld [vmem:[%s7 + $0x758] sm:$0xff]
    %v1072 = vld [vmem:[%s7 + $0x760] sm:$0xff]
    %v1073 = vld [vmem:[%s7 + $0x768] sm:$0xff]
    %v1074 = vld [vmem:[%s7 + $0x770] sm:$0xff]
    %v1075 = vld [vmem:[%s7 + $0x778] sm:$0xff]
    %v1076 = vld [vmem:[%s7 + $0x780] sm:$0xff]
    %v1077 = vld [vmem:[%s7 + $0x788] sm:$0xff]
    %v1078 = vld [vmem:[%s7 + $0x790] sm:$0xff]
    %v1079 = vld [vmem:[%s7 + $0x798] sm:$0xff]
    %v1080 = vld [vmem:[%s7 + $0x7a0] sm:$0xff]
    %v1081 = vld [vmem:[%s7 + $0x7a8] sm:$0xff]
    %v1082 = vld [vmem:[%s7 + $0x7b0] sm:$0xff]
    %v1083 = vld [vmem:[%s7 + $0x7b8] sm:$0xff]
    %v1084 = vld [vmem:[%s7 + $0x7c0] sm:$0xff]
    %v1085 = vld [vmem:[%s7 + $0x7c8] sm:$0xff]
    %v1086 = vld [vmem:[%s7 + $0x7d0] sm:$0xff]
    %v1087 = vld [vmem:[%s7 + $0x7d8] sm:$0xff]
    %v1088 = vld [vmem:[%s7 + $0x7e0] sm:$0xff]
    %v1089 = vld [vmem:[%s7 + $0x7e8] sm:$0xff]
    %v1090 = vld [vmem:[%s7 + $0x7f0] sm:$0xff]
    %v1091 = vld [vmem:[%s7 + $0x7f8] sm:$0xff]
    %v1092 = vld [vmem:[%s8] sm:$0xff]
    %v1093 = vpack.c.bf16 %v758, %v758
    %v1094 = vpack.c.bf16 %v760, %v760
    %v1096 = vlaneseq
    %v1097 = vshrl.u32 %v1096, 7
    %v1098 = vsub.s32 0, %v1097
    %v1099 = vrot.slane %v833, %v1098
    %v1100 = vlaneseq
    %v1101 = vshrl.u32 %v1100, 7
    %v1102 = vsub.s32 1, %v1101
    %v1103 = vrot.slane %v833, %v1102
    %v1104 = vlaneseq
    %v1105 = vshrl.u32 %v1104, 7
    %v1106 = vsub.s32 2, %v1105
    %v1107 = vrot.slane %v833, %v1106
    %v1108 = vlaneseq
    %v1109 = vshrl.u32 %v1108, 7
    %v1110 = vsub.s32 3, %v1109
    %v1111 = vrot.slane %v833, %v1110
    %v1180 = vunpack.c.l.b16 %v769
    %v1181 = vunpack.c.h.b16 %v769
    %v1182 = vunpack.c.l.b16 %v770
    %v1183 = vunpack.c.h.b16 %v770
    %v1184 = vunpack.c.l.b16 %v771
    %v1185 = vunpack.c.h.b16 %v771
    %v1186 = vunpack.c.l.b16 %v772
    %v1187 = vunpack.c.h.b16 %v772
    %v1188 = vunpack.c.l.b16 %v773
    %v1189 = vunpack.c.h.b16 %v773
    %v1190 = vunpack.c.l.b16 %v774
    %v1191 = vunpack.c.h.b16 %v774
    %v1192 = vunpack.c.l.b16 %v775
    %v1193 = vunpack.c.h.b16 %v775
    %v1194 = vunpack.c.l.b16 %v776
    %v1195 = vunpack.c.h.b16 %v776
    %v1196 = vunpack.c.l.b16 %v777
    %v1197 = vunpack.c.h.b16 %v777
    %v1198 = vunpack.c.l.b16 %v778
    %v1199 = vunpack.c.h.b16 %v778
    %v1200 = vunpack.c.l.b16 %v779
    %v1201 = vunpack.c.h.b16 %v779
    %v1202 = vunpack.c.l.b16 %v780
    %v1203 = vunpack.c.h.b16 %v780
    %v1204 = vunpack.c.l.b16 %v781
    %v1205 = vunpack.c.h.b16 %v781
    %v1206 = vunpack.c.l.b16 %v782
    %v1207 = vunpack.c.h.b16 %v782
    %v1208 = vunpack.c.l.b16 %v783
    %v1209 = vunpack.c.h.b16 %v783
    %v1210 = vunpack.c.l.b16 %v784
    %v1211 = vunpack.c.h.b16 %v784
    %v1212 = vunpack.c.l.b16 %v785
    %v1213 = vunpack.c.h.b16 %v785
    %v1214 = vunpack.c.l.b16 %v786
    %v1215 = vunpack.c.h.b16 %v786
    %v1216 = vunpack.c.l.b16 %v787
    %v1217 = vunpack.c.h.b16 %v787
    %v1218 = vunpack.c.l.b16 %v788
    %v1219 = vunpack.c.h.b16 %v788
    %v1220 = vunpack.c.l.b16 %v789
    %v1221 = vunpack.c.h.b16 %v789
    %v1222 = vunpack.c.l.b16 %v790
    %v1223 = vunpack.c.h.b16 %v790
    %v1224 = vunpack.c.l.b16 %v791
    %v1225 = vunpack.c.h.b16 %v791
    %v1226 = vunpack.c.l.b16 %v792
    %v1227 = vunpack.c.h.b16 %v792
    %v1228 = vunpack.c.l.b16 %v793
    %v1229 = vunpack.c.h.b16 %v793
    %v1230 = vunpack.c.l.b16 %v794
    %v1231 = vunpack.c.h.b16 %v794
    %v1232 = vunpack.c.l.b16 %v795
    %v1233 = vunpack.c.h.b16 %v795
    %v1234 = vunpack.c.l.b16 %v796
    %v1235 = vunpack.c.h.b16 %v796
    %v1236 = vunpack.c.l.b16 %v797
    %v1237 = vunpack.c.h.b16 %v797
    %v1238 = vunpack.c.l.b16 %v798
    %v1239 = vunpack.c.h.b16 %v798
    %v1240 = vunpack.c.l.b16 %v799
    %v1241 = vunpack.c.h.b16 %v799
    %v1242 = vunpack.c.l.b16 %v800
    %v1243 = vunpack.c.h.b16 %v800
    %v1244 = vunpack.c.l.b16 %v801
    %v1245 = vunpack.c.h.b16 %v801
    %v1246 = vunpack.c.l.b16 %v802
    %v1247 = vunpack.c.h.b16 %v802
    %v1248 = vunpack.c.l.b16 %v803
    %v1249 = vunpack.c.h.b16 %v803
    %v1250 = vunpack.c.l.b16 %v804
    %v1251 = vunpack.c.h.b16 %v804
    %v1252 = vunpack.c.l.b16 %v805
    %v1253 = vunpack.c.h.b16 %v805
    %v1254 = vunpack.c.l.b16 %v806
    %v1255 = vunpack.c.h.b16 %v806
    %v1256 = vunpack.c.l.b16 %v807
    %v1257 = vunpack.c.h.b16 %v807
    %v1258 = vunpack.c.l.b16 %v808
    %v1259 = vunpack.c.h.b16 %v808
    %v1260 = vunpack.c.l.b16 %v809
    %v1261 = vunpack.c.h.b16 %v809
    %v1262 = vunpack.c.l.b16 %v810
    %v1263 = vunpack.c.h.b16 %v810
    %v1264 = vunpack.c.l.b16 %v811
    %v1265 = vunpack.c.h.b16 %v811
    %v1266 = vunpack.c.l.b16 %v812
    %v1267 = vunpack.c.h.b16 %v812
    %v1268 = vunpack.c.l.b16 %v813
    %v1269 = vunpack.c.h.b16 %v813
    %v1270 = vunpack.c.l.b16 %v814
    %v1271 = vunpack.c.h.b16 %v814
    %v1272 = vunpack.c.l.b16 %v815
    %v1273 = vunpack.c.h.b16 %v815
    %v1274 = vunpack.c.l.b16 %v816
    %v1275 = vunpack.c.h.b16 %v816
    %v1276 = vunpack.c.l.b16 %v817
    %v1277 = vunpack.c.h.b16 %v817
    %v1278 = vunpack.c.l.b16 %v818
    %v1279 = vunpack.c.h.b16 %v818
    %v1280 = vunpack.c.l.b16 %v819
    %v1281 = vunpack.c.h.b16 %v819
    %v1282 = vunpack.c.l.b16 %v820
    %v1283 = vunpack.c.h.b16 %v820
    %v1284 = vunpack.c.l.b16 %v821
    %v1285 = vunpack.c.h.b16 %v821
    %v1286 = vunpack.c.l.b16 %v822
    %v1287 = vunpack.c.h.b16 %v822
    %v1288 = vunpack.c.l.b16 %v823
    %v1289 = vunpack.c.h.b16 %v823
    %v1290 = vunpack.c.l.b16 %v824
    %v1291 = vunpack.c.h.b16 %v824
    %v1292 = vunpack.c.l.b16 %v825
    %v1293 = vunpack.c.h.b16 %v825
    %v1294 = vunpack.c.l.b16 %v826
    %v1295 = vunpack.c.h.b16 %v826
    %v1296 = vunpack.c.l.b16 %v827
    %v1297 = vunpack.c.h.b16 %v827
    %v1298 = vunpack.c.l.b16 %v828
    %v1299 = vunpack.c.h.b16 %v828
    %v1300 = vunpack.c.l.b16 %v829
    %v1301 = vunpack.c.h.b16 %v829
    %v1302 = vunpack.c.l.b16 %v830
    %v1303 = vunpack.c.h.b16 %v830
    %v1304 = vunpack.c.l.b16 %v831
    %v1305 = vunpack.c.h.b16 %v831
    %v1306 = vunpack.c.l.b16 %v832
    %v1307 = vunpack.c.h.b16 %v832
    %v1308 = vpack.c.b16 %v1184, %v1180
    %v1309 = vpack.c.b16 %v1185, %v1181
    %v1310 = vpack.c.b16 %v1186, %v1182
    %v1311 = vpack.c.b16 %v1187, %v1183
    %v1312 = vpack.c.b16 %v1192, %v1188
    %v1313 = vpack.c.b16 %v1193, %v1189
    %v1314 = vpack.c.b16 %v1194, %v1190
    %v1315 = vpack.c.b16 %v1195, %v1191
    %v1316 = vpack.c.b16 %v1200, %v1196
    %v1317 = vpack.c.b16 %v1201, %v1197
    %v1318 = vpack.c.b16 %v1202, %v1198
    %v1319 = vpack.c.b16 %v1203, %v1199
    %v1320 = vpack.c.b16 %v1208, %v1204
    %v1321 = vpack.c.b16 %v1209, %v1205
    %v1322 = vpack.c.b16 %v1210, %v1206
    %v1323 = vpack.c.b16 %v1211, %v1207
    %v1324 = vpack.c.b16 %v1216, %v1212
    %v1325 = vpack.c.b16 %v1217, %v1213
    %v1326 = vpack.c.b16 %v1218, %v1214
    %v1327 = vpack.c.b16 %v1219, %v1215
    %v1328 = vpack.c.b16 %v1224, %v1220
    %v1329 = vpack.c.b16 %v1225, %v1221
    %v1330 = vpack.c.b16 %v1226, %v1222
    %v1331 = vpack.c.b16 %v1227, %v1223
    %v1332 = vpack.c.b16 %v1232, %v1228
    %v1333 = vpack.c.b16 %v1233, %v1229
    %v1334 = vpack.c.b16 %v1234, %v1230
    %v1335 = vpack.c.b16 %v1235, %v1231
    %v1336 = vpack.c.b16 %v1240, %v1236
    %v1337 = vpack.c.b16 %v1241, %v1237
    %v1338 = vpack.c.b16 %v1242, %v1238
    %v1339 = vpack.c.b16 %v1243, %v1239
    %v1340 = vpack.c.b16 %v1248, %v1244
    %v1341 = vpack.c.b16 %v1249, %v1245
    %v1342 = vpack.c.b16 %v1250, %v1246
    %v1343 = vpack.c.b16 %v1251, %v1247
    %v1344 = vpack.c.b16 %v1256, %v1252
    %v1345 = vpack.c.b16 %v1257, %v1253
    %v1346 = vpack.c.b16 %v1258, %v1254
    %v1347 = vpack.c.b16 %v1259, %v1255
    %v1348 = vpack.c.b16 %v1264, %v1260
    %v1349 = vpack.c.b16 %v1265, %v1261
    %v1350 = vpack.c.b16 %v1266, %v1262
    %v1351 = vpack.c.b16 %v1267, %v1263
    %v1352 = vpack.c.b16 %v1272, %v1268
    %v1353 = vpack.c.b16 %v1273, %v1269
    %v1354 = vpack.c.b16 %v1274, %v1270
    %v1355 = vpack.c.b16 %v1275, %v1271
    %v1356 = vpack.c.b16 %v1280, %v1276
    %v1357 = vpack.c.b16 %v1281, %v1277
    %v1358 = vpack.c.b16 %v1282, %v1278
    %v1359 = vpack.c.b16 %v1283, %v1279
    %v1360 = vpack.c.b16 %v1288, %v1284
    %v1361 = vpack.c.b16 %v1289, %v1285
    %v1362 = vpack.c.b16 %v1290, %v1286
    %v1363 = vpack.c.b16 %v1291, %v1287
    %v1364 = vpack.c.b16 %v1296, %v1292
    %v1365 = vpack.c.b16 %v1297, %v1293
    %v1366 = vpack.c.b16 %v1298, %v1294
    %v1367 = vpack.c.b16 %v1299, %v1295
    %v1368 = vpack.c.b16 %v1304, %v1300
    %v1369 = vpack.c.b16 %v1305, %v1301
    %v1370 = vpack.c.b16 %v1306, %v1302
    %v1371 = vpack.c.b16 %v1307, %v1303
    %1436 = vmatprep.subr.bf16.mxu0 %v1309
    %1437 = vmatpush1.bf16.msra.mxu0 %v1308
    %1438 = vmatprep.subr.bf16.mxu0 %v1313
    %1439 = vmatpush1.bf16.msra.mxu0 %v1312
    %1440 = vmatprep.subr.bf16.mxu0 %v1317
    %1441 = vmatpush1.bf16.msra.mxu0 %v1316
    %1442 = vmatprep.subr.bf16.mxu0 %v1321
    %1443 = vmatpush1.bf16.msra.mxu0 %v1320
    %1444 = vmatprep.subr.bf16.mxu0 %v1325
    %1445 = vmatpush1.bf16.msra.mxu0 %v1324
    %1446 = vmatprep.subr.bf16.mxu0 %v1329
    %1447 = vmatpush1.bf16.msra.mxu0 %v1328
    %1448 = vmatprep.subr.bf16.mxu0 %v1333
    %1449 = vmatpush1.bf16.msra.mxu0 %v1332
    %1450 = vmatprep.subr.bf16.mxu0 %v1337
    %1451 = vmatpush1.bf16.msra.mxu0 %v1336
    %1452 = vmatprep.subr.bf16.mxu0 %v1341
    %1453 = vmatpush1.bf16.msra.mxu0 %v1340
    %1454 = vmatprep.subr.bf16.mxu0 %v1345
    %1455 = vmatpush1.bf16.msra.mxu0 %v1344
    %1456 = vmatprep.subr.bf16.mxu0 %v1349
    %1457 = vmatpush1.bf16.msra.mxu0 %v1348
    %1458 = vmatprep.subr.bf16.mxu0 %v1353
    %1459 = vmatpush1.bf16.msra.mxu0 %v1352
    %1460 = vmatprep.subr.bf16.mxu0 %v1357
    %1461 = vmatpush1.bf16.msra.mxu0 %v1356
    %1462 = vmatprep.subr.bf16.mxu0 %v1361
    %1463 = vmatpush1.bf16.msra.mxu0 %v1360
    %1464 = vmatprep.subr.bf16.mxu0 %v1365
    %1465 = vmatpush1.bf16.msra.mxu0 %v1364
    %1466 = vmatprep.subr.bf16.mxu0 %v1369
    %1467 = vmatpush1.bf16.msra.mxu0 %v1368
    %1468 = vmatprep.mubr.bf16.mxu0 %v1094
    %1469 = vmatmul.mubr.bf16.gmra.mrb[0].mxu0 %v1093
    %v1470 = vpop.f32.mrb[0].mxu0
    %v1471 = vadd.f32 %v1099, %v1470
    %v1472 = vpop.f32.mrb[0].mxu0
    %v1473 = vadd.f32 %v1103, %v1472
    %v1474 = vpop.f32.mrb[0].mxu0
    %v1475 = vpop.f32.mrb[0].mxu0
    %1476 = vdwg.mxu0
    %1477 = vmatprep.subr.bf16.mxu0 %v1311
    %1478 = vmatpush1.bf16.msra.mxu0 %v1310
    %1479 = vmatprep.subr.bf16.mxu0 %v1315
    %1480 = vmatpush1.bf16.msra.mxu0 %v1314
    %1481 = vmatprep.subr.bf16.mxu0 %v1319
    %1482 = vmatpush1.bf16.msra.mxu0 %v1318
    %1483 = vmatprep.subr.bf16.mxu0 %v1323
    %1484 = vmatpush1.bf16.msra.mxu0 %v1322
    %1485 = vmatprep.subr.bf16.mxu0 %v1327
    %1486 = vmatpush1.bf16.msra.mxu0 %v1326
    %1487 = vmatprep.subr.bf16.mxu0 %v1331
    %1488 = vmatpush1.bf16.msra.mxu0 %v1330
    %1489 = vmatprep.subr.bf16.mxu0 %v1335
    %1490 = vmatpush1.bf16.msra.mxu0 %v1334
    %1491 = vmatprep.subr.bf16.mxu0 %v1339
    %1492 = vmatpush1.bf16.msra.mxu0 %v1338
    %1493 = vmatprep.subr.bf16.mxu0 %v1343
    %1494 = vmatpush1.bf16.msra.mxu0 %v1342
    %1495 = vmatprep.subr.bf16.mxu0 %v1347
    %1496 = vmatpush1.bf16.msra.mxu0 %v1346
    %1497 = vmatprep.subr.bf16.mxu0 %v1351
    %1498 = vmatpush1.bf16.msra.mxu0 %v1350
    %1499 = vmatprep.subr.bf16.mxu0 %v1355
    %1500 = vmatpush1.bf16.msra.mxu0 %v1354
    %1501 = vmatprep.subr.bf16.mxu0 %v1359
    %1502 = vmatpush1.bf16.msra.mxu0 %v1358
    %1503 = vmatprep.subr.bf16.mxu0 %v1363
    %1504 = vmatpush1.bf16.msra.mxu0 %v1362
    %1505 = vmatprep.subr.bf16.mxu0 %v1367
    %1506 = vmatpush1.bf16.msra.mxu0 %v1366
    %1507 = vmatprep.subr.bf16.mxu0 %v1371
    %1508 = vmatpush1.bf16.msra.mxu0 %v1370
    %1509 = vmatprep.mubr.bf16.mxu0 %v1094
    %1510 = vmatmul.mubr.bf16.gmra.mrb[0].mxu0 %v1093
    %v1511 = vpop.f32.mrb[0].mxu0
    %v1512 = vadd.f32 %v1107, %v1511
    %v1513 = vpop.f32.mrb[0].mxu0
    %v1514 = vadd.f32 %v1111, %v1513
    %v1515 = vpop.f32.mrb[0].mxu0
    %v1516 = vpop.f32.mrb[0].mxu0
    %1517 = vdwg.mxu0
    %v1518 = vlaneseq
    %v1519 = vshrl.u32 %v1518, 7
    %vm1520 = vcmp.lt.s32.totalorder %v1519, 2
    %v1521 = vsel %vm1520, 1, 0
    %v1522 = vcvt.s32.f32 %v1521
    %v1523 = vsub.f32 1.0, %v1522
    %v1524 = vmul.f32 %v1471, %v1522
    %v1525 = vmul.f32 %v1473, %v1522
    %v1526 = vmul.f32 %v1512, %v1522
    %v1527 = vmul.f32 %v1514, %v1522
    %vm1528 = vcmask 1043456
    %v1529 = vsel %vm1528, %v1524, 0.0
    %v1530 = vrot.slane %v1529, 4
    %v1531 = vadd.f32 %v1529, %v1530
    %v1532 = vrot.slane %v1531, 2
    %v1533 = vadd.f32 %v1531, %v1532
    %v1534 = vrot.slane %v1533, 1
    %v1535 = vadd.f32 %v1533, %v1534
    %v1536 = vsel %vm1528, %v1525, 0.0
    %v1537 = vrot.slane %v1536, 4
    %v1538 = vadd.f32 %v1536, %v1537
    %v1539 = vrot.slane %v1538, 2
    %v1540 = vadd.f32 %v1538, %v1539
    %v1541 = vrot.slane %v1540, 1
    %v1542 = vadd.f32 %v1540, %v1541
    %v1543 = vsel %vm1528, %v1526, 0.0
    %v1544 = vrot.slane %v1543, 4
    %v1545 = vadd.f32 %v1543, %v1544
    %v1546 = vrot.slane %v1545, 2
    %v1547 = vadd.f32 %v1545, %v1546
    %v1548 = vrot.slane %v1547, 1
    %v1549 = vadd.f32 %v1547, %v1548
    %v1550 = vsel %vm1528, %v1527, 0.0
    %v1551 = vrot.slane %v1550, 4
    %v1552 = vadd.f32 %v1550, %v1551
    %v1553 = vrot.slane %v1552, 2
    %v1554 = vadd.f32 %v1552, %v1553
    %v1555 = vrot.slane %v1554, 1
    %v1556 = vadd.f32 %v1554, %v1555
    %v1557 = vmul.f32 %v1535, 0.5
    %v1558 = vmul.f32 %v1542, 0.5
    %v1559 = vmul.f32 %v1549, 0.5
    %v1560 = vmul.f32 %v1556, 0.5
    %v1561 = vmul.f32 %v1471, %v1523
    %v1562 = vmul.f32 %v1473, %v1523
    %v1563 = vmul.f32 %v1512, %v1523
    %v1564 = vmul.f32 %v1514, %v1523
    %v1565 = vsel %vm1528, %v1561, 0.0
    %v1566 = vrot.slane %v1565, 4
    %v1567 = vadd.f32 %v1565, %v1566
    %v1568 = vrot.slane %v1567, 2
    %v1569 = vadd.f32 %v1567, %v1568
    %v1570 = vrot.slane %v1569, 1
    %v1571 = vadd.f32 %v1569, %v1570
    %v1572 = vsel %vm1528, %v1562, 0.0
    %v1573 = vrot.slane %v1572, 4
    %v1574 = vadd.f32 %v1572, %v1573
    %v1575 = vrot.slane %v1574, 2
    %v1576 = vadd.f32 %v1574, %v1575
    %v1577 = vrot.slane %v1576, 1
    %v1578 = vadd.f32 %v1576, %v1577
    %v1579 = vsel %vm1528, %v1563, 0.0
    %v1580 = vrot.slane %v1579, 4
    %v1581 = vadd.f32 %v1579, %v1580
    %v1582 = vrot.slane %v1581, 2
    %v1583 = vadd.f32 %v1581, %v1582
    %v1584 = vrot.slane %v1583, 1
    %v1585 = vadd.f32 %v1583, %v1584
    %v1586 = vsel %vm1528, %v1564, 0.0
    %v1587 = vrot.slane %v1586, 4
    %v1588 = vadd.f32 %v1586, %v1587
    %v1589 = vrot.slane %v1588, 2
    %v1590 = vadd.f32 %v1588, %v1589
    %v1591 = vrot.slane %v1590, 1
    %v1592 = vadd.f32 %v1590, %v1591
    %v1593 = vmul.f32 %v1571, 0.5
    %v1594 = vmul.f32 %v1578, 0.5
    %v1595 = vmul.f32 %v1585, 0.5
    %v1596 = vmul.f32 %v1592, 0.5
    %v1597 = vmul.f32 %v1522, %v1557
    %v1598 = vmul.f32 %v1522, %v1558
    %v1599 = vmul.f32 %v1522, %v1559
    %v1600 = vmul.f32 %v1522, %v1560
    %v1601 = vmul.f32 %v1523, %v1593
    %v1602 = vmul.f32 %v1523, %v1594
    %v1603 = vmul.f32 %v1523, %v1595
    %v1604 = vmul.f32 %v1523, %v1596
    %v1605 = vadd.f32 %v1597, %v1601
    %v1606 = vadd.f32 %v1598, %v1602
    %v1607 = vadd.f32 %v1599, %v1603
    %v1608 = vadd.f32 %v1600, %v1604
    %v1609 = vsub.f32 %v1471, %v1557
    %v1610 = vsub.f32 %v1473, %v1558
    %v1611 = vsub.f32 %v1512, %v1559
    %v1612 = vsub.f32 %v1514, %v1560
    %v1613 = vmul.f32 %v1609, %v1609
    %v1614 = vmul.f32 %v1610, %v1610
    %v1615 = vmul.f32 %v1611, %v1611
    %v1616 = vmul.f32 %v1612, %v1612
    %v1617 = vmul.f32 %v1613, %v1522
    %v1618 = vmul.f32 %v1614, %v1522
    %v1619 = vmul.f32 %v1615, %v1522
    %v1620 = vmul.f32 %v1616, %v1522
    %v1621 = vsel %vm1528, %v1617, 0.0
    %v1622 = vrot.slane %v1621, 4
    %v1623 = vadd.f32 %v1621, %v1622
    %v1624 = vrot.slane %v1623, 2
    %v1625 = vadd.f32 %v1623, %v1624
    %v1626 = vrot.slane %v1625, 1
    %v1627 = vadd.f32 %v1625, %v1626
    %v1628 = vsel %vm1528, %v1618, 0.0
    %v1629 = vrot.slane %v1628, 4
    %v1630 = vadd.f32 %v1628, %v1629
    %v1631 = vrot.slane %v1630, 2
    %v1632 = vadd.f32 %v1630, %v1631
    %v1633 = vrot.slane %v1632, 1
    %v1634 = vadd.f32 %v1632, %v1633
    %v1635 = vsel %vm1528, %v1619, 0.0
    %v1636 = vrot.slane %v1635, 4
    %v1637 = vadd.f32 %v1635, %v1636
    %v1638 = vrot.slane %v1637, 2
    %v1639 = vadd.f32 %v1637, %v1638
    %v1640 = vrot.slane %v1639, 1
    %v1641 = vadd.f32 %v1639, %v1640
    %v1642 = vsel %vm1528, %v1620, 0.0
    %v1643 = vrot.slane %v1642, 4
    %v1644 = vadd.f32 %v1642, %v1643
    %v1645 = vrot.slane %v1644, 2
    %v1646 = vadd.f32 %v1644, %v1645
    %v1647 = vrot.slane %v1646, 1
    %v1648 = vadd.f32 %v1646, %v1647
    %v1649 = vmul.f32 %v1627, 0.5
    %v1650 = vmul.f32 %v1634, 0.5
    %v1651 = vmul.f32 %v1641, 0.5
    %v1652 = vmul.f32 %v1648, 0.5
    %v1653 = vsub.f32 %v1471, %v1593
    %v1654 = vsub.f32 %v1473, %v1594
    %v1655 = vsub.f32 %v1512, %v1595
    %v1656 = vsub.f32 %v1514, %v1596
    %v1657 = vmul.f32 %v1653, %v1653
    %v1658 = vmul.f32 %v1654, %v1654
    %v1659 = vmul.f32 %v1655, %v1655
    %v1660 = vmul.f32 %v1656, %v1656
    %v1661 = vmul.f32 %v1657, %v1523
    %v1662 = vmul.f32 %v1658, %v1523
    %v1663 = vmul.f32 %v1659, %v1523
    %v1664 = vmul.f32 %v1660, %v1523
    %v1665 = vsel %vm1528, %v1661, 0.0
    %v1666 = vrot.slane %v1665, 4
    %v1667 = vadd.f32 %v1665, %v1666
    %v1668 = vrot.slane %v1667, 2
    %v1669 = vadd.f32 %v1667, %v1668
    %v1670 = vrot.slane %v1669, 1
    %v1671 = vadd.f32 %v1669, %v1670
    %v1672 = vsel %vm1528, %v1662, 0.0
    %v1673 = vrot.slane %v1672, 4
    %v1674 = vadd.f32 %v1672, %v1673
    %v1675 = vrot.slane %v1674, 2
    %v1676 = vadd.f32 %v1674, %v1675
    %v1677 = vrot.slane %v1676, 1
    %v1678 = vadd.f32 %v1676, %v1677
    %v1679 = vsel %vm1528, %v1663, 0.0
    %v1680 = vrot.slane %v1679, 4
    %v1681 = vadd.f32 %v1679, %v1680
    %v1682 = vrot.slane %v1681, 2
    %v1683 = vadd.f32 %v1681, %v1682
    %v1684 = vrot.slane %v1683, 1
    %v1685 = vadd.f32 %v1683, %v1684
    %v1686 = vsel %vm1528, %v1664, 0.0
    %v1687 = vrot.slane %v1686, 4
    %v1688 = vadd.f32 %v1686, %v1687
    %v1689 = vrot.slane %v1688, 2
    %v1690 = vadd.f32 %v1688, %v1689
    %v1691 = vrot.slane %v1690, 1
    %v1692 = vadd.f32 %v1690, %v1691
    %v1693 = vmul.f32 %v1671, 0.5
    %v1694 = vmul.f32 %v1678, 0.5
    %v1695 = vmul.f32 %v1685, 0.5
    %v1696 = vmul.f32 %v1692, 0.5
    %v1697 = vmul.f32 %v1522, %v1649
    %v1698 = vmul.f32 %v1522, %v1650
    %v1699 = vmul.f32 %v1522, %v1651
    %v1700 = vmul.f32 %v1522, %v1652
    %v1701 = vmul.f32 %v1523, %v1693
    %v1702 = vmul.f32 %v1523, %v1694
    %v1703 = vmul.f32 %v1523, %v1695
    %v1704 = vmul.f32 %v1523, %v1696
    %v1705 = vadd.f32 %v1697, %v1701
    %v1706 = vadd.f32 %v1698, %v1702
    %v1707 = vadd.f32 %v1699, %v1703
    %v1708 = vadd.f32 %v1700, %v1704
    %v1709 = vsub.f32 %v1471, %v1605
    %v1710 = vsub.f32 %v1473, %v1606
    %v1711 = vsub.f32 %v1512, %v1607
    %v1712 = vsub.f32 %v1514, %v1608
    %v1713 = vadd.f32 %v1705, 1e-05
    %v1714 = vadd.f32 %v1706, 1e-05
    %v1715 = vadd.f32 %v1707, 1e-05
    %v1716 = vadd.f32 %v1708, 1e-05
    %v1717 = vrsqrt.pop %v1713
    %v1718 = vrsqrt.pop %v1714
    %v1719 = vrsqrt.pop %v1715
    %v1720 = vrsqrt.pop %v1716
    %v1721 = vmul.f32 %v1709, %v1717
    %v1722 = vmul.f32 %v1710, %v1718
    %v1723 = vmul.f32 %v1711, %v1719
    %v1724 = vmul.f32 %v1712, %v1720
    %v1726 = vlaneseq
    %v1727 = vshrl.u32 %v1726, 7
    %v1728 = vsub.s32 0, %v1727
    %v1729 = vrot.slane %v834, %v1728
    %v1730 = vlaneseq
    %v1731 = vshrl.u32 %v1730, 7
    %v1732 = vsub.s32 1, %v1731
    %v1733 = vrot.slane %v834, %v1732
    %v1734 = vlaneseq
    %v1735 = vshrl.u32 %v1734, 7
    %v1736 = vsub.s32 2, %v1735
    %v1737 = vrot.slane %v834, %v1736
    %v1738 = vlaneseq
    %v1739 = vshrl.u32 %v1738, 7
    %v1740 = vsub.s32 3, %v1739
    %v1741 = vrot.slane %v834, %v1740
    %v1746 = vmul.f32 %v1721, %v1729
    %v1747 = vmul.f32 %v1722, %v1733
    %v1748 = vmul.f32 %v1723, %v1737
    %v1749 = vmul.f32 %v1724, %v1741
    %v1751 = vlaneseq
    %v1752 = vshrl.u32 %v1751, 7
    %v1753 = vsub.s32 0, %v1752
    %v1754 = vrot.slane %v835, %v1753
    %v1755 = vlaneseq
    %v1756 = vshrl.u32 %v1755, 7
    %v1757 = vsub.s32 1, %v1756
    %v1758 = vrot.slane %v835, %v1757
    %v1759 = vlaneseq
    %v1760 = vshrl.u32 %v1759, 7
    %v1761 = vsub.s32 2, %v1760
    %v1762 = vrot.slane %v835, %v1761
    %v1763 = vlaneseq
    %v1764 = vshrl.u32 %v1763, 7
    %v1765 = vsub.s32 3, %v1764
    %v1766 = vrot.slane %v835, %v1765
    %v1771 = vadd.f32 %v1746, %v1754
    %v1772 = vadd.f32 %v1747, %v1758
    %v1773 = vadd.f32 %v1748, %v1762
    %v1774 = vadd.f32 %v1749, %v1766
    %v1775 = vmax.f32 %v1771, 0.0
    %v1776 = vmax.f32 %v1772, 0.0
    %v1777 = vmax.f32 %v1773, 0.0
    %v1778 = vmax.f32 %v1774, 0.0
    %v1779 = vpack.c.bf16 %v1775, %v1775
    %v1780 = vpack.c.bf16 %v1776, %v1776
    %v1781 = vpack.c.bf16 %v1777, %v1777
    %v1782 = vpack.c.bf16 %v1778, %v1778
    %v1784 = vlaneseq
    %v1785 = vshrl.u32 %v1784, 7
    %v1786 = vsub.s32 0, %v1785
    %v1787 = vrot.slane %v1092, %v1786
    %v1788 = vlaneseq
    %v1789 = vshrl.u32 %v1788, 7
    %v1790 = vsub.s32 1, %v1789
    %v1791 = vrot.slane %v1092, %v1790
    %v1792 = vlaneseq
    %v1793 = vshrl.u32 %v1792, 7
    %v1794 = vsub.s32 2, %v1793
    %v1795 = vrot.slane %v1092, %v1794
    %v1796 = vlaneseq
    %v1797 = vshrl.u32 %v1796, 7
    %v1798 = vsub.s32 3, %v1797
    %v1799 = vrot.slane %v1092, %v1798
    %v1800 = vlaneseq
    %v1801 = vshrl.u32 %v1800, 7
    %v1802 = vsub.s32 4, %v1801
    %v1803 = vrot.slane %v1092, %v1802
    %v1804 = vlaneseq
    %v1805 = vshrl.u32 %v1804, 7
    %v1806 = vsub.s32 5, %v1805
    %v1807 = vrot.slane %v1092, %v1806
    %v1808 = vlaneseq
    %v1809 = vshrl.u32 %v1808, 7
    %v1810 = vsub.s32 6, %v1809
    %v1811 = vrot.slane %v1092, %v1810
    %v1812 = vlaneseq
    %v1813 = vshrl.u32 %v1812, 7
    %v1814 = vsub.s32 7, %v1813
    %v1815 = vrot.slane %v1092, %v1814
    %v2080 = vunpack.c.l.b16 %v836
    %v2081 = vunpack.c.h.b16 %v836
    %v2082 = vunpack.c.l.b16 %v837
    %v2083 = vunpack.c.h.b16 %v837
    %v2084 = vunpack.c.l.b16 %v838
    %v2085 = vunpack.c.h.b16 %v838
    %v2086 = vunpack.c.l.b16 %v839
    %v2087 = vunpack.c.h.b16 %v839
    %v2088 = vunpack.c.l.b16 %v840
    %v2089 = vunpack.c.h.b16 %v840
    %v2090 = vunpack.c.l.b16 %v841
    %v2091 = vunpack.c.h.b16 %v841
    %v2092 = vunpack.c.l.b16 %v842
    %v2093 = vunpack.c.h.b16 %v842
    %v2094 = vunpack.c.l.b16 %v843
    %v2095 = vunpack.c.h.b16 %v843
    %v2096 = vunpack.c.l.b16 %v844
    %v2097 = vunpack.c.h.b16 %v844
    %v2098 = vunpack.c.l.b16 %v845
    %v2099 = vunpack.c.h.b16 %v845
    %v2100 = vunpack.c.l.b16 %v846
    %v2101 = vunpack.c.h.b16 %v846
    %v2102 = vunpack.c.l.b16 %v847
    %v2103 = vunpack.c.h.b16 %v847
    %v2104 = vunpack.c.l.b16 %v848
    %v2105 = vunpack.c.h.b16 %v848
    %v2106 = vunpack.c.l.b16 %v849
    %v2107 = vunpack.c.h.b16 %v849
    %v2108 = vunpack.c.l.b16 %v850
    %v2109 = vunpack.c.h.b16 %v850
    %v2110 = vunpack.c.l.b16 %v851
    %v2111 = vunpack.c.h.b16 %v851
    %v2112 = vunpack.c.l.b16 %v852
    %v2113 = vunpack.c.h.b16 %v852
    %v2114 = vunpack.c.l.b16 %v853
    %v2115 = vunpack.c.h.b16 %v853
    %v2116 = vunpack.c.l.b16 %v854
    %v2117 = vunpack.c.h.b16 %v854
    %v2118 = vunpack.c.l.b16 %v855
    %v2119 = vunpack.c.h.b16 %v855
    %v2120 = vunpack.c.l.b16 %v856
    %v2121 = vunpack.c.h.b16 %v856
    %v2122 = vunpack.c.l.b16 %v857
    %v2123 = vunpack.c.h.b16 %v857
    %v2124 = vunpack.c.l.b16 %v858
    %v2125 = vunpack.c.h.b16 %v858
    %v2126 = vunpack.c.l.b16 %v859
    %v2127 = vunpack.c.h.b16 %v859
    %v2128 = vunpack.c.l.b16 %v860
    %v2129 = vunpack.c.h.b16 %v860
    %v2130 = vunpack.c.l.b16 %v861
    %v2131 = vunpack.c.h.b16 %v861
    %v2132 = vunpack.c.l.b16 %v862
    %v2133 = vunpack.c.h.b16 %v862
    %v2134 = vunpack.c.l.b16 %v863
    %v2135 = vunpack.c.h.b16 %v863
    %v2136 = vunpack.c.l.b16 %v864
    %v2137 = vunpack.c.h.b16 %v864
    %v2138 = vunpack.c.l.b16 %v865
    %v2139 = vunpack.c.h.b16 %v865
    %v2140 = vunpack.c.l.b16 %v866
    %v2141 = vunpack.c.h.b16 %v866
    %v2142 = vunpack.c.l.b16 %v867
    %v2143 = vunpack.c.h.b16 %v867
    %v2144 = vunpack.c.l.b16 %v868
    %v2145 = vunpack.c.h.b16 %v868
    %v2146 = vunpack.c.l.b16 %v869
    %v2147 = vunpack.c.h.b16 %v869
    %v2148 = vunpack.c.l.b16 %v870
    %v2149 = vunpack.c.h.b16 %v870
    %v2150 = vunpack.c.l.b16 %v871
    %v2151 = vunpack.c.h.b16 %v871
    %v2152 = vunpack.c.l.b16 %v872
    %v2153 = vunpack.c.h.b16 %v872
    %v2154 = vunpack.c.l.b16 %v873
    %v2155 = vunpack.c.h.b16 %v873
    %v2156 = vunpack.c.l.b16 %v874
    %v2157 = vunpack.c.h.b16 %v874
    %v2158 = vunpack.c.l.b16 %v875
    %v2159 = vunpack.c.h.b16 %v875
    %v2160 = vunpack.c.l.b16 %v876
    %v2161 = vunpack.c.h.b16 %v876
    %v2162 = vunpack.c.l.b16 %v877
    %v2163 = vunpack.c.h.b16 %v877
    %v2164 = vunpack.c.l.b16 %v878
    %v2165 = vunpack.c.h.b16 %v878
    %v2166 = vunpack.c.l.b16 %v879
    %v2167 = vunpack.c.h.b16 %v879
    %v2168 = vunpack.c.l.b16 %v880
    %v2169 = vunpack.c.h.b16 %v880
    %v2170 = vunpack.c.l.b16 %v881
    %v2171 = vunpack.c.h.b16 %v881
    %v2172 = vunpack.c.l.b16 %v882
    %v2173 = vunpack.c.h.b16 %v882
    %v2174 = vunpack.c.l.b16 %v883
    %v2175 = vunpack.c.h.b16 %v883
    %v2176 = vunpack.c.l.b16 %v884
    %v2177 = vunpack.c.h.b16 %v884
    %v2178 = vunpack.c.l.b16 %v885
    %v2179 = vunpack.c.h.b16 %v885
    %v2180 = vunpack.c.l.b16 %v886
    %v2181 = vunpack.c.h.b16 %v886
    %v2182 = vunpack.c.l.b16 %v887
    %v2183 = vunpack.c.h.b16 %v887
    %v2184 = vunpack.c.l.b16 %v888
    %v2185 = vunpack.c.h.b16 %v888
    %v2186 = vunpack.c.l.b16 %v889
    %v2187 = vunpack.c.h.b16 %v889
    %v2188 = vunpack.c.l.b16 %v890
    %v2189 = vunpack.c.h.b16 %v890
    %v2190 = vunpack.c.l.b16 %v891
    %v2191 = vunpack.c.h.b16 %v891
    %v2192 = vunpack.c.l.b16 %v892
    %v2193 = vunpack.c.h.b16 %v892
    %v2194 = vunpack.c.l.b16 %v893
    %v2195 = vunpack.c.h.b16 %v893
    %v2196 = vunpack.c.l.b16 %v894
    %v2197 = vunpack.c.h.b16 %v894
    %v2198 = vunpack.c.l.b16 %v895
    %v2199 = vunpack.c.h.b16 %v895
    %v2200 = vunpack.c.l.b16 %v896
    %v2201 = vunpack.c.h.b16 %v896
    %v2202 = vunpack.c.l.b16 %v897
    %v2203 = vunpack.c.h.b16 %v897
    %v2204 = vunpack.c.l.b16 %v898
    %v2205 = vunpack.c.h.b16 %v898
    %v2206 = vunpack.c.l.b16 %v899
    %v2207 = vunpack.c.h.b16 %v899
    %v2208 = vunpack.c.l.b16 %v900
    %v2209 = vunpack.c.h.b16 %v900
    %v2210 = vunpack.c.l.b16 %v901
    %v2211 = vunpack.c.h.b16 %v901
    %v2212 = vunpack.c.l.b16 %v902
    %v2213 = vunpack.c.h.b16 %v902
    %v2214 = vunpack.c.l.b16 %v903
    %v2215 = vunpack.c.h.b16 %v903
    %v2216 = vunpack.c.l.b16 %v904
    %v2217 = vunpack.c.h.b16 %v904
    %v2218 = vunpack.c.l.b16 %v905
    %v2219 = vunpack.c.h.b16 %v905
    %v2220 = vunpack.c.l.b16 %v906
    %v2221 = vunpack.c.h.b16 %v906
    %v2222 = vunpack.c.l.b16 %v907
    %v2223 = vunpack.c.h.b16 %v907
    %v2224 = vunpack.c.l.b16 %v908
    %v2225 = vunpack.c.h.b16 %v908
    %v2226 = vunpack.c.l.b16 %v909
    %v2227 = vunpack.c.h.b16 %v909
    %v2228 = vunpack.c.l.b16 %v910
    %v2229 = vunpack.c.h.b16 %v910
    %v2230 = vunpack.c.l.b16 %v911
    %v2231 = vunpack.c.h.b16 %v911
    %v2232 = vunpack.c.l.b16 %v912
    %v2233 = vunpack.c.h.b16 %v912
    %v2234 = vunpack.c.l.b16 %v913
    %v2235 = vunpack.c.h.b16 %v913
    %v2236 = vunpack.c.l.b16 %v914
    %v2237 = vunpack.c.h.b16 %v914
    %v2238 = vunpack.c.l.b16 %v915
    %v2239 = vunpack.c.h.b16 %v915
    %v2240 = vunpack.c.l.b16 %v916
    %v2241 = vunpack.c.h.b16 %v916
    %v2242 = vunpack.c.l.b16 %v917
    %v2243 = vunpack.c.h.b16 %v917
    %v2244 = vunpack.c.l.b16 %v918
    %v2245 = vunpack.c.h.b16 %v918
    %v2246 = vunpack.c.l.b16 %v919
    %v2247 = vunpack.c.h.b16 %v919
    %v2248 = vunpack.c.l.b16 %v920
    %v2249 = vunpack.c.h.b16 %v920
    %v2250 = vunpack.c.l.b16 %v921
    %v2251 = vunpack.c.h.b16 %v921
    %v2252 = vunpack.c.l.b16 %v922
    %v2253 = vunpack.c.h.b16 %v922
    %v2254 = vunpack.c.l.b16 %v923
    %v2255 = vunpack.c.h.b16 %v923
    %v2256 = vunpack.c.l.b16 %v924
    %v2257 = vunpack.c.h.b16 %v924
    %v2258 = vunpack.c.l.b16 %v925
    %v2259 = vunpack.c.h.b16 %v925
    %v2260 = vunpack.c.l.b16 %v926
    %v2261 = vunpack.c.h.b16 %v926
    %v2262 = vunpack.c.l.b16 %v927
    %v2263 = vunpack.c.h.b16 %v927
    %v2264 = vunpack.c.l.b16 %v928
    %v2265 = vunpack.c.h.b16 %v928
    %v2266 = vunpack.c.l.b16 %v929
    %v2267 = vunpack.c.h.b16 %v929
    %v2268 = vunpack.c.l.b16 %v930
    %v2269 = vunpack.c.h.b16 %v930
    %v2270 = vunpack.c.l.b16 %v931
    %v2271 = vunpack.c.h.b16 %v931
    %v2272 = vunpack.c.l.b16 %v932
    %v2273 = vunpack.c.h.b16 %v932
    %v2274 = vunpack.c.l.b16 %v933
    %v2275 = vunpack.c.h.b16 %v933
    %v2276 = vunpack.c.l.b16 %v934
    %v2277 = vunpack.c.h.b16 %v934
    %v2278 = vunpack.c.l.b16 %v935
    %v2279 = vunpack.c.h.b16 %v935
    %v2280 = vunpack.c.l.b16 %v936
    %v2281 = vunpack.c.h.b16 %v936
    %v2282 = vunpack.c.l.b16 %v937
    %v2283 = vunpack.c.h.b16 %v937
    %v2284 = vunpack.c.l.b16 %v938
    %v2285 = vunpack.c.h.b16 %v938
    %v2286 = vunpack.c.l.b16 %v939
    %v2287 = vunpack.c.h.b16 %v939
    %v2288 = vunpack.c.l.b16 %v940
    %v2289 = vunpack.c.h.b16 %v940
    %v2290 = vunpack.c.l.b16 %v941
    %v2291 = vunpack.c.h.b16 %v941
    %v2292 = vunpack.c.l.b16 %v942
    %v2293 = vunpack.c.h.b16 %v942
    %v2294 = vunpack.c.l.b16 %v943
    %v2295 = vunpack.c.h.b16 %v943
    %v2296 = vunpack.c.l.b16 %v944
    %v2297 = vunpack.c.h.b16 %v944
    %v2298 = vunpack.c.l.b16 %v945
    %v2299 = vunpack.c.h.b16 %v945
    %v2300 = vunpack.c.l.b16 %v946
    %v2301 = vunpack.c.h.b16 %v946
    %v2302 = vunpack.c.l.b16 %v947
    %v2303 = vunpack.c.h.b16 %v947
    %v2304 = vunpack.c.l.b16 %v948
    %v2305 = vunpack.c.h.b16 %v948
    %v2306 = vunpack.c.l.b16 %v949
    %v2307 = vunpack.c.h.b16 %v949
    %v2308 = vunpack.c.l.b16 %v950
    %v2309 = vunpack.c.h.b16 %v950
    %v2310 = vunpack.c.l.b16 %v951
    %v2311 = vunpack.c.h.b16 %v951
    %v2312 = vunpack.c.l.b16 %v952
    %v2313 = vunpack.c.h.b16 %v952
    %v2314 = vunpack.c.l.b16 %v953
    %v2315 = vunpack.c.h.b16 %v953
    %v2316 = vunpack.c.l.b16 %v954
    %v2317 = vunpack.c.h.b16 %v954
    %v2318 = vunpack.c.l.b16 %v955
    %v2319 = vunpack.c.h.b16 %v955
    %v2320 = vunpack.c.l.b16 %v956
    %v2321 = vunpack.c.h.b16 %v956
    %v2322 = vunpack.c.l.b16 %v957
    %v2323 = vunpack.c.h.b16 %v957
    %v2324 = vunpack.c.l.b16 %v958
    %v2325 = vunpack.c.h.b16 %v958
    %v2326 = vunpack.c.l.b16 %v959
    %v2327 = vunpack.c.h.b16 %v959
    %v2328 = vunpack.c.l.b16 %v960
    %v2329 = vunpack.c.h.b16 %v960
    %v2330 = vunpack.c.l.b16 %v961
    %v2331 = vunpack.c.h.b16 %v961
    %v2332 = vunpack.c.l.b16 %v962
    %v2333 = vunpack.c.h.b16 %v962
    %v2334 = vunpack.c.l.b16 %v963
    %v2335 = vunpack.c.h.b16 %v963
    %v2336 = vunpack.c.l.b16 %v964
    %v2337 = vunpack.c.h.b16 %v964
    %v2338 = vunpack.c.l.b16 %v965
    %v2339 = vunpack.c.h.b16 %v965
    %v2340 = vunpack.c.l.b16 %v966
    %v2341 = vunpack.c.h.b16 %v966
    %v2342 = vunpack.c.l.b16 %v967
    %v2343 = vunpack.c.h.b16 %v967
    %v2344 = vunpack.c.l.b16 %v968
    %v2345 = vunpack.c.h.b16 %v968
    %v2346 = vunpack.c.l.b16 %v969
    %v2347 = vunpack.c.h.b16 %v969
    %v2348 = vunpack.c.l.b16 %v970
    %v2349 = vunpack.c.h.b16 %v970
    %v2350 = vunpack.c.l.b16 %v971
    %v2351 = vunpack.c.h.b16 %v971
    %v2352 = vunpack.c.l.b16 %v972
    %v2353 = vunpack.c.h.b16 %v972
    %v2354 = vunpack.c.l.b16 %v973
    %v2355 = vunpack.c.h.b16 %v973
    %v2356 = vunpack.c.l.b16 %v974
    %v2357 = vunpack.c.h.b16 %v974
    %v2358 = vunpack.c.l.b16 %v975
    %v2359 = vunpack.c.h.b16 %v975
    %v2360 = vunpack.c.l.b16 %v976
    %v2361 = vunpack.c.h.b16 %v976
    %v2362 = vunpack.c.l.b16 %v977
    %v2363 = vunpack.c.h.b16 %v977
    %v2364 = vunpack.c.l.b16 %v978
    %v2365 = vunpack.c.h.b16 %v978
    %v2366 = vunpack.c.l.b16 %v979
    %v2367 = vunpack.c.h.b16 %v979
    %v2368 = vunpack.c.l.b16 %v980
    %v2369 = vunpack.c.h.b16 %v980
    %v2370 = vunpack.c.l.b16 %v981
    %v2371 = vunpack.c.h.b16 %v981
    %v2372 = vunpack.c.l.b16 %v982
    %v2373 = vunpack.c.h.b16 %v982
    %v2374 = vunpack.c.l.b16 %v983
    %v2375 = vunpack.c.h.b16 %v983
    %v2376 = vunpack.c.l.b16 %v984
    %v2377 = vunpack.c.h.b16 %v984
    %v2378 = vunpack.c.l.b16 %v985
    %v2379 = vunpack.c.h.b16 %v985
    %v2380 = vunpack.c.l.b16 %v986
    %v2381 = vunpack.c.h.b16 %v986
    %v2382 = vunpack.c.l.b16 %v987
    %v2383 = vunpack.c.h.b16 %v987
    %v2384 = vunpack.c.l.b16 %v988
    %v2385 = vunpack.c.h.b16 %v988
    %v2386 = vunpack.c.l.b16 %v989
    %v2387 = vunpack.c.h.b16 %v989
    %v2388 = vunpack.c.l.b16 %v990
    %v2389 = vunpack.c.h.b16 %v990
    %v2390 = vunpack.c.l.b16 %v991
    %v2391 = vunpack.c.h.b16 %v991
    %v2392 = vunpack.c.l.b16 %v992
    %v2393 = vunpack.c.h.b16 %v992
    %v2394 = vunpack.c.l.b16 %v993
    %v2395 = vunpack.c.h.b16 %v993
    %v2396 = vunpack.c.l.b16 %v994
    %v2397 = vunpack.c.h.b16 %v994
    %v2398 = vunpack.c.l.b16 %v995
    %v2399 = vunpack.c.h.b16 %v995
    %v2400 = vunpack.c.l.b16 %v996
    %v2401 = vunpack.c.h.b16 %v996
    %v2402 = vunpack.c.l.b16 %v997
    %v2403 = vunpack.c.h.b16 %v997
    %v2404 = vunpack.c.l.b16 %v998
    %v2405 = vunpack.c.h.b16 %v998
    %v2406 = vunpack.c.l.b16 %v999
    %v2407 = vunpack.c.h.b16 %v999
    %v2408 = vunpack.c.l.b16 %v1000
    %v2409 = vunpack.c.h.b16 %v1000
    %v2410 = vunpack.c.l.b16 %v1001
    %v2411 = vunpack.c.h.b16 %v1001
    %v2412 = vunpack.c.l.b16 %v1002
    %v2413 = vunpack.c.h.b16 %v1002
    %v2414 = vunpack.c.l.b16 %v1003
    %v2415 = vunpack.c.h.b16 %v1003
    %v2416 = vunpack.c.l.b16 %v1004
    %v2417 = vunpack.c.h.b16 %v1004
    %v2418 = vunpack.c.l.b16 %v1005
    %v2419 = vunpack.c.h.b16 %v1005
    %v2420 = vunpack.c.l.b16 %v1006
    %v2421 = vunpack.c.h.b16 %v1006
    %v2422 = vunpack.c.l.b16 %v1007
    %v2423 = vunpack.c.h.b16 %v1007
    %v2424 = vunpack.c.l.b16 %v1008
    %v2425 = vunpack.c.h.b16 %v1008
    %v2426 = vunpack.c.l.b16 %v1009
    %v2427 = vunpack.c.h.b16 %v1009
    %v2428 = vunpack.c.l.b16 %v1010
    %v2429 = vunpack.c.h.b16 %v1010
    %v2430 = vunpack.c.l.b16 %v1011
    %v2431 = vunpack.c.h.b16 %v1011
    %v2432 = vunpack.c.l.b16 %v1012
    %v2433 = vunpack.c.h.b16 %v1012
    %v2434 = vunpack.c.l.b16 %v1013
    %v2435 = vunpack.c.h.b16 %v1013
    %v2436 = vunpack.c.l.b16 %v1014
    %v2437 = vunpack.c.h.b16 %v1014
    %v2438 = vunpack.c.l.b16 %v1015
    %v2439 = vunpack.c.h.b16 %v1015
    %v2440 = vunpack.c.l.b16 %v1016
    %v2441 = vunpack.c.h.b16 %v1016
    %v2442 = vunpack.c.l.b16 %v1017
    %v2443 = vunpack.c.h.b16 %v1017
    %v2444 = vunpack.c.l.b16 %v1018
    %v2445 = vunpack.c.h.b16 %v1018
    %v2446 = vunpack.c.l.b16 %v1019
    %v2447 = vunpack.c.h.b16 %v1019
    %v2448 = vunpack.c.l.b16 %v1020
    %v2449 = vunpack.c.h.b16 %v1020
    %v2450 = vunpack.c.l.b16 %v1021
    %v2451 = vunpack.c.h.b16 %v1021
    %v2452 = vunpack.c.l.b16 %v1022
    %v2453 = vunpack.c.h.b16 %v1022
    %v2454 = vunpack.c.l.b16 %v1023
    %v2455 = vunpack.c.h.b16 %v1023
    %v2456 = vunpack.c.l.b16 %v1024
    %v2457 = vunpack.c.h.b16 %v1024
    %v2458 = vunpack.c.l.b16 %v1025
    %v2459 = vunpack.c.h.b16 %v1025
    %v2460 = vunpack.c.l.b16 %v1026
    %v2461 = vunpack.c.h.b16 %v1026
    %v2462 = vunpack.c.l.b16 %v1027
    %v2463 = vunpack.c.h.b16 %v1027
    %v2464 = vunpack.c.l.b16 %v1028
    %v2465 = vunpack.c.h.b16 %v1028
    %v2466 = vunpack.c.l.b16 %v1029
    %v2467 = vunpack.c.h.b16 %v1029
    %v2468 = vunpack.c.l.b16 %v1030
    %v2469 = vunpack.c.h.b16 %v1030
    %v2470 = vunpack.c.l.b16 %v1031
    %v2471 = vunpack.c.h.b16 %v1031
    %v2472 = vunpack.c.l.b16 %v1032
    %v2473 = vunpack.c.h.b16 %v1032
    %v2474 = vunpack.c.l.b16 %v1033
    %v2475 = vunpack.c.h.b16 %v1033
    %v2476 = vunpack.c.l.b16 %v1034
    %v2477 = vunpack.c.h.b16 %v1034
    %v2478 = vunpack.c.l.b16 %v1035
    %v2479 = vunpack.c.h.b16 %v1035
    %v2480 = vunpack.c.l.b16 %v1036
    %v2481 = vunpack.c.h.b16 %v1036
    %v2482 = vunpack.c.l.b16 %v1037
    %v2483 = vunpack.c.h.b16 %v1037
    %v2484 = vunpack.c.l.b16 %v1038
    %v2485 = vunpack.c.h.b16 %v1038
    %v2486 = vunpack.c.l.b16 %v1039
    %v2487 = vunpack.c.h.b16 %v1039
    %v2488 = vunpack.c.l.b16 %v1040
    %v2489 = vunpack.c.h.b16 %v1040
    %v2490 = vunpack.c.l.b16 %v1041
    %v2491 = vunpack.c.h.b16 %v1041
    %v2492 = vunpack.c.l.b16 %v1042
    %v2493 = vunpack.c.h.b16 %v1042
    %v2494 = vunpack.c.l.b16 %v1043
    %v2495 = vunpack.c.h.b16 %v1043
    %v2496 = vunpack.c.l.b16 %v1044
    %v2497 = vunpack.c.h.b16 %v1044
    %v2498 = vunpack.c.l.b16 %v1045
    %v2499 = vunpack.c.h.b16 %v1045
    %v2500 = vunpack.c.l.b16 %v1046
    %v2501 = vunpack.c.h.b16 %v1046
    %v2502 = vunpack.c.l.b16 %v1047
    %v2503 = vunpack.c.h.b16 %v1047
    %v2504 = vunpack.c.l.b16 %v1048
    %v2505 = vunpack.c.h.b16 %v1048
    %v2506 = vunpack.c.l.b16 %v1049
    %v2507 = vunpack.c.h.b16 %v1049
    %v2508 = vunpack.c.l.b16 %v1050
    %v2509 = vunpack.c.h.b16 %v1050
    %v2510 = vunpack.c.l.b16 %v1051
    %v2511 = vunpack.c.h.b16 %v1051
    %v2512 = vunpack.c.l.b16 %v1052
    %v2513 = vunpack.c.h.b16 %v1052
    %v2514 = vunpack.c.l.b16 %v1053
    %v2515 = vunpack.c.h.b16 %v1053
    %v2516 = vunpack.c.l.b16 %v1054
    %v2517 = vunpack.c.h.b16 %v1054
    %v2518 = vunpack.c.l.b16 %v1055
    %v2519 = vunpack.c.h.b16 %v1055
    %v2520 = vunpack.c.l.b16 %v1056
    %v2521 = vunpack.c.h.b16 %v1056
    %v2522 = vunpack.c.l.b16 %v1057
    %v2523 = vunpack.c.h.b16 %v1057
    %v2524 = vunpack.c.l.b16 %v1058
    %v2525 = vunpack.c.h.b16 %v1058
    %v2526 = vunpack.c.l.b16 %v1059
    %v2527 = vunpack.c.h.b16 %v1059
    %v2528 = vunpack.c.l.b16 %v1060
    %v2529 = vunpack.c.h.b16 %v1060
    %v2530 = vunpack.c.l.b16 %v1061
    %v2531 = vunpack.c.h.b16 %v1061
    %v2532 = vunpack.c.l.b16 %v1062
    %v2533 = vunpack.c.h.b16 %v1062
    %v2534 = vunpack.c.l.b16 %v1063
    %v2535 = vunpack.c.h.b16 %v1063
    %v2536 = vunpack.c.l.b16 %v1064
    %v2537 = vunpack.c.h.b16 %v1064
    %v2538 = vunpack.c.l.b16 %v1065
    %v2539 = vunpack.c.h.b16 %v1065
    %v2540 = vunpack.c.l.b16 %v1066
    %v2541 = vunpack.c.h.b16 %v1066
    %v2542 = vunpack.c.l.b16 %v1067
    %v2543 = vunpack.c.h.b16 %v1067
    %v2544 = vunpack.c.l.b16 %v1068
    %v2545 = vunpack.c.h.b16 %v1068
    %v2546 = vunpack.c.l.b16 %v1069
    %v2547 = vunpack.c.h.b16 %v1069
    %v2548 = vunpack.c.l.b16 %v1070
    %v2549 = vunpack.c.h.b16 %v1070
    %v2550 = vunpack.c.l.b16 %v1071
    %v2551 = vunpack.c.h.b16 %v1071
    %v2552 = vunpack.c.l.b16 %v1072
    %v2553 = vunpack.c.h.b16 %v1072
    %v2554 = vunpack.c.l.b16 %v1073
    %v2555 = vunpack.c.h.b16 %v1073
    %v2556 = vunpack.c.l.b16 %v1074
    %v2557 = vunpack.c.h.b16 %v1074
    %v2558 = vunpack.c.l.b16 %v1075
    %v2559 = vunpack.c.h.b16 %v1075
    %v2560 = vunpack.c.l.b16 %v1076
    %v2561 = vunpack.c.h.b16 %v1076
    %v2562 = vunpack.c.l.b16 %v1077
    %v2563 = vunpack.c.h.b16 %v1077
    %v2564 = vunpack.c.l.b16 %v1078
    %v2565 = vunpack.c.h.b16 %v1078
    %v2566 = vunpack.c.l.b16 %v1079
    %v2567 = vunpack.c.h.b16 %v1079
    %v2568 = vunpack.c.l.b16 %v1080
    %v2569 = vunpack.c.h.b16 %v1080
    %v2570 = vunpack.c.l.b16 %v1081
    %v2571 = vunpack.c.h.b16 %v1081
    %v2572 = vunpack.c.l.b16 %v1082
    %v2573 = vunpack.c.h.b16 %v1082
    %v2574 = vunpack.c.l.b16 %v1083
    %v2575 = vunpack.c.h.b16 %v1083
    %v2576 = vunpack.c.l.b16 %v1084
    %v2577 = vunpack.c.h.b16 %v1084
    %v2578 = vunpack.c.l.b16 %v1085
    %v2579 = vunpack.c.h.b16 %v1085
    %v2580 = vunpack.c.l.b16 %v1086
    %v2581 = vunpack.c.h.b16 %v1086
    %v2582 = vunpack.c.l.b16 %v1087
    %v2583 = vunpack.c.h.b16 %v1087
    %v2584 = vunpack.c.l.b16 %v1088
    %v2585 = vunpack.c.h.b16 %v1088
    %v2586 = vunpack.c.l.b16 %v1089
    %v2587 = vunpack.c.h.b16 %v1089
    %v2588 = vunpack.c.l.b16 %v1090
    %v2589 = vunpack.c.h.b16 %v1090
    %v2590 = vunpack.c.l.b16 %v1091
    %v2591 = vunpack.c.h.b16 %v1091
    %v2592 = vpack.c.b16 %v2088, %v2080
    %v2593 = vpack.c.b16 %v2089, %v2081
    %v2594 = vpack.c.b16 %v2090, %v2082
    %v2595 = vpack.c.b16 %v2091, %v2083
    %v2596 = vpack.c.b16 %v2092, %v2084
    %v2597 = vpack.c.b16 %v2093, %v2085
    %v2598 = vpack.c.b16 %v2094, %v2086
    %v2599 = vpack.c.b16 %v2095, %v2087
    %v2600 = vpack.c.b16 %v2104, %v2096
    %v2601 = vpack.c.b16 %v2105, %v2097
    %v2602 = vpack.c.b16 %v2106, %v2098
    %v2603 = vpack.c.b16 %v2107, %v2099
    %v2604 = vpack.c.b16 %v2108, %v2100
    %v2605 = vpack.c.b16 %v2109, %v2101
    %v2606 = vpack.c.b16 %v2110, %v2102
    %v2607 = vpack.c.b16 %v2111, %v2103
    %v2608 = vpack.c.b16 %v2120, %v2112
    %v2609 = vpack.c.b16 %v2121, %v2113
    %v2610 = vpack.c.b16 %v2122, %v2114
    %v2611 = vpack.c.b16 %v2123, %v2115
    %v2612 = vpack.c.b16 %v2124, %v2116
    %v2613 = vpack.c.b16 %v2125, %v2117
    %v2614 = vpack.c.b16 %v2126, %v2118
    %v2615 = vpack.c.b16 %v2127, %v2119
    %v2616 = vpack.c.b16 %v2136, %v2128
    %v2617 = vpack.c.b16 %v2137, %v2129
    %v2618 = vpack.c.b16 %v2138, %v2130
    %v2619 = vpack.c.b16 %v2139, %v2131
    %v2620 = vpack.c.b16 %v2140, %v2132
    %v2621 = vpack.c.b16 %v2141, %v2133
    %v2622 = vpack.c.b16 %v2142, %v2134
    %v2623 = vpack.c.b16 %v2143, %v2135
    %v2624 = vpack.c.b16 %v2152, %v2144
    %v2625 = vpack.c.b16 %v2153, %v2145
    %v2626 = vpack.c.b16 %v2154, %v2146
    %v2627 = vpack.c.b16 %v2155, %v2147
    %v2628 = vpack.c.b16 %v2156, %v2148
    %v2629 = vpack.c.b16 %v2157, %v2149
    %v2630 = vpack.c.b16 %v2158, %v2150
    %v2631 = vpack.c.b16 %v2159, %v2151
    %v2632 = vpack.c.b16 %v2168, %v2160
    %v2633 = vpack.c.b16 %v2169, %v2161
    %v2634 = vpack.c.b16 %v2170, %v2162
    %v2635 = vpack.c.b16 %v2171, %v2163
    %v2636 = vpack.c.b16 %v2172, %v2164
    %v2637 = vpack.c.b16 %v2173, %v2165
    %v2638 = vpack.c.b16 %v2174, %v2166
    %v2639 = vpack.c.b16 %v2175, %v2167
    %v2640 = vpack.c.b16 %v2184, %v2176
    %v2641 = vpack.c.b16 %v2185, %v2177
    %v2642 = vpack.c.b16 %v2186, %v2178
    %v2643 = vpack.c.b16 %v2187, %v2179
    %v2644 = vpack.c.b16 %v2188, %v2180
    %v2645 = vpack.c.b16 %v2189, %v2181
    %v2646 = vpack.c.b16 %v2190, %v2182
    %v2647 = vpack.c.b16 %v2191, %v2183
    %v2648 = vpack.c.b16 %v2200, %v2192
    %v2649 = vpack.c.b16 %v2201, %v2193
    %v2650 = vpack.c.b16 %v2202, %v2194
    %v2651 = vpack.c.b16 %v2203, %v2195
    %v2652 = vpack.c.b16 %v2204, %v2196
    %v2653 = vpack.c.b16 %v2205, %v2197
    %v2654 = vpack.c.b16 %v2206, %v2198
    %v2655 = vpack.c.b16 %v2207, %v2199
    %v2656 = vpack.c.b16 %v2216, %v2208
    %v2657 = vpack.c.b16 %v2217, %v2209
    %v2658 = vpack.c.b16 %v2218, %v2210
    %v2659 = vpack.c.b16 %v2219, %v2211
    %v2660 = vpack.c.b16 %v2220, %v2212
    %v2661 = vpack.c.b16 %v2221, %v2213
    %v2662 = vpack.c.b16 %v2222, %v2214
    %v2663 = vpack.c.b16 %v2223, %v2215
    %v2664 = vpack.c.b16 %v2232, %v2224
    %v2665 = vpack.c.b16 %v2233, %v2225
    %v2666 = vpack.c.b16 %v2234, %v2226
    %v2667 = vpack.c.b16 %v2235, %v2227
    %v2668 = vpack.c.b16 %v2236, %v2228
    %v2669 = vpack.c.b16 %v2237, %v2229
    %v2670 = vpack.c.b16 %v2238, %v2230
    %v2671 = vpack.c.b16 %v2239, %v2231
    %v2672 = vpack.c.b16 %v2248, %v2240
    %v2673 = vpack.c.b16 %v2249, %v2241
    %v2674 = vpack.c.b16 %v2250, %v2242
    %v2675 = vpack.c.b16 %v2251, %v2243
    %v2676 = vpack.c.b16 %v2252, %v2244
    %v2677 = vpack.c.b16 %v2253, %v2245
    %v2678 = vpack.c.b16 %v2254, %v2246
    %v2679 = vpack.c.b16 %v2255, %v2247
    %v2680 = vpack.c.b16 %v2264, %v2256
    %v2681 = vpack.c.b16 %v2265, %v2257
    %v2682 = vpack.c.b16 %v2266, %v2258
    %v2683 = vpack.c.b16 %v2267, %v2259
    %v2684 = vpack.c.b16 %v2268, %v2260
    %v2685 = vpack.c.b16 %v2269, %v2261
    %v2686 = vpack.c.b16 %v2270, %v2262
    %v2687 = vpack.c.b16 %v2271, %v2263
    %v2688 = vpack.c.b16 %v2280, %v2272
    %v2689 = vpack.c.b16 %v2281, %v2273
    %v2690 = vpack.c.b16 %v2282, %v2274
    %v2691 = vpack.c.b16 %v2283, %v2275
    %v2692 = vpack.c.b16 %v2284, %v2276
    %v2693 = vpack.c.b16 %v2285, %v2277
    %v2694 = vpack.c.b16 %v2286, %v2278
    %v2695 = vpack.c.b16 %v2287, %v2279
    %v2696 = vpack.c.b16 %v2296, %v2288
    %v2697 = vpack.c.b16 %v2297, %v2289
    %v2698 = vpack.c.b16 %v2298, %v2290
    %v2699 = vpack.c.b16 %v2299, %v2291
    %v2700 = vpack.c.b16 %v2300, %v2292
    %v2701 = vpack.c.b16 %v2301, %v2293
    %v2702 = vpack.c.b16 %v2302, %v2294
    %v2703 = vpack.c.b16 %v2303, %v2295
    %v2704 = vpack.c.b16 %v2312, %v2304
    %v2705 = vpack.c.b16 %v2313, %v2305
    %v2706 = vpack.c.b16 %v2314, %v2306
    %v2707 = vpack.c.b16 %v2315, %v2307
    %v2708 = vpack.c.b16 %v2316, %v2308
    %v2709 = vpack.c.b16 %v2317, %v2309
    %v2710 = vpack.c.b16 %v2318, %v2310
    %v2711 = vpack.c.b16 %v2319, %v2311
    %v2712 = vpack.c.b16 %v2328, %v2320
    %v2713 = vpack.c.b16 %v2329, %v2321
    %v2714 = vpack.c.b16 %v2330, %v2322
    %v2715 = vpack.c.b16 %v2331, %v2323
    %v2716 = vpack.c.b16 %v2332, %v2324
    %v2717 = vpack.c.b16 %v2333, %v2325
    %v2718 = vpack.c.b16 %v2334, %v2326
    %v2719 = vpack.c.b16 %v2335, %v2327
    %v2720 = vpack.c.b16 %v2344, %v2336
    %v2721 = vpack.c.b16 %v2345, %v2337
    %v2722 = vpack.c.b16 %v2346, %v2338
    %v2723 = vpack.c.b16 %v2347, %v2339
    %v2724 = vpack.c.b16 %v2348, %v2340
    %v2725 = vpack.c.b16 %v2349, %v2341
    %v2726 = vpack.c.b16 %v2350, %v2342
    %v2727 = vpack.c.b16 %v2351, %v2343
    %v2728 = vpack.c.b16 %v2360, %v2352
    %v2729 = vpack.c.b16 %v2361, %v2353
    %v2730 = vpack.c.b16 %v2362, %v2354
    %v2731 = vpack.c.b16 %v2363, %v2355
    %v2732 = vpack.c.b16 %v2364, %v2356
    %v2733 = vpack.c.b16 %v2365, %v2357
    %v2734 = vpack.c.b16 %v2366, %v2358
    %v2735 = vpack.c.b16 %v2367, %v2359
    %v2736 = vpack.c.b16 %v2376, %v2368
    %v2737 = vpack.c.b16 %v2377, %v2369
    %v2738 = vpack.c.b16 %v2378, %v2370
    %v2739 = vpack.c.b16 %v2379, %v2371
    %v2740 = vpack.c.b16 %v2380, %v2372
    %v2741 = vpack.c.b16 %v2381, %v2373
    %v2742 = vpack.c.b16 %v2382, %v2374
    %v2743 = vpack.c.b16 %v2383, %v2375
    %v2744 = vpack.c.b16 %v2392, %v2384
    %v2745 = vpack.c.b16 %v2393, %v2385
    %v2746 = vpack.c.b16 %v2394, %v2386
    %v2747 = vpack.c.b16 %v2395, %v2387
    %v2748 = vpack.c.b16 %v2396, %v2388
    %v2749 = vpack.c.b16 %v2397, %v2389
    %v2750 = vpack.c.b16 %v2398, %v2390
    %v2751 = vpack.c.b16 %v2399, %v2391
    %v2752 = vpack.c.b16 %v2408, %v2400
    %v2753 = vpack.c.b16 %v2409, %v2401
    %v2754 = vpack.c.b16 %v2410, %v2402
    %v2755 = vpack.c.b16 %v2411, %v2403
    %v2756 = vpack.c.b16 %v2412, %v2404
    %v2757 = vpack.c.b16 %v2413, %v2405
    %v2758 = vpack.c.b16 %v2414, %v2406
    %v2759 = vpack.c.b16 %v2415, %v2407
    %v2760 = vpack.c.b16 %v2424, %v2416
    %v2761 = vpack.c.b16 %v2425, %v2417
    %v2762 = vpack.c.b16 %v2426, %v2418
    %v2763 = vpack.c.b16 %v2427, %v2419
    %v2764 = vpack.c.b16 %v2428, %v2420
    %v2765 = vpack.c.b16 %v2429, %v2421
    %v2766 = vpack.c.b16 %v2430, %v2422
    %v2767 = vpack.c.b16 %v2431, %v2423
    %v2768 = vpack.c.b16 %v2440, %v2432
    %v2769 = vpack.c.b16 %v2441, %v2433
    %v2770 = vpack.c.b16 %v2442, %v2434
    %v2771 = vpack.c.b16 %v2443, %v2435
    %v2772 = vpack.c.b16 %v2444, %v2436
    %v2773 = vpack.c.b16 %v2445, %v2437
    %v2774 = vpack.c.b16 %v2446, %v2438
    %v2775 = vpack.c.b16 %v2447, %v2439
    %v2776 = vpack.c.b16 %v2456, %v2448
    %v2777 = vpack.c.b16 %v2457, %v2449
    %v2778 = vpack.c.b16 %v2458, %v2450
    %v2779 = vpack.c.b16 %v2459, %v2451
    %v2780 = vpack.c.b16 %v2460, %v2452
    %v2781 = vpack.c.b16 %v2461, %v2453
    %v2782 = vpack.c.b16 %v2462, %v2454
    %v2783 = vpack.c.b16 %v2463, %v2455
    %v2784 = vpack.c.b16 %v2472, %v2464
    %v2785 = vpack.c.b16 %v2473, %v2465
    %v2786 = vpack.c.b16 %v2474, %v2466
    %v2787 = vpack.c.b16 %v2475, %v2467
    %v2788 = vpack.c.b16 %v2476, %v2468
    %v2789 = vpack.c.b16 %v2477, %v2469
    %v2790 = vpack.c.b16 %v2478, %v2470
    %v2791 = vpack.c.b16 %v2479, %v2471
    %v2792 = vpack.c.b16 %v2488, %v2480
    %v2793 = vpack.c.b16 %v2489, %v2481
    %v2794 = vpack.c.b16 %v2490, %v2482
    %v2795 = vpack.c.b16 %v2491, %v2483
    %v2796 = vpack.c.b16 %v2492, %v2484
    %v2797 = vpack.c.b16 %v2493, %v2485
    %v2798 = vpack.c.b16 %v2494, %v2486
    %v2799 = vpack.c.b16 %v2495, %v2487
    %v2800 = vpack.c.b16 %v2504, %v2496
    %v2801 = vpack.c.b16 %v2505, %v2497
    %v2802 = vpack.c.b16 %v2506, %v2498
    %v2803 = vpack.c.b16 %v2507, %v2499
    %v2804 = vpack.c.b16 %v2508, %v2500
    %v2805 = vpack.c.b16 %v2509, %v2501
    %v2806 = vpack.c.b16 %v2510, %v2502
    %v2807 = vpack.c.b16 %v2511, %v2503
    %v2808 = vpack.c.b16 %v2520, %v2512
    %v2809 = vpack.c.b16 %v2521, %v2513
    %v2810 = vpack.c.b16 %v2522, %v2514
    %v2811 = vpack.c.b16 %v2523, %v2515
    %v2812 = vpack.c.b16 %v2524, %v2516
    %v2813 = vpack.c.b16 %v2525, %v2517
    %v2814 = vpack.c.b16 %v2526, %v2518
    %v2815 = vpack.c.b16 %v2527, %v2519
    %v2816 = vpack.c.b16 %v2536, %v2528
    %v2817 = vpack.c.b16 %v2537, %v2529
    %v2818 = vpack.c.b16 %v2538, %v2530
    %v2819 = vpack.c.b16 %v2539, %v2531
    %v2820 = vpack.c.b16 %v2540, %v2532
    %v2821 = vpack.c.b16 %v2541, %v2533
    %v2822 = vpack.c.b16 %v2542, %v2534
    %v2823 = vpack.c.b16 %v2543, %v2535
    %v2824 = vpack.c.b16 %v2552, %v2544
    %v2825 = vpack.c.b16 %v2553, %v2545
    %v2826 = vpack.c.b16 %v2554, %v2546
    %v2827 = vpack.c.b16 %v2555, %v2547
    %v2828 = vpack.c.b16 %v2556, %v2548
    %v2829 = vpack.c.b16 %v2557, %v2549
    %v2830 = vpack.c.b16 %v2558, %v2550
    %v2831 = vpack.c.b16 %v2559, %v2551
    %v2832 = vpack.c.b16 %v2568, %v2560
    %v2833 = vpack.c.b16 %v2569, %v2561
    %v2834 = vpack.c.b16 %v2570, %v2562
    %v2835 = vpack.c.b16 %v2571, %v2563
    %v2836 = vpack.c.b16 %v2572, %v2564
    %v2837 = vpack.c.b16 %v2573, %v2565
    %v2838 = vpack.c.b16 %v2574, %v2566
    %v2839 = vpack.c.b16 %v2575, %v2567
    %v2840 = vpack.c.b16 %v2584, %v2576
    %v2841 = vpack.c.b16 %v2585, %v2577
    %v2842 = vpack.c.b16 %v2586, %v2578
    %v2843 = vpack.c.b16 %v2587, %v2579
    %v2844 = vpack.c.b16 %v2588, %v2580
    %v2845 = vpack.c.b16 %v2589, %v2581
    %v2846 = vpack.c.b16 %v2590, %v2582
    %v2847 = vpack.c.b16 %v2591, %v2583
    %3104 = vmatprep.subr.bf16.mxu0 %v2593
    %3105 = vmatpush1.bf16.msra.mxu0 %v2592
    %3106 = vmatprep.subr.bf16.mxu0 %v2601
    %3107 = vmatpush1.bf16.msra.mxu0 %v2600
    %3108 = vmatprep.subr.bf16.mxu0 %v2609
    %3109 = vmatpush1.bf16.msra.mxu0 %v2608
    %3110 = vmatprep.subr.bf16.mxu0 %v2617
    %3111 = vmatpush1.bf16.msra.mxu0 %v2616
    %3112 = vmatprep.subr.bf16.mxu0 %v2625
    %3113 = vmatpush1.bf16.msra.mxu0 %v2624
    %3114 = vmatprep.subr.bf16.mxu0 %v2633
    %3115 = vmatpush1.bf16.msra.mxu0 %v2632
    %3116 = vmatprep.subr.bf16.mxu0 %v2641
    %3117 = vmatpush1.bf16.msra.mxu0 %v2640
    %3118 = vmatprep.subr.bf16.mxu0 %v2649
    %3119 = vmatpush1.bf16.msra.mxu0 %v2648
    %3120 = vmatprep.subr.bf16.mxu0 %v2657
    %3121 = vmatpush1.bf16.msra.mxu0 %v2656
    %3122 = vmatprep.subr.bf16.mxu0 %v2665
    %3123 = vmatpush1.bf16.msra.mxu0 %v2664
    %3124 = vmatprep.subr.bf16.mxu0 %v2673
    %3125 = vmatpush1.bf16.msra.mxu0 %v2672
    %3126 = vmatprep.subr.bf16.mxu0 %v2681
    %3127 = vmatpush1.bf16.msra.mxu0 %v2680
    %3128 = vmatprep.subr.bf16.mxu0 %v2689
    %3129 = vmatpush1.bf16.msra.mxu0 %v2688
    %3130 = vmatprep.subr.bf16.mxu0 %v2697
    %3131 = vmatpush1.bf16.msra.mxu0 %v2696
    %3132 = vmatprep.subr.bf16.mxu0 %v2705
    %3133 = vmatpush1.bf16.msra.mxu0 %v2704
    %3134 = vmatprep.subr.bf16.mxu0 %v2713
    %3135 = vmatpush1.bf16.msra.mxu0 %v2712
    %3136 = vmatprep.mubr.bf16.mxu0 %v1780
    %3137 = vmatmul.mubr.bf16.gmra.mrb[0].mxu0 %v1779
    %v3138 = vpop.f32.mrb[0].mxu0
    %v3139 = vadd.f32 %v1787, %v3138
    %v3140 = vpop.f32.mrb[0].mxu0
    %v3141 = vadd.f32 %v1791, %v3140
    %v3142 = vpop.f32.mrb[0].mxu0
    %v3143 = vpop.f32.mrb[0].mxu0
    %3144 = vdwg.mxu0
    %3145 = vmatprep.subr.bf16.mxu0 %v2721
    %3146 = vmatpush1.bf16.msra.mxu0 %v2720
    %3147 = vmatprep.subr.bf16.mxu0 %v2729
    %3148 = vmatpush1.bf16.msra.mxu0 %v2728
    %3149 = vmatprep.subr.bf16.mxu0 %v2737
    %3150 = vmatpush1.bf16.msra.mxu0 %v2736
    %3151 = vmatprep.subr.bf16.mxu0 %v2745
    %3152 = vmatpush1.bf16.msra.mxu0 %v2744
    %3153 = vmatprep.subr.bf16.mxu0 %v2753
    %3154 = vmatpush1.bf16.msra.mxu0 %v2752
    %3155 = vmatprep.subr.bf16.mxu0 %v2761
    %3156 = vmatpush1.bf16.msra.mxu0 %v2760
    %3157 = vmatprep.subr.bf16.mxu0 %v2769
    %3158 = vmatpush1.bf16.msra.mxu0 %v2768
    %3159 = vmatprep.subr.bf16.mxu0 %v2777
    %3160 = vmatpush1.bf16.msra.mxu0 %v2776
    %3161 = vmatprep.subr.bf16.mxu0 %v2785
    %3162 = vmatpush1.bf16.msra.mxu0 %v2784
    %3163 = vmatprep.subr.bf16.mxu0 %v2793
    %3164 = vmatpush1.bf16.msra.mxu0 %v2792
    %3165 = vmatprep.subr.bf16.mxu0 %v2801
    %3166 = vmatpush1.bf16.msra.mxu0 %v2800
    %3167 = vmatprep.subr.bf16.mxu0 %v2809
    %3168 = vmatpush1.bf16.msra.mxu0 %v2808
    %3169 = vmatprep.subr.bf16.mxu0 %v2817
    %3170 = vmatpush1.bf16.msra.mxu0 %v2816
    %3171 = vmatprep.subr.bf16.mxu0 %v2825
    %3172 = vmatpush1.bf16.msra.mxu0 %v2824
    %3173 = vmatprep.subr.bf16.mxu0 %v2833
    %3174 = vmatpush1.bf16.msra.mxu0 %v2832
    %3175 = vmatprep.subr.bf16.mxu0 %v2841
    %3176 = vmatpush1.bf16.msra.mxu0 %v2840
    %3177 = vmatprep.mubr.bf16.mxu0 %v1782
    %3178 = vmatmul.mubr.bf16.gmra.mrb[0].mxu0 %v1781
    %v3179 = vpop.f32.mrb[0].mxu0
    %v3180 = vadd.f32 %v3139, %v3179
    %v3181 = vpop.f32.mrb[0].mxu0
    %v3182 = vadd.f32 %v3141, %v3181
    %v3183 = vpop.f32.mrb[0].mxu0
    %v3184 = vpop.f32.mrb[0].mxu0
    %3185 = vdwg.mxu0
    %3186 = vmatprep.subr.bf16.mxu0 %v2595
    %3187 = vmatpush1.bf16.msra.mxu0 %v2594
    %3188 = vmatprep.subr.bf16.mxu0 %v2603
    %3189 = vmatpush1.bf16.msra.mxu0 %v2602
    %3190 = vmatprep.subr.bf16.mxu0 %v2611
    %3191 = vmatpush1.bf16.msra.mxu0 %v2610
    %3192 = vmatprep.subr.bf16.mxu0 %v2619
    %3193 = vmatpush1.bf16.msra.mxu0 %v2618
    %3194 = vmatprep.subr.bf16.mxu0 %v2627
    %3195 = vmatpush1.bf16.msra.mxu0 %v2626
    %3196 = vmatprep.subr.bf16.mxu0 %v2635
    %3197 = vmatpush1.bf16.msra.mxu0 %v2634
    %3198 = vmatprep.subr.bf16.mxu0 %v2643
    %3199 = vmatpush1.bf16.msra.mxu0 %v2642
    %3200 = vmatprep.subr.bf16.mxu0 %v2651
    %3201 = vmatpush1.bf16.msra.mxu0 %v2650
    %3202 = vmatprep.subr.bf16.mxu0 %v2659
    %3203 = vmatpush1.bf16.msra.mxu0 %v2658
    %3204 = vmatprep.subr.bf16.mxu0 %v2667
    %3205 = vmatpush1.bf16.msra.mxu0 %v2666
    %3206 = vmatprep.subr.bf16.mxu0 %v2675
    %3207 = vmatpush1.bf16.msra.mxu0 %v2674
    %3208 = vmatprep.subr.bf16.mxu0 %v2683
    %3209 = vmatpush1.bf16.msra.mxu0 %v2682
    %3210 = vmatprep.subr.bf16.mxu0 %v2691
    %3211 = vmatpush1.bf16.msra.mxu0 %v2690
    %3212 = vmatprep.subr.bf16.mxu0 %v2699
    %3213 = vmatpush1.bf16.msra.mxu0 %v2698
    %3214 = vmatprep.subr.bf16.mxu0 %v2707
    %3215 = vmatpush1.bf16.msra.mxu0 %v2706
    %3216 = vmatprep.subr.bf16.mxu0 %v2715
    %3217 = vmatpush1.bf16.msra.mxu0 %v2714
    %3218 = vmatprep.mubr.bf16.mxu0 %v1780
    %3219 = vmatmul.mubr.bf16.gmra.mrb[0].mxu0 %v1779
    %v3220 = vpop.f32.mrb[0].mxu0
    %v3221 = vadd.f32 %v1795, %v3220
    %v3222 = vpop.f32.mrb[0].mxu0
    %v3223 = vadd.f32 %v1799, %v3222
    %v3224 = vpop.f32.mrb[0].mxu0
    %v3225 = vpop.f32.mrb[0].mxu0
    %3226 = vdwg.mxu0
    %3227 = vmatprep.subr.bf16.mxu0 %v2723
    %3228 = vmatpush1.bf16.msra.mxu0 %v2722
    %3229 = vmatprep.subr.bf16.mxu0 %v2731
    %3230 = vmatpush1.bf16.msra.mxu0 %v2730
    %3231 = vmatprep.subr.bf16.mxu0 %v2739
    %3232 = vmatpush1.bf16.msra.mxu0 %v2738
    %3233 = vmatprep.subr.bf16.mxu0 %v2747
    %3234 = vmatpush1.bf16.msra.mxu0 %v2746
    %3235 = vmatprep.subr.bf16.mxu0 %v2755
    %3236 = vmatpush1.bf16.msra.mxu0 %v2754
    %3237 = vmatprep.subr.bf16.mxu0 %v2763
    %3238 = vmatpush1.bf16.msra.mxu0 %v2762
    %3239 = vmatprep.subr.bf16.mxu0 %v2771
    %3240 = vmatpush1.bf16.msra.mxu0 %v2770
    %3241 = vmatprep.subr.bf16.mxu0 %v2779
    %3242 = vmatpush1.bf16.msra.mxu0 %v2778
    %3243 = vmatprep.subr.bf16.mxu0 %v2787
    %3244 = vmatpush1.bf16.msra.mxu0 %v2786
    %3245 = vmatprep.subr.bf16.mxu0 %v2795
    %3246 = vmatpush1.bf16.msra.mxu0 %v2794
    %3247 = vmatprep.subr.bf16.mxu0 %v2803
    %3248 = vmatpush1.bf16.msra.mxu0 %v2802
    %3249 = vmatprep.subr.bf16.mxu0 %v2811
    %3250 = vmatpush1.bf16.msra.mxu0 %v2810
    %3251 = vmatprep.subr.bf16.mxu0 %v2819
    %3252 = vmatpush1.bf16.msra.mxu0 %v2818
    %3253 = vmatprep.subr.bf16.mxu0 %v2827
    %3254 = vmatpush1.bf16.msra.mxu0 %v2826
    %3255 = vmatprep.subr.bf16.mxu0 %v2835
    %3256 = vmatpush1.bf16.msra.mxu0 %v2834
    %3257 = vmatprep.subr.bf16.mxu0 %v2843
    %3258 = vmatpush1.bf16.msra.mxu0 %v2842
    %3259 = vmatprep.mubr.bf16.mxu0 %v1782
    %3260 = vmatmul.mubr.bf16.gmra.mrb[0].mxu0 %v1781
    %v3261 = vpop.f32.mrb[0].mxu0
    %v3262 = vadd.f32 %v3221, %v3261
    %v3263 = vpop.f32.mrb[0].mxu0
    %v3264 = vadd.f32 %v3223, %v3263
    %v3265 = vpop.f32.mrb[0].mxu0
    %v3266 = vpop.f32.mrb[0].mxu0
    %3267 = vdwg.mxu0
    %3268 = vmatprep.subr.bf16.mxu0 %v2597
    %3269 = vmatpush1.bf16.msra.mxu0 %v2596
    %3270 = vmatprep.subr.bf16.mxu0 %v2605
    %3271 = vmatpush1.bf16.msra.mxu0 %v2604
    %3272 = vmatprep.subr.bf16.mxu0 %v2613
    %3273 = vmatpush1.bf16.msra.mxu0 %v2612
    %3274 = vmatprep.subr.bf16.mxu0 %v2621
    %3275 = vmatpush1.bf16.msra.mxu0 %v2620
    %3276 = vmatprep.subr.bf16.mxu0 %v2629
    %3277 = vmatpush1.bf16.msra.mxu0 %v2628
    %3278 = vmatprep.subr.bf16.mxu0 %v2637
    %3279 = vmatpush1.bf16.msra.mxu0 %v2636
    %3280 = vmatprep.subr.bf16.mxu0 %v2645
    %3281 = vmatpush1.bf16.msra.mxu0 %v2644
    %3282 = vmatprep.subr.bf16.mxu0 %v2653
    %3283 = vmatpush1.bf16.msra.mxu0 %v2652
    %3284 = vmatprep.subr.bf16.mxu0 %v2661
    %3285 = vmatpush1.bf16.msra.mxu0 %v2660
    %3286 = vmatprep.subr.bf16.mxu0 %v2669
    %3287 = vmatpush1.bf16.msra.mxu0 %v2668
    %3288 = vmatprep.subr.bf16.mxu0 %v2677
    %3289 = vmatpush1.bf16.msra.mxu0 %v2676
    %3290 = vmatprep.subr.bf16.mxu0 %v2685
    %3291 = vmatpush1.bf16.msra.mxu0 %v2684
    %3292 = vmatprep.subr.bf16.mxu0 %v2693
    %3293 = vmatpush1.bf16.msra.mxu0 %v2692
    %3294 = vmatprep.subr.bf16.mxu0 %v2701
    %3295 = vmatpush1.bf16.msra.mxu0 %v2700
    %3296 = vmatprep.subr.bf16.mxu0 %v2709
    %3297 = vmatpush1.bf16.msra.mxu0 %v2708
    %3298 = vmatprep.subr.bf16.mxu0 %v2717
    %3299 = vmatpush1.bf16.msra.mxu0 %v2716
    %3300 = vmatprep.mubr.bf16.mxu0 %v1780
    %3301 = vmatmul.mubr.bf16.gmra.mrb[0].mxu0 %v1779
    %v3302 = vpop.f32.mrb[0].mxu0
    %v3303 = vadd.f32 %v1803, %v3302
    %v3304 = vpop.f32.mrb[0].mxu0
    %v3305 = vadd.f32 %v1807, %v3304
    %v3306 = vpop.f32.mrb[0].mxu0
    %v3307 = vpop.f32.mrb[0].mxu0
    %3308 = vdwg.mxu0
    %3309 = vmatprep.subr.bf16.mxu0 %v2725
    %3310 = vmatpush1.bf16.msra.mxu0 %v2724
    %3311 = vmatprep.subr.bf16.mxu0 %v2733
    %3312 = vmatpush1.bf16.msra.mxu0 %v2732
    %3313 = vmatprep.subr.bf16.mxu0 %v2741
    %3314 = vmatpush1.bf16.msra.mxu0 %v2740
    %3315 = vmatprep.subr.bf16.mxu0 %v2749
    %3316 = vmatpush1.bf16.msra.mxu0 %v2748
    %3317 = vmatprep.subr.bf16.mxu0 %v2757
    %3318 = vmatpush1.bf16.msra.mxu0 %v2756
    %3319 = vmatprep.subr.bf16.mxu0 %v2765
    %3320 = vmatpush1.bf16.msra.mxu0 %v2764
    %3321 = vmatprep.subr.bf16.mxu0 %v2773
    %3322 = vmatpush1.bf16.msra.mxu0 %v2772
    %3323 = vmatprep.subr.bf16.mxu0 %v2781
    %3324 = vmatpush1.bf16.msra.mxu0 %v2780
    %3325 = vmatprep.subr.bf16.mxu0 %v2789
    %3326 = vmatpush1.bf16.msra.mxu0 %v2788
    %3327 = vmatprep.subr.bf16.mxu0 %v2797
    %3328 = vmatpush1.bf16.msra.mxu0 %v2796
    %3329 = vmatprep.subr.bf16.mxu0 %v2805
    %3330 = vmatpush1.bf16.msra.mxu0 %v2804
    %3331 = vmatprep.subr.bf16.mxu0 %v2813
    %3332 = vmatpush1.bf16.msra.mxu0 %v2812
    %3333 = vmatprep.subr.bf16.mxu0 %v2821
    %3334 = vmatpush1.bf16.msra.mxu0 %v2820
    %3335 = vmatprep.subr.bf16.mxu0 %v2829
    %3336 = vmatpush1.bf16.msra.mxu0 %v2828
    %3337 = vmatprep.subr.bf16.mxu0 %v2837
    %3338 = vmatpush1.bf16.msra.mxu0 %v2836
    %3339 = vmatprep.subr.bf16.mxu0 %v2845
    %3340 = vmatpush1.bf16.msra.mxu0 %v2844
    %3341 = vmatprep.mubr.bf16.mxu0 %v1782
    %3342 = vmatmul.mubr.bf16.gmra.mrb[0].mxu0 %v1781
    %v3343 = vpop.f32.mrb[0].mxu0
    %v3344 = vadd.f32 %v3303, %v3343
    %v3345 = vpop.f32.mrb[0].mxu0
    %v3346 = vadd.f32 %v3305, %v3345
    %v3347 = vpop.f32.mrb[0].mxu0
    %v3348 = vpop.f32.mrb[0].mxu0
    %3349 = vdwg.mxu0
    %3350 = vmatprep.subr.bf16.mxu0 %v2599
    %3351 = vmatpush1.bf16.msra.mxu0 %v2598
    %3352 = vmatprep.subr.bf16.mxu0 %v2607
    %3353 = vmatpush1.bf16.msra.mxu0 %v2606
    %3354 = vmatprep.subr.bf16.mxu0 %v2615
    %3355 = vmatpush1.bf16.msra.mxu0 %v2614
    %3356 = vmatprep.subr.bf16.mxu0 %v2623
    %3357 = vmatpush1.bf16.msra.mxu0 %v2622
    %3358 = vmatprep.subr.bf16.mxu0 %v2631
    %3359 = vmatpush1.bf16.msra.mxu0 %v2630
    %3360 = vmatprep.subr.bf16.mxu0 %v2639
    %3361 = vmatpush1.bf16.msra.mxu0 %v2638
    %3362 = vmatprep.subr.bf16.mxu0 %v2647
    %3363 = vmatpush1.bf16.msra.mxu0 %v2646
    %3364 = vmatprep.subr.bf16.mxu0 %v2655
    %3365 = vmatpush1.bf16.msra.mxu0 %v2654
    %3366 = vmatprep.subr.bf16.mxu0 %v2663
    %3367 = vmatpush1.bf16.msra.mxu0 %v2662
    %3368 = vmatprep.subr.bf16.mxu0 %v2671
    %3369 = vmatpush1.bf16.msra.mxu0 %v2670
    %3370 = vmatprep.subr.bf16.mxu0 %v2679
    %3371 = vmatpush1.bf16.msra.mxu0 %v2678
    %3372 = vmatprep.subr.bf16.mxu0 %v2687
    %3373 = vmatpush1.bf16.msra.mxu0 %v2686
    %3374 = vmatprep.subr.bf16.mxu0 %v2695
    %3375 = vmatpush1.bf16.msra.mxu0 %v2694
    %3376 = vmatprep.subr.bf16.mxu0 %v2703
    %3377 = vmatpush1.bf16.msra.mxu0 %v2702
    %3378 = vmatprep.subr.bf16.mxu0 %v2711
    %3379 = vmatpush1.bf16.msra.mxu0 %v2710
    %3380 = vmatprep.subr.bf16.mxu0 %v2719
    %3381 = vmatpush1.bf16.msra.mxu0 %v2718
    %3382 = vmatprep.mubr.bf16.mxu0 %v1780
    %3383 = vmatmul.mubr.bf16.gmra.mrb[0].mxu0 %v1779
    %v3384 = vpop.f32.mrb[0].mxu0
    %v3385 = vadd.f32 %v1811, %v3384
    %v3386 = vpop.f32.mrb[0].mxu0
    %v3387 = vadd.f32 %v1815, %v3386
    %v3388 = vpop.f32.mrb[0].mxu0
    %v3389 = vpop.f32.mrb[0].mxu0
    %3390 = vdwg.mxu0
    %3391 = vmatprep.subr.bf16.mxu0 %v2727
    %3392 = vmatpush1.bf16.msra.mxu0 %v2726
    %3393 = vmatprep.subr.bf16.mxu0 %v2735
    %3394 = vmatpush1.bf16.msra.mxu0 %v2734
    %3395 = vmatprep.subr.bf16.mxu0 %v2743
    %3396 = vmatpush1.bf16.msra.mxu0 %v2742
    %3397 = vmatprep.subr.bf16.mxu0 %v2751
    %3398 = vmatpush1.bf16.msra.mxu0 %v2750
    %3399 = vmatprep.subr.bf16.mxu0 %v2759
    %3400 = vmatpush1.bf16.msra.mxu0 %v2758
    %3401 = vmatprep.subr.bf16.mxu0 %v2767
    %3402 = vmatpush1.bf16.msra.mxu0 %v2766
    %3403 = vmatprep.subr.bf16.mxu0 %v2775
    %3404 = vmatpush1.bf16.msra.mxu0 %v2774
    %3405 = vmatprep.subr.bf16.mxu0 %v2783
    %3406 = vmatpush1.bf16.msra.mxu0 %v2782
    %3407 = vmatprep.subr.bf16.mxu0 %v2791
    %3408 = vmatpush1.bf16.msra.mxu0 %v2790
    %3409 = vmatprep.subr.bf16.mxu0 %v2799
    %3410 = vmatpush1.bf16.msra.mxu0 %v2798
    %3411 = vmatprep.subr.bf16.mxu0 %v2807
    %3412 = vmatpush1.bf16.msra.mxu0 %v2806
    %3413 = vmatprep.subr.bf16.mxu0 %v2815
    %3414 = vmatpush1.bf16.msra.mxu0 %v2814
    %3415 = vmatprep.subr.bf16.mxu0 %v2823
    %3416 = vmatpush1.bf16.msra.mxu0 %v2822
    %3417 = vmatprep.subr.bf16.mxu0 %v2831
    %3418 = vmatpush1.bf16.msra.mxu0 %v2830
    %3419 = vmatprep.subr.bf16.mxu0 %v2839
    %3420 = vmatpush1.bf16.msra.mxu0 %v2838
    %3421 = vmatprep.subr.bf16.mxu0 %v2847
    %3422 = vmatpush1.bf16.msra.mxu0 %v2846
    %3423 = vmatprep.mubr.bf16.mxu0 %v1782
    %3424 = vmatmul.mubr.bf16.gmra.mrb[0].mxu0 %v1781
    %v3425 = vpop.f32.mrb[0].mxu0
    %v3426 = vadd.f32 %v3385, %v3425
    %v3427 = vpop.f32.mrb[0].mxu0
    %v3428 = vadd.f32 %v3387, %v3427
    %v3429 = vpop.f32.mrb[0].mxu0
    %v3430 = vpop.f32.mrb[0].mxu0
    %3431 = vdwg.mxu0
    %v3440 = vcombine.low %v3180, %v3182
    %v3441 = vcombine.low %v3262, %v3264
    %v3442 = vcombine.low %v3344, %v3346
    %v3443 = vcombine.low %v3426, %v3428
    %3448 = vst [vmem:[%s9] sm:$0xff] %v3440
    %3449 = vst [vmem:[%s9 + $0x8] sm:$0xff] %v3441
    %3450 = vst [vmem:[%s9 + $0x10] sm:$0xff] %v3442
    %3451 = vst [vmem:[%s9 + $0x18] sm:$0xff] %v3443
    // Predicated region
    $region38: #{byol_forward.2} parent=1 // pred_check
      _
    $region39: #{byol_forward.2} parent=1 // pred_check_branch
      %3453 = sbr.rel (0) target = $region41
    $region40: #{byol_forward.2} parent=1 // pred_region
      _
    $region41: #{byol_forward.2} parent=1 // pred_fallthru
      _
    // Predicated region
    $region42: #{byol_forward.2} parent=1 // pred_check
      _
    $region43: #{byol_forward.2} parent=1 // pred_check_branch
      %3455 = sbr.rel (0) target = $region45
    $region44: #{byol_forward.2} parent=1 // pred_region
      %s3457 = ssub.s32 128, 128
      %3458 = vsyncadd [#allocation3], %s3457
      %s3460 = sshll.u32 [#allocation2], 4
      %s3461 = int_to_ptr.vmem [resolvable:$true] %s3460
      %3463 = dma.vmem_to_hbm [thread:$0]  %s3461, 128, %s10, [#allocation3]
    $region45: #{byol_forward.2} parent=1 // pred_fallthru
      _
    // Predicated region
    $region46: #{byol_forward.2} parent=1 // pred_check
      _
    $region47: #{byol_forward.2} parent=1 // pred_check_branch
      %3465 = sbr.rel (0) target = $region49
    $region48: #{byol_forward.2} parent=1 // pred_region
      _
    $region49: #{byol_forward.2} parent=1 // pred_fallthru
      _
    // Predicated region
    $region50: #{byol_forward.2} parent=1 // pred_check
      _
    $region51: #{byol_forward.2} parent=1 // pred_check_branch
      %3467 = sbr.rel (0) target = $region53
    $region52: #{byol_forward.2} parent=1 // pred_region
      %3468 = dma.done [#allocation3], 128
    $region53: #{byol_forward.2} parent=1 // pred_fallthru
      _
    %3469 = vsyncpa [#allocation3], 1

// kernel: byol_forward.3
$region0: #{byol_forward.3}
  #allocation0 [shape = 'u32[]', space=smem, size = 0x4, offset = 0x4, fixed_abs, tag = 'smem constant byte address 0x4 - core index']
  #allocation1 [shape = 'u32[144,128]{1,0:T(1,128)}', space=vmem, size = 0x12000, scoped, tag = 'internal scratch']
  %s0 = inlined_call_operand.vmem [shape: f32[4,768], index: 0, kind: input, shape index: {}]
  %s1 = inlined_call_operand.vmem [shape: bf16[768,256], index: 1, kind: input, shape index: {}]
  %s2 = inlined_call_operand.vmem [shape: f32[1,256], index: 2, kind: input, shape index: {}]
  %s3 = inlined_call_operand.vmem [shape: bf16[256,512], index: 3, kind: input, shape index: {}]
  %s4 = inlined_call_operand.vmem [shape: f32[1,512], index: 4, kind: input, shape index: {}]
  %s5 = inlined_call_operand.vmem [shape: f32[1,512], index: 5, kind: input, shape index: {}]
  %s6 = inlined_call_operand.vmem [shape: f32[1,512], index: 6, kind: input, shape index: {}]
  %s7 = inlined_call_operand.vmem [shape: bf16[512,1024], index: 7, kind: input, shape index: {}]
  %s8 = inlined_call_operand.vmem [shape: f32[1,1024], index: 8, kind: input, shape index: {}]
  %s9 = inlined_call_operand.vmem [shape: bf16[1024,512], index: 9, kind: input, shape index: {}]
  %s10 = inlined_call_operand.vmem [shape: f32[1,512], index: 10, kind: input, shape index: {}]
  %s11 = inlined_call_operand.vmem [shape: f32[1,512], index: 11, kind: input, shape index: {}]
  %s12 = inlined_call_operand.vmem [shape: f32[1,512], index: 12, kind: input, shape index: {}]
  %s13 = inlined_call_operand.vmem [shape: bf16[512,1024], index: 13, kind: input, shape index: {}]
  %s14 = inlined_call_operand.vmem [shape: f32[1,1024], index: 14, kind: input, shape index: {}]
  %s15 = inlined_call_operand.vmem [shape: f32[4,1024], index: 15, kind: input, shape index: {}]
  %s16 = inlined_call_operand.hbm [shape: f32[4,256], index: 16, kind: output, shape index: {0}]
  %s17 = inlined_call_operand.hbm [shape: f32[1,1], index: 17, kind: output, shape index: {1}]
  %18 = xla_tuple %s16, %s17
  %s19 = sld [smem:[#allocation0]]
  $region82: #{byol_forward.3} parent=0
    _
  %s21 = ssub.s32 1, %s19
  %s22 = scalar_select 0, %s21, %s19
  $region1: #{byol_forward.3} parent=0
    #allocation2 [shape = 'u8[4096]{0}', space=vmem, size = 0x1000, scoped, tag = 'output window, operand 0, single buffered']
    #allocation3 [shape = 's32[1]{0}', space=sflag, size = 0x4, scoped, tag = 'scoped memory for byol_forward.3']
    #allocation4 [shape = 's32[1]{0}', space=sflag, size = 0x4, scoped, tag = 'scoped memory for byol_forward.3']
    #allocation5 [shape = 'u8[512]{0}', space=smem, size = 0x200, scoped, tag = 'output window, operand 1, single buffered']
    %23 = vsyncpa [#allocation3], 0
    %24 = vsyncpa [#allocation4], 0
    // Predicated region
    $region2: #{byol_forward.3} parent=1 // pred_check
      _
    $region3: #{byol_forward.3} parent=1 // pred_check_branch
      %26 = sbr.rel (0) target = $region5
    $region4: #{byol_forward.3} parent=1 // pred_region
      _
    $region5: #{byol_forward.3} parent=1 // pred_fallthru
      _
    // Predicated region
    $region6: #{byol_forward.3} parent=1 // pred_check
      _
    $region7: #{byol_forward.3} parent=1 // pred_check_branch
      %28 = sbr.rel (0) target = $region9
    $region8: #{byol_forward.3} parent=1 // pred_region
      _
    $region9: #{byol_forward.3} parent=1 // pred_fallthru
      _
    // Predicated region
    $region10: #{byol_forward.3} parent=1 // pred_check
      _
    $region11: #{byol_forward.3} parent=1 // pred_check_branch
      %30 = sbr.rel (0) target = $region13
    $region12: #{byol_forward.3} parent=1 // pred_region
      _
    $region13: #{byol_forward.3} parent=1 // pred_fallthru
      _
    // Predicated region
    $region14: #{byol_forward.3} parent=1 // pred_check
      _
    $region15: #{byol_forward.3} parent=1 // pred_check_branch
      %32 = sbr.rel (0) target = $region17
    $region16: #{byol_forward.3} parent=1 // pred_region
      _
    $region17: #{byol_forward.3} parent=1 // pred_fallthru
      _
    // Predicated region
    $region18: #{byol_forward.3} parent=1 // pred_check
      _
    $region19: #{byol_forward.3} parent=1 // pred_check_branch
      %34 = sbr.rel (0) target = $region21
    $region20: #{byol_forward.3} parent=1 // pred_region
      _
    $region21: #{byol_forward.3} parent=1 // pred_fallthru
      _
    // Predicated region
    $region22: #{byol_forward.3} parent=1 // pred_check
      _
    $region23: #{byol_forward.3} parent=1 // pred_check_branch
      %36 = sbr.rel (0) target = $region25
    $region24: #{byol_forward.3} parent=1 // pred_region
      _
    $region25: #{byol_forward.3} parent=1 // pred_fallthru
      _
    // Predicated region
    $region26: #{byol_forward.3} parent=1 // pred_check
      _
    $region27: #{byol_forward.3} parent=1 // pred_check_branch
      %38 = sbr.rel (0) target = $region29
    $region28: #{byol_forward.3} parent=1 // pred_region
      _
    $region29: #{byol_forward.3} parent=1 // pred_fallthru
      _
    // Predicated region
    $region30: #{byol_forward.3} parent=1 // pred_check
      _
    $region31: #{byol_forward.3} parent=1 // pred_check_branch
      %40 = sbr.rel (0) target = $region33
    $region32: #{byol_forward.3} parent=1 // pred_region
      _
    $region33: #{byol_forward.3} parent=1 // pred_fallthru
      _
    // Predicated region
    $region34: #{byol_forward.3} parent=1 // pred_check
      _
    $region35: #{byol_forward.3} parent=1 // pred_check_branch
      %42 = sbr.rel (0) target = $region37
    $region36: #{byol_forward.3} parent=1 // pred_region
      _
    $region37: #{byol_forward.3} parent=1 // pred_fallthru
      _
    // Predicated region
    $region38: #{byol_forward.3} parent=1 // pred_check
      _
    $region39: #{byol_forward.3} parent=1 // pred_check_branch
      %44 = sbr.rel (0) target = $region41
    $region40: #{byol_forward.3} parent=1 // pred_region
      _
    $region41: #{byol_forward.3} parent=1 // pred_fallthru
      _
    // Predicated region
    $region42: #{byol_forward.3} parent=1 // pred_check
      _
    $region43: #{byol_forward.3} parent=1 // pred_check_branch
      %46 = sbr.rel (0) target = $region45
    $region44: #{byol_forward.3} parent=1 // pred_region
      _
    $region45: #{byol_forward.3} parent=1 // pred_fallthru
      _
    // Predicated region
    $region46: #{byol_forward.3} parent=1 // pred_check
      _
    $region47: #{byol_forward.3} parent=1 // pred_check_branch
      %48 = sbr.rel (0) target = $region49
    $region48: #{byol_forward.3} parent=1 // pred_region
      _
    $region49: #{byol_forward.3} parent=1 // pred_fallthru
      _
    // Predicated region
    $region50: #{byol_forward.3} parent=1 // pred_check
      _
    $region51: #{byol_forward.3} parent=1 // pred_check_branch
      %50 = sbr.rel (0) target = $region53
    $region52: #{byol_forward.3} parent=1 // pred_region
      _
    $region53: #{byol_forward.3} parent=1 // pred_fallthru
      _
    // Predicated region
    $region54: #{byol_forward.3} parent=1 // pred_check
      _
    $region55: #{byol_forward.3} parent=1 // pred_check_branch
      %52 = sbr.rel (0) target = $region57
    $region56: #{byol_forward.3} parent=1 // pred_region
      _
    $region57: #{byol_forward.3} parent=1 // pred_fallthru
      _
    // Predicated region
    $region58: #{byol_forward.3} parent=1 // pred_check
      _
    $region59: #{byol_forward.3} parent=1 // pred_check_branch
      %54 = sbr.rel (0) target = $region61
    $region60: #{byol_forward.3} parent=1 // pred_region
      _
    $region61: #{byol_forward.3} parent=1 // pred_fallthru
      _
    // Predicated region
    $region62: #{byol_forward.3} parent=1 // pred_check
      _
    $region63: #{byol_forward.3} parent=1 // pred_check_branch
      %56 = sbr.rel (0) target = $region65
    $region64: #{byol_forward.3} parent=1 // pred_region
      _
    $region65: #{byol_forward.3} parent=1 // pred_fallthru
      _
    %v57 = vld [vmem:[%s0] sm:$0xff]
    %v58 = vld [vmem:[%s0 + $0x8] sm:$0xff]
    %v59 = vld [vmem:[%s0 + $0x10] sm:$0xff]
    %v60 = vld [vmem:[%s1] sm:$0xff]
    %v61 = vld [vmem:[%s1 + $0x8] sm:$0xff]
    %v62 = vld [vmem:[%s1 + $0x10] sm:$0xff]
    %v63 = vld [vmem:[%s1 + $0x18] sm:$0xff]
    %v64 = vld [vmem:[%s1 + $0x20] sm:$0xff]
    %v65 = vld [vmem:[%s1 + $0x28] sm:$0xff]
    %v66 = vld [vmem:[%s1 + $0x30] sm:$0xff]
    %v67 = vld [vmem:[%s1 + $0x38] sm:$0xff]
    %v68 = vld [vmem:[%s1 + $0x40] sm:$0xff]
    %v69 = vld [vmem:[%s1 + $0x48] sm:$0xff]
    %v70 = vld [vmem:[%s1 + $0x50] sm:$0xff]
    %v71 = vld [vmem:[%s1 + $0x58] sm:$0xff]
    %v72 = vld [vmem:[%s1 + $0x60] sm:$0xff]
    %v73 = vld [vmem:[%s1 + $0x68] sm:$0xff]
    %v74 = vld [vmem:[%s1 + $0x70] sm:$0xff]
    %v75 = vld [vmem:[%s1 + $0x78] sm:$0xff]
    %v76 = vld [vmem:[%s1 + $0x80] sm:$0xff]
    %v77 = vld [vmem:[%s1 + $0x88] sm:$0xff]
    %v78 = vld [vmem:[%s1 + $0x90] sm:$0xff]
    %v79 = vld [vmem:[%s1 + $0x98] sm:$0xff]
    %v80 = vld [vmem:[%s1 + $0xa0] sm:$0xff]
    %v81 = vld [vmem:[%s1 + $0xa8] sm:$0xff]
    %v82 = vld [vmem:[%s1 + $0xb0] sm:$0xff]
    %v83 = vld [vmem:[%s1 + $0xb8] sm:$0xff]
    %v84 = vld [vmem:[%s1 + $0xc0] sm:$0xff]
    %v85 = vld [vmem:[%s1 + $0xc8] sm:$0xff]
    %v86 = vld [vmem:[%s1 + $0xd0] sm:$0xff]
    %v87 = vld [vmem:[%s1 + $0xd8] sm:$0xff]
    %v88 = vld [vmem:[%s1 + $0xe0] sm:$0xff]
    %v89 = vld [vmem:[%s1 + $0xe8] sm:$0xff]
    %v90 = vld [vmem:[%s1 + $0xf0] sm:$0xff]
    %v91 = vld [vmem:[%s1 + $0xf8] sm:$0xff]
    %v92 = vld [vmem:[%s1 + $0x100] sm:$0xff]
    %v93 = vld [vmem:[%s1 + $0x108] sm:$0xff]
    %v94 = vld [vmem:[%s1 + $0x110] sm:$0xff]
    %v95 = vld [vmem:[%s1 + $0x118] sm:$0xff]
    %v96 = vld [vmem:[%s1 + $0x120] sm:$0xff]
    %v97 = vld [vmem:[%s1 + $0x128] sm:$0xff]
    %v98 = vld [vmem:[%s1 + $0x130] sm:$0xff]
    %v99 = vld [vmem:[%s1 + $0x138] sm:$0xff]
    %v100 = vld [vmem:[%s1 + $0x140] sm:$0xff]
    %v101 = vld [vmem:[%s1 + $0x148] sm:$0xff]
    %v102 = vld [vmem:[%s1 + $0x150] sm:$0xff]
    %v103 = vld [vmem:[%s1 + $0x158] sm:$0xff]
    %v104 = vld [vmem:[%s1 + $0x160] sm:$0xff]
    %v105 = vld [vmem:[%s1 + $0x168] sm:$0xff]
    %v106 = vld [vmem:[%s1 + $0x170] sm:$0xff]
    %v107 = vld [vmem:[%s1 + $0x178] sm:$0xff]
    %v108 = vld [vmem:[%s1 + $0x180] sm:$0xff]
    %v109 = vld [vmem:[%s1 + $0x188] sm:$0xff]
    %v110 = vld [vmem:[%s1 + $0x190] sm:$0xff]
    %v111 = vld [vmem:[%s1 + $0x198] sm:$0xff]
    %v112 = vld [vmem:[%s1 + $0x1a0] sm:$0xff]
    %v113 = vld [vmem:[%s1 + $0x1a8] sm:$0xff]
    %v114 = vld [vmem:[%s1 + $0x1b0] sm:$0xff]
    %v115 = vld [vmem:[%s1 + $0x1b8] sm:$0xff]
    %v116 = vld [vmem:[%s1 + $0x1c0] sm:$0xff]
    %v117 = vld [vmem:[%s1 + $0x1c8] sm:$0xff]
    %v118 = vld [vmem:[%s1 + $0x1d0] sm:$0xff]
    %v119 = vld [vmem:[%s1 + $0x1d8] sm:$0xff]
    %v120 = vld [vmem:[%s1 + $0x1e0] sm:$0xff]
    %v121 = vld [vmem:[%s1 + $0x1e8] sm:$0xff]
    %v122 = vld [vmem:[%s1 + $0x1f0] sm:$0xff]
    %v123 = vld [vmem:[%s1 + $0x1f8] sm:$0xff]
    %v124 = vld [vmem:[%s1 + $0x200] sm:$0xff]
    %v125 = vld [vmem:[%s1 + $0x208] sm:$0xff]
    %v126 = vld [vmem:[%s1 + $0x210] sm:$0xff]
    %v127 = vld [vmem:[%s1 + $0x218] sm:$0xff]
    %v128 = vld [vmem:[%s1 + $0x220] sm:$0xff]
    %v129 = vld [vmem:[%s1 + $0x228] sm:$0xff]
    %v130 = vld [vmem:[%s1 + $0x230] sm:$0xff]
    %v131 = vld [vmem:[%s1 + $0x238] sm:$0xff]
    %v132 = vld [vmem:[%s1 + $0x240] sm:$0xff]
    %v133 = vld [vmem:[%s1 + $0x248] sm:$0xff]
    %v134 = vld [vmem:[%s1 + $0x250] sm:$0xff]
    %v135 = vld [vmem:[%s1 + $0x258] sm:$0xff]
    %v136 = vld [vmem:[%s1 + $0x260] sm:$0xff]
    %v137 = vld [vmem:[%s1 + $0x268] sm:$0xff]
    %v138 = vld [vmem:[%s1 + $0x270] sm:$0xff]
    %v139 = vld [vmem:[%s1 + $0x278] sm:$0xff]
    %v140 = vld [vmem:[%s1 + $0x280] sm:$0xff]
    %v141 = vld [vmem:[%s1 + $0x288] sm:$0xff]
    %v142 = vld [vmem:[%s1 + $0x290] sm:$0xff]
    %v143 = vld [vmem:[%s1 + $0x298] sm:$0xff]
    %v144 = vld [vmem:[%s1 + $0x2a0] sm:$0xff]
    %v145 = vld [vmem:[%s1 + $0x2a8] sm:$0xff]
    %v146 = vld [vmem:[%s1 + $0x2b0] sm:$0xff]
    %v147 = vld [vmem:[%s1 + $0x2b8] sm:$0xff]
    %v148 = vld [vmem:[%s1 + $0x2c0] sm:$0xff]
    %v149 = vld [vmem:[%s1 + $0x2c8] sm:$0xff]
    %v150 = vld [vmem:[%s1 + $0x2d0] sm:$0xff]
    %v151 = vld [vmem:[%s1 + $0x2d8] sm:$0xff]
    %v152 = vld [vmem:[%s1 + $0x2e0] sm:$0xff]
    %v153 = vld [vmem:[%s1 + $0x2e8] sm:$0xff]
    %v154 = vld [vmem:[%s1 + $0x2f0] sm:$0xff]
    %v155 = vld [vmem:[%s1 + $0x2f8] sm:$0xff]
    %v159 = vcombine.high %v57, %v57
    %v160 = vcombine.high %v58, %v58
    %v161 = vcombine.high %v59, %v59
    %v165 = vpack.c.bf16 %v57, %v57
    %v166 = vpack.c.bf16 %v159, %v159
    %v167 = vpack.c.bf16 %v58, %v58
    %v168 = vpack.c.bf16 %v160, %v160
    %v169 = vpack.c.bf16 %v59, %v59
    %v170 = vpack.c.bf16 %v161, %v161
    %v171 = vld [vmem:[%s2] sm:$0x3]
    %v173 = vlaneseq
    %v174 = vshrl.u32 %v173, 7
    %v175 = vsub.s32 0, %v174
    %v176 = vrot.slane %v171, %v175
    %v177 = vlaneseq
    %v178 = vshrl.u32 %v177, 7
    %v179 = vsub.s32 1, %v178
    %v180 = vrot.slane %v171, %v179
    %v279 = vunpack.c.l.b16 %v60
    %v280 = vunpack.c.h.b16 %v60
    %v281 = vunpack.c.l.b16 %v61
    %v282 = vunpack.c.h.b16 %v61
    %v283 = vunpack.c.l.b16 %v62
    %v284 = vunpack.c.h.b16 %v62
    %v285 = vunpack.c.l.b16 %v63
    %v286 = vunpack.c.h.b16 %v63
    %v287 = vunpack.c.l.b16 %v64
    %v288 = vunpack.c.h.b16 %v64
    %v289 = vunpack.c.l.b16 %v65
    %v290 = vunpack.c.h.b16 %v65
    %v291 = vunpack.c.l.b16 %v66
    %v292 = vunpack.c.h.b16 %v66
    %v293 = vunpack.c.l.b16 %v67
    %v294 = vunpack.c.h.b16 %v67
    %v295 = vunpack.c.l.b16 %v68
    %v296 = vunpack.c.h.b16 %v68
    %v297 = vunpack.c.l.b16 %v69
    %v298 = vunpack.c.h.b16 %v69
    %v299 = vunpack.c.l.b16 %v70
    %v300 = vunpack.c.h.b16 %v70
    %v301 = vunpack.c.l.b16 %v71
    %v302 = vunpack.c.h.b16 %v71
    %v303 = vunpack.c.l.b16 %v72
    %v304 = vunpack.c.h.b16 %v72
    %v305 = vunpack.c.l.b16 %v73
    %v306 = vunpack.c.h.b16 %v73
    %v307 = vunpack.c.l.b16 %v74
    %v308 = vunpack.c.h.b16 %v74
    %v309 = vunpack.c.l.b16 %v75
    %v310 = vunpack.c.h.b16 %v75
    %v311 = vunpack.c.l.b16 %v76
    %v312 = vunpack.c.h.b16 %v76
    %v313 = vunpack.c.l.b16 %v77
    %v314 = vunpack.c.h.b16 %v77
    %v315 = vunpack.c.l.b16 %v78
    %v316 = vunpack.c.h.b16 %v78
    %v317 = vunpack.c.l.b16 %v79
    %v318 = vunpack.c.h.b16 %v79
    %v319 = vunpack.c.l.b16 %v80
    %v320 = vunpack.c.h.b16 %v80
    %v321 = vunpack.c.l.b16 %v81
    %v322 = vunpack.c.h.b16 %v81
    %v323 = vunpack.c.l.b16 %v82
    %v324 = vunpack.c.h.b16 %v82
    %v325 = vunpack.c.l.b16 %v83
    %v326 = vunpack.c.h.b16 %v83
    %v327 = vunpack.c.l.b16 %v84
    %v328 = vunpack.c.h.b16 %v84
    %v329 = vunpack.c.l.b16 %v85
    %v330 = vunpack.c.h.b16 %v85
    %v331 = vunpack.c.l.b16 %v86
    %v332 = vunpack.c.h.b16 %v86
    %v333 = vunpack.c.l.b16 %v87
    %v334 = vunpack.c.h.b16 %v87
    %v335 = vunpack.c.l.b16 %v88
    %v336 = vunpack.c.h.b16 %v88
    %v337 = vunpack.c.l.b16 %v89
    %v338 = vunpack.c.h.b16 %v89
    %v339 = vunpack.c.l.b16 %v90
    %v340 = vunpack.c.h.b16 %v90
    %v341 = vunpack.c.l.b16 %v91
    %v342 = vunpack.c.h.b16 %v91
    %v343 = vunpack.c.l.b16 %v92
    %v344 = vunpack.c.h.b16 %v92
    %v345 = vunpack.c.l.b16 %v93
    %v346 = vunpack.c.h.b16 %v93
    %v347 = vunpack.c.l.b16 %v94
    %v348 = vunpack.c.h.b16 %v94
    %v349 = vunpack.c.l.b16 %v95
    %v350 = vunpack.c.h.b16 %v95
    %v351 = vunpack.c.l.b16 %v96
    %v352 = vunpack.c.h.b16 %v96
    %v353 = vunpack.c.l.b16 %v97
    %v354 = vunpack.c.h.b16 %v97
    %v355 = vunpack.c.l.b16 %v98
    %v356 = vunpack.c.h.b16 %v98
    %v357 = vunpack.c.l.b16 %v99
    %v358 = vunpack.c.h.b16 %v99
    %v359 = vunpack.c.l.b16 %v100
    %v360 = vunpack.c.h.b16 %v100
    %v361 = vunpack.c.l.b16 %v101
    %v362 = vunpack.c.h.b16 %v101
    %v363 = vunpack.c.l.b16 %v102
    %v364 = vunpack.c.h.b16 %v102
    %v365 = vunpack.c.l.b16 %v103
    %v366 = vunpack.c.h.b16 %v103
    %v367 = vunpack.c.l.b16 %v104
    %v368 = vunpack.c.h.b16 %v104
    %v369 = vunpack.c.l.b16 %v105
    %v370 = vunpack.c.h.b16 %v105
    %v371 = vunpack.c.l.b16 %v106
    %v372 = vunpack.c.h.b16 %v106
    %v373 = vunpack.c.l.b16 %v107
    %v374 = vunpack.c.h.b16 %v107
    %v375 = vunpack.c.l.b16 %v108
    %v376 = vunpack.c.h.b16 %v108
    %v377 = vunpack.c.l.b16 %v109
    %v378 = vunpack.c.h.b16 %v109
    %v379 = vunpack.c.l.b16 %v110
    %v380 = vunpack.c.h.b16 %v110
    %v381 = vunpack.c.l.b16 %v111
    %v382 = vunpack.c.h.b16 %v111
    %v383 = vunpack.c.l.b16 %v112
    %v384 = vunpack.c.h.b16 %v112
    %v385 = vunpack.c.l.b16 %v113
    %v386 = vunpack.c.h.b16 %v113
    %v387 = vunpack.c.l.b16 %v114
    %v388 = vunpack.c.h.b16 %v114
    %v389 = vunpack.c.l.b16 %v115
    %v390 = vunpack.c.h.b16 %v115
    %v391 = vunpack.c.l.b16 %v116
    %v392 = vunpack.c.h.b16 %v116
    %v393 = vunpack.c.l.b16 %v117
    %v394 = vunpack.c.h.b16 %v117
    %v395 = vunpack.c.l.b16 %v118
    %v396 = vunpack.c.h.b16 %v118
    %v397 = vunpack.c.l.b16 %v119
    %v398 = vunpack.c.h.b16 %v119
    %v399 = vunpack.c.l.b16 %v120
    %v400 = vunpack.c.h.b16 %v120
    %v401 = vunpack.c.l.b16 %v121
    %v402 = vunpack.c.h.b16 %v121
    %v403 = vunpack.c.l.b16 %v122
    %v404 = vunpack.c.h.b16 %v122
    %v405 = vunpack.c.l.b16 %v123
    %v406 = vunpack.c.h.b16 %v123
    %v407 = vunpack.c.l.b16 %v124
    %v408 = vunpack.c.h.b16 %v124
    %v409 = vunpack.c.l.b16 %v125
    %v410 = vunpack.c.h.b16 %v125
    %v411 = vunpack.c.l.b16 %v126
    %v412 = vunpack.c.h.b16 %v126
    %v413 = vunpack.c.l.b16 %v127
    %v414 = vunpack.c.h.b16 %v127
    %v415 = vunpack.c.l.b16 %v128
    %v416 = vunpack.c.h.b16 %v128
    %v417 = vunpack.c.l.b16 %v129
    %v418 = vunpack.c.h.b16 %v129
    %v419 = vunpack.c.l.b16 %v130
    %v420 = vunpack.c.h.b16 %v130
    %v421 = vunpack.c.l.b16 %v131
    %v422 = vunpack.c.h.b16 %v131
    %v423 = vunpack.c.l.b16 %v132
    %v424 = vunpack.c.h.b16 %v132
    %v425 = vunpack.c.l.b16 %v133
    %v426 = vunpack.c.h.b16 %v133
    %v427 = vunpack.c.l.b16 %v134
    %v428 = vunpack.c.h.b16 %v134
    %v429 = vunpack.c.l.b16 %v135
    %v430 = vunpack.c.h.b16 %v135
    %v431 = vunpack.c.l.b16 %v136
    %v432 = vunpack.c.h.b16 %v136
    %v433 = vunpack.c.l.b16 %v137
    %v434 = vunpack.c.h.b16 %v137
    %v435 = vunpack.c.l.b16 %v138
    %v436 = vunpack.c.h.b16 %v138
    %v437 = vunpack.c.l.b16 %v139
    %v438 = vunpack.c.h.b16 %v139
    %v439 = vunpack.c.l.b16 %v140
    %v440 = vunpack.c.h.b16 %v140
    %v441 = vunpack.c.l.b16 %v141
    %v442 = vunpack.c.h.b16 %v141
    %v443 = vunpack.c.l.b16 %v142
    %v444 = vunpack.c.h.b16 %v142
    %v445 = vunpack.c.l.b16 %v143
    %v446 = vunpack.c.h.b16 %v143
    %v447 = vunpack.c.l.b16 %v144
    %v448 = vunpack.c.h.b16 %v144
    %v449 = vunpack.c.l.b16 %v145
    %v450 = vunpack.c.h.b16 %v145
    %v451 = vunpack.c.l.b16 %v146
    %v452 = vunpack.c.h.b16 %v146
    %v453 = vunpack.c.l.b16 %v147
    %v454 = vunpack.c.h.b16 %v147
    %v455 = vunpack.c.l.b16 %v148
    %v456 = vunpack.c.h.b16 %v148
    %v457 = vunpack.c.l.b16 %v149
    %v458 = vunpack.c.h.b16 %v149
    %v459 = vunpack.c.l.b16 %v150
    %v460 = vunpack.c.h.b16 %v150
    %v461 = vunpack.c.l.b16 %v151
    %v462 = vunpack.c.h.b16 %v151
    %v463 = vunpack.c.l.b16 %v152
    %v464 = vunpack.c.h.b16 %v152
    %v465 = vunpack.c.l.b16 %v153
    %v466 = vunpack.c.h.b16 %v153
    %v467 = vunpack.c.l.b16 %v154
    %v468 = vunpack.c.h.b16 %v154
    %v469 = vunpack.c.l.b16 %v155
    %v470 = vunpack.c.h.b16 %v155
    %v471 = vpack.c.b16 %v281, %v279
    %v472 = vpack.c.b16 %v282, %v280
    %v473 = vpack.c.b16 %v285, %v283
    %v474 = vpack.c.b16 %v286, %v284
    %v475 = vpack.c.b16 %v289, %v287
    %v476 = vpack.c.b16 %v290, %v288
    %v477 = vpack.c.b16 %v293, %v291
    %v478 = vpack.c.b16 %v294, %v292
    %v479 = vpack.c.b16 %v297, %v295
    %v480 = vpack.c.b16 %v298, %v296
    %v481 = vpack.c.b16 %v301, %v299
    %v482 = vpack.c.b16 %v302, %v300
    %v483 = vpack.c.b16 %v305, %v303
    %v484 = vpack.c.b16 %v306, %v304
    %v485 = vpack.c.b16 %v309, %v307
    %v486 = vpack.c.b16 %v310, %v308
    %v487 = vpack.c.b16 %v313, %v311
    %v488 = vpack.c.b16 %v314, %v312
    %v489 = vpack.c.b16 %v317, %v315
    %v490 = vpack.c.b16 %v318, %v316
    %v491 = vpack.c.b16 %v321, %v319
    %v492 = vpack.c.b16 %v322, %v320
    %v493 = vpack.c.b16 %v325, %v323
    %v494 = vpack.c.b16 %v326, %v324
    %v495 = vpack.c.b16 %v329, %v327
    %v496 = vpack.c.b16 %v330, %v328
    %v497 = vpack.c.b16 %v333, %v331
    %v498 = vpack.c.b16 %v334, %v332
    %v499 = vpack.c.b16 %v337, %v335
    %v500 = vpack.c.b16 %v338, %v336
    %v501 = vpack.c.b16 %v341, %v339
    %v502 = vpack.c.b16 %v342, %v340
    %v503 = vpack.c.b16 %v345, %v343
    %v504 = vpack.c.b16 %v346, %v344
    %v505 = vpack.c.b16 %v349, %v347
    %v506 = vpack.c.b16 %v350, %v348
    %v507 = vpack.c.b16 %v353, %v351
    %v508 = vpack.c.b16 %v354, %v352
    %v509 = vpack.c.b16 %v357, %v355
    %v510 = vpack.c.b16 %v358, %v356
    %v511 = vpack.c.b16 %v361, %v359
    %v512 = vpack.c.b16 %v362, %v360
    %v513 = vpack.c.b16 %v365, %v363
    %v514 = vpack.c.b16 %v366, %v364
    %v515 = vpack.c.b16 %v369, %v367
    %v516 = vpack.c.b16 %v370, %v368
    %v517 = vpack.c.b16 %v373, %v371
    %v518 = vpack.c.b16 %v374, %v372
    %v519 = vpack.c.b16 %v377, %v375
    %v520 = vpack.c.b16 %v378, %v376
    %v521 = vpack.c.b16 %v381, %v379
    %v522 = vpack.c.b16 %v382, %v380
    %v523 = vpack.c.b16 %v385, %v383
    %v524 = vpack.c.b16 %v386, %v384
    %v525 = vpack.c.b16 %v389, %v387
    %v526 = vpack.c.b16 %v390, %v388
    %v527 = vpack.c.b16 %v393, %v391
    %v528 = vpack.c.b16 %v394, %v392
    %v529 = vpack.c.b16 %v397, %v395
    %v530 = vpack.c.b16 %v398, %v396
    %v531 = vpack.c.b16 %v401, %v399
    %v532 = vpack.c.b16 %v402, %v400
    %v533 = vpack.c.b16 %v405, %v403
    %v534 = vpack.c.b16 %v406, %v404
    %v535 = vpack.c.b16 %v409, %v407
    %v536 = vpack.c.b16 %v410, %v408
    %v537 = vpack.c.b16 %v413, %v411
    %v538 = vpack.c.b16 %v414, %v412
    %v539 = vpack.c.b16 %v417, %v415
    %v540 = vpack.c.b16 %v418, %v416
    %v541 = vpack.c.b16 %v421, %v419
    %v542 = vpack.c.b16 %v422, %v420
    %v543 = vpack.c.b16 %v425, %v423
    %v544 = vpack.c.b16 %v426, %v424
    %v545 = vpack.c.b16 %v429, %v427
    %v546 = vpack.c.b16 %v430, %v428
    %v547 = vpack.c.b16 %v433, %v431
    %v548 = vpack.c.b16 %v434, %v432
    %v549 = vpack.c.b16 %v437, %v435
    %v550 = vpack.c.b16 %v438, %v436
    %v551 = vpack.c.b16 %v441, %v439
    %v552 = vpack.c.b16 %v442, %v440
    %v553 = vpack.c.b16 %v445, %v443
    %v554 = vpack.c.b16 %v446, %v444
    %v555 = vpack.c.b16 %v449, %v447
    %v556 = vpack.c.b16 %v450, %v448
    %v557 = vpack.c.b16 %v453, %v451
    %v558 = vpack.c.b16 %v454, %v452
    %v559 = vpack.c.b16 %v457, %v455
    %v560 = vpack.c.b16 %v458, %v456
    %v561 = vpack.c.b16 %v461, %v459
    %v562 = vpack.c.b16 %v462, %v460
    %v563 = vpack.c.b16 %v465, %v463
    %v564 = vpack.c.b16 %v466, %v464
    %v565 = vpack.c.b16 %v469, %v467
    %v566 = vpack.c.b16 %v470, %v468
    %663 = vmatprep.subr.bf16.mxu0 %v472
    %664 = vmatpush1.bf16.msra.mxu0 %v471
    %665 = vmatprep.subr.bf16.mxu0 %v474
    %666 = vmatpush1.bf16.msra.mxu0 %v473
    %667 = vmatprep.subr.bf16.mxu0 %v476
    %668 = vmatpush1.bf16.msra.mxu0 %v475
    %669 = vmatprep.subr.bf16.mxu0 %v478
    %670 = vmatpush1.bf16.msra.mxu0 %v477
    %671 = vmatprep.subr.bf16.mxu0 %v480
    %672 = vmatpush1.bf16.msra.mxu0 %v479
    %673 = vmatprep.subr.bf16.mxu0 %v482
    %674 = vmatpush1.bf16.msra.mxu0 %v481
    %675 = vmatprep.subr.bf16.mxu0 %v484
    %676 = vmatpush1.bf16.msra.mxu0 %v483
    %677 = vmatprep.subr.bf16.mxu0 %v486
    %678 = vmatpush1.bf16.msra.mxu0 %v485
    %679 = vmatprep.subr.bf16.mxu0 %v488
    %680 = vmatpush1.bf16.msra.mxu0 %v487
    %681 = vmatprep.subr.bf16.mxu0 %v490
    %682 = vmatpush1.bf16.msra.mxu0 %v489
    %683 = vmatprep.subr.bf16.mxu0 %v492
    %684 = vmatpush1.bf16.msra.mxu0 %v491
    %685 = vmatprep.subr.bf16.mxu0 %v494
    %686 = vmatpush1.bf16.msra.mxu0 %v493
    %687 = vmatprep.subr.bf16.mxu0 %v496
    %688 = vmatpush1.bf16.msra.mxu0 %v495
    %689 = vmatprep.subr.bf16.mxu0 %v498
    %690 = vmatpush1.bf16.msra.mxu0 %v497
    %691 = vmatprep.subr.bf16.mxu0 %v500
    %692 = vmatpush1.bf16.msra.mxu0 %v499
    %693 = vmatprep.subr.bf16.mxu0 %v502
    %694 = vmatpush1.bf16.msra.mxu0 %v501
    %695 = vmatprep.mubr.bf16.mxu0 %v166
    %696 = vmatmul.mubr.bf16.gmra.mrb[0].mxu0 %v165
    %v697 = vpop.f32.mrb[0].mxu0
    %v698 = vadd.f32 %v176, %v697
    %v699 = vpop.f32.mrb[0].mxu0
    %v700 = vadd.f32 %v180, %v699
    %v701 = vpop.f32.mrb[0].mxu0
    %v702 = vpop.f32.mrb[0].mxu0
    %703 = vdwg.mxu0
    %704 = vmatprep.subr.bf16.mxu0 %v504
    %705 = vmatpush1.bf16.msra.mxu0 %v503
    %706 = vmatprep.subr.bf16.mxu0 %v506
    %707 = vmatpush1.bf16.msra.mxu0 %v505
    %708 = vmatprep.subr.bf16.mxu0 %v508
    %709 = vmatpush1.bf16.msra.mxu0 %v507
    %710 = vmatprep.subr.bf16.mxu0 %v510
    %711 = vmatpush1.bf16.msra.mxu0 %v509
    %712 = vmatprep.subr.bf16.mxu0 %v512
    %713 = vmatpush1.bf16.msra.mxu0 %v511
    %714 = vmatprep.subr.bf16.mxu0 %v514
    %715 = vmatpush1.bf16.msra.mxu0 %v513
    %716 = vmatprep.subr.bf16.mxu0 %v516
    %717 = vmatpush1.bf16.msra.mxu0 %v515
    %718 = vmatprep.subr.bf16.mxu0 %v518
    %719 = vmatpush1.bf16.msra.mxu0 %v517
    %720 = vmatprep.subr.bf16.mxu0 %v520
    %721 = vmatpush1.bf16.msra.mxu0 %v519
    %722 = vmatprep.subr.bf16.mxu0 %v522
    %723 = vmatpush1.bf16.msra.mxu0 %v521
    %724 = vmatprep.subr.bf16.mxu0 %v524
    %725 = vmatpush1.bf16.msra.mxu0 %v523
    %726 = vmatprep.subr.bf16.mxu0 %v526
    %727 = vmatpush1.bf16.msra.mxu0 %v525
    %728 = vmatprep.subr.bf16.mxu0 %v528
    %729 = vmatpush1.bf16.msra.mxu0 %v527
    %730 = vmatprep.subr.bf16.mxu0 %v530
    %731 = vmatpush1.bf16.msra.mxu0 %v529
    %732 = vmatprep.subr.bf16.mxu0 %v532
    %733 = vmatpush1.bf16.msra.mxu0 %v531
    %734 = vmatprep.subr.bf16.mxu0 %v534
    %735 = vmatpush1.bf16.msra.mxu0 %v533
    %736 = vmatprep.mubr.bf16.mxu0 %v168
    %737 = vmatmul.mubr.bf16.gmra.mrb[0].mxu0 %v167
    %v738 = vpop.f32.mrb[0].mxu0
    %v739 = vadd.f32 %v698, %v738
    %v740 = vpop.f32.mrb[0].mxu0
    %v741 = vadd.f32 %v700, %v740
    %v742 = vpop.f32.mrb[0].mxu0
    %v743 = vpop.f32.mrb[0].mxu0
    %744 = vdwg.mxu0
    %745 = vmatprep.subr.bf16.mxu0 %v536
    %746 = vmatpush1.bf16.msra.mxu0 %v535
    %747 = vmatprep.subr.bf16.mxu0 %v538
    %748 = vmatpush1.bf16.msra.mxu0 %v537
    %749 = vmatprep.subr.bf16.mxu0 %v540
    %750 = vmatpush1.bf16.msra.mxu0 %v539
    %751 = vmatprep.subr.bf16.mxu0 %v542
    %752 = vmatpush1.bf16.msra.mxu0 %v541
    %753 = vmatprep.subr.bf16.mxu0 %v544
    %754 = vmatpush1.bf16.msra.mxu0 %v543
    %755 = vmatprep.subr.bf16.mxu0 %v546
    %756 = vmatpush1.bf16.msra.mxu0 %v545
    %757 = vmatprep.subr.bf16.mxu0 %v548
    %758 = vmatpush1.bf16.msra.mxu0 %v547
    %759 = vmatprep.subr.bf16.mxu0 %v550
    %760 = vmatpush1.bf16.msra.mxu0 %v549
    %761 = vmatprep.subr.bf16.mxu0 %v552
    %762 = vmatpush1.bf16.msra.mxu0 %v551
    %763 = vmatprep.subr.bf16.mxu0 %v554
    %764 = vmatpush1.bf16.msra.mxu0 %v553
    %765 = vmatprep.subr.bf16.mxu0 %v556
    %766 = vmatpush1.bf16.msra.mxu0 %v555
    %767 = vmatprep.subr.bf16.mxu0 %v558
    %768 = vmatpush1.bf16.msra.mxu0 %v557
    %769 = vmatprep.subr.bf16.mxu0 %v560
    %770 = vmatpush1.bf16.msra.mxu0 %v559
    %771 = vmatprep.subr.bf16.mxu0 %v562
    %772 = vmatpush1.bf16.msra.mxu0 %v561
    %773 = vmatprep.subr.bf16.mxu0 %v564
    %774 = vmatpush1.bf16.msra.mxu0 %v563
    %775 = vmatprep.subr.bf16.mxu0 %v566
    %776 = vmatpush1.bf16.msra.mxu0 %v565
    %777 = vmatprep.mubr.bf16.mxu0 %v170
    %778 = vmatmul.mubr.bf16.gmra.mrb[0].mxu0 %v169
    %v779 = vpop.f32.mrb[0].mxu0
    %v780 = vadd.f32 %v739, %v779
    %v781 = vpop.f32.mrb[0].mxu0
    %v782 = vadd.f32 %v741, %v781
    %v783 = vpop.f32.mrb[0].mxu0
    %v784 = vpop.f32.mrb[0].mxu0
    %785 = vdwg.mxu0
    %v788 = vcombine.low %v780, %v782
    %790 = vst [vmem:[#allocation2] sm:$0xff] %v788
    %v791 = vld [vmem:[%s3] sm:$0xff]
    %v792 = vld [vmem:[%s3 + $0x8] sm:$0xff]
    %v793 = vld [vmem:[%s3 + $0x10] sm:$0xff]
    %v794 = vld [vmem:[%s3 + $0x18] sm:$0xff]
    %v795 = vld [vmem:[%s3 + $0x20] sm:$0xff]
    %v796 = vld [vmem:[%s3 + $0x28] sm:$0xff]
    %v797 = vld [vmem:[%s3 + $0x30] sm:$0xff]
    %v798 = vld [vmem:[%s3 + $0x38] sm:$0xff]
    %v799 = vld [vmem:[%s3 + $0x40] sm:$0xff]
    %v800 = vld [vmem:[%s3 + $0x48] sm:$0xff]
    %v801 = vld [vmem:[%s3 + $0x50] sm:$0xff]
    %v802 = vld [vmem:[%s3 + $0x58] sm:$0xff]
    %v803 = vld [vmem:[%s3 + $0x60] sm:$0xff]
    %v804 = vld [vmem:[%s3 + $0x68] sm:$0xff]
    %v805 = vld [vmem:[%s3 + $0x70] sm:$0xff]
    %v806 = vld [vmem:[%s3 + $0x78] sm:$0xff]
    %v807 = vld [vmem:[%s3 + $0x80] sm:$0xff]
    %v808 = vld [vmem:[%s3 + $0x88] sm:$0xff]
    %v809 = vld [vmem:[%s3 + $0x90] sm:$0xff]
    %v810 = vld [vmem:[%s3 + $0x98] sm:$0xff]
    %v811 = vld [vmem:[%s3 + $0xa0] sm:$0xff]
    %v812 = vld [vmem:[%s3 + $0xa8] sm:$0xff]
    %v813 = vld [vmem:[%s3 + $0xb0] sm:$0xff]
    %v814 = vld [vmem:[%s3 + $0xb8] sm:$0xff]
    %v815 = vld [vmem:[%s3 + $0xc0] sm:$0xff]
    %v816 = vld [vmem:[%s3 + $0xc8] sm:$0xff]
    %v817 = vld [vmem:[%s3 + $0xd0] sm:$0xff]
    %v818 = vld [vmem:[%s3 + $0xd8] sm:$0xff]
    %v819 = vld [vmem:[%s3 + $0xe0] sm:$0xff]
    %v820 = vld [vmem:[%s3 + $0xe8] sm:$0xff]
    %v821 = vld [vmem:[%s3 + $0xf0] sm:$0xff]
    %v822 = vld [vmem:[%s3 + $0xf8] sm:$0xff]
    %v823 = vld [vmem:[%s3 + $0x100] sm:$0xff]
    %v824 = vld [vmem:[%s3 + $0x108] sm:$0xff]
    %v825 = vld [vmem:[%s3 + $0x110] sm:$0xff]
    %v826 = vld [vmem:[%s3 + $0x118] sm:$0xff]
    %v827 = vld [vmem:[%s3 + $0x120] sm:$0xff]
    %v828 = vld [vmem:[%s3 + $0x128] sm:$0xff]
    %v829 = vld [vmem:[%s3 + $0x130] sm:$0xff]
    %v830 = vld [vmem:[%s3 + $0x138] sm:$0xff]
    %v831 = vld [vmem:[%s3 + $0x140] sm:$0xff]
    %v832 = vld [vmem:[%s3 + $0x148] sm:$0xff]
    %v833 = vld [vmem:[%s3 + $0x150] sm:$0xff]
    %v834 = vld [vmem:[%s3 + $0x158] sm:$0xff]
    %v835 = vld [vmem:[%s3 + $0x160] sm:$0xff]
    %v836 = vld [vmem:[%s3 + $0x168] sm:$0xff]
    %v837 = vld [vmem:[%s3 + $0x170] sm:$0xff]
    %v838 = vld [vmem:[%s3 + $0x178] sm:$0xff]
    %v839 = vld [vmem:[%s3 + $0x180] sm:$0xff]
    %v840 = vld [vmem:[%s3 + $0x188] sm:$0xff]
    %v841 = vld [vmem:[%s3 + $0x190] sm:$0xff]
    %v842 = vld [vmem:[%s3 + $0x198] sm:$0xff]
    %v843 = vld [vmem:[%s3 + $0x1a0] sm:$0xff]
    %v844 = vld [vmem:[%s3 + $0x1a8] sm:$0xff]
    %v845 = vld [vmem:[%s3 + $0x1b0] sm:$0xff]
    %v846 = vld [vmem:[%s3 + $0x1b8] sm:$0xff]
    %v847 = vld [vmem:[%s3 + $0x1c0] sm:$0xff]
    %v848 = vld [vmem:[%s3 + $0x1c8] sm:$0xff]
    %v849 = vld [vmem:[%s3 + $0x1d0] sm:$0xff]
    %v850 = vld [vmem:[%s3 + $0x1d8] sm:$0xff]
    %v851 = vld [vmem:[%s3 + $0x1e0] sm:$0xff]
    %v852 = vld [vmem:[%s3 + $0x1e8] sm:$0xff]
    %v853 = vld [vmem:[%s3 + $0x1f0] sm:$0xff]
    %v854 = vld [vmem:[%s3 + $0x1f8] sm:$0xff]
    %v855 = vld [vmem:[%s4] sm:$0xf]
    %v856 = vld [vmem:[%s5] sm:$0xf]
    %v857 = vld [vmem:[%s6] sm:$0xf]
    %v858 = vld [vmem:[%s7] sm:$0xff]
    %v859 = vld [vmem:[%s7 + $0x8] sm:$0xff]
    %v860 = vld [vmem:[%s7 + $0x10] sm:$0xff]
    %v861 = vld [vmem:[%s7 + $0x18] sm:$0xff]
    %v862 = vld [vmem:[%s7 + $0x20] sm:$0xff]
    %v863 = vld [vmem:[%s7 + $0x28] sm:$0xff]
    %v864 = vld [vmem:[%s7 + $0x30] sm:$0xff]
    %v865 = vld [vmem:[%s7 + $0x38] sm:$0xff]
    %v866 = vld [vmem:[%s7 + $0x40] sm:$0xff]
    %v867 = vld [vmem:[%s7 + $0x48] sm:$0xff]
    %v868 = vld [vmem:[%s7 + $0x50] sm:$0xff]
    %v869 = vld [vmem:[%s7 + $0x58] sm:$0xff]
    %v870 = vld [vmem:[%s7 + $0x60] sm:$0xff]
    %v871 = vld [vmem:[%s7 + $0x68] sm:$0xff]
    %v872 = vld [vmem:[%s7 + $0x70] sm:$0xff]
    %v873 = vld [vmem:[%s7 + $0x78] sm:$0xff]
    %v874 = vld [vmem:[%s7 + $0x80] sm:$0xff]
    %v875 = vld [vmem:[%s7 + $0x88] sm:$0xff]
    %v876 = vld [vmem:[%s7 + $0x90] sm:$0xff]
    %v877 = vld [vmem:[%s7 + $0x98] sm:$0xff]
    %v878 = vld [vmem:[%s7 + $0xa0] sm:$0xff]
    %v879 = vld [vmem:[%s7 + $0xa8] sm:$0xff]
    %v880 = vld [vmem:[%s7 + $0xb0] sm:$0xff]
    %v881 = vld [vmem:[%s7 + $0xb8] sm:$0xff]
    %v882 = vld [vmem:[%s7 + $0xc0] sm:$0xff]
    %v883 = vld [vmem:[%s7 + $0xc8] sm:$0xff]
    %v884 = vld [vmem:[%s7 + $0xd0] sm:$0xff]
    %v885 = vld [vmem:[%s7 + $0xd8] sm:$0xff]
    %v886 = vld [vmem:[%s7 + $0xe0] sm:$0xff]
    %v887 = vld [vmem:[%s7 + $0xe8] sm:$0xff]
    %v888 = vld [vmem:[%s7 + $0xf0] sm:$0xff]
    %v889 = vld [vmem:[%s7 + $0xf8] sm:$0xff]
    %v890 = vld [vmem:[%s7 + $0x100] sm:$0xff]
    %v891 = vld [vmem:[%s7 + $0x108] sm:$0xff]
    %v892 = vld [vmem:[%s7 + $0x110] sm:$0xff]
    %v893 = vld [vmem:[%s7 + $0x118] sm:$0xff]
    %v894 = vld [vmem:[%s7 + $0x120] sm:$0xff]
    %v895 = vld [vmem:[%s7 + $0x128] sm:$0xff]
    %v896 = vld [vmem:[%s7 + $0x130] sm:$0xff]
    %v897 = vld [vmem:[%s7 + $0x138] sm:$0xff]
    %v898 = vld [vmem:[%s7 + $0x140] sm:$0xff]
    %v899 = vld [vmem:[%s7 + $0x148] sm:$0xff]
    %v900 = vld [vmem:[%s7 + $0x150] sm:$0xff]
    %v901 = vld [vmem:[%s7 + $0x158] sm:$0xff]
    %v902 = vld [vmem:[%s7 + $0x160] sm:$0xff]
    %v903 = vld [vmem:[%s7 + $0x168] sm:$0xff]
    %v904 = vld [vmem:[%s7 + $0x170] sm:$0xff]
    %v905 = vld [vmem:[%s7 + $0x178] sm:$0xff]
    %v906 = vld [vmem:[%s7 + $0x180] sm:$0xff]
    %v907 = vld [vmem:[%s7 + $0x188] sm:$0xff]
    %v908 = vld [vmem:[%s7 + $0x190] sm:$0xff]
    %v909 = vld [vmem:[%s7 + $0x198] sm:$0xff]
    %v910 = vld [vmem:[%s7 + $0x1a0] sm:$0xff]
    %v911 = vld [vmem:[%s7 + $0x1a8] sm:$0xff]
    %v912 = vld [vmem:[%s7 + $0x1b0] sm:$0xff]
    %v913 = vld [vmem:[%s7 + $0x1b8] sm:$0xff]
    %v914 = vld [vmem:[%s7 + $0x1c0] sm:$0xff]
    %v915 = vld [vmem:[%s7 + $0x1c8] sm:$0xff]
    %v916 = vld [vmem:[%s7 + $0x1d0] sm:$0xff]
    %v917 = vld [vmem:[%s7 + $0x1d8] sm:$0xff]
    %v918 = vld [vmem:[%s7 + $0x1e0] sm:$0xff]
    %v919 = vld [vmem:[%s7 + $0x1e8] sm:$0xff]
    %v920 = vld [vmem:[%s7 + $0x1f0] sm:$0xff]
    %v921 = vld [vmem:[%s7 + $0x1f8] sm:$0xff]
    %v922 = vld [vmem:[%s7 + $0x200] sm:$0xff]
    %v923 = vld [vmem:[%s7 + $0x208] sm:$0xff]
    %v924 = vld [vmem:[%s7 + $0x210] sm:$0xff]
    %v925 = vld [vmem:[%s7 + $0x218] sm:$0xff]
    %v926 = vld [vmem:[%s7 + $0x220] sm:$0xff]
    %v927 = vld [vmem:[%s7 + $0x228] sm:$0xff]
    %v928 = vld [vmem:[%s7 + $0x230] sm:$0xff]
    %v929 = vld [vmem:[%s7 + $0x238] sm:$0xff]
    %v930 = vld [vmem:[%s7 + $0x240] sm:$0xff]
    %v931 = vld [vmem:[%s7 + $0x248] sm:$0xff]
    %v932 = vld [vmem:[%s7 + $0x250] sm:$0xff]
    %v933 = vld [vmem:[%s7 + $0x258] sm:$0xff]
    %v934 = vld [vmem:[%s7 + $0x260] sm:$0xff]
    %v935 = vld [vmem:[%s7 + $0x268] sm:$0xff]
    %v936 = vld [vmem:[%s7 + $0x270] sm:$0xff]
    %v937 = vld [vmem:[%s7 + $0x278] sm:$0xff]
    %v938 = vld [vmem:[%s7 + $0x280] sm:$0xff]
    %v939 = vld [vmem:[%s7 + $0x288] sm:$0xff]
    %v940 = vld [vmem:[%s7 + $0x290] sm:$0xff]
    %v941 = vld [vmem:[%s7 + $0x298] sm:$0xff]
    %v942 = vld [vmem:[%s7 + $0x2a0] sm:$0xff]
    %v943 = vld [vmem:[%s7 + $0x2a8] sm:$0xff]
    %v944 = vld [vmem:[%s7 + $0x2b0] sm:$0xff]
    %v945 = vld [vmem:[%s7 + $0x2b8] sm:$0xff]
    %v946 = vld [vmem:[%s7 + $0x2c0] sm:$0xff]
    %v947 = vld [vmem:[%s7 + $0x2c8] sm:$0xff]
    %v948 = vld [vmem:[%s7 + $0x2d0] sm:$0xff]
    %v949 = vld [vmem:[%s7 + $0x2d8] sm:$0xff]
    %v950 = vld [vmem:[%s7 + $0x2e0] sm:$0xff]
    %v951 = vld [vmem:[%s7 + $0x2e8] sm:$0xff]
    %v952 = vld [vmem:[%s7 + $0x2f0] sm:$0xff]
    %v953 = vld [vmem:[%s7 + $0x2f8] sm:$0xff]
    %v954 = vld [vmem:[%s7 + $0x300] sm:$0xff]
    %v955 = vld [vmem:[%s7 + $0x308] sm:$0xff]
    %v956 = vld [vmem:[%s7 + $0x310] sm:$0xff]
    %v957 = vld [vmem:[%s7 + $0x318] sm:$0xff]
    %v958 = vld [vmem:[%s7 + $0x320] sm:$0xff]
    %v959 = vld [vmem:[%s7 + $0x328] sm:$0xff]
    %v960 = vld [vmem:[%s7 + $0x330] sm:$0xff]
    %v961 = vld [vmem:[%s7 + $0x338] sm:$0xff]
    %v962 = vld [vmem:[%s7 + $0x340] sm:$0xff]
    %v963 = vld [vmem:[%s7 + $0x348] sm:$0xff]
    %v964 = vld [vmem:[%s7 + $0x350] sm:$0xff]
    %v965 = vld [vmem:[%s7 + $0x358] sm:$0xff]
    %v966 = vld [vmem:[%s7 + $0x360] sm:$0xff]
    %v967 = vld [vmem:[%s7 + $0x368] sm:$0xff]
    %v968 = vld [vmem:[%s7 + $0x370] sm:$0xff]
    %v969 = vld [vmem:[%s7 + $0x378] sm:$0xff]
    %v970 = vld [vmem:[%s7 + $0x380] sm:$0xff]
    %v971 = vld [vmem:[%s7 + $0x388] sm:$0xff]
    %v972 = vld [vmem:[%s7 + $0x390] sm:$0xff]
    %v973 = vld [vmem:[%s7 + $0x398] sm:$0xff]
    %v974 = vld [vmem:[%s7 + $0x3a0] sm:$0xff]
    %v975 = vld [vmem:[%s7 + $0x3a8] sm:$0xff]
    %v976 = vld [vmem:[%s7 + $0x3b0] sm:$0xff]
    %v977 = vld [vmem:[%s7 + $0x3b8] sm:$0xff]
    %v978 = vld [vmem:[%s7 + $0x3c0] sm:$0xff]
    %v979 = vld [vmem:[%s7 + $0x3c8] sm:$0xff]
    %v980 = vld [vmem:[%s7 + $0x3d0] sm:$0xff]
    %v981 = vld [vmem:[%s7 + $0x3d8] sm:$0xff]
    %v982 = vld [vmem:[%s7 + $0x3e0] sm:$0xff]
    %v983 = vld [vmem:[%s7 + $0x3e8] sm:$0xff]
    %v984 = vld [vmem:[%s7 + $0x3f0] sm:$0xff]
    %v985 = vld [vmem:[%s7 + $0x3f8] sm:$0xff]
    %v986 = vld [vmem:[%s7 + $0x400] sm:$0xff]
    %v987 = vld [vmem:[%s7 + $0x408] sm:$0xff]
    %v988 = vld [vmem:[%s7 + $0x410] sm:$0xff]
    %v989 = vld [vmem:[%s7 + $0x418] sm:$0xff]
    %v990 = vld [vmem:[%s7 + $0x420] sm:$0xff]
    %v991 = vld [vmem:[%s7 + $0x428] sm:$0xff]
    %v992 = vld [vmem:[%s7 + $0x430] sm:$0xff]
    %v993 = vld [vmem:[%s7 + $0x438] sm:$0xff]
    %v994 = vld [vmem:[%s7 + $0x440] sm:$0xff]
    %v995 = vld [vmem:[%s7 + $0x448] sm:$0xff]
    %v996 = vld [vmem:[%s7 + $0x450] sm:$0xff]
    %v997 = vld [vmem:[%s7 + $0x458] sm:$0xff]
    %v998 = vld [vmem:[%s7 + $0x460] sm:$0xff]
    %v999 = vld [vmem:[%s7 + $0x468] sm:$0xff]
    %v1000 = vld [vmem:[%s7 + $0x470] sm:$0xff]
    %v1001 = vld [vmem:[%s7 + $0x478] sm:$0xff]
    %v1002 = vld [vmem:[%s7 + $0x480] sm:$0xff]
    %v1003 = vld [vmem:[%s7 + $0x488] sm:$0xff]
    %v1004 = vld [vmem:[%s7 + $0x490] sm:$0xff]
    %v1005 = vld [vmem:[%s7 + $0x498] sm:$0xff]
    %v1006 = vld [vmem:[%s7 + $0x4a0] sm:$0xff]
    %v1007 = vld [vmem:[%s7 + $0x4a8] sm:$0xff]
    %v1008 = vld [vmem:[%s7 + $0x4b0] sm:$0xff]
    %v1009 = vld [vmem:[%s7 + $0x4b8] sm:$0xff]
    %v1010 = vld [vmem:[%s7 + $0x4c0] sm:$0xff]
    %v1011 = vld [vmem:[%s7 + $0x4c8] sm:$0xff]
    %v1012 = vld [vmem:[%s7 + $0x4d0] sm:$0xff]
    %v1013 = vld [vmem:[%s7 + $0x4d8] sm:$0xff]
    %v1014 = vld [vmem:[%s7 + $0x4e0] sm:$0xff]
    %v1015 = vld [vmem:[%s7 + $0x4e8] sm:$0xff]
    %v1016 = vld [vmem:[%s7 + $0x4f0] sm:$0xff]
    %v1017 = vld [vmem:[%s7 + $0x4f8] sm:$0xff]
    %v1018 = vld [vmem:[%s7 + $0x500] sm:$0xff]
    %v1019 = vld [vmem:[%s7 + $0x508] sm:$0xff]
    %v1020 = vld [vmem:[%s7 + $0x510] sm:$0xff]
    %v1021 = vld [vmem:[%s7 + $0x518] sm:$0xff]
    %v1022 = vld [vmem:[%s7 + $0x520] sm:$0xff]
    %v1023 = vld [vmem:[%s7 + $0x528] sm:$0xff]
    %v1024 = vld [vmem:[%s7 + $0x530] sm:$0xff]
    %v1025 = vld [vmem:[%s7 + $0x538] sm:$0xff]
    %v1026 = vld [vmem:[%s7 + $0x540] sm:$0xff]
    %v1027 = vld [vmem:[%s7 + $0x548] sm:$0xff]
    %v1028 = vld [vmem:[%s7 + $0x550] sm:$0xff]
    %v1029 = vld [vmem:[%s7 + $0x558] sm:$0xff]
    %v1030 = vld [vmem:[%s7 + $0x560] sm:$0xff]
    %v1031 = vld [vmem:[%s7 + $0x568] sm:$0xff]
    %v1032 = vld [vmem:[%s7 + $0x570] sm:$0xff]
    %v1033 = vld [vmem:[%s7 + $0x578] sm:$0xff]
    %v1034 = vld [vmem:[%s7 + $0x580] sm:$0xff]
    %v1035 = vld [vmem:[%s7 + $0x588] sm:$0xff]
    %v1036 = vld [vmem:[%s7 + $0x590] sm:$0xff]
    %v1037 = vld [vmem:[%s7 + $0x598] sm:$0xff]
    %v1038 = vld [vmem:[%s7 + $0x5a0] sm:$0xff]
    %v1039 = vld [vmem:[%s7 + $0x5a8] sm:$0xff]
    %v1040 = vld [vmem:[%s7 + $0x5b0] sm:$0xff]
    %v1041 = vld [vmem:[%s7 + $0x5b8] sm:$0xff]
    %v1042 = vld [vmem:[%s7 + $0x5c0] sm:$0xff]
    %v1043 = vld [vmem:[%s7 + $0x5c8] sm:$0xff]
    %v1044 = vld [vmem:[%s7 + $0x5d0] sm:$0xff]
    %v1045 = vld [vmem:[%s7 + $0x5d8] sm:$0xff]
    %v1046 = vld [vmem:[%s7 + $0x5e0] sm:$0xff]
    %v1047 = vld [vmem:[%s7 + $0x5e8] sm:$0xff]
    %v1048 = vld [vmem:[%s7 + $0x5f0] sm:$0xff]
    %v1049 = vld [vmem:[%s7 + $0x5f8] sm:$0xff]
    %v1050 = vld [vmem:[%s7 + $0x600] sm:$0xff]
    %v1051 = vld [vmem:[%s7 + $0x608] sm:$0xff]
    %v1052 = vld [vmem:[%s7 + $0x610] sm:$0xff]
    %v1053 = vld [vmem:[%s7 + $0x618] sm:$0xff]
    %v1054 = vld [vmem:[%s7 + $0x620] sm:$0xff]
    %v1055 = vld [vmem:[%s7 + $0x628] sm:$0xff]
    %v1056 = vld [vmem:[%s7 + $0x630] sm:$0xff]
    %v1057 = vld [vmem:[%s7 + $0x638] sm:$0xff]
    %v1058 = vld [vmem:[%s7 + $0x640] sm:$0xff]
    %v1059 = vld [vmem:[%s7 + $0x648] sm:$0xff]
    %v1060 = vld [vmem:[%s7 + $0x650] sm:$0xff]
    %v1061 = vld [vmem:[%s7 + $0x658] sm:$0xff]
    %v1062 = vld [vmem:[%s7 + $0x660] sm:$0xff]
    %v1063 = vld [vmem:[%s7 + $0x668] sm:$0xff]
    %v1064 = vld [vmem:[%s7 + $0x670] sm:$0xff]
    %v1065 = vld [vmem:[%s7 + $0x678] sm:$0xff]
    %v1066 = vld [vmem:[%s7 + $0x680] sm:$0xff]
    %v1067 = vld [vmem:[%s7 + $0x688] sm:$0xff]
    %v1068 = vld [vmem:[%s7 + $0x690] sm:$0xff]
    %v1069 = vld [vmem:[%s7 + $0x698] sm:$0xff]
    %v1070 = vld [vmem:[%s7 + $0x6a0] sm:$0xff]
    %v1071 = vld [vmem:[%s7 + $0x6a8] sm:$0xff]
    %v1072 = vld [vmem:[%s7 + $0x6b0] sm:$0xff]
    %v1073 = vld [vmem:[%s7 + $0x6b8] sm:$0xff]
    %v1074 = vld [vmem:[%s7 + $0x6c0] sm:$0xff]
    %v1075 = vld [vmem:[%s7 + $0x6c8] sm:$0xff]
    %v1076 = vld [vmem:[%s7 + $0x6d0] sm:$0xff]
    %v1077 = vld [vmem:[%s7 + $0x6d8] sm:$0xff]
    %v1078 = vld [vmem:[%s7 + $0x6e0] sm:$0xff]
    %v1079 = vld [vmem:[%s7 + $0x6e8] sm:$0xff]
    %v1080 = vld [vmem:[%s7 + $0x6f0] sm:$0xff]
    %v1081 = vld [vmem:[%s7 + $0x6f8] sm:$0xff]
    %v1082 = vld [vmem:[%s7 + $0x700] sm:$0xff]
    %v1083 = vld [vmem:[%s7 + $0x708] sm:$0xff]
    %v1084 = vld [vmem:[%s7 + $0x710] sm:$0xff]
    %v1085 = vld [vmem:[%s7 + $0x718] sm:$0xff]
    %v1086 = vld [vmem:[%s7 + $0x720] sm:$0xff]
    %v1087 = vld [vmem:[%s7 + $0x728] sm:$0xff]
    %v1088 = vld [vmem:[%s7 + $0x730] sm:$0xff]
    %v1089 = vld [vmem:[%s7 + $0x738] sm:$0xff]
    %v1090 = vld [vmem:[%s7 + $0x740] sm:$0xff]
    %v1091 = vld [vmem:[%s7 + $0x748] sm:$0xff]
    %v1092 = vld [vmem:[%s7 + $0x750] sm:$0xff]
    %v1093 = vld [vmem:[%s7 + $0x758] sm:$0xff]
    %v1094 = vld [vmem:[%s7 + $0x760] sm:$0xff]
    %v1095 = vld [vmem:[%s7 + $0x768] sm:$0xff]
    %v1096 = vld [vmem:[%s7 + $0x770] sm:$0xff]
    %v1097 = vld [vmem:[%s7 + $0x778] sm:$0xff]
    %v1098 = vld [vmem:[%s7 + $0x780] sm:$0xff]
    %v1099 = vld [vmem:[%s7 + $0x788] sm:$0xff]
    %v1100 = vld [vmem:[%s7 + $0x790] sm:$0xff]
    %v1101 = vld [vmem:[%s7 + $0x798] sm:$0xff]
    %v1102 = vld [vmem:[%s7 + $0x7a0] sm:$0xff]
    %v1103 = vld [vmem:[%s7 + $0x7a8] sm:$0xff]
    %v1104 = vld [vmem:[%s7 + $0x7b0] sm:$0xff]
    %v1105 = vld [vmem:[%s7 + $0x7b8] sm:$0xff]
    %v1106 = vld [vmem:[%s7 + $0x7c0] sm:$0xff]
    %v1107 = vld [vmem:[%s7 + $0x7c8] sm:$0xff]
    %v1108 = vld [vmem:[%s7 + $0x7d0] sm:$0xff]
    %v1109 = vld [vmem:[%s7 + $0x7d8] sm:$0xff]
    %v1110 = vld [vmem:[%s7 + $0x7e0] sm:$0xff]
    %v1111 = vld [vmem:[%s7 + $0x7e8] sm:$0xff]
    %v1112 = vld [vmem:[%s7 + $0x7f0] sm:$0xff]
    %v1113 = vld [vmem:[%s7 + $0x7f8] sm:$0xff]
    %v1114 = vld [vmem:[%s8] sm:$0xff]
    %v1115 = vpack.c.bf16 %v780, %v780
    %v1116 = vpack.c.bf16 %v782, %v782
    %v1118 = vlaneseq
    %v1119 = vshrl.u32 %v1118, 7
    %v1120 = vsub.s32 0, %v1119
    %v1121 = vrot.slane %v855, %v1120
    %v1122 = vlaneseq
    %v1123 = vshrl.u32 %v1122, 7
    %v1124 = vsub.s32 1, %v1123
    %v1125 = vrot.slane %v855, %v1124
    %v1126 = vlaneseq
    %v1127 = vshrl.u32 %v1126, 7
    %v1128 = vsub.s32 2, %v1127
    %v1129 = vrot.slane %v855, %v1128
    %v1130 = vlaneseq
    %v1131 = vshrl.u32 %v1130, 7
    %v1132 = vsub.s32 3, %v1131
    %v1133 = vrot.slane %v855, %v1132
    %v1202 = vunpack.c.l.b16 %v791
    %v1203 = vunpack.c.h.b16 %v791
    %v1204 = vunpack.c.l.b16 %v792
    %v1205 = vunpack.c.h.b16 %v792
    %v1206 = vunpack.c.l.b16 %v793
    %v1207 = vunpack.c.h.b16 %v793
    %v1208 = vunpack.c.l.b16 %v794
    %v1209 = vunpack.c.h.b16 %v794
    %v1210 = vunpack.c.l.b16 %v795
    %v1211 = vunpack.c.h.b16 %v795
    %v1212 = vunpack.c.l.b16 %v796
    %v1213 = vunpack.c.h.b16 %v796
    %v1214 = vunpack.c.l.b16 %v797
    %v1215 = vunpack.c.h.b16 %v797
    %v1216 = vunpack.c.l.b16 %v798
    %v1217 = vunpack.c.h.b16 %v798
    %v1218 = vunpack.c.l.b16 %v799
    %v1219 = vunpack.c.h.b16 %v799
    %v1220 = vunpack.c.l.b16 %v800
    %v1221 = vunpack.c.h.b16 %v800
    %v1222 = vunpack.c.l.b16 %v801
    %v1223 = vunpack.c.h.b16 %v801
    %v1224 = vunpack.c.l.b16 %v802
    %v1225 = vunpack.c.h.b16 %v802
    %v1226 = vunpack.c.l.b16 %v803
    %v1227 = vunpack.c.h.b16 %v803
    %v1228 = vunpack.c.l.b16 %v804
    %v1229 = vunpack.c.h.b16 %v804
    %v1230 = vunpack.c.l.b16 %v805
    %v1231 = vunpack.c.h.b16 %v805
    %v1232 = vunpack.c.l.b16 %v806
    %v1233 = vunpack.c.h.b16 %v806
    %v1234 = vunpack.c.l.b16 %v807
    %v1235 = vunpack.c.h.b16 %v807
    %v1236 = vunpack.c.l.b16 %v808
    %v1237 = vunpack.c.h.b16 %v808
    %v1238 = vunpack.c.l.b16 %v809
    %v1239 = vunpack.c.h.b16 %v809
    %v1240 = vunpack.c.l.b16 %v810
    %v1241 = vunpack.c.h.b16 %v810
    %v1242 = vunpack.c.l.b16 %v811
    %v1243 = vunpack.c.h.b16 %v811
    %v1244 = vunpack.c.l.b16 %v812
    %v1245 = vunpack.c.h.b16 %v812
    %v1246 = vunpack.c.l.b16 %v813
    %v1247 = vunpack.c.h.b16 %v813
    %v1248 = vunpack.c.l.b16 %v814
    %v1249 = vunpack.c.h.b16 %v814
    %v1250 = vunpack.c.l.b16 %v815
    %v1251 = vunpack.c.h.b16 %v815
    %v1252 = vunpack.c.l.b16 %v816
    %v1253 = vunpack.c.h.b16 %v816
    %v1254 = vunpack.c.l.b16 %v817
    %v1255 = vunpack.c.h.b16 %v817
    %v1256 = vunpack.c.l.b16 %v818
    %v1257 = vunpack.c.h.b16 %v818
    %v1258 = vunpack.c.l.b16 %v819
    %v1259 = vunpack.c.h.b16 %v819
    %v1260 = vunpack.c.l.b16 %v820
    %v1261 = vunpack.c.h.b16 %v820
    %v1262 = vunpack.c.l.b16 %v821
    %v1263 = vunpack.c.h.b16 %v821
    %v1264 = vunpack.c.l.b16 %v822
    %v1265 = vunpack.c.h.b16 %v822
    %v1266 = vunpack.c.l.b16 %v823
    %v1267 = vunpack.c.h.b16 %v823
    %v1268 = vunpack.c.l.b16 %v824
    %v1269 = vunpack.c.h.b16 %v824
    %v1270 = vunpack.c.l.b16 %v825
    %v1271 = vunpack.c.h.b16 %v825
    %v1272 = vunpack.c.l.b16 %v826
    %v1273 = vunpack.c.h.b16 %v826
    %v1274 = vunpack.c.l.b16 %v827
    %v1275 = vunpack.c.h.b16 %v827
    %v1276 = vunpack.c.l.b16 %v828
    %v1277 = vunpack.c.h.b16 %v828
    %v1278 = vunpack.c.l.b16 %v829
    %v1279 = vunpack.c.h.b16 %v829
    %v1280 = vunpack.c.l.b16 %v830
    %v1281 = vunpack.c.h.b16 %v830
    %v1282 = vunpack.c.l.b16 %v831
    %v1283 = vunpack.c.h.b16 %v831
    %v1284 = vunpack.c.l.b16 %v832
    %v1285 = vunpack.c.h.b16 %v832
    %v1286 = vunpack.c.l.b16 %v833
    %v1287 = vunpack.c.h.b16 %v833
    %v1288 = vunpack.c.l.b16 %v834
    %v1289 = vunpack.c.h.b16 %v834
    %v1290 = vunpack.c.l.b16 %v835
    %v1291 = vunpack.c.h.b16 %v835
    %v1292 = vunpack.c.l.b16 %v836
    %v1293 = vunpack.c.h.b16 %v836
    %v1294 = vunpack.c.l.b16 %v837
    %v1295 = vunpack.c.h.b16 %v837
    %v1296 = vunpack.c.l.b16 %v838
    %v1297 = vunpack.c.h.b16 %v838
    %v1298 = vunpack.c.l.b16 %v839
    %v1299 = vunpack.c.h.b16 %v839
    %v1300 = vunpack.c.l.b16 %v840
    %v1301 = vunpack.c.h.b16 %v840
    %v1302 = vunpack.c.l.b16 %v841
    %v1303 = vunpack.c.h.b16 %v841
    %v1304 = vunpack.c.l.b16 %v842
    %v1305 = vunpack.c.h.b16 %v842
    %v1306 = vunpack.c.l.b16 %v843
    %v1307 = vunpack.c.h.b16 %v843
    %v1308 = vunpack.c.l.b16 %v844
    %v1309 = vunpack.c.h.b16 %v844
    %v1310 = vunpack.c.l.b16 %v845
    %v1311 = vunpack.c.h.b16 %v845
    %v1312 = vunpack.c.l.b16 %v846
    %v1313 = vunpack.c.h.b16 %v846
    %v1314 = vunpack.c.l.b16 %v847
    %v1315 = vunpack.c.h.b16 %v847
    %v1316 = vunpack.c.l.b16 %v848
    %v1317 = vunpack.c.h.b16 %v848
    %v1318 = vunpack.c.l.b16 %v849
    %v1319 = vunpack.c.h.b16 %v849
    %v1320 = vunpack.c.l.b16 %v850
    %v1321 = vunpack.c.h.b16 %v850
    %v1322 = vunpack.c.l.b16 %v851
    %v1323 = vunpack.c.h.b16 %v851
    %v1324 = vunpack.c.l.b16 %v852
    %v1325 = vunpack.c.h.b16 %v852
    %v1326 = vunpack.c.l.b16 %v853
    %v1327 = vunpack.c.h.b16 %v853
    %v1328 = vunpack.c.l.b16 %v854
    %v1329 = vunpack.c.h.b16 %v854
    %v1330 = vpack.c.b16 %v1206, %v1202
    %v1331 = vpack.c.b16 %v1207, %v1203
    %v1332 = vpack.c.b16 %v1208, %v1204
    %v1333 = vpack.c.b16 %v1209, %v1205
    %v1334 = vpack.c.b16 %v1214, %v1210
    %v1335 = vpack.c.b16 %v1215, %v1211
    %v1336 = vpack.c.b16 %v1216, %v1212
    %v1337 = vpack.c.b16 %v1217, %v1213
    %v1338 = vpack.c.b16 %v1222, %v1218
    %v1339 = vpack.c.b16 %v1223, %v1219
    %v1340 = vpack.c.b16 %v1224, %v1220
    %v1341 = vpack.c.b16 %v1225, %v1221
    %v1342 = vpack.c.b16 %v1230, %v1226
    %v1343 = vpack.c.b16 %v1231, %v1227
    %v1344 = vpack.c.b16 %v1232, %v1228
    %v1345 = vpack.c.b16 %v1233, %v1229
    %v1346 = vpack.c.b16 %v1238, %v1234
    %v1347 = vpack.c.b16 %v1239, %v1235
    %v1348 = vpack.c.b16 %v1240, %v1236
    %v1349 = vpack.c.b16 %v1241, %v1237
    %v1350 = vpack.c.b16 %v1246, %v1242
    %v1351 = vpack.c.b16 %v1247, %v1243
    %v1352 = vpack.c.b16 %v1248, %v1244
    %v1353 = vpack.c.b16 %v1249, %v1245
    %v1354 = vpack.c.b16 %v1254, %v1250
    %v1355 = vpack.c.b16 %v1255, %v1251
    %v1356 = vpack.c.b16 %v1256, %v1252
    %v1357 = vpack.c.b16 %v1257, %v1253
    %v1358 = vpack.c.b16 %v1262, %v1258
    %v1359 = vpack.c.b16 %v1263, %v1259
    %v1360 = vpack.c.b16 %v1264, %v1260
    %v1361 = vpack.c.b16 %v1265, %v1261
    %v1362 = vpack.c.b16 %v1270, %v1266
    %v1363 = vpack.c.b16 %v1271, %v1267
    %v1364 = vpack.c.b16 %v1272, %v1268
    %v1365 = vpack.c.b16 %v1273, %v1269
    %v1366 = vpack.c.b16 %v1278, %v1274
    %v1367 = vpack.c.b16 %v1279, %v1275
    %v1368 = vpack.c.b16 %v1280, %v1276
    %v1369 = vpack.c.b16 %v1281, %v1277
    %v1370 = vpack.c.b16 %v1286, %v1282
    %v1371 = vpack.c.b16 %v1287, %v1283
    %v1372 = vpack.c.b16 %v1288, %v1284
    %v1373 = vpack.c.b16 %v1289, %v1285
    %v1374 = vpack.c.b16 %v1294, %v1290
    %v1375 = vpack.c.b16 %v1295, %v1291
    %v1376 = vpack.c.b16 %v1296, %v1292
    %v1377 = vpack.c.b16 %v1297, %v1293
    %v1378 = vpack.c.b16 %v1302, %v1298
    %v1379 = vpack.c.b16 %v1303, %v1299
    %v1380 = vpack.c.b16 %v1304, %v1300
    %v1381 = vpack.c.b16 %v1305, %v1301
    %v1382 = vpack.c.b16 %v1310, %v1306
    %v1383 = vpack.c.b16 %v1311, %v1307
    %v1384 = vpack.c.b16 %v1312, %v1308
    %v1385 = vpack.c.b16 %v1313, %v1309
    %v1386 = vpack.c.b16 %v1318, %v1314
    %v1387 = vpack.c.b16 %v1319, %v1315
    %v1388 = vpack.c.b16 %v1320, %v1316
    %v1389 = vpack.c.b16 %v1321, %v1317
    %v1390 = vpack.c.b16 %v1326, %v1322
    %v1391 = vpack.c.b16 %v1327, %v1323
    %v1392 = vpack.c.b16 %v1328, %v1324
    %v1393 = vpack.c.b16 %v1329, %v1325
    %1458 = vmatprep.subr.bf16.mxu0 %v1331
    %1459 = vmatpush1.bf16.msra.mxu0 %v1330
    %1460 = vmatprep.subr.bf16.mxu0 %v1335
    %1461 = vmatpush1.bf16.msra.mxu0 %v1334
    %1462 = vmatprep.subr.bf16.mxu0 %v1339
    %1463 = vmatpush1.bf16.msra.mxu0 %v1338
    %1464 = vmatprep.subr.bf16.mxu0 %v1343
    %1465 = vmatpush1.bf16.msra.mxu0 %v1342
    %1466 = vmatprep.subr.bf16.mxu0 %v1347
    %1467 = vmatpush1.bf16.msra.mxu0 %v1346
    %1468 = vmatprep.subr.bf16.mxu0 %v1351
    %1469 = vmatpush1.bf16.msra.mxu0 %v1350
    %1470 = vmatprep.subr.bf16.mxu0 %v1355
    %1471 = vmatpush1.bf16.msra.mxu0 %v1354
    %1472 = vmatprep.subr.bf16.mxu0 %v1359
    %1473 = vmatpush1.bf16.msra.mxu0 %v1358
    %1474 = vmatprep.subr.bf16.mxu0 %v1363
    %1475 = vmatpush1.bf16.msra.mxu0 %v1362
    %1476 = vmatprep.subr.bf16.mxu0 %v1367
    %1477 = vmatpush1.bf16.msra.mxu0 %v1366
    %1478 = vmatprep.subr.bf16.mxu0 %v1371
    %1479 = vmatpush1.bf16.msra.mxu0 %v1370
    %1480 = vmatprep.subr.bf16.mxu0 %v1375
    %1481 = vmatpush1.bf16.msra.mxu0 %v1374
    %1482 = vmatprep.subr.bf16.mxu0 %v1379
    %1483 = vmatpush1.bf16.msra.mxu0 %v1378
    %1484 = vmatprep.subr.bf16.mxu0 %v1383
    %1485 = vmatpush1.bf16.msra.mxu0 %v1382
    %1486 = vmatprep.subr.bf16.mxu0 %v1387
    %1487 = vmatpush1.bf16.msra.mxu0 %v1386
    %1488 = vmatprep.subr.bf16.mxu0 %v1391
    %1489 = vmatpush1.bf16.msra.mxu0 %v1390
    %1490 = vmatprep.mubr.bf16.mxu0 %v1116
    %1491 = vmatmul.mubr.bf16.gmra.mrb[0].mxu0 %v1115
    %v1492 = vpop.f32.mrb[0].mxu0
    %v1493 = vadd.f32 %v1121, %v1492
    %v1494 = vpop.f32.mrb[0].mxu0
    %v1495 = vadd.f32 %v1125, %v1494
    %v1496 = vpop.f32.mrb[0].mxu0
    %v1497 = vpop.f32.mrb[0].mxu0
    %1498 = vdwg.mxu0
    %1499 = vmatprep.subr.bf16.mxu0 %v1333
    %1500 = vmatpush1.bf16.msra.mxu0 %v1332
    %1501 = vmatprep.subr.bf16.mxu0 %v1337
    %1502 = vmatpush1.bf16.msra.mxu0 %v1336
    %1503 = vmatprep.subr.bf16.mxu0 %v1341
    %1504 = vmatpush1.bf16.msra.mxu0 %v1340
    %1505 = vmatprep.subr.bf16.mxu0 %v1345
    %1506 = vmatpush1.bf16.msra.mxu0 %v1344
    %1507 = vmatprep.subr.bf16.mxu0 %v1349
    %1508 = vmatpush1.bf16.msra.mxu0 %v1348
    %1509 = vmatprep.subr.bf16.mxu0 %v1353
    %1510 = vmatpush1.bf16.msra.mxu0 %v1352
    %1511 = vmatprep.subr.bf16.mxu0 %v1357
    %1512 = vmatpush1.bf16.msra.mxu0 %v1356
    %1513 = vmatprep.subr.bf16.mxu0 %v1361
    %1514 = vmatpush1.bf16.msra.mxu0 %v1360
    %1515 = vmatprep.subr.bf16.mxu0 %v1365
    %1516 = vmatpush1.bf16.msra.mxu0 %v1364
    %1517 = vmatprep.subr.bf16.mxu0 %v1369
    %1518 = vmatpush1.bf16.msra.mxu0 %v1368
    %1519 = vmatprep.subr.bf16.mxu0 %v1373
    %1520 = vmatpush1.bf16.msra.mxu0 %v1372
    %1521 = vmatprep.subr.bf16.mxu0 %v1377
    %1522 = vmatpush1.bf16.msra.mxu0 %v1376
    %1523 = vmatprep.subr.bf16.mxu0 %v1381
    %1524 = vmatpush1.bf16.msra.mxu0 %v1380
    %1525 = vmatprep.subr.bf16.mxu0 %v1385
    %1526 = vmatpush1.bf16.msra.mxu0 %v1384
    %1527 = vmatprep.subr.bf16.mxu0 %v1389
    %1528 = vmatpush1.bf16.msra.mxu0 %v1388
    %1529 = vmatprep.subr.bf16.mxu0 %v1393
    %1530 = vmatpush1.bf16.msra.mxu0 %v1392
    %1531 = vmatprep.mubr.bf16.mxu0 %v1116
    %1532 = vmatmul.mubr.bf16.gmra.mrb[0].mxu0 %v1115
    %v1533 = vpop.f32.mrb[0].mxu0
    %v1534 = vadd.f32 %v1129, %v1533
    %v1535 = vpop.f32.mrb[0].mxu0
    %v1536 = vadd.f32 %v1133, %v1535
    %v1537 = vpop.f32.mrb[0].mxu0
    %v1538 = vpop.f32.mrb[0].mxu0
    %1539 = vdwg.mxu0
    %v1540 = vlaneseq
    %v1541 = vshrl.u32 %v1540, 7
    %vm1542 = vcmp.lt.s32.totalorder %v1541, 2
    %v1543 = vsel %vm1542, 1, 0
    %v1544 = vcvt.s32.f32 %v1543
    %v1545 = vsub.f32 1.0, %v1544
    %v1546 = vmul.f32 %v1493, %v1544
    %v1547 = vmul.f32 %v1495, %v1544
    %v1548 = vmul.f32 %v1534, %v1544
    %v1549 = vmul.f32 %v1536, %v1544
    %vm1550 = vcmask 1043456
    %v1551 = vsel %vm1550, %v1546, 0.0
    %v1552 = vrot.slane %v1551, 4
    %v1553 = vadd.f32 %v1551, %v1552
    %v1554 = vrot.slane %v1553, 2
    %v1555 = vadd.f32 %v1553, %v1554
    %v1556 = vrot.slane %v1555, 1
    %v1557 = vadd.f32 %v1555, %v1556
    %v1558 = vsel %vm1550, %v1547, 0.0
    %v1559 = vrot.slane %v1558, 4
    %v1560 = vadd.f32 %v1558, %v1559
    %v1561 = vrot.slane %v1560, 2
    %v1562 = vadd.f32 %v1560, %v1561
    %v1563 = vrot.slane %v1562, 1
    %v1564 = vadd.f32 %v1562, %v1563
    %v1565 = vsel %vm1550, %v1548, 0.0
    %v1566 = vrot.slane %v1565, 4
    %v1567 = vadd.f32 %v1565, %v1566
    %v1568 = vrot.slane %v1567, 2
    %v1569 = vadd.f32 %v1567, %v1568
    %v1570 = vrot.slane %v1569, 1
    %v1571 = vadd.f32 %v1569, %v1570
    %v1572 = vsel %vm1550, %v1549, 0.0
    %v1573 = vrot.slane %v1572, 4
    %v1574 = vadd.f32 %v1572, %v1573
    %v1575 = vrot.slane %v1574, 2
    %v1576 = vadd.f32 %v1574, %v1575
    %v1577 = vrot.slane %v1576, 1
    %v1578 = vadd.f32 %v1576, %v1577
    %v1579 = vmul.f32 %v1557, 0.5
    %v1580 = vmul.f32 %v1564, 0.5
    %v1581 = vmul.f32 %v1571, 0.5
    %v1582 = vmul.f32 %v1578, 0.5
    %v1583 = vmul.f32 %v1493, %v1545
    %v1584 = vmul.f32 %v1495, %v1545
    %v1585 = vmul.f32 %v1534, %v1545
    %v1586 = vmul.f32 %v1536, %v1545
    %v1587 = vsel %vm1550, %v1583, 0.0
    %v1588 = vrot.slane %v1587, 4
    %v1589 = vadd.f32 %v1587, %v1588
    %v1590 = vrot.slane %v1589, 2
    %v1591 = vadd.f32 %v1589, %v1590
    %v1592 = vrot.slane %v1591, 1
    %v1593 = vadd.f32 %v1591, %v1592
    %v1594 = vsel %vm1550, %v1584, 0.0
    %v1595 = vrot.slane %v1594, 4
    %v1596 = vadd.f32 %v1594, %v1595
    %v1597 = vrot.slane %v1596, 2
    %v1598 = vadd.f32 %v1596, %v1597
    %v1599 = vrot.slane %v1598, 1
    %v1600 = vadd.f32 %v1598, %v1599
    %v1601 = vsel %vm1550, %v1585, 0.0
    %v1602 = vrot.slane %v1601, 4
    %v1603 = vadd.f32 %v1601, %v1602
    %v1604 = vrot.slane %v1603, 2
    %v1605 = vadd.f32 %v1603, %v1604
    %v1606 = vrot.slane %v1605, 1
    %v1607 = vadd.f32 %v1605, %v1606
    %v1608 = vsel %vm1550, %v1586, 0.0
    %v1609 = vrot.slane %v1608, 4
    %v1610 = vadd.f32 %v1608, %v1609
    %v1611 = vrot.slane %v1610, 2
    %v1612 = vadd.f32 %v1610, %v1611
    %v1613 = vrot.slane %v1612, 1
    %v1614 = vadd.f32 %v1612, %v1613
    %v1615 = vmul.f32 %v1593, 0.5
    %v1616 = vmul.f32 %v1600, 0.5
    %v1617 = vmul.f32 %v1607, 0.5
    %v1618 = vmul.f32 %v1614, 0.5
    %v1619 = vmul.f32 %v1544, %v1579
    %v1620 = vmul.f32 %v1544, %v1580
    %v1621 = vmul.f32 %v1544, %v1581
    %v1622 = vmul.f32 %v1544, %v1582
    %v1623 = vmul.f32 %v1545, %v1615
    %v1624 = vmul.f32 %v1545, %v1616
    %v1625 = vmul.f32 %v1545, %v1617
    %v1626 = vmul.f32 %v1545, %v1618
    %v1627 = vadd.f32 %v1619, %v1623
    %v1628 = vadd.f32 %v1620, %v1624
    %v1629 = vadd.f32 %v1621, %v1625
    %v1630 = vadd.f32 %v1622, %v1626
    %v1631 = vsub.f32 %v1493, %v1579
    %v1632 = vsub.f32 %v1495, %v1580
    %v1633 = vsub.f32 %v1534, %v1581
    %v1634 = vsub.f32 %v1536, %v1582
    %v1635 = vmul.f32 %v1631, %v1631
    %v1636 = vmul.f32 %v1632, %v1632
    %v1637 = vmul.f32 %v1633, %v1633
    %v1638 = vmul.f32 %v1634, %v1634
    %v1639 = vmul.f32 %v1635, %v1544
    %v1640 = vmul.f32 %v1636, %v1544
    %v1641 = vmul.f32 %v1637, %v1544
    %v1642 = vmul.f32 %v1638, %v1544
    %v1643 = vsel %vm1550, %v1639, 0.0
    %v1644 = vrot.slane %v1643, 4
    %v1645 = vadd.f32 %v1643, %v1644
    %v1646 = vrot.slane %v1645, 2
    %v1647 = vadd.f32 %v1645, %v1646
    %v1648 = vrot.slane %v1647, 1
    %v1649 = vadd.f32 %v1647, %v1648
    %v1650 = vsel %vm1550, %v1640, 0.0
    %v1651 = vrot.slane %v1650, 4
    %v1652 = vadd.f32 %v1650, %v1651
    %v1653 = vrot.slane %v1652, 2
    %v1654 = vadd.f32 %v1652, %v1653
    %v1655 = vrot.slane %v1654, 1
    %v1656 = vadd.f32 %v1654, %v1655
    %v1657 = vsel %vm1550, %v1641, 0.0
    %v1658 = vrot.slane %v1657, 4
    %v1659 = vadd.f32 %v1657, %v1658
    %v1660 = vrot.slane %v1659, 2
    %v1661 = vadd.f32 %v1659, %v1660
    %v1662 = vrot.slane %v1661, 1
    %v1663 = vadd.f32 %v1661, %v1662
    %v1664 = vsel %vm1550, %v1642, 0.0
    %v1665 = vrot.slane %v1664, 4
    %v1666 = vadd.f32 %v1664, %v1665
    %v1667 = vrot.slane %v1666, 2
    %v1668 = vadd.f32 %v1666, %v1667
    %v1669 = vrot.slane %v1668, 1
    %v1670 = vadd.f32 %v1668, %v1669
    %v1671 = vmul.f32 %v1649, 0.5
    %v1672 = vmul.f32 %v1656, 0.5
    %v1673 = vmul.f32 %v1663, 0.5
    %v1674 = vmul.f32 %v1670, 0.5
    %v1675 = vsub.f32 %v1493, %v1615
    %v1676 = vsub.f32 %v1495, %v1616
    %v1677 = vsub.f32 %v1534, %v1617
    %v1678 = vsub.f32 %v1536, %v1618
    %v1679 = vmul.f32 %v1675, %v1675
    %v1680 = vmul.f32 %v1676, %v1676
    %v1681 = vmul.f32 %v1677, %v1677
    %v1682 = vmul.f32 %v1678, %v1678
    %v1683 = vmul.f32 %v1679, %v1545
    %v1684 = vmul.f32 %v1680, %v1545
    %v1685 = vmul.f32 %v1681, %v1545
    %v1686 = vmul.f32 %v1682, %v1545
    %v1687 = vsel %vm1550, %v1683, 0.0
    %v1688 = vrot.slane %v1687, 4
    %v1689 = vadd.f32 %v1687, %v1688
    %v1690 = vrot.slane %v1689, 2
    %v1691 = vadd.f32 %v1689, %v1690
    %v1692 = vrot.slane %v1691, 1
    %v1693 = vadd.f32 %v1691, %v1692
    %v1694 = vsel %vm1550, %v1684, 0.0
    %v1695 = vrot.slane %v1694, 4
    %v1696 = vadd.f32 %v1694, %v1695
    %v1697 = vrot.slane %v1696, 2
    %v1698 = vadd.f32 %v1696, %v1697
    %v1699 = vrot.slane %v1698, 1
    %v1700 = vadd.f32 %v1698, %v1699
    %v1701 = vsel %vm1550, %v1685, 0.0
    %v1702 = vrot.slane %v1701, 4
    %v1703 = vadd.f32 %v1701, %v1702
    %v1704 = vrot.slane %v1703, 2
    %v1705 = vadd.f32 %v1703, %v1704
    %v1706 = vrot.slane %v1705, 1
    %v1707 = vadd.f32 %v1705, %v1706
    %v1708 = vsel %vm1550, %v1686, 0.0
    %v1709 = vrot.slane %v1708, 4
    %v1710 = vadd.f32 %v1708, %v1709
    %v1711 = vrot.slane %v1710, 2
    %v1712 = vadd.f32 %v1710, %v1711
    %v1713 = vrot.slane %v1712, 1
    %v1714 = vadd.f32 %v1712, %v1713
    %v1715 = vmul.f32 %v1693, 0.5
    %v1716 = vmul.f32 %v1700, 0.5
    %v1717 = vmul.f32 %v1707, 0.5
    %v1718 = vmul.f32 %v1714, 0.5
    %v1719 = vmul.f32 %v1544, %v1671
    %v1720 = vmul.f32 %v1544, %v1672
    %v1721 = vmul.f32 %v1544, %v1673
    %v1722 = vmul.f32 %v1544, %v1674
    %v1723 = vmul.f32 %v1545, %v1715
    %v1724 = vmul.f32 %v1545, %v1716
    %v1725 = vmul.f32 %v1545, %v1717
    %v1726 = vmul.f32 %v1545, %v1718
    %v1727 = vadd.f32 %v1719, %v1723
    %v1728 = vadd.f32 %v1720, %v1724
    %v1729 = vadd.f32 %v1721, %v1725
    %v1730 = vadd.f32 %v1722, %v1726
    %v1731 = vsub.f32 %v1493, %v1627
    %v1732 = vsub.f32 %v1495, %v1628
    %v1733 = vsub.f32 %v1534, %v1629
    %v1734 = vsub.f32 %v1536, %v1630
    %v1735 = vadd.f32 %v1727, 1e-05
    %v1736 = vadd.f32 %v1728, 1e-05
    %v1737 = vadd.f32 %v1729, 1e-05
    %v1738 = vadd.f32 %v1730, 1e-05
    %v1739 = vrsqrt.pop %v1735
    %v1740 = vrsqrt.pop %v1736
    %v1741 = vrsqrt.pop %v1737
    %v1742 = vrsqrt.pop %v1738
    %v1743 = vmul.f32 %v1731, %v1739
    %v1744 = vmul.f32 %v1732, %v1740
    %v1745 = vmul.f32 %v1733, %v1741
    %v1746 = vmul.f32 %v1734, %v1742
    %v1748 = vlaneseq
    %v1749 = vshrl.u32 %v1748, 7
    %v1750 = vsub.s32 0, %v1749
    %v1751 = vrot.slane %v856, %v1750
    %v1752 = vlaneseq
    %v1753 = vshrl.u32 %v1752, 7
    %v1754 = vsub.s32 1, %v1753
    %v1755 = vrot.slane %v856, %v1754
    %v1756 = vlaneseq
    %v1757 = vshrl.u32 %v1756, 7
    %v1758 = vsub.s32 2, %v1757
    %v1759 = vrot.slane %v856, %v1758
    %v1760 = vlaneseq
    %v1761 = vshrl.u32 %v1760, 7
    %v1762 = vsub.s32 3, %v1761
    %v1763 = vrot.slane %v856, %v1762
    %v1768 = vmul.f32 %v1743, %v1751
    %v1769 = vmul.f32 %v1744, %v1755
    %v1770 = vmul.f32 %v1745, %v1759
    %v1771 = vmul.f32 %v1746, %v1763
    %v1773 = vlaneseq
    %v1774 = vshrl.u32 %v1773, 7
    %v1775 = vsub.s32 0, %v1774
    %v1776 = vrot.slane %v857, %v1775
    %v1777 = vlaneseq
    %v1778 = vshrl.u32 %v1777, 7
    %v1779 = vsub.s32 1, %v1778
    %v1780 = vrot.slane %v857, %v1779
    %v1781 = vlaneseq
    %v1782 = vshrl.u32 %v1781, 7
    %v1783 = vsub.s32 2, %v1782
    %v1784 = vrot.slane %v857, %v1783
    %v1785 = vlaneseq
    %v1786 = vshrl.u32 %v1785, 7
    %v1787 = vsub.s32 3, %v1786
    %v1788 = vrot.slane %v857, %v1787
    %v1793 = vadd.f32 %v1768, %v1776
    %v1794 = vadd.f32 %v1769, %v1780
    %v1795 = vadd.f32 %v1770, %v1784
    %v1796 = vadd.f32 %v1771, %v1788
    %v1797 = vmax.f32 %v1793, 0.0
    %v1798 = vmax.f32 %v1794, 0.0
    %v1799 = vmax.f32 %v1795, 0.0
    %v1800 = vmax.f32 %v1796, 0.0
    %v1801 = vpack.c.bf16 %v1797, %v1797
    %v1802 = vpack.c.bf16 %v1798, %v1798
    %v1803 = vpack.c.bf16 %v1799, %v1799
    %v1804 = vpack.c.bf16 %v1800, %v1800
    %v1806 = vlaneseq
    %v1807 = vshrl.u32 %v1806, 7
    %v1808 = vsub.s32 0, %v1807
    %v1809 = vrot.slane %v1114, %v1808
    %v1810 = vlaneseq
    %v1811 = vshrl.u32 %v1810, 7
    %v1812 = vsub.s32 1, %v1811
    %v1813 = vrot.slane %v1114, %v1812
    %v1814 = vlaneseq
    %v1815 = vshrl.u32 %v1814, 7
    %v1816 = vsub.s32 2, %v1815
    %v1817 = vrot.slane %v1114, %v1816
    %v1818 = vlaneseq
    %v1819 = vshrl.u32 %v1818, 7
    %v1820 = vsub.s32 3, %v1819
    %v1821 = vrot.slane %v1114, %v1820
    %v1822 = vlaneseq
    %v1823 = vshrl.u32 %v1822, 7
    %v1824 = vsub.s32 4, %v1823
    %v1825 = vrot.slane %v1114, %v1824
    %v1826 = vlaneseq
    %v1827 = vshrl.u32 %v1826, 7
    %v1828 = vsub.s32 5, %v1827
    %v1829 = vrot.slane %v1114, %v1828
    %v1830 = vlaneseq
    %v1831 = vshrl.u32 %v1830, 7
    %v1832 = vsub.s32 6, %v1831
    %v1833 = vrot.slane %v1114, %v1832
    %v1834 = vlaneseq
    %v1835 = vshrl.u32 %v1834, 7
    %v1836 = vsub.s32 7, %v1835
    %v1837 = vrot.slane %v1114, %v1836
    %v2102 = vunpack.c.l.b16 %v858
    %v2103 = vunpack.c.h.b16 %v858
    %v2104 = vunpack.c.l.b16 %v859
    %v2105 = vunpack.c.h.b16 %v859
    %v2106 = vunpack.c.l.b16 %v860
    %v2107 = vunpack.c.h.b16 %v860
    %v2108 = vunpack.c.l.b16 %v861
    %v2109 = vunpack.c.h.b16 %v861
    %v2110 = vunpack.c.l.b16 %v862
    %v2111 = vunpack.c.h.b16 %v862
    %v2112 = vunpack.c.l.b16 %v863
    %v2113 = vunpack.c.h.b16 %v863
    %v2114 = vunpack.c.l.b16 %v864
    %v2115 = vunpack.c.h.b16 %v864
    %v2116 = vunpack.c.l.b16 %v865
    %v2117 = vunpack.c.h.b16 %v865
    %v2118 = vunpack.c.l.b16 %v866
    %v2119 = vunpack.c.h.b16 %v866
    %v2120 = vunpack.c.l.b16 %v867
    %v2121 = vunpack.c.h.b16 %v867
    %v2122 = vunpack.c.l.b16 %v868
    %v2123 = vunpack.c.h.b16 %v868
    %v2124 = vunpack.c.l.b16 %v869
    %v2125 = vunpack.c.h.b16 %v869
    %v2126 = vunpack.c.l.b16 %v870
    %v2127 = vunpack.c.h.b16 %v870
    %v2128 = vunpack.c.l.b16 %v871
    %v2129 = vunpack.c.h.b16 %v871
    %v2130 = vunpack.c.l.b16 %v872
    %v2131 = vunpack.c.h.b16 %v872
    %v2132 = vunpack.c.l.b16 %v873
    %v2133 = vunpack.c.h.b16 %v873
    %v2134 = vunpack.c.l.b16 %v874
    %v2135 = vunpack.c.h.b16 %v874
    %v2136 = vunpack.c.l.b16 %v875
    %v2137 = vunpack.c.h.b16 %v875
    %v2138 = vunpack.c.l.b16 %v876
    %v2139 = vunpack.c.h.b16 %v876
    %v2140 = vunpack.c.l.b16 %v877
    %v2141 = vunpack.c.h.b16 %v877
    %v2142 = vunpack.c.l.b16 %v878
    %v2143 = vunpack.c.h.b16 %v878
    %v2144 = vunpack.c.l.b16 %v879
    %v2145 = vunpack.c.h.b16 %v879
    %v2146 = vunpack.c.l.b16 %v880
    %v2147 = vunpack.c.h.b16 %v880
    %v2148 = vunpack.c.l.b16 %v881
    %v2149 = vunpack.c.h.b16 %v881
    %v2150 = vunpack.c.l.b16 %v882
    %v2151 = vunpack.c.h.b16 %v882
    %v2152 = vunpack.c.l.b16 %v883
    %v2153 = vunpack.c.h.b16 %v883
    %v2154 = vunpack.c.l.b16 %v884
    %v2155 = vunpack.c.h.b16 %v884
    %v2156 = vunpack.c.l.b16 %v885
    %v2157 = vunpack.c.h.b16 %v885
    %v2158 = vunpack.c.l.b16 %v886
    %v2159 = vunpack.c.h.b16 %v886
    %v2160 = vunpack.c.l.b16 %v887
    %v2161 = vunpack.c.h.b16 %v887
    %v2162 = vunpack.c.l.b16 %v888
    %v2163 = vunpack.c.h.b16 %v888
    %v2164 = vunpack.c.l.b16 %v889
    %v2165 = vunpack.c.h.b16 %v889
    %v2166 = vunpack.c.l.b16 %v890
    %v2167 = vunpack.c.h.b16 %v890
    %v2168 = vunpack.c.l.b16 %v891
    %v2169 = vunpack.c.h.b16 %v891
    %v2170 = vunpack.c.l.b16 %v892
    %v2171 = vunpack.c.h.b16 %v892
    %v2172 = vunpack.c.l.b16 %v893
    %v2173 = vunpack.c.h.b16 %v893
    %v2174 = vunpack.c.l.b16 %v894
    %v2175 = vunpack.c.h.b16 %v894
    %v2176 = vunpack.c.l.b16 %v895
    %v2177 = vunpack.c.h.b16 %v895
    %v2178 = vunpack.c.l.b16 %v896
    %v2179 = vunpack.c.h.b16 %v896
    %v2180 = vunpack.c.l.b16 %v897
    %v2181 = vunpack.c.h.b16 %v897
    %v2182 = vunpack.c.l.b16 %v898
    %v2183 = vunpack.c.h.b16 %v898
    %v2184 = vunpack.c.l.b16 %v899
    %v2185 = vunpack.c.h.b16 %v899
    %v2186 = vunpack.c.l.b16 %v900
    %v2187 = vunpack.c.h.b16 %v900
    %v2188 = vunpack.c.l.b16 %v901
    %v2189 = vunpack.c.h.b16 %v901
    %v2190 = vunpack.c.l.b16 %v902
    %v2191 = vunpack.c.h.b16 %v902
    %v2192 = vunpack.c.l.b16 %v903
    %v2193 = vunpack.c.h.b16 %v903
    %v2194 = vunpack.c.l.b16 %v904
    %v2195 = vunpack.c.h.b16 %v904
    %v2196 = vunpack.c.l.b16 %v905
    %v2197 = vunpack.c.h.b16 %v905
    %v2198 = vunpack.c.l.b16 %v906
    %v2199 = vunpack.c.h.b16 %v906
    %v2200 = vunpack.c.l.b16 %v907
    %v2201 = vunpack.c.h.b16 %v907
    %v2202 = vunpack.c.l.b16 %v908
    %v2203 = vunpack.c.h.b16 %v908
    %v2204 = vunpack.c.l.b16 %v909
    %v2205 = vunpack.c.h.b16 %v909
    %v2206 = vunpack.c.l.b16 %v910
    %v2207 = vunpack.c.h.b16 %v910
    %v2208 = vunpack.c.l.b16 %v911
    %v2209 = vunpack.c.h.b16 %v911
    %v2210 = vunpack.c.l.b16 %v912
    %v2211 = vunpack.c.h.b16 %v912
    %v2212 = vunpack.c.l.b16 %v913
    %v2213 = vunpack.c.h.b16 %v913
    %v2214 = vunpack.c.l.b16 %v914
    %v2215 = vunpack.c.h.b16 %v914
    %v2216 = vunpack.c.l.b16 %v915
    %v2217 = vunpack.c.h.b16 %v915
    %v2218 = vunpack.c.l.b16 %v916
    %v2219 = vunpack.c.h.b16 %v916
    %v2220 = vunpack.c.l.b16 %v917
    %v2221 = vunpack.c.h.b16 %v917
    %v2222 = vunpack.c.l.b16 %v918
    %v2223 = vunpack.c.h.b16 %v918
    %v2224 = vunpack.c.l.b16 %v919
    %v2225 = vunpack.c.h.b16 %v919
    %v2226 = vunpack.c.l.b16 %v920
    %v2227 = vunpack.c.h.b16 %v920
    %v2228 = vunpack.c.l.b16 %v921
    %v2229 = vunpack.c.h.b16 %v921
    %v2230 = vunpack.c.l.b16 %v922
    %v2231 = vunpack.c.h.b16 %v922
    %v2232 = vunpack.c.l.b16 %v923
    %v2233 = vunpack.c.h.b16 %v923
    %v2234 = vunpack.c.l.b16 %v924
    %v2235 = vunpack.c.h.b16 %v924
    %v2236 = vunpack.c.l.b16 %v925
    %v2237 = vunpack.c.h.b16 %v925
    %v2238 = vunpack.c.l.b16 %v926
    %v2239 = vunpack.c.h.b16 %v926
    %v2240 = vunpack.c.l.b16 %v927
    %v2241 = vunpack.c.h.b16 %v927
    %v2242 = vunpack.c.l.b16 %v928
    %v2243 = vunpack.c.h.b16 %v928
    %v2244 = vunpack.c.l.b16 %v929
    %v2245 = vunpack.c.h.b16 %v929
    %v2246 = vunpack.c.l.b16 %v930
    %v2247 = vunpack.c.h.b16 %v930
    %v2248 = vunpack.c.l.b16 %v931
    %v2249 = vunpack.c.h.b16 %v931
    %v2250 = vunpack.c.l.b16 %v932
    %v2251 = vunpack.c.h.b16 %v932
    %v2252 = vunpack.c.l.b16 %v933
    %v2253 = vunpack.c.h.b16 %v933
    %v2254 = vunpack.c.l.b16 %v934
    %v2255 = vunpack.c.h.b16 %v934
    %v2256 = vunpack.c.l.b16 %v935
    %v2257 = vunpack.c.h.b16 %v935
    %v2258 = vunpack.c.l.b16 %v936
    %v2259 = vunpack.c.h.b16 %v936
    %v2260 = vunpack.c.l.b16 %v937
    %v2261 = vunpack.c.h.b16 %v937
    %v2262 = vunpack.c.l.b16 %v938
    %v2263 = vunpack.c.h.b16 %v938
    %v2264 = vunpack.c.l.b16 %v939
    %v2265 = vunpack.c.h.b16 %v939
    %v2266 = vunpack.c.l.b16 %v940
    %v2267 = vunpack.c.h.b16 %v940
    %v2268 = vunpack.c.l.b16 %v941
    %v2269 = vunpack.c.h.b16 %v941
    %v2270 = vunpack.c.l.b16 %v942
    %v2271 = vunpack.c.h.b16 %v942
    %v2272 = vunpack.c.l.b16 %v943
    %v2273 = vunpack.c.h.b16 %v943
    %v2274 = vunpack.c.l.b16 %v944
    %v2275 = vunpack.c.h.b16 %v944
    %v2276 = vunpack.c.l.b16 %v945
    %v2277 = vunpack.c.h.b16 %v945
    %v2278 = vunpack.c.l.b16 %v946
    %v2279 = vunpack.c.h.b16 %v946
    %v2280 = vunpack.c.l.b16 %v947
    %v2281 = vunpack.c.h.b16 %v947
    %v2282 = vunpack.c.l.b16 %v948
    %v2283 = vunpack.c.h.b16 %v948
    %v2284 = vunpack.c.l.b16 %v949
    %v2285 = vunpack.c.h.b16 %v949
    %v2286 = vunpack.c.l.b16 %v950
    %v2287 = vunpack.c.h.b16 %v950
    %v2288 = vunpack.c.l.b16 %v951
    %v2289 = vunpack.c.h.b16 %v951
    %v2290 = vunpack.c.l.b16 %v952
    %v2291 = vunpack.c.h.b16 %v952
    %v2292 = vunpack.c.l.b16 %v953
    %v2293 = vunpack.c.h.b16 %v953
    %v2294 = vunpack.c.l.b16 %v954
    %v2295 = vunpack.c.h.b16 %v954
    %v2296 = vunpack.c.l.b16 %v955
    %v2297 = vunpack.c.h.b16 %v955
    %v2298 = vunpack.c.l.b16 %v956
    %v2299 = vunpack.c.h.b16 %v956
    %v2300 = vunpack.c.l.b16 %v957
    %v2301 = vunpack.c.h.b16 %v957
    %v2302 = vunpack.c.l.b16 %v958
    %v2303 = vunpack.c.h.b16 %v958
    %v2304 = vunpack.c.l.b16 %v959
    %v2305 = vunpack.c.h.b16 %v959
    %v2306 = vunpack.c.l.b16 %v960
    %v2307 = vunpack.c.h.b16 %v960
    %v2308 = vunpack.c.l.b16 %v961
    %v2309 = vunpack.c.h.b16 %v961
    %v2310 = vunpack.c.l.b16 %v962
    %v2311 = vunpack.c.h.b16 %v962
    %v2312 = vunpack.c.l.b16 %v963
    %v2313 = vunpack.c.h.b16 %v963
    %v2314 = vunpack.c.l.b16 %v964
    %v2315 = vunpack.c.h.b16 %v964
    %v2316 = vunpack.c.l.b16 %v965
    %v2317 = vunpack.c.h.b16 %v965
    %v2318 = vunpack.c.l.b16 %v966
    %v2319 = vunpack.c.h.b16 %v966
    %v2320 = vunpack.c.l.b16 %v967
    %v2321 = vunpack.c.h.b16 %v967
    %v2322 = vunpack.c.l.b16 %v968
    %v2323 = vunpack.c.h.b16 %v968
    %v2324 = vunpack.c.l.b16 %v969
    %v2325 = vunpack.c.h.b16 %v969
    %v2326 = vunpack.c.l.b16 %v970
    %v2327 = vunpack.c.h.b16 %v970
    %v2328 = vunpack.c.l.b16 %v971
    %v2329 = vunpack.c.h.b16 %v971
    %v2330 = vunpack.c.l.b16 %v972
    %v2331 = vunpack.c.h.b16 %v972
    %v2332 = vunpack.c.l.b16 %v973
    %v2333 = vunpack.c.h.b16 %v973
    %v2334 = vunpack.c.l.b16 %v974
    %v2335 = vunpack.c.h.b16 %v974
    %v2336 = vunpack.c.l.b16 %v975
    %v2337 = vunpack.c.h.b16 %v975
    %v2338 = vunpack.c.l.b16 %v976
    %v2339 = vunpack.c.h.b16 %v976
    %v2340 = vunpack.c.l.b16 %v977
    %v2341 = vunpack.c.h.b16 %v977
    %v2342 = vunpack.c.l.b16 %v978
    %v2343 = vunpack.c.h.b16 %v978
    %v2344 = vunpack.c.l.b16 %v979
    %v2345 = vunpack.c.h.b16 %v979
    %v2346 = vunpack.c.l.b16 %v980
    %v2347 = vunpack.c.h.b16 %v980
    %v2348 = vunpack.c.l.b16 %v981
    %v2349 = vunpack.c.h.b16 %v981
    %v2350 = vunpack.c.l.b16 %v982
    %v2351 = vunpack.c.h.b16 %v982
    %v2352 = vunpack.c.l.b16 %v983
    %v2353 = vunpack.c.h.b16 %v983
    %v2354 = vunpack.c.l.b16 %v984
    %v2355 = vunpack.c.h.b16 %v984
    %v2356 = vunpack.c.l.b16 %v985
    %v2357 = vunpack.c.h.b16 %v985
    %v2358 = vunpack.c.l.b16 %v986
    %v2359 = vunpack.c.h.b16 %v986
    %v2360 = vunpack.c.l.b16 %v987
    %v2361 = vunpack.c.h.b16 %v987
    %v2362 = vunpack.c.l.b16 %v988
    %v2363 = vunpack.c.h.b16 %v988
    %v2364 = vunpack.c.l.b16 %v989
    %v2365 = vunpack.c.h.b16 %v989
    %v2366 = vunpack.c.l.b16 %v990
    %v2367 = vunpack.c.h.b16 %v990
    %v2368 = vunpack.c.l.b16 %v991
    %v2369 = vunpack.c.h.b16 %v991
    %v2370 = vunpack.c.l.b16 %v992
    %v2371 = vunpack.c.h.b16 %v992
    %v2372 = vunpack.c.l.b16 %v993
    %v2373 = vunpack.c.h.b16 %v993
    %v2374 = vunpack.c.l.b16 %v994
    %v2375 = vunpack.c.h.b16 %v994
    %v2376 = vunpack.c.l.b16 %v995
    %v2377 = vunpack.c.h.b16 %v995
    %v2378 = vunpack.c.l.b16 %v996
    %v2379 = vunpack.c.h.b16 %v996
    %v2380 = vunpack.c.l.b16 %v997
    %v2381 = vunpack.c.h.b16 %v997
    %v2382 = vunpack.c.l.b16 %v998
    %v2383 = vunpack.c.h.b16 %v998
    %v2384 = vunpack.c.l.b16 %v999
    %v2385 = vunpack.c.h.b16 %v999
    %v2386 = vunpack.c.l.b16 %v1000
    %v2387 = vunpack.c.h.b16 %v1000
    %v2388 = vunpack.c.l.b16 %v1001
    %v2389 = vunpack.c.h.b16 %v1001
    %v2390 = vunpack.c.l.b16 %v1002
    %v2391 = vunpack.c.h.b16 %v1002
    %v2392 = vunpack.c.l.b16 %v1003
    %v2393 = vunpack.c.h.b16 %v1003
    %v2394 = vunpack.c.l.b16 %v1004
    %v2395 = vunpack.c.h.b16 %v1004
    %v2396 = vunpack.c.l.b16 %v1005
    %v2397 = vunpack.c.h.b16 %v1005
    %v2398 = vunpack.c.l.b16 %v1006
    %v2399 = vunpack.c.h.b16 %v1006
    %v2400 = vunpack.c.l.b16 %v1007
    %v2401 = vunpack.c.h.b16 %v1007
    %v2402 = vunpack.c.l.b16 %v1008
    %v2403 = vunpack.c.h.b16 %v1008
    %v2404 = vunpack.c.l.b16 %v1009
    %v2405 = vunpack.c.h.b16 %v1009
    %v2406 = vunpack.c.l.b16 %v1010
    %v2407 = vunpack.c.h.b16 %v1010
    %v2408 = vunpack.c.l.b16 %v1011
    %v2409 = vunpack.c.h.b16 %v1011
    %v2410 = vunpack.c.l.b16 %v1012
    %v2411 = vunpack.c.h.b16 %v1012
    %v2412 = vunpack.c.l.b16 %v1013
    %v2413 = vunpack.c.h.b16 %v1013
    %v2414 = vunpack.c.l.b16 %v1014
    %v2415 = vunpack.c.h.b16 %v1014
    %v2416 = vunpack.c.l.b16 %v1015
    %v2417 = vunpack.c.h.b16 %v1015
    %v2418 = vunpack.c.l.b16 %v1016
    %v2419 = vunpack.c.h.b16 %v1016
    %v2420 = vunpack.c.l.b16 %v1017
    %v2421 = vunpack.c.h.b16 %v1017
    %v2422 = vunpack.c.l.b16 %v1018
    %v2423 = vunpack.c.h.b16 %v1018
    %v2424 = vunpack.c.l.b16 %v1019
    %v2425 = vunpack.c.h.b16 %v1019
    %v2426 = vunpack.c.l.b16 %v1020
    %v2427 = vunpack.c.h.b16 %v1020
    %v2428 = vunpack.c.l.b16 %v1021
    %v2429 = vunpack.c.h.b16 %v1021
    %v2430 = vunpack.c.l.b16 %v1022
    %v2431 = vunpack.c.h.b16 %v1022
    %v2432 = vunpack.c.l.b16 %v1023
    %v2433 = vunpack.c.h.b16 %v1023
    %v2434 = vunpack.c.l.b16 %v1024
    %v2435 = vunpack.c.h.b16 %v1024
    %v2436 = vunpack.c.l.b16 %v1025
    %v2437 = vunpack.c.h.b16 %v1025
    %v2438 = vunpack.c.l.b16 %v1026
    %v2439 = vunpack.c.h.b16 %v1026
    %v2440 = vunpack.c.l.b16 %v1027
    %v2441 = vunpack.c.h.b16 %v1027
    %v2442 = vunpack.c.l.b16 %v1028
    %v2443 = vunpack.c.h.b16 %v1028
    %v2444 = vunpack.c.l.b16 %v1029
    %v2445 = vunpack.c.h.b16 %v1029
    %v2446 = vunpack.c.l.b16 %v1030
    %v2447 = vunpack.c.h.b16 %v1030
    %v2448 = vunpack.c.l.b16 %v1031
    %v2449 = vunpack.c.h.b16 %v1031
    %v2450 = vunpack.c.l.b16 %v1032
    %v2451 = vunpack.c.h.b16 %v1032
    %v2452 = vunpack.c.l.b16 %v1033
    %v2453 = vunpack.c.h.b16 %v1033
    %v2454 = vunpack.c.l.b16 %v1034
    %v2455 = vunpack.c.h.b16 %v1034
    %v2456 = vunpack.c.l.b16 %v1035
    %v2457 = vunpack.c.h.b16 %v1035
    %v2458 = vunpack.c.l.b16 %v1036
    %v2459 = vunpack.c.h.b16 %v1036
    %v2460 = vunpack.c.l.b16 %v1037
    %v2461 = vunpack.c.h.b16 %v1037
    %v2462 = vunpack.c.l.b16 %v1038
    %v2463 = vunpack.c.h.b16 %v1038
    %v2464 = vunpack.c.l.b16 %v1039
    %v2465 = vunpack.c.h.b16 %v1039
    %v2466 = vunpack.c.l.b16 %v1040
    %v2467 = vunpack.c.h.b16 %v1040
    %v2468 = vunpack.c.l.b16 %v1041
    %v2469 = vunpack.c.h.b16 %v1041
    %v2470 = vunpack.c.l.b16 %v1042
    %v2471 = vunpack.c.h.b16 %v1042
    %v2472 = vunpack.c.l.b16 %v1043
    %v2473 = vunpack.c.h.b16 %v1043
    %v2474 = vunpack.c.l.b16 %v1044
    %v2475 = vunpack.c.h.b16 %v1044
    %v2476 = vunpack.c.l.b16 %v1045
    %v2477 = vunpack.c.h.b16 %v1045
    %v2478 = vunpack.c.l.b16 %v1046
    %v2479 = vunpack.c.h.b16 %v1046
    %v2480 = vunpack.c.l.b16 %v1047
    %v2481 = vunpack.c.h.b16 %v1047
    %v2482 = vunpack.c.l.b16 %v1048
    %v2483 = vunpack.c.h.b16 %v1048
    %v2484 = vunpack.c.l.b16 %v1049
    %v2485 = vunpack.c.h.b16 %v1049
    %v2486 = vunpack.c.l.b16 %v1050
    %v2487 = vunpack.c.h.b16 %v1050
    %v2488 = vunpack.c.l.b16 %v1051
    %v2489 = vunpack.c.h.b16 %v1051
    %v2490 = vunpack.c.l.b16 %v1052
    %v2491 = vunpack.c.h.b16 %v1052
    %v2492 = vunpack.c.l.b16 %v1053
    %v2493 = vunpack.c.h.b16 %v1053
    %v2494 = vunpack.c.l.b16 %v1054
    %v2495 = vunpack.c.h.b16 %v1054
    %v2496 = vunpack.c.l.b16 %v1055
    %v2497 = vunpack.c.h.b16 %v1055
    %v2498 = vunpack.c.l.b16 %v1056
    %v2499 = vunpack.c.h.b16 %v1056
    %v2500 = vunpack.c.l.b16 %v1057
    %v2501 = vunpack.c.h.b16 %v1057
    %v2502 = vunpack.c.l.b16 %v1058
    %v2503 = vunpack.c.h.b16 %v1058
    %v2504 = vunpack.c.l.b16 %v1059
    %v2505 = vunpack.c.h.b16 %v1059
    %v2506 = vunpack.c.l.b16 %v1060
    %v2507 = vunpack.c.h.b16 %v1060
    %v2508 = vunpack.c.l.b16 %v1061
    %v2509 = vunpack.c.h.b16 %v1061
    %v2510 = vunpack.c.l.b16 %v1062
    %v2511 = vunpack.c.h.b16 %v1062
    %v2512 = vunpack.c.l.b16 %v1063
    %v2513 = vunpack.c.h.b16 %v1063
    %v2514 = vunpack.c.l.b16 %v1064
    %v2515 = vunpack.c.h.b16 %v1064
    %v2516 = vunpack.c.l.b16 %v1065
    %v2517 = vunpack.c.h.b16 %v1065
    %v2518 = vunpack.c.l.b16 %v1066
    %v2519 = vunpack.c.h.b16 %v1066
    %v2520 = vunpack.c.l.b16 %v1067
    %v2521 = vunpack.c.h.b16 %v1067
    %v2522 = vunpack.c.l.b16 %v1068
    %v2523 = vunpack.c.h.b16 %v1068
    %v2524 = vunpack.c.l.b16 %v1069
    %v2525 = vunpack.c.h.b16 %v1069
    %v2526 = vunpack.c.l.b16 %v1070
    %v2527 = vunpack.c.h.b16 %v1070
    %v2528 = vunpack.c.l.b16 %v1071
    %v2529 = vunpack.c.h.b16 %v1071
    %v2530 = vunpack.c.l.b16 %v1072
    %v2531 = vunpack.c.h.b16 %v1072
    %v2532 = vunpack.c.l.b16 %v1073
    %v2533 = vunpack.c.h.b16 %v1073
    %v2534 = vunpack.c.l.b16 %v1074
    %v2535 = vunpack.c.h.b16 %v1074
    %v2536 = vunpack.c.l.b16 %v1075
    %v2537 = vunpack.c.h.b16 %v1075
    %v2538 = vunpack.c.l.b16 %v1076
    %v2539 = vunpack.c.h.b16 %v1076
    %v2540 = vunpack.c.l.b16 %v1077
    %v2541 = vunpack.c.h.b16 %v1077
    %v2542 = vunpack.c.l.b16 %v1078
    %v2543 = vunpack.c.h.b16 %v1078
    %v2544 = vunpack.c.l.b16 %v1079
    %v2545 = vunpack.c.h.b16 %v1079
    %v2546 = vunpack.c.l.b16 %v1080
    %v2547 = vunpack.c.h.b16 %v1080
    %v2548 = vunpack.c.l.b16 %v1081
    %v2549 = vunpack.c.h.b16 %v1081
    %v2550 = vunpack.c.l.b16 %v1082
    %v2551 = vunpack.c.h.b16 %v1082
    %v2552 = vunpack.c.l.b16 %v1083
    %v2553 = vunpack.c.h.b16 %v1083
    %v2554 = vunpack.c.l.b16 %v1084
    %v2555 = vunpack.c.h.b16 %v1084
    %v2556 = vunpack.c.l.b16 %v1085
    %v2557 = vunpack.c.h.b16 %v1085
    %v2558 = vunpack.c.l.b16 %v1086
    %v2559 = vunpack.c.h.b16 %v1086
    %v2560 = vunpack.c.l.b16 %v1087
    %v2561 = vunpack.c.h.b16 %v1087
    %v2562 = vunpack.c.l.b16 %v1088
    %v2563 = vunpack.c.h.b16 %v1088
    %v2564 = vunpack.c.l.b16 %v1089
    %v2565 = vunpack.c.h.b16 %v1089
    %v2566 = vunpack.c.l.b16 %v1090
    %v2567 = vunpack.c.h.b16 %v1090
    %v2568 = vunpack.c.l.b16 %v1091
    %v2569 = vunpack.c.h.b16 %v1091
    %v2570 = vunpack.c.l.b16 %v1092
    %v2571 = vunpack.c.h.b16 %v1092
    %v2572 = vunpack.c.l.b16 %v1093
    %v2573 = vunpack.c.h.b16 %v1093
    %v2574 = vunpack.c.l.b16 %v1094
    %v2575 = vunpack.c.h.b16 %v1094
    %v2576 = vunpack.c.l.b16 %v1095
    %v2577 = vunpack.c.h.b16 %v1095
    %v2578 = vunpack.c.l.b16 %v1096
    %v2579 = vunpack.c.h.b16 %v1096
    %v2580 = vunpack.c.l.b16 %v1097
    %v2581 = vunpack.c.h.b16 %v1097
    %v2582 = vunpack.c.l.b16 %v1098
    %v2583 = vunpack.c.h.b16 %v1098
    %v2584 = vunpack.c.l.b16 %v1099
    %v2585 = vunpack.c.h.b16 %v1099
    %v2586 = vunpack.c.l.b16 %v1100
    %v2587 = vunpack.c.h.b16 %v1100
    %v2588 = vunpack.c.l.b16 %v1101
    %v2589 = vunpack.c.h.b16 %v1101
    %v2590 = vunpack.c.l.b16 %v1102
    %v2591 = vunpack.c.h.b16 %v1102
    %v2592 = vunpack.c.l.b16 %v1103
    %v2593 = vunpack.c.h.b16 %v1103
    %v2594 = vunpack.c.l.b16 %v1104
    %v2595 = vunpack.c.h.b16 %v1104
    %v2596 = vunpack.c.l.b16 %v1105
    %v2597 = vunpack.c.h.b16 %v1105
    %v2598 = vunpack.c.l.b16 %v1106
    %v2599 = vunpack.c.h.b16 %v1106
    %v2600 = vunpack.c.l.b16 %v1107
    %v2601 = vunpack.c.h.b16 %v1107
    %v2602 = vunpack.c.l.b16 %v1108
    %v2603 = vunpack.c.h.b16 %v1108
    %v2604 = vunpack.c.l.b16 %v1109
    %v2605 = vunpack.c.h.b16 %v1109
    %v2606 = vunpack.c.l.b16 %v1110
    %v2607 = vunpack.c.h.b16 %v1110
    %v2608 = vunpack.c.l.b16 %v1111
    %v2609 = vunpack.c.h.b16 %v1111
    %v2610 = vunpack.c.l.b16 %v1112
    %v2611 = vunpack.c.h.b16 %v1112
    %v2612 = vunpack.c.l.b16 %v1113
    %v2613 = vunpack.c.h.b16 %v1113
    %v2614 = vpack.c.b16 %v2110, %v2102
    %v2615 = vpack.c.b16 %v2111, %v2103
    %v2616 = vpack.c.b16 %v2112, %v2104
    %v2617 = vpack.c.b16 %v2113, %v2105
    %v2618 = vpack.c.b16 %v2114, %v2106
    %v2619 = vpack.c.b16 %v2115, %v2107
    %v2620 = vpack.c.b16 %v2116, %v2108
    %v2621 = vpack.c.b16 %v2117, %v2109
    %v2622 = vpack.c.b16 %v2126, %v2118
    %v2623 = vpack.c.b16 %v2127, %v2119
    %v2624 = vpack.c.b16 %v2128, %v2120
    %v2625 = vpack.c.b16 %v2129, %v2121
    %v2626 = vpack.c.b16 %v2130, %v2122
    %v2627 = vpack.c.b16 %v2131, %v2123
    %v2628 = vpack.c.b16 %v2132, %v2124
    %v2629 = vpack.c.b16 %v2133, %v2125
    %v2630 = vpack.c.b16 %v2142, %v2134
    %v2631 = vpack.c.b16 %v2143, %v2135
    %v2632 = vpack.c.b16 %v2144, %v2136
    %v2633 = vpack.c.b16 %v2145, %v2137
    %v2634 = vpack.c.b16 %v2146, %v2138
    %v2635 = vpack.c.b16 %v2147, %v2139
    %v2636 = vpack.c.b16 %v2148, %v2140
    %v2637 = vpack.c.b16 %v2149, %v2141
    %v2638 = vpack.c.b16 %v2158, %v2150
    %v2639 = vpack.c.b16 %v2159, %v2151
    %v2640 = vpack.c.b16 %v2160, %v2152
    %v2641 = vpack.c.b16 %v2161, %v2153
    %v2642 = vpack.c.b16 %v2162, %v2154
    %v2643 = vpack.c.b16 %v2163, %v2155
    %v2644 = vpack.c.b16 %v2164, %v2156
    %v2645 = vpack.c.b16 %v2165, %v2157
    %v2646 = vpack.c.b16 %v2174, %v2166
    %v2647 = vpack.c.b16 %v2175, %v2167
    %v2648 = vpack.c.b16 %v2176, %v2168
    %v2649 = vpack.c.b16 %v2177, %v2169
    %v2650 = vpack.c.b16 %v2178, %v2170
    %v2651 = vpack.c.b16 %v2179, %v2171
    %v2652 = vpack.c.b16 %v2180, %v2172
    %v2653 = vpack.c.b16 %v2181, %v2173
    %v2654 = vpack.c.b16 %v2190, %v2182
    %v2655 = vpack.c.b16 %v2191, %v2183
    %v2656 = vpack.c.b16 %v2192, %v2184
    %v2657 = vpack.c.b16 %v2193, %v2185
    %v2658 = vpack.c.b16 %v2194, %v2186
    %v2659 = vpack.c.b16 %v2195, %v2187
    %v2660 = vpack.c.b16 %v2196, %v2188
    %v2661 = vpack.c.b16 %v2197, %v2189
    %v2662 = vpack.c.b16 %v2206, %v2198
    %v2663 = vpack.c.b16 %v2207, %v2199
    %v2664 = vpack.c.b16 %v2208, %v2200
    %v2665 = vpack.c.b16 %v2209, %v2201
    %v2666 = vpack.c.b16 %v2210, %v2202
    %v2667 = vpack.c.b16 %v2211, %v2203
    %v2668 = vpack.c.b16 %v2212, %v2204
    %v2669 = vpack.c.b16 %v2213, %v2205
    %v2670 = vpack.c.b16 %v2222, %v2214
    %v2671 = vpack.c.b16 %v2223, %v2215
    %v2672 = vpack.c.b16 %v2224, %v2216
    %v2673 = vpack.c.b16 %v2225, %v2217
    %v2674 = vpack.c.b16 %v2226, %v2218
    %v2675 = vpack.c.b16 %v2227, %v2219
    %v2676 = vpack.c.b16 %v2228, %v2220
    %v2677 = vpack.c.b16 %v2229, %v2221
    %v2678 = vpack.c.b16 %v2238, %v2230
    %v2679 = vpack.c.b16 %v2239, %v2231
    %v2680 = vpack.c.b16 %v2240, %v2232
    %v2681 = vpack.c.b16 %v2241, %v2233
    %v2682 = vpack.c.b16 %v2242, %v2234
    %v2683 = vpack.c.b16 %v2243, %v2235
    %v2684 = vpack.c.b16 %v2244, %v2236
    %v2685 = vpack.c.b16 %v2245, %v2237
    %v2686 = vpack.c.b16 %v2254, %v2246
    %v2687 = vpack.c.b16 %v2255, %v2247
    %v2688 = vpack.c.b16 %v2256, %v2248
    %v2689 = vpack.c.b16 %v2257, %v2249
    %v2690 = vpack.c.b16 %v2258, %v2250
    %v2691 = vpack.c.b16 %v2259, %v2251
    %v2692 = vpack.c.b16 %v2260, %v2252
    %v2693 = vpack.c.b16 %v2261, %v2253
    %v2694 = vpack.c.b16 %v2270, %v2262
    %v2695 = vpack.c.b16 %v2271, %v2263
    %v2696 = vpack.c.b16 %v2272, %v2264
    %v2697 = vpack.c.b16 %v2273, %v2265
    %v2698 = vpack.c.b16 %v2274, %v2266
    %v2699 = vpack.c.b16 %v2275, %v2267
    %v2700 = vpack.c.b16 %v2276, %v2268
    %v2701 = vpack.c.b16 %v2277, %v2269
    %v2702 = vpack.c.b16 %v2286, %v2278
    %v2703 = vpack.c.b16 %v2287, %v2279
    %v2704 = vpack.c.b16 %v2288, %v2280
    %v2705 = vpack.c.b16 %v2289, %v2281
    %v2706 = vpack.c.b16 %v2290, %v2282
    %v2707 = vpack.c.b16 %v2291, %v2283
    %v2708 = vpack.c.b16 %v2292, %v2284
    %v2709 = vpack.c.b16 %v2293, %v2285
    %v2710 = vpack.c.b16 %v2302, %v2294
    %v2711 = vpack.c.b16 %v2303, %v2295
    %v2712 = vpack.c.b16 %v2304, %v2296
    %v2713 = vpack.c.b16 %v2305, %v2297
    %v2714 = vpack.c.b16 %v2306, %v2298
    %v2715 = vpack.c.b16 %v2307, %v2299
    %v2716 = vpack.c.b16 %v2308, %v2300
    %v2717 = vpack.c.b16 %v2309, %v2301
    %v2718 = vpack.c.b16 %v2318, %v2310
    %v2719 = vpack.c.b16 %v2319, %v2311
    %v2720 = vpack.c.b16 %v2320, %v2312
    %v2721 = vpack.c.b16 %v2321, %v2313
    %v2722 = vpack.c.b16 %v2322, %v2314
    %v2723 = vpack.c.b16 %v2323, %v2315
    %v2724 = vpack.c.b16 %v2324, %v2316
    %v2725 = vpack.c.b16 %v2325, %v2317
    %v2726 = vpack.c.b16 %v2334, %v2326
    %v2727 = vpack.c.b16 %v2335, %v2327
    %v2728 = vpack.c.b16 %v2336, %v2328
    %v2729 = vpack.c.b16 %v2337, %v2329
    %v2730 = vpack.c.b16 %v2338, %v2330
    %v2731 = vpack.c.b16 %v2339, %v2331
    %v2732 = vpack.c.b16 %v2340, %v2332
    %v2733 = vpack.c.b16 %v2341, %v2333
    %v2734 = vpack.c.b16 %v2350, %v2342
    %v2735 = vpack.c.b16 %v2351, %v2343
    %v2736 = vpack.c.b16 %v2352, %v2344
    %v2737 = vpack.c.b16 %v2353, %v2345
    %v2738 = vpack.c.b16 %v2354, %v2346
    %v2739 = vpack.c.b16 %v2355, %v2347
    %v2740 = vpack.c.b16 %v2356, %v2348
    %v2741 = vpack.c.b16 %v2357, %v2349
    %v2742 = vpack.c.b16 %v2366, %v2358
    %v2743 = vpack.c.b16 %v2367, %v2359
    %v2744 = vpack.c.b16 %v2368, %v2360
    %v2745 = vpack.c.b16 %v2369, %v2361
    %v2746 = vpack.c.b16 %v2370, %v2362
    %v2747 = vpack.c.b16 %v2371, %v2363
    %v2748 = vpack.c.b16 %v2372, %v2364
    %v2749 = vpack.c.b16 %v2373, %v2365
    %v2750 = vpack.c.b16 %v2382, %v2374
    %v2751 = vpack.c.b16 %v2383, %v2375
    %v2752 = vpack.c.b16 %v2384, %v2376
    %v2753 = vpack.c.b16 %v2385, %v2377
    %v2754 = vpack.c.b16 %v2386, %v2378
    %v2755 = vpack.c.b16 %v2387, %v2379
    %v2756 = vpack.c.b16 %v2388, %v2380
    %v2757 = vpack.c.b16 %v2389, %v2381
    %v2758 = vpack.c.b16 %v2398, %v2390
    %v2759 = vpack.c.b16 %v2399, %v2391
    %v2760 = vpack.c.b16 %v2400, %v2392
    %v2761 = vpack.c.b16 %v2401, %v2393
    %v2762 = vpack.c.b16 %v2402, %v2394
    %v2763 = vpack.c.b16 %v2403, %v2395
    %v2764 = vpack.c.b16 %v2404, %v2396
    %v2765 = vpack.c.b16 %v2405, %v2397
    %v2766 = vpack.c.b16 %v2414, %v2406
    %v2767 = vpack.c.b16 %v2415, %v2407
    %v2768 = vpack.c.b16 %v2416, %v2408
    %v2769 = vpack.c.b16 %v2417, %v2409
    %v2770 = vpack.c.b16 %v2418, %v2410
    %v2771 = vpack.c.b16 %v2419, %v2411
    %v2772 = vpack.c.b16 %v2420, %v2412
    %v2773 = vpack.c.b16 %v2421, %v2413
    %v2774 = vpack.c.b16 %v2430, %v2422
    %v2775 = vpack.c.b16 %v2431, %v2423
    %v2776 = vpack.c.b16 %v2432, %v2424
    %v2777 = vpack.c.b16 %v2433, %v2425
    %v2778 = vpack.c.b16 %v2434, %v2426
    %v2779 = vpack.c.b16 %v2435, %v2427
    %v2780 = vpack.c.b16 %v2436, %v2428
    %v2781 = vpack.c.b16 %v2437, %v2429
    %v2782 = vpack.c.b16 %v2446, %v2438
    %v2783 = vpack.c.b16 %v2447, %v2439
    %v2784 = vpack.c.b16 %v2448, %v2440
    %v2785 = vpack.c.b16 %v2449, %v2441
    %v2786 = vpack.c.b16 %v2450, %v2442
    %v2787 = vpack.c.b16 %v2451, %v2443
    %v2788 = vpack.c.b16 %v2452, %v2444
    %v2789 = vpack.c.b16 %v2453, %v2445
    %v2790 = vpack.c.b16 %v2462, %v2454
    %v2791 = vpack.c.b16 %v2463, %v2455
    %v2792 = vpack.c.b16 %v2464, %v2456
    %v2793 = vpack.c.b16 %v2465, %v2457
    %v2794 = vpack.c.b16 %v2466, %v2458
    %v2795 = vpack.c.b16 %v2467, %v2459
    %v2796 = vpack.c.b16 %v2468, %v2460
    %v2797 = vpack.c.b16 %v2469, %v2461
    %v2798 = vpack.c.b16 %v2478, %v2470
    %v2799 = vpack.c.b16 %v2479, %v2471
    %v2800 = vpack.c.b16 %v2480, %v2472
    %v2801 = vpack.c.b16 %v2481, %v2473
    %v2802 = vpack.c.b16 %v2482, %v2474
    %v2803 = vpack.c.b16 %v2483, %v2475
    %v2804 = vpack.c.b16 %v2484, %v2476
    %v2805 = vpack.c.b16 %v2485, %v2477
    %v2806 = vpack.c.b16 %v2494, %v2486
    %v2807 = vpack.c.b16 %v2495, %v2487
    %v2808 = vpack.c.b16 %v2496, %v2488
    %v2809 = vpack.c.b16 %v2497, %v2489
    %v2810 = vpack.c.b16 %v2498, %v2490
    %v2811 = vpack.c.b16 %v2499, %v2491
    %v2812 = vpack.c.b16 %v2500, %v2492
    %v2813 = vpack.c.b16 %v2501, %v2493
    %v2814 = vpack.c.b16 %v2510, %v2502
    %v2815 = vpack.c.b16 %v2511, %v2503
    %v2816 = vpack.c.b16 %v2512, %v2504
    %v2817 = vpack.c.b16 %v2513, %v2505
    %v2818 = vpack.c.b16 %v2514, %v2506
    %v2819 = vpack.c.b16 %v2515, %v2507
    %v2820 = vpack.c.b16 %v2516, %v2508
    %v2821 = vpack.c.b16 %v2517, %v2509
    %v2822 = vpack.c.b16 %v2526, %v2518
    %v2823 = vpack.c.b16 %v2527, %v2519
    %v2824 = vpack.c.b16 %v2528, %v2520
    %v2825 = vpack.c.b16 %v2529, %v2521
    %v2826 = vpack.c.b16 %v2530, %v2522
    %v2827 = vpack.c.b16 %v2531, %v2523
    %v2828 = vpack.c.b16 %v2532, %v2524
    %v2829 = vpack.c.b16 %v2533, %v2525
    %v2830 = vpack.c.b16 %v2542, %v2534
    %v2831 = vpack.c.b16 %v2543, %v2535
    %v2832 = vpack.c.b16 %v2544, %v2536
    %v2833 = vpack.c.b16 %v2545, %v2537
    %v2834 = vpack.c.b16 %v2546, %v2538
    %v2835 = vpack.c.b16 %v2547, %v2539
    %v2836 = vpack.c.b16 %v2548, %v2540
    %v2837 = vpack.c.b16 %v2549, %v2541
    %v2838 = vpack.c.b16 %v2558, %v2550
    %v2839 = vpack.c.b16 %v2559, %v2551
    %v2840 = vpack.c.b16 %v2560, %v2552
    %v2841 = vpack.c.b16 %v2561, %v2553
    %v2842 = vpack.c.b16 %v2562, %v2554
    %v2843 = vpack.c.b16 %v2563, %v2555
    %v2844 = vpack.c.b16 %v2564, %v2556
    %v2845 = vpack.c.b16 %v2565, %v2557
    %v2846 = vpack.c.b16 %v2574, %v2566
    %v2847 = vpack.c.b16 %v2575, %v2567
    %v2848 = vpack.c.b16 %v2576, %v2568
    %v2849 = vpack.c.b16 %v2577, %v2569
    %v2850 = vpack.c.b16 %v2578, %v2570
    %v2851 = vpack.c.b16 %v2579, %v2571
    %v2852 = vpack.c.b16 %v2580, %v2572
    %v2853 = vpack.c.b16 %v2581, %v2573
    %v2854 = vpack.c.b16 %v2590, %v2582
    %v2855 = vpack.c.b16 %v2591, %v2583
    %v2856 = vpack.c.b16 %v2592, %v2584
    %v2857 = vpack.c.b16 %v2593, %v2585
    %v2858 = vpack.c.b16 %v2594, %v2586
    %v2859 = vpack.c.b16 %v2595, %v2587
    %v2860 = vpack.c.b16 %v2596, %v2588
    %v2861 = vpack.c.b16 %v2597, %v2589
    %v2862 = vpack.c.b16 %v2606, %v2598
    %v2863 = vpack.c.b16 %v2607, %v2599
    %v2864 = vpack.c.b16 %v2608, %v2600
    %v2865 = vpack.c.b16 %v2609, %v2601
    %v2866 = vpack.c.b16 %v2610, %v2602
    %v2867 = vpack.c.b16 %v2611, %v2603
    %v2868 = vpack.c.b16 %v2612, %v2604
    %v2869 = vpack.c.b16 %v2613, %v2605
    %3126 = vmatprep.subr.bf16.mxu0 %v2615
    %3127 = vmatpush1.bf16.msra.mxu0 %v2614
    %3128 = vmatprep.subr.bf16.mxu0 %v2623
    %3129 = vmatpush1.bf16.msra.mxu0 %v2622
    %3130 = vmatprep.subr.bf16.mxu0 %v2631
    %3131 = vmatpush1.bf16.msra.mxu0 %v2630
    %3132 = vmatprep.subr.bf16.mxu0 %v2639
    %3133 = vmatpush1.bf16.msra.mxu0 %v2638
    %3134 = vmatprep.subr.bf16.mxu0 %v2647
    %3135 = vmatpush1.bf16.msra.mxu0 %v2646
    %3136 = vmatprep.subr.bf16.mxu0 %v2655
    %3137 = vmatpush1.bf16.msra.mxu0 %v2654
    %3138 = vmatprep.subr.bf16.mxu0 %v2663
    %3139 = vmatpush1.bf16.msra.mxu0 %v2662
    %3140 = vmatprep.subr.bf16.mxu0 %v2671
    %3141 = vmatpush1.bf16.msra.mxu0 %v2670
    %3142 = vmatprep.subr.bf16.mxu0 %v2679
    %3143 = vmatpush1.bf16.msra.mxu0 %v2678
    %3144 = vmatprep.subr.bf16.mxu0 %v2687
    %3145 = vmatpush1.bf16.msra.mxu0 %v2686
    %3146 = vmatprep.subr.bf16.mxu0 %v2695
    %3147 = vmatpush1.bf16.msra.mxu0 %v2694
    %3148 = vmatprep.subr.bf16.mxu0 %v2703
    %3149 = vmatpush1.bf16.msra.mxu0 %v2702
    %3150 = vmatprep.subr.bf16.mxu0 %v2711
    %3151 = vmatpush1.bf16.msra.mxu0 %v2710
    %3152 = vmatprep.subr.bf16.mxu0 %v2719
    %3153 = vmatpush1.bf16.msra.mxu0 %v2718
    %3154 = vmatprep.subr.bf16.mxu0 %v2727
    %3155 = vmatpush1.bf16.msra.mxu0 %v2726
    %3156 = vmatprep.subr.bf16.mxu0 %v2735
    %3157 = vmatpush1.bf16.msra.mxu0 %v2734
    %3158 = vmatprep.mubr.bf16.mxu0 %v1802
    %3159 = vmatmul.mubr.bf16.gmra.mrb[0].mxu0 %v1801
    %v3160 = vpop.f32.mrb[0].mxu0
    %v3161 = vadd.f32 %v1809, %v3160
    %v3162 = vpop.f32.mrb[0].mxu0
    %v3163 = vadd.f32 %v1813, %v3162
    %v3164 = vpop.f32.mrb[0].mxu0
    %v3165 = vpop.f32.mrb[0].mxu0
    %3166 = vdwg.mxu0
    %3167 = vmatprep.subr.bf16.mxu0 %v2743
    %3168 = vmatpush1.bf16.msra.mxu0 %v2742
    %3169 = vmatprep.subr.bf16.mxu0 %v2751
    %3170 = vmatpush1.bf16.msra.mxu0 %v2750
    %3171 = vmatprep.subr.bf16.mxu0 %v2759
    %3172 = vmatpush1.bf16.msra.mxu0 %v2758
    %3173 = vmatprep.subr.bf16.mxu0 %v2767
    %3174 = vmatpush1.bf16.msra.mxu0 %v2766
    %3175 = vmatprep.subr.bf16.mxu0 %v2775
    %3176 = vmatpush1.bf16.msra.mxu0 %v2774
    %3177 = vmatprep.subr.bf16.mxu0 %v2783
    %3178 = vmatpush1.bf16.msra.mxu0 %v2782
    %3179 = vmatprep.subr.bf16.mxu0 %v2791
    %3180 = vmatpush1.bf16.msra.mxu0 %v2790
    %3181 = vmatprep.subr.bf16.mxu0 %v2799
    %3182 = vmatpush1.bf16.msra.mxu0 %v2798
    %3183 = vmatprep.subr.bf16.mxu0 %v2807
    %3184 = vmatpush1.bf16.msra.mxu0 %v2806
    %3185 = vmatprep.subr.bf16.mxu0 %v2815
    %3186 = vmatpush1.bf16.msra.mxu0 %v2814
    %3187 = vmatprep.subr.bf16.mxu0 %v2823
    %3188 = vmatpush1.bf16.msra.mxu0 %v2822
    %3189 = vmatprep.subr.bf16.mxu0 %v2831
    %3190 = vmatpush1.bf16.msra.mxu0 %v2830
    %3191 = vmatprep.subr.bf16.mxu0 %v2839
    %3192 = vmatpush1.bf16.msra.mxu0 %v2838
    %3193 = vmatprep.subr.bf16.mxu0 %v2847
    %3194 = vmatpush1.bf16.msra.mxu0 %v2846
    %3195 = vmatprep.subr.bf16.mxu0 %v2855
    %3196 = vmatpush1.bf16.msra.mxu0 %v2854
    %3197 = vmatprep.subr.bf16.mxu0 %v2863
    %3198 = vmatpush1.bf16.msra.mxu0 %v2862
    %3199 = vmatprep.mubr.bf16.mxu0 %v1804
    %3200 = vmatmul.mubr.bf16.gmra.mrb[0].mxu0 %v1803
    %v3201 = vpop.f32.mrb[0].mxu0
    %v3202 = vadd.f32 %v3161, %v3201
    %v3203 = vpop.f32.mrb[0].mxu0
    %v3204 = vadd.f32 %v3163, %v3203
    %v3205 = vpop.f32.mrb[0].mxu0
    %v3206 = vpop.f32.mrb[0].mxu0
    %3207 = vdwg.mxu0
    %3208 = vmatprep.subr.bf16.mxu0 %v2617
    %3209 = vmatpush1.bf16.msra.mxu0 %v2616
    %3210 = vmatprep.subr.bf16.mxu0 %v2625
    %3211 = vmatpush1.bf16.msra.mxu0 %v2624
    %3212 = vmatprep.subr.bf16.mxu0 %v2633
    %3213 = vmatpush1.bf16.msra.mxu0 %v2632
    %3214 = vmatprep.subr.bf16.mxu0 %v2641
    %3215 = vmatpush1.bf16.msra.mxu0 %v2640
    %3216 = vmatprep.subr.bf16.mxu0 %v2649
    %3217 = vmatpush1.bf16.msra.mxu0 %v2648
    %3218 = vmatprep.subr.bf16.mxu0 %v2657
    %3219 = vmatpush1.bf16.msra.mxu0 %v2656
    %3220 = vmatprep.subr.bf16.mxu0 %v2665
    %3221 = vmatpush1.bf16.msra.mxu0 %v2664
    %3222 = vmatprep.subr.bf16.mxu0 %v2673
    %3223 = vmatpush1.bf16.msra.mxu0 %v2672
    %3224 = vmatprep.subr.bf16.mxu0 %v2681
    %3225 = vmatpush1.bf16.msra.mxu0 %v2680
    %3226 = vmatprep.subr.bf16.mxu0 %v2689
    %3227 = vmatpush1.bf16.msra.mxu0 %v2688
    %3228 = vmatprep.subr.bf16.mxu0 %v2697
    %3229 = vmatpush1.bf16.msra.mxu0 %v2696
    %3230 = vmatprep.subr.bf16.mxu0 %v2705
    %3231 = vmatpush1.bf16.msra.mxu0 %v2704
    %3232 = vmatprep.subr.bf16.mxu0 %v2713
    %3233 = vmatpush1.bf16.msra.mxu0 %v2712
    %3234 = vmatprep.subr.bf16.mxu0 %v2721
    %3235 = vmatpush1.bf16.msra.mxu0 %v2720
    %3236 = vmatprep.subr.bf16.mxu0 %v2729
    %3237 = vmatpush1.bf16.msra.mxu0 %v2728
    %3238 = vmatprep.subr.bf16.mxu0 %v2737
    %3239 = vmatpush1.bf16.msra.mxu0 %v2736
    %3240 = vmatprep.mubr.bf16.mxu0 %v1802
    %3241 = vmatmul.mubr.bf16.gmra.mrb[0].mxu0 %v1801
    %v3242 = vpop.f32.mrb[0].mxu0
    %v3243 = vadd.f32 %v1817, %v3242
    %v3244 = vpop.f32.mrb[0].mxu0
    %v3245 = vadd.f32 %v1821, %v3244
    %v3246 = vpop.f32.mrb[0].mxu0
    %v3247 = vpop.f32.mrb[0].mxu0
    %3248 = vdwg.mxu0
    %3249 = vmatprep.subr.bf16.mxu0 %v2745
    %3250 = vmatpush1.bf16.msra.mxu0 %v2744
    %3251 = vmatprep.subr.bf16.mxu0 %v2753
    %3252 = vmatpush1.bf16.msra.mxu0 %v2752
    %3253 = vmatprep.subr.bf16.mxu0 %v2761
    %3254 = vmatpush1.bf16.msra.mxu0 %v2760
    %3255 = vmatprep.subr.bf16.mxu0 %v2769
    %3256 = vmatpush1.bf16.msra.mxu0 %v2768
    %3257 = vmatprep.subr.bf16.mxu0 %v2777
    %3258 = vmatpush1.bf16.msra.mxu0 %v2776
    %3259 = vmatprep.subr.bf16.mxu0 %v2785
    %3260 = vmatpush1.bf16.msra.mxu0 %v2784
    %3261 = vmatprep.subr.bf16.mxu0 %v2793
    %3262 = vmatpush1.bf16.msra.mxu0 %v2792
    %3263 = vmatprep.subr.bf16.mxu0 %v2801
    %3264 = vmatpush1.bf16.msra.mxu0 %v2800
    %3265 = vmatprep.subr.bf16.mxu0 %v2809
    %3266 = vmatpush1.bf16.msra.mxu0 %v2808
    %3267 = vmatprep.subr.bf16.mxu0 %v2817
    %3268 = vmatpush1.bf16.msra.mxu0 %v2816
    %3269 = vmatprep.subr.bf16.mxu0 %v2825
    %3270 = vmatpush1.bf16.msra.mxu0 %v2824
    %3271 = vmatprep.subr.bf16.mxu0 %v2833
    %3272 = vmatpush1.bf16.msra.mxu0 %v2832
    %3273 = vmatprep.subr.bf16.mxu0 %v2841
    %3274 = vmatpush1.bf16.msra.mxu0 %v2840
    %3275 = vmatprep.subr.bf16.mxu0 %v2849
    %3276 = vmatpush1.bf16.msra.mxu0 %v2848
    %3277 = vmatprep.subr.bf16.mxu0 %v2857
    %3278 = vmatpush1.bf16.msra.mxu0 %v2856
    %3279 = vmatprep.subr.bf16.mxu0 %v2865
    %3280 = vmatpush1.bf16.msra.mxu0 %v2864
    %3281 = vmatprep.mubr.bf16.mxu0 %v1804
    %3282 = vmatmul.mubr.bf16.gmra.mrb[0].mxu0 %v1803
    %v3283 = vpop.f32.mrb[0].mxu0
    %v3284 = vadd.f32 %v3243, %v3283
    %v3285 = vpop.f32.mrb[0].mxu0
    %v3286 = vadd.f32 %v3245, %v3285
    %v3287 = vpop.f32.mrb[0].mxu0
    %v3288 = vpop.f32.mrb[0].mxu0
    %3289 = vdwg.mxu0
    %3290 = vmatprep.subr.bf16.mxu0 %v2619
    %3291 = vmatpush1.bf16.msra.mxu0 %v2618
    %3292 = vmatprep.subr.bf16.mxu0 %v2627
    %3293 = vmatpush1.bf16.msra.mxu0 %v2626
    %3294 = vmatprep.subr.bf16.mxu0 %v2635
    %3295 = vmatpush1.bf16.msra.mxu0 %v2634
    %3296 = vmatprep.subr.bf16.mxu0 %v2643
    %3297 = vmatpush1.bf16.msra.mxu0 %v2642
    %3298 = vmatprep.subr.bf16.mxu0 %v2651
    %3299 = vmatpush1.bf16.msra.mxu0 %v2650
    %3300 = vmatprep.subr.bf16.mxu0 %v2659
    %3301 = vmatpush1.bf16.msra.mxu0 %v2658
    %3302 = vmatprep.subr.bf16.mxu0 %v2667
    %3303 = vmatpush1.bf16.msra.mxu0 %v2666
    %3304 = vmatprep.subr.bf16.mxu0 %v2675
    %3305 = vmatpush1.bf16.msra.mxu0 %v2674
    %3306 = vmatprep.subr.bf16.mxu0 %v2683
    %3307 = vmatpush1.bf16.msra.mxu0 %v2682
    %3308 = vmatprep.subr.bf16.mxu0 %v2691
    %3309 = vmatpush1.bf16.msra.mxu0 %v2690
    %3310 = vmatprep.subr.bf16.mxu0 %v2699
    %3311 = vmatpush1.bf16.msra.mxu0 %v2698
    %3312 = vmatprep.subr.bf16.mxu0 %v2707
    %3313 = vmatpush1.bf16.msra.mxu0 %v2706
    %3314 = vmatprep.subr.bf16.mxu0 %v2715
    %3315 = vmatpush1.bf16.msra.mxu0 %v2714
    %3316 = vmatprep.subr.bf16.mxu0 %v2723
    %3317 = vmatpush1.bf16.msra.mxu0 %v2722
    %3318 = vmatprep.subr.bf16.mxu0 %v2731
    %3319 = vmatpush1.bf16.msra.mxu0 %v2730
    %3320 = vmatprep.subr.bf16.mxu0 %v2739
    %3321 = vmatpush1.bf16.msra.mxu0 %v2738
    %3322 = vmatprep.mubr.bf16.mxu0 %v1802
    %3323 = vmatmul.mubr.bf16.gmra.mrb[0].mxu0 %v1801
    %v3324 = vpop.f32.mrb[0].mxu0
    %v3325 = vadd.f32 %v1825, %v3324
    %v3326 = vpop.f32.mrb[0].mxu0
    %v3327 = vadd.f32 %v1829, %v3326
    %v3328 = vpop.f32.mrb[0].mxu0
    %v3329 = vpop.f32.mrb[0].mxu0
    %3330 = vdwg.mxu0
    %3331 = vmatprep.subr.bf16.mxu0 %v2747
    %3332 = vmatpush1.bf16.msra.mxu0 %v2746
    %3333 = vmatprep.subr.bf16.mxu0 %v2755
    %3334 = vmatpush1.bf16.msra.mxu0 %v2754
    %3335 = vmatprep.subr.bf16.mxu0 %v2763
    %3336 = vmatpush1.bf16.msra.mxu0 %v2762
    %3337 = vmatprep.subr.bf16.mxu0 %v2771
    %3338 = vmatpush1.bf16.msra.mxu0 %v2770
    %3339 = vmatprep.subr.bf16.mxu0 %v2779
    %3340 = vmatpush1.bf16.msra.mxu0 %v2778
    %3341 = vmatprep.subr.bf16.mxu0 %v2787
    %3342 = vmatpush1.bf16.msra.mxu0 %v2786
    %3343 = vmatprep.subr.bf16.mxu0 %v2795
    %3344 = vmatpush1.bf16.msra.mxu0 %v2794
    %3345 = vmatprep.subr.bf16.mxu0 %v2803
    %3346 = vmatpush1.bf16.msra.mxu0 %v2802
    %3347 = vmatprep.subr.bf16.mxu0 %v2811
    %3348 = vmatpush1.bf16.msra.mxu0 %v2810
    %3349 = vmatprep.subr.bf16.mxu0 %v2819
    %3350 = vmatpush1.bf16.msra.mxu0 %v2818
    %3351 = vmatprep.subr.bf16.mxu0 %v2827
    %3352 = vmatpush1.bf16.msra.mxu0 %v2826
    %3353 = vmatprep.subr.bf16.mxu0 %v2835
    %3354 = vmatpush1.bf16.msra.mxu0 %v2834
    %3355 = vmatprep.subr.bf16.mxu0 %v2843
    %3356 = vmatpush1.bf16.msra.mxu0 %v2842
    %3357 = vmatprep.subr.bf16.mxu0 %v2851
    %3358 = vmatpush1.bf16.msra.mxu0 %v2850
    %3359 = vmatprep.subr.bf16.mxu0 %v2859
    %3360 = vmatpush1.bf16.msra.mxu0 %v2858
    %3361 = vmatprep.subr.bf16.mxu0 %v2867
    %3362 = vmatpush1.bf16.msra.mxu0 %v2866
    %3363 = vmatprep.mubr.bf16.mxu0 %v1804
    %3364 = vmatmul.mubr.bf16.gmra.mrb[0].mxu0 %v1803
    %v3365 = vpop.f32.mrb[0].mxu0
    %v3366 = vadd.f32 %v3325, %v3365
    %v3367 = vpop.f32.mrb[0].mxu0
    %v3368 = vadd.f32 %v3327, %v3367
    %v3369 = vpop.f32.mrb[0].mxu0
    %v3370 = vpop.f32.mrb[0].mxu0
    %3371 = vdwg.mxu0
    %3372 = vmatprep.subr.bf16.mxu0 %v2621
    %3373 = vmatpush1.bf16.msra.mxu0 %v2620
    %3374 = vmatprep.subr.bf16.mxu0 %v2629
    %3375 = vmatpush1.bf16.msra.mxu0 %v2628
    %3376 = vmatprep.subr.bf16.mxu0 %v2637
    %3377 = vmatpush1.bf16.msra.mxu0 %v2636
    %3378 = vmatprep.subr.bf16.mxu0 %v2645
    %3379 = vmatpush1.bf16.msra.mxu0 %v2644
    %3380 = vmatprep.subr.bf16.mxu0 %v2653
    %3381 = vmatpush1.bf16.msra.mxu0 %v2652
    %3382 = vmatprep.subr.bf16.mxu0 %v2661
    %3383 = vmatpush1.bf16.msra.mxu0 %v2660
    %3384 = vmatprep.subr.bf16.mxu0 %v2669
    %3385 = vmatpush1.bf16.msra.mxu0 %v2668
    %3386 = vmatprep.subr.bf16.mxu0 %v2677
    %3387 = vmatpush1.bf16.msra.mxu0 %v2676
    %3388 = vmatprep.subr.bf16.mxu0 %v2685
    %3389 = vmatpush1.bf16.msra.mxu0 %v2684
    %3390 = vmatprep.subr.bf16.mxu0 %v2693
    %3391 = vmatpush1.bf16.msra.mxu0 %v2692
    %3392 = vmatprep.subr.bf16.mxu0 %v2701
    %3393 = vmatpush1.bf16.msra.mxu0 %v2700
    %3394 = vmatprep.subr.bf16.mxu0 %v2709
    %3395 = vmatpush1.bf16.msra.mxu0 %v2708
    %3396 = vmatprep.subr.bf16.mxu0 %v2717
    %3397 = vmatpush1.bf16.msra.mxu0 %v2716
    %3398 = vmatprep.subr.bf16.mxu0 %v2725
    %3399 = vmatpush1.bf16.msra.mxu0 %v2724
    %3400 = vmatprep.subr.bf16.mxu0 %v2733
    %3401 = vmatpush1.bf16.msra.mxu0 %v2732
    %3402 = vmatprep.subr.bf16.mxu0 %v2741
    %3403 = vmatpush1.bf16.msra.mxu0 %v2740
    %3404 = vmatprep.mubr.bf16.mxu0 %v1802
    %3405 = vmatmul.mubr.bf16.gmra.mrb[0].mxu0 %v1801
    %v3406 = vpop.f32.mrb[0].mxu0
    %v3407 = vadd.f32 %v1833, %v3406
    %v3408 = vpop.f32.mrb[0].mxu0
    %v3409 = vadd.f32 %v1837, %v3408
    %v3410 = vpop.f32.mrb[0].mxu0
    %v3411 = vpop.f32.mrb[0].mxu0
    %3412 = vdwg.mxu0
    %3413 = vmatprep.subr.bf16.mxu0 %v2749
    %3414 = vmatpush1.bf16.msra.mxu0 %v2748
    %3415 = vmatprep.subr.bf16.mxu0 %v2757
    %3416 = vmatpush1.bf16.msra.mxu0 %v2756
    %3417 = vmatprep.subr.bf16.mxu0 %v2765
    %3418 = vmatpush1.bf16.msra.mxu0 %v2764
    %3419 = vmatprep.subr.bf16.mxu0 %v2773
    %3420 = vmatpush1.bf16.msra.mxu0 %v2772
    %3421 = vmatprep.subr.bf16.mxu0 %v2781
    %3422 = vmatpush1.bf16.msra.mxu0 %v2780
    %3423 = vmatprep.subr.bf16.mxu0 %v2789
    %3424 = vmatpush1.bf16.msra.mxu0 %v2788
    %3425 = vmatprep.subr.bf16.mxu0 %v2797
    %3426 = vmatpush1.bf16.msra.mxu0 %v2796
    %3427 = vmatprep.subr.bf16.mxu0 %v2805
    %3428 = vmatpush1.bf16.msra.mxu0 %v2804
    %3429 = vmatprep.subr.bf16.mxu0 %v2813
    %3430 = vmatpush1.bf16.msra.mxu0 %v2812
    %3431 = vmatprep.subr.bf16.mxu0 %v2821
    %3432 = vmatpush1.bf16.msra.mxu0 %v2820
    %3433 = vmatprep.subr.bf16.mxu0 %v2829
    %3434 = vmatpush1.bf16.msra.mxu0 %v2828
    %3435 = vmatprep.subr.bf16.mxu0 %v2837
    %3436 = vmatpush1.bf16.msra.mxu0 %v2836
    %3437 = vmatprep.subr.bf16.mxu0 %v2845
    %3438 = vmatpush1.bf16.msra.mxu0 %v2844
    %3439 = vmatprep.subr.bf16.mxu0 %v2853
    %3440 = vmatpush1.bf16.msra.mxu0 %v2852
    %3441 = vmatprep.subr.bf16.mxu0 %v2861
    %3442 = vmatpush1.bf16.msra.mxu0 %v2860
    %3443 = vmatprep.subr.bf16.mxu0 %v2869
    %3444 = vmatpush1.bf16.msra.mxu0 %v2868
    %3445 = vmatprep.mubr.bf16.mxu0 %v1804
    %3446 = vmatmul.mubr.bf16.gmra.mrb[0].mxu0 %v1803
    %v3447 = vpop.f32.mrb[0].mxu0
    %v3448 = vadd.f32 %v3407, %v3447
    %v3449 = vpop.f32.mrb[0].mxu0
    %v3450 = vadd.f32 %v3409, %v3449
    %v3451 = vpop.f32.mrb[0].mxu0
    %v3452 = vpop.f32.mrb[0].mxu0
    %3453 = vdwg.mxu0
    %v3454 = vld [vmem:[%s9] sm:$0xff]
    %v3455 = vld [vmem:[%s9 + $0x8] sm:$0xff]
    %v3456 = vld [vmem:[%s9 + $0x10] sm:$0xff]
    %v3457 = vld [vmem:[%s9 + $0x18] sm:$0xff]
    %v3458 = vld [vmem:[%s9 + $0x20] sm:$0xff]
    %v3459 = vld [vmem:[%s9 + $0x28] sm:$0xff]
    %v3460 = vld [vmem:[%s9 + $0x30] sm:$0xff]
    %v3461 = vld [vmem:[%s9 + $0x38] sm:$0xff]
    %v3462 = vld [vmem:[%s9 + $0x40] sm:$0xff]
    %v3463 = vld [vmem:[%s9 + $0x48] sm:$0xff]
    %v3464 = vld [vmem:[%s9 + $0x50] sm:$0xff]
    %v3465 = vld [vmem:[%s9 + $0x58] sm:$0xff]
    %v3466 = vld [vmem:[%s9 + $0x60] sm:$0xff]
    %v3467 = vld [vmem:[%s9 + $0x68] sm:$0xff]
    %v3468 = vld [vmem:[%s9 + $0x70] sm:$0xff]
    %v3469 = vld [vmem:[%s9 + $0x78] sm:$0xff]
    %v3470 = vld [vmem:[%s9 + $0x80] sm:$0xff]
    %v3471 = vld [vmem:[%s9 + $0x88] sm:$0xff]
    %v3472 = vld [vmem:[%s9 + $0x90] sm:$0xff]
    %v3473 = vld [vmem:[%s9 + $0x98] sm:$0xff]
    %v3474 = vld [vmem:[%s9 + $0xa0] sm:$0xff]
    %v3475 = vld [vmem:[%s9 + $0xa8] sm:$0xff]
    %v3476 = vld [vmem:[%s9 + $0xb0] sm:$0xff]
    %v3477 = vld [vmem:[%s9 + $0xb8] sm:$0xff]
    %v3478 = vld [vmem:[%s9 + $0xc0] sm:$0xff]
    %v3479 = vld [vmem:[%s9 + $0xc8] sm:$0xff]
    %v3480 = vld [vmem:[%s9 + $0xd0] sm:$0xff]
    %v3481 = vld [vmem:[%s9 + $0xd8] sm:$0xff]
    %v3482 = vld [vmem:[%s9 + $0xe0] sm:$0xff]
    %v3483 = vld [vmem:[%s9 + $0xe8] sm:$0xff]
    %v3484 = vld [vmem:[%s9 + $0xf0] sm:$0xff]
    %v3485 = vld [vmem:[%s9 + $0xf8] sm:$0xff]
    %v3486 = vld [vmem:[%s9 + $0x100] sm:$0xff]
    %v3487 = vld [vmem:[%s9 + $0x108] sm:$0xff]
    %v3488 = vld [vmem:[%s9 + $0x110] sm:$0xff]
    %v3489 = vld [vmem:[%s9 + $0x118] sm:$0xff]
    %v3490 = vld [vmem:[%s9 + $0x120] sm:$0xff]
    %v3491 = vld [vmem:[%s9 + $0x128] sm:$0xff]
    %v3492 = vld [vmem:[%s9 + $0x130] sm:$0xff]
    %v3493 = vld [vmem:[%s9 + $0x138] sm:$0xff]
    %v3494 = vld [vmem:[%s9 + $0x140] sm:$0xff]
    %v3495 = vld [vmem:[%s9 + $0x148] sm:$0xff]
    %v3496 = vld [vmem:[%s9 + $0x150] sm:$0xff]
    %v3497 = vld [vmem:[%s9 + $0x158] sm:$0xff]
    %v3498 = vld [vmem:[%s9 + $0x160] sm:$0xff]
    %v3499 = vld [vmem:[%s9 + $0x168] sm:$0xff]
    %v3500 = vld [vmem:[%s9 + $0x170] sm:$0xff]
    %v3501 = vld [vmem:[%s9 + $0x178] sm:$0xff]
    %v3502 = vld [vmem:[%s9 + $0x180] sm:$0xff]
    %v3503 = vld [vmem:[%s9 + $0x188] sm:$0xff]
    %v3504 = vld [vmem:[%s9 + $0x190] sm:$0xff]
    %v3505 = vld [vmem:[%s9 + $0x198] sm:$0xff]
    %v3506 = vld [vmem:[%s9 + $0x1a0] sm:$0xff]
    %v3507 = vld [vmem:[%s9 + $0x1a8] sm:$0xff]
    %v3508 = vld [vmem:[%s9 + $0x1b0] sm:$0xff]
    %v3509 = vld [vmem:[%s9 + $0x1b8] sm:$0xff]
    %v3510 = vld [vmem:[%s9 + $0x1c0] sm:$0xff]
    %v3511 = vld [vmem:[%s9 + $0x1c8] sm:$0xff]
    %v3512 = vld [vmem:[%s9 + $0x1d0] sm:$0xff]
    %v3513 = vld [vmem:[%s9 + $0x1d8] sm:$0xff]
    %v3514 = vld [vmem:[%s9 + $0x1e0] sm:$0xff]
    %v3515 = vld [vmem:[%s9 + $0x1e8] sm:$0xff]
    %v3516 = vld [vmem:[%s9 + $0x1f0] sm:$0xff]
    %v3517 = vld [vmem:[%s9 + $0x1f8] sm:$0xff]
    %v3518 = vld [vmem:[%s9 + $0x200] sm:$0xff]
    %v3519 = vld [vmem:[%s9 + $0x208] sm:$0xff]
    %v3520 = vld [vmem:[%s9 + $0x210] sm:$0xff]
    %v3521 = vld [vmem:[%s9 + $0x218] sm:$0xff]
    %v3522 = vld [vmem:[%s9 + $0x220] sm:$0xff]
    %v3523 = vld [vmem:[%s9 + $0x228] sm:$0xff]
    %v3524 = vld [vmem:[%s9 + $0x230] sm:$0xff]
    %v3525 = vld [vmem:[%s9 + $0x238] sm:$0xff]
    %v3526 = vld [vmem:[%s9 + $0x240] sm:$0xff]
    %v3527 = vld [vmem:[%s9 + $0x248] sm:$0xff]
    %v3528 = vld [vmem:[%s9 + $0x250] sm:$0xff]
    %v3529 = vld [vmem:[%s9 + $0x258] sm:$0xff]
    %v3530 = vld [vmem:[%s9 + $0x260] sm:$0xff]
    %v3531 = vld [vmem:[%s9 + $0x268] sm:$0xff]
    %v3532 = vld [vmem:[%s9 + $0x270] sm:$0xff]
    %v3533 = vld [vmem:[%s9 + $0x278] sm:$0xff]
    %v3534 = vld [vmem:[%s9 + $0x280] sm:$0xff]
    %v3535 = vld [vmem:[%s9 + $0x288] sm:$0xff]
    %v3536 = vld [vmem:[%s9 + $0x290] sm:$0xff]
    %v3537 = vld [vmem:[%s9 + $0x298] sm:$0xff]
    %v3538 = vld [vmem:[%s9 + $0x2a0] sm:$0xff]
    %v3539 = vld [vmem:[%s9 + $0x2a8] sm:$0xff]
    %v3540 = vld [vmem:[%s9 + $0x2b0] sm:$0xff]
    %v3541 = vld [vmem:[%s9 + $0x2b8] sm:$0xff]
    %v3542 = vld [vmem:[%s9 + $0x2c0] sm:$0xff]
    %v3543 = vld [vmem:[%s9 + $0x2c8] sm:$0xff]
    %v3544 = vld [vmem:[%s9 + $0x2d0] sm:$0xff]
    %v3545 = vld [vmem:[%s9 + $0x2d8] sm:$0xff]
    %v3546 = vld [vmem:[%s9 + $0x2e0] sm:$0xff]
    %v3547 = vld [vmem:[%s9 + $0x2e8] sm:$0xff]
    %v3548 = vld [vmem:[%s9 + $0x2f0] sm:$0xff]
    %v3549 = vld [vmem:[%s9 + $0x2f8] sm:$0xff]
    %v3550 = vld [vmem:[%s9 + $0x300] sm:$0xff]
    %v3551 = vld [vmem:[%s9 + $0x308] sm:$0xff]
    %v3552 = vld [vmem:[%s9 + $0x310] sm:$0xff]
    %v3553 = vld [vmem:[%s9 + $0x318] sm:$0xff]
    %v3554 = vld [vmem:[%s9 + $0x320] sm:$0xff]
    %v3555 = vld [vmem:[%s9 + $0x328] sm:$0xff]
    %v3556 = vld [vmem:[%s9 + $0x330] sm:$0xff]
    %v3557 = vld [vmem:[%s9 + $0x338] sm:$0xff]
    %v3558 = vld [vmem:[%s9 + $0x340] sm:$0xff]
    %v3559 = vld [vmem:[%s9 + $0x348] sm:$0xff]
    %v3560 = vld [vmem:[%s9 + $0x350] sm:$0xff]
    %v3561 = vld [vmem:[%s9 + $0x358] sm:$0xff]
    %v3562 = vld [vmem:[%s9 + $0x360] sm:$0xff]
    %v3563 = vld [vmem:[%s9 + $0x368] sm:$0xff]
    %v3564 = vld [vmem:[%s9 + $0x370] sm:$0xff]
    %v3565 = vld [vmem:[%s9 + $0x378] sm:$0xff]
    %v3566 = vld [vmem:[%s9 + $0x380] sm:$0xff]
    %v3567 = vld [vmem:[%s9 + $0x388] sm:$0xff]
    %v3568 = vld [vmem:[%s9 + $0x390] sm:$0xff]
    %v3569 = vld [vmem:[%s9 + $0x398] sm:$0xff]
    %v3570 = vld [vmem:[%s9 + $0x3a0] sm:$0xff]
    %v3571 = vld [vmem:[%s9 + $0x3a8] sm:$0xff]
    %v3572 = vld [vmem:[%s9 + $0x3b0] sm:$0xff]
    %v3573 = vld [vmem:[%s9 + $0x3b8] sm:$0xff]
    %v3574 = vld [vmem:[%s9 + $0x3c0] sm:$0xff]
    %v3575 = vld [vmem:[%s9 + $0x3c8] sm:$0xff]
    %v3576 = vld [vmem:[%s9 + $0x3d0] sm:$0xff]
    %v3577 = vld [vmem:[%s9 + $0x3d8] sm:$0xff]
    %v3578 = vld [vmem:[%s9 + $0x3e0] sm:$0xff]
    %v3579 = vld [vmem:[%s9 + $0x3e8] sm:$0xff]
    %v3580 = vld [vmem:[%s9 + $0x3f0] sm:$0xff]
    %v3581 = vld [vmem:[%s9 + $0x3f8] sm:$0xff]
    %v3582 = vld [vmem:[%s9 + $0x400] sm:$0xff]
    %v3583 = vld [vmem:[%s9 + $0x408] sm:$0xff]
    %v3584 = vld [vmem:[%s9 + $0x410] sm:$0xff]
    %v3585 = vld [vmem:[%s9 + $0x418] sm:$0xff]
    %v3586 = vld [vmem:[%s9 + $0x420] sm:$0xff]
    %v3587 = vld [vmem:[%s9 + $0x428] sm:$0xff]
    %v3588 = vld [vmem:[%s9 + $0x430] sm:$0xff]
    %v3589 = vld [vmem:[%s9 + $0x438] sm:$0xff]
    %v3590 = vld [vmem:[%s9 + $0x440] sm:$0xff]
    %v3591 = vld [vmem:[%s9 + $0x448] sm:$0xff]
    %v3592 = vld [vmem:[%s9 + $0x450] sm:$0xff]
    %v3593 = vld [vmem:[%s9 + $0x458] sm:$0xff]
    %v3594 = vld [vmem:[%s9 + $0x460] sm:$0xff]
    %v3595 = vld [vmem:[%s9 + $0x468] sm:$0xff]
    %v3596 = vld [vmem:[%s9 + $0x470] sm:$0xff]
    %v3597 = vld [vmem:[%s9 + $0x478] sm:$0xff]
    %v3598 = vld [vmem:[%s9 + $0x480] sm:$0xff]
    %v3599 = vld [vmem:[%s9 + $0x488] sm:$0xff]
    %v3600 = vld [vmem:[%s9 + $0x490] sm:$0xff]
    %v3601 = vld [vmem:[%s9 + $0x498] sm:$0xff]
    %v3602 = vld [vmem:[%s9 + $0x4a0] sm:$0xff]
    %v3603 = vld [vmem:[%s9 + $0x4a8] sm:$0xff]
    %v3604 = vld [vmem:[%s9 + $0x4b0] sm:$0xff]
    %v3605 = vld [vmem:[%s9 + $0x4b8] sm:$0xff]
    %v3606 = vld [vmem:[%s9 + $0x4c0] sm:$0xff]
    %v3607 = vld [vmem:[%s9 + $0x4c8] sm:$0xff]
    %v3608 = vld [vmem:[%s9 + $0x4d0] sm:$0xff]
    %v3609 = vld [vmem:[%s9 + $0x4d8] sm:$0xff]
    %v3610 = vld [vmem:[%s9 + $0x4e0] sm:$0xff]
    %v3611 = vld [vmem:[%s9 + $0x4e8] sm:$0xff]
    %v3612 = vld [vmem:[%s9 + $0x4f0] sm:$0xff]
    %v3613 = vld [vmem:[%s9 + $0x4f8] sm:$0xff]
    %v3614 = vld [vmem:[%s9 + $0x500] sm:$0xff]
    %v3615 = vld [vmem:[%s9 + $0x508] sm:$0xff]
    %v3616 = vld [vmem:[%s9 + $0x510] sm:$0xff]
    %v3617 = vld [vmem:[%s9 + $0x518] sm:$0xff]
    %v3618 = vld [vmem:[%s9 + $0x520] sm:$0xff]
    %v3619 = vld [vmem:[%s9 + $0x528] sm:$0xff]
    %v3620 = vld [vmem:[%s9 + $0x530] sm:$0xff]
    %v3621 = vld [vmem:[%s9 + $0x538] sm:$0xff]
    %v3622 = vld [vmem:[%s9 + $0x540] sm:$0xff]
    %v3623 = vld [vmem:[%s9 + $0x548] sm:$0xff]
    %v3624 = vld [vmem:[%s9 + $0x550] sm:$0xff]
    %v3625 = vld [vmem:[%s9 + $0x558] sm:$0xff]
    %v3626 = vld [vmem:[%s9 + $0x560] sm:$0xff]
    %v3627 = vld [vmem:[%s9 + $0x568] sm:$0xff]
    %v3628 = vld [vmem:[%s9 + $0x570] sm:$0xff]
    %v3629 = vld [vmem:[%s9 + $0x578] sm:$0xff]
    %v3630 = vld [vmem:[%s9 + $0x580] sm:$0xff]
    %v3631 = vld [vmem:[%s9 + $0x588] sm:$0xff]
    %v3632 = vld [vmem:[%s9 + $0x590] sm:$0xff]
    %v3633 = vld [vmem:[%s9 + $0x598] sm:$0xff]
    %v3634 = vld [vmem:[%s9 + $0x5a0] sm:$0xff]
    %v3635 = vld [vmem:[%s9 + $0x5a8] sm:$0xff]
    %v3636 = vld [vmem:[%s9 + $0x5b0] sm:$0xff]
    %v3637 = vld [vmem:[%s9 + $0x5b8] sm:$0xff]
    %v3638 = vld [vmem:[%s9 + $0x5c0] sm:$0xff]
    %v3639 = vld [vmem:[%s9 + $0x5c8] sm:$0xff]
    %v3640 = vld [vmem:[%s9 + $0x5d0] sm:$0xff]
    %v3641 = vld [vmem:[%s9 + $0x5d8] sm:$0xff]
    %v3642 = vld [vmem:[%s9 + $0x5e0] sm:$0xff]
    %v3643 = vld [vmem:[%s9 + $0x5e8] sm:$0xff]
    %v3644 = vld [vmem:[%s9 + $0x5f0] sm:$0xff]
    %v3645 = vld [vmem:[%s9 + $0x5f8] sm:$0xff]
    %v3646 = vld [vmem:[%s9 + $0x600] sm:$0xff]
    %v3647 = vld [vmem:[%s9 + $0x608] sm:$0xff]
    %v3648 = vld [vmem:[%s9 + $0x610] sm:$0xff]
    %v3649 = vld [vmem:[%s9 + $0x618] sm:$0xff]
    %v3650 = vld [vmem:[%s9 + $0x620] sm:$0xff]
    %v3651 = vld [vmem:[%s9 + $0x628] sm:$0xff]
    %v3652 = vld [vmem:[%s9 + $0x630] sm:$0xff]
    %v3653 = vld [vmem:[%s9 + $0x638] sm:$0xff]
    %v3654 = vld [vmem:[%s9 + $0x640] sm:$0xff]
    %v3655 = vld [vmem:[%s9 + $0x648] sm:$0xff]
    %v3656 = vld [vmem:[%s9 + $0x650] sm:$0xff]
    %v3657 = vld [vmem:[%s9 + $0x658] sm:$0xff]
    %v3658 = vld [vmem:[%s9 + $0x660] sm:$0xff]
    %v3659 = vld [vmem:[%s9 + $0x668] sm:$0xff]
    %v3660 = vld [vmem:[%s9 + $0x670] sm:$0xff]
    %v3661 = vld [vmem:[%s9 + $0x678] sm:$0xff]
    %v3662 = vld [vmem:[%s9 + $0x680] sm:$0xff]
    %v3663 = vld [vmem:[%s9 + $0x688] sm:$0xff]
    %v3664 = vld [vmem:[%s9 + $0x690] sm:$0xff]
    %v3665 = vld [vmem:[%s9 + $0x698] sm:$0xff]
    %v3666 = vld [vmem:[%s9 + $0x6a0] sm:$0xff]
    %v3667 = vld [vmem:[%s9 + $0x6a8] sm:$0xff]
    %v3668 = vld [vmem:[%s9 + $0x6b0] sm:$0xff]
    %v3669 = vld [vmem:[%s9 + $0x6b8] sm:$0xff]
    %v3670 = vld [vmem:[%s9 + $0x6c0] sm:$0xff]
    %v3671 = vld [vmem:[%s9 + $0x6c8] sm:$0xff]
    %v3672 = vld [vmem:[%s9 + $0x6d0] sm:$0xff]
    %v3673 = vld [vmem:[%s9 + $0x6d8] sm:$0xff]
    %v3674 = vld [vmem:[%s9 + $0x6e0] sm:$0xff]
    %v3675 = vld [vmem:[%s9 + $0x6e8] sm:$0xff]
    %v3676 = vld [vmem:[%s9 + $0x6f0] sm:$0xff]
    %v3677 = vld [vmem:[%s9 + $0x6f8] sm:$0xff]
    %v3678 = vld [vmem:[%s9 + $0x700] sm:$0xff]
    %v3679 = vld [vmem:[%s9 + $0x708] sm:$0xff]
    %v3680 = vld [vmem:[%s9 + $0x710] sm:$0xff]
    %v3681 = vld [vmem:[%s9 + $0x718] sm:$0xff]
    %v3682 = vld [vmem:[%s9 + $0x720] sm:$0xff]
    %v3683 = vld [vmem:[%s9 + $0x728] sm:$0xff]
    %v3684 = vld [vmem:[%s9 + $0x730] sm:$0xff]
    %v3685 = vld [vmem:[%s9 + $0x738] sm:$0xff]
    %v3686 = vld [vmem:[%s9 + $0x740] sm:$0xff]
    %v3687 = vld [vmem:[%s9 + $0x748] sm:$0xff]
    %v3688 = vld [vmem:[%s9 + $0x750] sm:$0xff]
    %v3689 = vld [vmem:[%s9 + $0x758] sm:$0xff]
    %v3690 = vld [vmem:[%s9 + $0x760] sm:$0xff]
    %v3691 = vld [vmem:[%s9 + $0x768] sm:$0xff]
    %v3692 = vld [vmem:[%s9 + $0x770] sm:$0xff]
    %v3693 = vld [vmem:[%s9 + $0x778] sm:$0xff]
    %v3694 = vld [vmem:[%s9 + $0x780] sm:$0xff]
    %v3695 = vld [vmem:[%s9 + $0x788] sm:$0xff]
    %v3696 = vld [vmem:[%s9 + $0x790] sm:$0xff]
    %v3697 = vld [vmem:[%s9 + $0x798] sm:$0xff]
    %v3698 = vld [vmem:[%s9 + $0x7a0] sm:$0xff]
    %v3699 = vld [vmem:[%s9 + $0x7a8] sm:$0xff]
    %v3700 = vld [vmem:[%s9 + $0x7b0] sm:$0xff]
    %v3701 = vld [vmem:[%s9 + $0x7b8] sm:$0xff]
    %v3702 = vld [vmem:[%s9 + $0x7c0] sm:$0xff]
    %v3703 = vld [vmem:[%s9 + $0x7c8] sm:$0xff]
    %v3704 = vld [vmem:[%s9 + $0x7d0] sm:$0xff]
    %v3705 = vld [vmem:[%s9 + $0x7d8] sm:$0xff]
    %v3706 = vld [vmem:[%s9 + $0x7e0] sm:$0xff]
    %v3707 = vld [vmem:[%s9 + $0x7e8] sm:$0xff]
    %v3708 = vld [vmem:[%s9 + $0x7f0] sm:$0xff]
    %v3709 = vld [vmem:[%s9 + $0x7f8] sm:$0xff]
    %v3710 = vld [vmem:[%s10] sm:$0xf]
    %v3711 = vld [vmem:[%s11] sm:$0xf]
    %v3712 = vld [vmem:[%s12] sm:$0xf]
    %v3713 = vld [vmem:[%s13] sm:$0xff]
    %v3714 = vld [vmem:[%s13 + $0x8] sm:$0xff]
    %v3715 = vld [vmem:[%s13 + $0x10] sm:$0xff]
    %v3716 = vld [vmem:[%s13 + $0x18] sm:$0xff]
    %v3717 = vld [vmem:[%s13 + $0x20] sm:$0xff]
    %v3718 = vld [vmem:[%s13 + $0x28] sm:$0xff]
    %v3719 = vld [vmem:[%s13 + $0x30] sm:$0xff]
    %v3720 = vld [vmem:[%s13 + $0x38] sm:$0xff]
    %v3721 = vld [vmem:[%s13 + $0x40] sm:$0xff]
    %v3722 = vld [vmem:[%s13 + $0x48] sm:$0xff]
    %v3723 = vld [vmem:[%s13 + $0x50] sm:$0xff]
    %v3724 = vld [vmem:[%s13 + $0x58] sm:$0xff]
    %v3725 = vld [vmem:[%s13 + $0x60] sm:$0xff]
    %v3726 = vld [vmem:[%s13 + $0x68] sm:$0xff]
    %v3727 = vld [vmem:[%s13 + $0x70] sm:$0xff]
    %v3728 = vld [vmem:[%s13 + $0x78] sm:$0xff]
    %v3729 = vld [vmem:[%s13 + $0x80] sm:$0xff]
    %v3730 = vld [vmem:[%s13 + $0x88] sm:$0xff]
    %v3731 = vld [vmem:[%s13 + $0x90] sm:$0xff]
    %v3732 = vld [vmem:[%s13 + $0x98] sm:$0xff]
    %v3733 = vld [vmem:[%s13 + $0xa0] sm:$0xff]
    %v3734 = vld [vmem:[%s13 + $0xa8] sm:$0xff]
    %v3735 = vld [vmem:[%s13 + $0xb0] sm:$0xff]
    %v3736 = vld [vmem:[%s13 + $0xb8] sm:$0xff]
    %v3737 = vld [vmem:[%s13 + $0xc0] sm:$0xff]
    %v3738 = vld [vmem:[%s13 + $0xc8] sm:$0xff]
    %v3739 = vld [vmem:[%s13 + $0xd0] sm:$0xff]
    %v3740 = vld [vmem:[%s13 + $0xd8] sm:$0xff]
    %v3741 = vld [vmem:[%s13 + $0xe0] sm:$0xff]
    %v3742 = vld [vmem:[%s13 + $0xe8] sm:$0xff]
    %v3743 = vld [vmem:[%s13 + $0xf0] sm:$0xff]
    %v3744 = vld [vmem:[%s13 + $0xf8] sm:$0xff]
    %v3745 = vld [vmem:[%s13 + $0x100] sm:$0xff]
    %v3746 = vld [vmem:[%s13 + $0x108] sm:$0xff]
    %v3747 = vld [vmem:[%s13 + $0x110] sm:$0xff]
    %v3748 = vld [vmem:[%s13 + $0x118] sm:$0xff]
    %v3749 = vld [vmem:[%s13 + $0x120] sm:$0xff]
    %v3750 = vld [vmem:[%s13 + $0x128] sm:$0xff]
    %v3751 = vld [vmem:[%s13 + $0x130] sm:$0xff]
    %v3752 = vld [vmem:[%s13 + $0x138] sm:$0xff]
    %v3753 = vld [vmem:[%s13 + $0x140] sm:$0xff]
    %v3754 = vld [vmem:[%s13 + $0x148] sm:$0xff]
    %v3755 = vld [vmem:[%s13 + $0x150] sm:$0xff]
    %v3756 = vld [vmem:[%s13 + $0x158] sm:$0xff]
    %v3757 = vld [vmem:[%s13 + $0x160] sm:$0xff]
    %v3758 = vld [vmem:[%s13 + $0x168] sm:$0xff]
    %v3759 = vld [vmem:[%s13 + $0x170] sm:$0xff]
    %v3760 = vld [vmem:[%s13 + $0x178] sm:$0xff]
    %v3761 = vld [vmem:[%s13 + $0x180] sm:$0xff]
    %v3762 = vld [vmem:[%s13 + $0x188] sm:$0xff]
    %v3763 = vld [vmem:[%s13 + $0x190] sm:$0xff]
    %v3764 = vld [vmem:[%s13 + $0x198] sm:$0xff]
    %v3765 = vld [vmem:[%s13 + $0x1a0] sm:$0xff]
    %v3766 = vld [vmem:[%s13 + $0x1a8] sm:$0xff]
    %v3767 = vld [vmem:[%s13 + $0x1b0] sm:$0xff]
    %v3768 = vld [vmem:[%s13 + $0x1b8] sm:$0xff]
    %v3769 = vld [vmem:[%s13 + $0x1c0] sm:$0xff]
    %v3770 = vld [vmem:[%s13 + $0x1c8] sm:$0xff]
    %v3771 = vld [vmem:[%s13 + $0x1d0] sm:$0xff]
    %v3772 = vld [vmem:[%s13 + $0x1d8] sm:$0xff]
    %v3773 = vld [vmem:[%s13 + $0x1e0] sm:$0xff]
    %v3774 = vld [vmem:[%s13 + $0x1e8] sm:$0xff]
    %v3775 = vld [vmem:[%s13 + $0x1f0] sm:$0xff]
    %v3776 = vld [vmem:[%s13 + $0x1f8] sm:$0xff]
    %v3777 = vld [vmem:[%s13 + $0x200] sm:$0xff]
    %v3778 = vld [vmem:[%s13 + $0x208] sm:$0xff]
    %v3779 = vld [vmem:[%s13 + $0x210] sm:$0xff]
    %v3780 = vld [vmem:[%s13 + $0x218] sm:$0xff]
    %v3781 = vld [vmem:[%s13 + $0x220] sm:$0xff]
    %v3782 = vld [vmem:[%s13 + $0x228] sm:$0xff]
    %v3783 = vld [vmem:[%s13 + $0x230] sm:$0xff]
    %v3784 = vld [vmem:[%s13 + $0x238] sm:$0xff]
    %v3785 = vld [vmem:[%s13 + $0x240] sm:$0xff]
    %v3786 = vld [vmem:[%s13 + $0x248] sm:$0xff]
    %v3787 = vld [vmem:[%s13 + $0x250] sm:$0xff]
    %v3788 = vld [vmem:[%s13 + $0x258] sm:$0xff]
    %v3789 = vld [vmem:[%s13 + $0x260] sm:$0xff]
    %v3790 = vld [vmem:[%s13 + $0x268] sm:$0xff]
    %v3791 = vld [vmem:[%s13 + $0x270] sm:$0xff]
    %v3792 = vld [vmem:[%s13 + $0x278] sm:$0xff]
    %v3793 = vld [vmem:[%s13 + $0x280] sm:$0xff]
    %v3794 = vld [vmem:[%s13 + $0x288] sm:$0xff]
    %v3795 = vld [vmem:[%s13 + $0x290] sm:$0xff]
    %v3796 = vld [vmem:[%s13 + $0x298] sm:$0xff]
    %v3797 = vld [vmem:[%s13 + $0x2a0] sm:$0xff]
    %v3798 = vld [vmem:[%s13 + $0x2a8] sm:$0xff]
    %v3799 = vld [vmem:[%s13 + $0x2b0] sm:$0xff]
    %v3800 = vld [vmem:[%s13 + $0x2b8] sm:$0xff]
    %v3801 = vld [vmem:[%s13 + $0x2c0] sm:$0xff]
    %v3802 = vld [vmem:[%s13 + $0x2c8] sm:$0xff]
    %v3803 = vld [vmem:[%s13 + $0x2d0] sm:$0xff]
    %v3804 = vld [vmem:[%s13 + $0x2d8] sm:$0xff]
    %v3805 = vld [vmem:[%s13 + $0x2e0] sm:$0xff]
    %v3806 = vld [vmem:[%s13 + $0x2e8] sm:$0xff]
    %v3807 = vld [vmem:[%s13 + $0x2f0] sm:$0xff]
    %v3808 = vld [vmem:[%s13 + $0x2f8] sm:$0xff]
    %v3809 = vld [vmem:[%s13 + $0x300] sm:$0xff]
    %v3810 = vld [vmem:[%s13 + $0x308] sm:$0xff]
    %v3811 = vld [vmem:[%s13 + $0x310] sm:$0xff]
    %v3812 = vld [vmem:[%s13 + $0x318] sm:$0xff]
    %v3813 = vld [vmem:[%s13 + $0x320] sm:$0xff]
    %v3814 = vld [vmem:[%s13 + $0x328] sm:$0xff]
    %v3815 = vld [vmem:[%s13 + $0x330] sm:$0xff]
    %v3816 = vld [vmem:[%s13 + $0x338] sm:$0xff]
    %v3817 = vld [vmem:[%s13 + $0x340] sm:$0xff]
    %v3818 = vld [vmem:[%s13 + $0x348] sm:$0xff]
    %v3819 = vld [vmem:[%s13 + $0x350] sm:$0xff]
    %v3820 = vld [vmem:[%s13 + $0x358] sm:$0xff]
    %v3821 = vld [vmem:[%s13 + $0x360] sm:$0xff]
    %v3822 = vld [vmem:[%s13 + $0x368] sm:$0xff]
    %v3823 = vld [vmem:[%s13 + $0x370] sm:$0xff]
    %v3824 = vld [vmem:[%s13 + $0x378] sm:$0xff]
    %v3825 = vld [vmem:[%s13 + $0x380] sm:$0xff]
    %v3826 = vld [vmem:[%s13 + $0x388] sm:$0xff]
    %v3827 = vld [vmem:[%s13 + $0x390] sm:$0xff]
    %v3828 = vld [vmem:[%s13 + $0x398] sm:$0xff]
    %v3829 = vld [vmem:[%s13 + $0x3a0] sm:$0xff]
    %v3830 = vld [vmem:[%s13 + $0x3a8] sm:$0xff]
    %v3831 = vld [vmem:[%s13 + $0x3b0] sm:$0xff]
    %v3832 = vld [vmem:[%s13 + $0x3b8] sm:$0xff]
    %v3833 = vld [vmem:[%s13 + $0x3c0] sm:$0xff]
    %v3834 = vld [vmem:[%s13 + $0x3c8] sm:$0xff]
    %v3835 = vld [vmem:[%s13 + $0x3d0] sm:$0xff]
    %v3836 = vld [vmem:[%s13 + $0x3d8] sm:$0xff]
    %v3837 = vld [vmem:[%s13 + $0x3e0] sm:$0xff]
    %v3838 = vld [vmem:[%s13 + $0x3e8] sm:$0xff]
    %v3839 = vld [vmem:[%s13 + $0x3f0] sm:$0xff]
    %v3840 = vld [vmem:[%s13 + $0x3f8] sm:$0xff]
    %v3841 = vld [vmem:[%s13 + $0x400] sm:$0xff]
    %v3842 = vld [vmem:[%s13 + $0x408] sm:$0xff]
    %v3843 = vld [vmem:[%s13 + $0x410] sm:$0xff]
    %v3844 = vld [vmem:[%s13 + $0x418] sm:$0xff]
    %v3845 = vld [vmem:[%s13 + $0x420] sm:$0xff]
    %v3846 = vld [vmem:[%s13 + $0x428] sm:$0xff]
    %v3847 = vld [vmem:[%s13 + $0x430] sm:$0xff]
    %v3848 = vld [vmem:[%s13 + $0x438] sm:$0xff]
    %v3849 = vld [vmem:[%s13 + $0x440] sm:$0xff]
    %v3850 = vld [vmem:[%s13 + $0x448] sm:$0xff]
    %v3851 = vld [vmem:[%s13 + $0x450] sm:$0xff]
    %v3852 = vld [vmem:[%s13 + $0x458] sm:$0xff]
    %v3853 = vld [vmem:[%s13 + $0x460] sm:$0xff]
    %v3854 = vld [vmem:[%s13 + $0x468] sm:$0xff]
    %v3855 = vld [vmem:[%s13 + $0x470] sm:$0xff]
    %v3856 = vld [vmem:[%s13 + $0x478] sm:$0xff]
    %v3857 = vld [vmem:[%s13 + $0x480] sm:$0xff]
    %v3858 = vld [vmem:[%s13 + $0x488] sm:$0xff]
    %v3859 = vld [vmem:[%s13 + $0x490] sm:$0xff]
    %v3860 = vld [vmem:[%s13 + $0x498] sm:$0xff]
    %v3861 = vld [vmem:[%s13 + $0x4a0] sm:$0xff]
    %v3862 = vld [vmem:[%s13 + $0x4a8] sm:$0xff]
    %v3863 = vld [vmem:[%s13 + $0x4b0] sm:$0xff]
    %v3864 = vld [vmem:[%s13 + $0x4b8] sm:$0xff]
    %v3865 = vld [vmem:[%s13 + $0x4c0] sm:$0xff]
    %v3866 = vld [vmem:[%s13 + $0x4c8] sm:$0xff]
    %v3867 = vld [vmem:[%s13 + $0x4d0] sm:$0xff]
    %v3868 = vld [vmem:[%s13 + $0x4d8] sm:$0xff]
    %v3869 = vld [vmem:[%s13 + $0x4e0] sm:$0xff]
    %v3870 = vld [vmem:[%s13 + $0x4e8] sm:$0xff]
    %v3871 = vld [vmem:[%s13 + $0x4f0] sm:$0xff]
    %v3872 = vld [vmem:[%s13 + $0x4f8] sm:$0xff]
    %v3873 = vld [vmem:[%s13 + $0x500] sm:$0xff]
    %v3874 = vld [vmem:[%s13 + $0x508] sm:$0xff]
    %v3875 = vld [vmem:[%s13 + $0x510] sm:$0xff]
    %v3876 = vld [vmem:[%s13 + $0x518] sm:$0xff]
    %v3877 = vld [vmem:[%s13 + $0x520] sm:$0xff]
    %v3878 = vld [vmem:[%s13 + $0x528] sm:$0xff]
    %v3879 = vld [vmem:[%s13 + $0x530] sm:$0xff]
    %v3880 = vld [vmem:[%s13 + $0x538] sm:$0xff]
    %v3881 = vld [vmem:[%s13 + $0x540] sm:$0xff]
    %v3882 = vld [vmem:[%s13 + $0x548] sm:$0xff]
    %v3883 = vld [vmem:[%s13 + $0x550] sm:$0xff]
    %v3884 = vld [vmem:[%s13 + $0x558] sm:$0xff]
    %v3885 = vld [vmem:[%s13 + $0x560] sm:$0xff]
    %v3886 = vld [vmem:[%s13 + $0x568] sm:$0xff]
    %v3887 = vld [vmem:[%s13 + $0x570] sm:$0xff]
    %v3888 = vld [vmem:[%s13 + $0x578] sm:$0xff]
    %v3889 = vld [vmem:[%s13 + $0x580] sm:$0xff]
    %v3890 = vld [vmem:[%s13 + $0x588] sm:$0xff]
    %v3891 = vld [vmem:[%s13 + $0x590] sm:$0xff]
    %v3892 = vld [vmem:[%s13 + $0x598] sm:$0xff]
    %v3893 = vld [vmem:[%s13 + $0x5a0] sm:$0xff]
    %v3894 = vld [vmem:[%s13 + $0x5a8] sm:$0xff]
    %v3895 = vld [vmem:[%s13 + $0x5b0] sm:$0xff]
    %v3896 = vld [vmem:[%s13 + $0x5b8] sm:$0xff]
    %v3897 = vld [vmem:[%s13 + $0x5c0] sm:$0xff]
    %v3898 = vld [vmem:[%s13 + $0x5c8] sm:$0xff]
    %v3899 = vld [vmem:[%s13 + $0x5d0] sm:$0xff]
    %v3900 = vld [vmem:[%s13 + $0x5d8] sm:$0xff]
    %v3901 = vld [vmem:[%s13 + $0x5e0] sm:$0xff]
    %v3902 = vld [vmem:[%s13 + $0x5e8] sm:$0xff]
    %v3903 = vld [vmem:[%s13 + $0x5f0] sm:$0xff]
    %v3904 = vld [vmem:[%s13 + $0x5f8] sm:$0xff]
    %v3905 = vld [vmem:[%s13 + $0x600] sm:$0xff]
    %v3906 = vld [vmem:[%s13 + $0x608] sm:$0xff]
    %v3907 = vld [vmem:[%s13 + $0x610] sm:$0xff]
    %v3908 = vld [vmem:[%s13 + $0x618] sm:$0xff]
    %v3909 = vld [vmem:[%s13 + $0x620] sm:$0xff]
    %v3910 = vld [vmem:[%s13 + $0x628] sm:$0xff]
    %v3911 = vld [vmem:[%s13 + $0x630] sm:$0xff]
    %v3912 = vld [vmem:[%s13 + $0x638] sm:$0xff]
    %v3913 = vld [vmem:[%s13 + $0x640] sm:$0xff]
    %v3914 = vld [vmem:[%s13 + $0x648] sm:$0xff]
    %v3915 = vld [vmem:[%s13 + $0x650] sm:$0xff]
    %v3916 = vld [vmem:[%s13 + $0x658] sm:$0xff]
    %v3917 = vld [vmem:[%s13 + $0x660] sm:$0xff]
    %v3918 = vld [vmem:[%s13 + $0x668] sm:$0xff]
    %v3919 = vld [vmem:[%s13 + $0x670] sm:$0xff]
    %v3920 = vld [vmem:[%s13 + $0x678] sm:$0xff]
    %v3921 = vld [vmem:[%s13 + $0x680] sm:$0xff]
    %v3922 = vld [vmem:[%s13 + $0x688] sm:$0xff]
    %v3923 = vld [vmem:[%s13 + $0x690] sm:$0xff]
    %v3924 = vld [vmem:[%s13 + $0x698] sm:$0xff]
    %v3925 = vld [vmem:[%s13 + $0x6a0] sm:$0xff]
    %v3926 = vld [vmem:[%s13 + $0x6a8] sm:$0xff]
    %v3927 = vld [vmem:[%s13 + $0x6b0] sm:$0xff]
    %v3928 = vld [vmem:[%s13 + $0x6b8] sm:$0xff]
    %v3929 = vld [vmem:[%s13 + $0x6c0] sm:$0xff]
    %v3930 = vld [vmem:[%s13 + $0x6c8] sm:$0xff]
    %v3931 = vld [vmem:[%s13 + $0x6d0] sm:$0xff]
    %v3932 = vld [vmem:[%s13 + $0x6d8] sm:$0xff]
    %v3933 = vld [vmem:[%s13 + $0x6e0] sm:$0xff]
    %v3934 = vld [vmem:[%s13 + $0x6e8] sm:$0xff]
    %v3935 = vld [vmem:[%s13 + $0x6f0] sm:$0xff]
    %v3936 = vld [vmem:[%s13 + $0x6f8] sm:$0xff]
    %v3937 = vld [vmem:[%s13 + $0x700] sm:$0xff]
    %v3938 = vld [vmem:[%s13 + $0x708] sm:$0xff]
    %v3939 = vld [vmem:[%s13 + $0x710] sm:$0xff]
    %v3940 = vld [vmem:[%s13 + $0x718] sm:$0xff]
    %v3941 = vld [vmem:[%s13 + $0x720] sm:$0xff]
    %v3942 = vld [vmem:[%s13 + $0x728] sm:$0xff]
    %v3943 = vld [vmem:[%s13 + $0x730] sm:$0xff]
    %v3944 = vld [vmem:[%s13 + $0x738] sm:$0xff]
    %v3945 = vld [vmem:[%s13 + $0x740] sm:$0xff]
    %v3946 = vld [vmem:[%s13 + $0x748] sm:$0xff]
    %v3947 = vld [vmem:[%s13 + $0x750] sm:$0xff]
    %v3948 = vld [vmem:[%s13 + $0x758] sm:$0xff]
    %v3949 = vld [vmem:[%s13 + $0x760] sm:$0xff]
    %v3950 = vld [vmem:[%s13 + $0x768] sm:$0xff]
    %v3951 = vld [vmem:[%s13 + $0x770] sm:$0xff]
    %v3952 = vld [vmem:[%s13 + $0x778] sm:$0xff]
    %v3953 = vld [vmem:[%s13 + $0x780] sm:$0xff]
    %v3954 = vld [vmem:[%s13 + $0x788] sm:$0xff]
    %v3955 = vld [vmem:[%s13 + $0x790] sm:$0xff]
    %v3956 = vld [vmem:[%s13 + $0x798] sm:$0xff]
    %v3957 = vld [vmem:[%s13 + $0x7a0] sm:$0xff]
    %v3958 = vld [vmem:[%s13 + $0x7a8] sm:$0xff]
    %v3959 = vld [vmem:[%s13 + $0x7b0] sm:$0xff]
    %v3960 = vld [vmem:[%s13 + $0x7b8] sm:$0xff]
    %v3961 = vld [vmem:[%s13 + $0x7c0] sm:$0xff]
    %v3962 = vld [vmem:[%s13 + $0x7c8] sm:$0xff]
    %v3963 = vld [vmem:[%s13 + $0x7d0] sm:$0xff]
    %v3964 = vld [vmem:[%s13 + $0x7d8] sm:$0xff]
    %v3965 = vld [vmem:[%s13 + $0x7e0] sm:$0xff]
    %v3966 = vld [vmem:[%s13 + $0x7e8] sm:$0xff]
    %v3967 = vld [vmem:[%s13 + $0x7f0] sm:$0xff]
    %v3968 = vld [vmem:[%s13 + $0x7f8] sm:$0xff]
    %v3969 = vld [vmem:[%s14] sm:$0xff]
    %v3970 = vpack.c.bf16 %v3202, %v3202
    %v3971 = vpack.c.bf16 %v3204, %v3204
    %v3972 = vpack.c.bf16 %v3284, %v3284
    %v3973 = vpack.c.bf16 %v3286, %v3286
    %v3974 = vpack.c.bf16 %v3366, %v3366
    %v3975 = vpack.c.bf16 %v3368, %v3368
    %v3976 = vpack.c.bf16 %v3448, %v3448
    %v3977 = vpack.c.bf16 %v3450, %v3450
    %v3979 = vlaneseq
    %v3980 = vshrl.u32 %v3979, 7
    %v3981 = vsub.s32 0, %v3980
    %v3982 = vrot.slane %v3710, %v3981
    %v3983 = vlaneseq
    %v3984 = vshrl.u32 %v3983, 7
    %v3985 = vsub.s32 1, %v3984
    %v3986 = vrot.slane %v3710, %v3985
    %v3987 = vlaneseq
    %v3988 = vshrl.u32 %v3987, 7
    %v3989 = vsub.s32 2, %v3988
    %v3990 = vrot.slane %v3710, %v3989
    %v3991 = vlaneseq
    %v3992 = vshrl.u32 %v3991, 7
    %v3993 = vsub.s32 3, %v3992
    %v3994 = vrot.slane %v3710, %v3993
    %v4255 = vunpack.c.l.b16 %v3454
    %v4256 = vunpack.c.h.b16 %v3454
    %v4257 = vunpack.c.l.b16 %v3455
    %v4258 = vunpack.c.h.b16 %v3455
    %v4259 = vunpack.c.l.b16 %v3456
    %v4260 = vunpack.c.h.b16 %v3456
    %v4261 = vunpack.c.l.b16 %v3457
    %v4262 = vunpack.c.h.b16 %v3457
    %v4263 = vunpack.c.l.b16 %v3458
    %v4264 = vunpack.c.h.b16 %v3458
    %v4265 = vunpack.c.l.b16 %v3459
    %v4266 = vunpack.c.h.b16 %v3459
    %v4267 = vunpack.c.l.b16 %v3460
    %v4268 = vunpack.c.h.b16 %v3460
    %v4269 = vunpack.c.l.b16 %v3461
    %v4270 = vunpack.c.h.b16 %v3461
    %v4271 = vunpack.c.l.b16 %v3462
    %v4272 = vunpack.c.h.b16 %v3462
    %v4273 = vunpack.c.l.b16 %v3463
    %v4274 = vunpack.c.h.b16 %v3463
    %v4275 = vunpack.c.l.b16 %v3464
    %v4276 = vunpack.c.h.b16 %v3464
    %v4277 = vunpack.c.l.b16 %v3465
    %v4278 = vunpack.c.h.b16 %v3465
    %v4279 = vunpack.c.l.b16 %v3466
    %v4280 = vunpack.c.h.b16 %v3466
    %v4281 = vunpack.c.l.b16 %v3467
    %v4282 = vunpack.c.h.b16 %v3467
    %v4283 = vunpack.c.l.b16 %v3468
    %v4284 = vunpack.c.h.b16 %v3468
    %v4285 = vunpack.c.l.b16 %v3469
    %v4286 = vunpack.c.h.b16 %v3469
    %v4287 = vunpack.c.l.b16 %v3470
    %v4288 = vunpack.c.h.b16 %v3470
    %v4289 = vunpack.c.l.b16 %v3471
    %v4290 = vunpack.c.h.b16 %v3471
    %v4291 = vunpack.c.l.b16 %v3472
    %v4292 = vunpack.c.h.b16 %v3472
    %v4293 = vunpack.c.l.b16 %v3473
    %v4294 = vunpack.c.h.b16 %v3473
    %v4295 = vunpack.c.l.b16 %v3474
    %v4296 = vunpack.c.h.b16 %v3474
    %v4297 = vunpack.c.l.b16 %v3475
    %v4298 = vunpack.c.h.b16 %v3475
    %v4299 = vunpack.c.l.b16 %v3476
    %v4300 = vunpack.c.h.b16 %v3476
    %v4301 = vunpack.c.l.b16 %v3477
    %v4302 = vunpack.c.h.b16 %v3477
    %v4303 = vunpack.c.l.b16 %v3478
    %v4304 = vunpack.c.h.b16 %v3478
    %v4305 = vunpack.c.l.b16 %v3479
    %v4306 = vunpack.c.h.b16 %v3479
    %v4307 = vunpack.c.l.b16 %v3480
    %v4308 = vunpack.c.h.b16 %v3480
    %v4309 = vunpack.c.l.b16 %v3481
    %v4310 = vunpack.c.h.b16 %v3481
    %v4311 = vunpack.c.l.b16 %v3482
    %v4312 = vunpack.c.h.b16 %v3482
    %v4313 = vunpack.c.l.b16 %v3483
    %v4314 = vunpack.c.h.b16 %v3483
    %v4315 = vunpack.c.l.b16 %v3484
    %v4316 = vunpack.c.h.b16 %v3484
    %v4317 = vunpack.c.l.b16 %v3485
    %v4318 = vunpack.c.h.b16 %v3485
    %v4319 = vunpack.c.l.b16 %v3486
    %v4320 = vunpack.c.h.b16 %v3486
    %v4321 = vunpack.c.l.b16 %v3487
    %v4322 = vunpack.c.h.b16 %v3487
    %v4323 = vunpack.c.l.b16 %v3488
    %v4324 = vunpack.c.h.b16 %v3488
    %v4325 = vunpack.c.l.b16 %v3489
    %v4326 = vunpack.c.h.b16 %v3489
    %v4327 = vunpack.c.l.b16 %v3490
    %v4328 = vunpack.c.h.b16 %v3490
    %v4329 = vunpack.c.l.b16 %v3491
    %v4330 = vunpack.c.h.b16 %v3491
    %v4331 = vunpack.c.l.b16 %v3492
    %v4332 = vunpack.c.h.b16 %v3492
    %v4333 = vunpack.c.l.b16 %v3493
    %v4334 = vunpack.c.h.b16 %v3493
    %v4335 = vunpack.c.l.b16 %v3494
    %v4336 = vunpack.c.h.b16 %v3494
    %v4337 = vunpack.c.l.b16 %v3495
    %v4338 = vunpack.c.h.b16 %v3495
    %v4339 = vunpack.c.l.b16 %v3496
    %v4340 = vunpack.c.h.b16 %v3496
    %v4341 = vunpack.c.l.b16 %v3497
    %v4342 = vunpack.c.h.b16 %v3497
    %v4343 = vunpack.c.l.b16 %v3498
    %v4344 = vunpack.c.h.b16 %v3498
    %v4345 = vunpack.c.l.b16 %v3499
    %v4346 = vunpack.c.h.b16 %v3499
    %v4347 = vunpack.c.l.b16 %v3500
    %v4348 = vunpack.c.h.b16 %v3500
    %v4349 = vunpack.c.l.b16 %v3501
    %v4350 = vunpack.c.h.b16 %v3501
    %v4351 = vunpack.c.l.b16 %v3502
    %v4352 = vunpack.c.h.b16 %v3502
    %v4353 = vunpack.c.l.b16 %v3503
    %v4354 = vunpack.c.h.b16 %v3503
    %v4355 = vunpack.c.l.b16 %v3504
    %v4356 = vunpack.c.h.b16 %v3504
    %v4357 = vunpack.c.l.b16 %v3505
    %v4358 = vunpack.c.h.b16 %v3505
    %v4359 = vunpack.c.l.b16 %v3506
    %v4360 = vunpack.c.h.b16 %v3506
    %v4361 = vunpack.c.l.b16 %v3507
    %v4362 = vunpack.c.h.b16 %v3507
    %v4363 = vunpack.c.l.b16 %v3508
    %v4364 = vunpack.c.h.b16 %v3508
    %v4365 = vunpack.c.l.b16 %v3509
    %v4366 = vunpack.c.h.b16 %v3509
    %v4367 = vunpack.c.l.b16 %v3510
    %v4368 = vunpack.c.h.b16 %v3510
    %v4369 = vunpack.c.l.b16 %v3511
    %v4370 = vunpack.c.h.b16 %v3511
    %v4371 = vunpack.c.l.b16 %v3512
    %v4372 = vunpack.c.h.b16 %v3512
    %v4373 = vunpack.c.l.b16 %v3513
    %v4374 = vunpack.c.h.b16 %v3513
    %v4375 = vunpack.c.l.b16 %v3514
    %v4376 = vunpack.c.h.b16 %v3514
    %v4377 = vunpack.c.l.b16 %v3515
    %v4378 = vunpack.c.h.b16 %v3515
    %v4379 = vunpack.c.l.b16 %v3516
    %v4380 = vunpack.c.h.b16 %v3516
    %v4381 = vunpack.c.l.b16 %v3517
    %v4382 = vunpack.c.h.b16 %v3517
    %v4383 = vunpack.c.l.b16 %v3518
    %v4384 = vunpack.c.h.b16 %v3518
    %v4385 = vunpack.c.l.b16 %v3519
    %v4386 = vunpack.c.h.b16 %v3519
    %v4387 = vunpack.c.l.b16 %v3520
    %v4388 = vunpack.c.h.b16 %v3520
    %v4389 = vunpack.c.l.b16 %v3521
    %v4390 = vunpack.c.h.b16 %v3521
    %v4391 = vunpack.c.l.b16 %v3522
    %v4392 = vunpack.c.h.b16 %v3522
    %v4393 = vunpack.c.l.b16 %v3523
    %v4394 = vunpack.c.h.b16 %v3523
    %v4395 = vunpack.c.l.b16 %v3524
    %v4396 = vunpack.c.h.b16 %v3524
    %v4397 = vunpack.c.l.b16 %v3525
    %v4398 = vunpack.c.h.b16 %v3525
    %v4399 = vunpack.c.l.b16 %v3526
    %v4400 = vunpack.c.h.b16 %v3526
    %v4401 = vunpack.c.l.b16 %v3527
    %v4402 = vunpack.c.h.b16 %v3527
    %v4403 = vunpack.c.l.b16 %v3528
    %v4404 = vunpack.c.h.b16 %v3528
    %v4405 = vunpack.c.l.b16 %v3529
    %v4406 = vunpack.c.h.b16 %v3529
    %v4407 = vunpack.c.l.b16 %v3530
    %v4408 = vunpack.c.h.b16 %v3530
    %v4409 = vunpack.c.l.b16 %v3531
    %v4410 = vunpack.c.h.b16 %v3531
    %v4411 = vunpack.c.l.b16 %v3532
    %v4412 = vunpack.c.h.b16 %v3532
    %v4413 = vunpack.c.l.b16 %v3533
    %v4414 = vunpack.c.h.b16 %v3533
    %v4415 = vunpack.c.l.b16 %v3534
    %v4416 = vunpack.c.h.b16 %v3534
    %v4417 = vunpack.c.l.b16 %v3535
    %v4418 = vunpack.c.h.b16 %v3535
    %v4419 = vunpack.c.l.b16 %v3536
    %v4420 = vunpack.c.h.b16 %v3536
    %v4421 = vunpack.c.l.b16 %v3537
    %v4422 = vunpack.c.h.b16 %v3537
    %v4423 = vunpack.c.l.b16 %v3538
    %v4424 = vunpack.c.h.b16 %v3538
    %v4425 = vunpack.c.l.b16 %v3539
    %v4426 = vunpack.c.h.b16 %v3539
    %v4427 = vunpack.c.l.b16 %v3540
    %v4428 = vunpack.c.h.b16 %v3540
    %v4429 = vunpack.c.l.b16 %v3541
    %v4430 = vunpack.c.h.b16 %v3541
    %v4431 = vunpack.c.l.b16 %v3542
    %v4432 = vunpack.c.h.b16 %v3542
    %v4433 = vunpack.c.l.b16 %v3543
    %v4434 = vunpack.c.h.b16 %v3543
    %v4435 = vunpack.c.l.b16 %v3544
    %v4436 = vunpack.c.h.b16 %v3544
    %v4437 = vunpack.c.l.b16 %v3545
    %v4438 = vunpack.c.h.b16 %v3545
    %v4439 = vunpack.c.l.b16 %v3546
    %v4440 = vunpack.c.h.b16 %v3546
    %v4441 = vunpack.c.l.b16 %v3547
    %v4442 = vunpack.c.h.b16 %v3547
    %v4443 = vunpack.c.l.b16 %v3548
    %v4444 = vunpack.c.h.b16 %v3548
    %v4445 = vunpack.c.l.b16 %v3549
    %v4446 = vunpack.c.h.b16 %v3549
    %v4447 = vunpack.c.l.b16 %v3550
    %v4448 = vunpack.c.h.b16 %v3550
    %v4449 = vunpack.c.l.b16 %v3551
    %v4450 = vunpack.c.h.b16 %v3551
    %v4451 = vunpack.c.l.b16 %v3552
    %v4452 = vunpack.c.h.b16 %v3552
    %v4453 = vunpack.c.l.b16 %v3553
    %v4454 = vunpack.c.h.b16 %v3553
    %v4455 = vunpack.c.l.b16 %v3554
    %v4456 = vunpack.c.h.b16 %v3554
    %v4457 = vunpack.c.l.b16 %v3555
    %v4458 = vunpack.c.h.b16 %v3555
    %v4459 = vunpack.c.l.b16 %v3556
    %v4460 = vunpack.c.h.b16 %v3556
    %v4461 = vunpack.c.l.b16 %v3557
    %v4462 = vunpack.c.h.b16 %v3557
    %v4463 = vunpack.c.l.b16 %v3558
    %v4464 = vunpack.c.h.b16 %v3558
    %v4465 = vunpack.c.l.b16 %v3559
    %v4466 = vunpack.c.h.b16 %v3559
    %v4467 = vunpack.c.l.b16 %v3560
    %v4468 = vunpack.c.h.b16 %v3560
    %v4469 = vunpack.c.l.b16 %v3561
    %v4470 = vunpack.c.h.b16 %v3561
    %v4471 = vunpack.c.l.b16 %v3562
    %v4472 = vunpack.c.h.b16 %v3562
    %v4473 = vunpack.c.l.b16 %v3563
    %v4474 = vunpack.c.h.b16 %v3563
    %v4475 = vunpack.c.l.b16 %v3564
    %v4476 = vunpack.c.h.b16 %v3564
    %v4477 = vunpack.c.l.b16 %v3565
    %v4478 = vunpack.c.h.b16 %v3565
    %v4479 = vunpack.c.l.b16 %v3566
    %v4480 = vunpack.c.h.b16 %v3566
    %v4481 = vunpack.c.l.b16 %v3567
    %v4482 = vunpack.c.h.b16 %v3567
    %v4483 = vunpack.c.l.b16 %v3568
    %v4484 = vunpack.c.h.b16 %v3568
    %v4485 = vunpack.c.l.b16 %v3569
    %v4486 = vunpack.c.h.b16 %v3569
    %v4487 = vunpack.c.l.b16 %v3570
    %v4488 = vunpack.c.h.b16 %v3570
    %v4489 = vunpack.c.l.b16 %v3571
    %v4490 = vunpack.c.h.b16 %v3571
    %v4491 = vunpack.c.l.b16 %v3572
    %v4492 = vunpack.c.h.b16 %v3572
    %v4493 = vunpack.c.l.b16 %v3573
    %v4494 = vunpack.c.h.b16 %v3573
    %v4495 = vunpack.c.l.b16 %v3574
    %v4496 = vunpack.c.h.b16 %v3574
    %v4497 = vunpack.c.l.b16 %v3575
    %v4498 = vunpack.c.h.b16 %v3575
    %v4499 = vunpack.c.l.b16 %v3576
    %v4500 = vunpack.c.h.b16 %v3576
    %v4501 = vunpack.c.l.b16 %v3577
    %v4502 = vunpack.c.h.b16 %v3577
    %v4503 = vunpack.c.l.b16 %v3578
    %v4504 = vunpack.c.h.b16 %v3578
    %v4505 = vunpack.c.l.b16 %v3579
    %v4506 = vunpack.c.h.b16 %v3579
    %v4507 = vunpack.c.l.b16 %v3580
    %v4508 = vunpack.c.h.b16 %v3580
    %v4509 = vunpack.c.l.b16 %v3581
    %v4510 = vunpack.c.h.b16 %v3581
    %v4511 = vunpack.c.l.b16 %v3582
    %v4512 = vunpack.c.h.b16 %v3582
    %v4513 = vunpack.c.l.b16 %v3583
    %v4514 = vunpack.c.h.b16 %v3583
    %v4515 = vunpack.c.l.b16 %v3584
    %v4516 = vunpack.c.h.b16 %v3584
    %v4517 = vunpack.c.l.b16 %v3585
    %v4518 = vunpack.c.h.b16 %v3585
    %v4519 = vunpack.c.l.b16 %v3586
    %v4520 = vunpack.c.h.b16 %v3586
    %v4521 = vunpack.c.l.b16 %v3587
    %v4522 = vunpack.c.h.b16 %v3587
    %v4523 = vunpack.c.l.b16 %v3588
    %v4524 = vunpack.c.h.b16 %v3588
    %v4525 = vunpack.c.l.b16 %v3589
    %v4526 = vunpack.c.h.b16 %v3589
    %v4527 = vunpack.c.l.b16 %v3590
    %v4528 = vunpack.c.h.b16 %v3590
    %v4529 = vunpack.c.l.b16 %v3591
    %v4530 = vunpack.c.h.b16 %v3591
    %v4531 = vunpack.c.l.b16 %v3592
    %v4532 = vunpack.c.h.b16 %v3592
    %v4533 = vunpack.c.l.b16 %v3593
    %v4534 = vunpack.c.h.b16 %v3593
    %v4535 = vunpack.c.l.b16 %v3594
    %v4536 = vunpack.c.h.b16 %v3594
    %v4537 = vunpack.c.l.b16 %v3595
    %v4538 = vunpack.c.h.b16 %v3595
    %v4539 = vunpack.c.l.b16 %v3596
    %v4540 = vunpack.c.h.b16 %v3596
    %v4541 = vunpack.c.l.b16 %v3597
    %v4542 = vunpack.c.h.b16 %v3597
    %v4543 = vunpack.c.l.b16 %v3598
    %v4544 = vunpack.c.h.b16 %v3598
    %v4545 = vunpack.c.l.b16 %v3599
    %v4546 = vunpack.c.h.b16 %v3599
    %v4547 = vunpack.c.l.b16 %v3600
    %v4548 = vunpack.c.h.b16 %v3600
    %v4549 = vunpack.c.l.b16 %v3601
    %v4550 = vunpack.c.h.b16 %v3601
    %v4551 = vunpack.c.l.b16 %v3602
    %v4552 = vunpack.c.h.b16 %v3602
    %v4553 = vunpack.c.l.b16 %v3603
    %v4554 = vunpack.c.h.b16 %v3603
    %v4555 = vunpack.c.l.b16 %v3604
    %v4556 = vunpack.c.h.b16 %v3604
    %v4557 = vunpack.c.l.b16 %v3605
    %v4558 = vunpack.c.h.b16 %v3605
    %v4559 = vunpack.c.l.b16 %v3606
    %v4560 = vunpack.c.h.b16 %v3606
    %v4561 = vunpack.c.l.b16 %v3607
    %v4562 = vunpack.c.h.b16 %v3607
    %v4563 = vunpack.c.l.b16 %v3608
    %v4564 = vunpack.c.h.b16 %v3608
    %v4565 = vunpack.c.l.b16 %v3609
    %v4566 = vunpack.c.h.b16 %v3609
    %v4567 = vunpack.c.l.b16 %v3610
    %v4568 = vunpack.c.h.b16 %v3610
    %v4569 = vunpack.c.l.b16 %v3611
    %v4570 = vunpack.c.h.b16 %v3611
    %v4571 = vunpack.c.l.b16 %v3612
    %v4572 = vunpack.c.h.b16 %v3612
    %v4573 = vunpack.c.l.b16 %v3613
    %v4574 = vunpack.c.h.b16 %v3613
    %v4575 = vunpack.c.l.b16 %v3614
    %v4576 = vunpack.c.h.b16 %v3614
    %v4577 = vunpack.c.l.b16 %v3615
    %v4578 = vunpack.c.h.b16 %v3615
    %v4579 = vunpack.c.l.b16 %v3616
    %v4580 = vunpack.c.h.b16 %v3616
    %v4581 = vunpack.c.l.b16 %v3617
    %v4582 = vunpack.c.h.b16 %v3617
    %v4583 = vunpack.c.l.b16 %v3618
    %v4584 = vunpack.c.h.b16 %v3618
    %v4585 = vunpack.c.l.b16 %v3619
    %v4586 = vunpack.c.h.b16 %v3619
    %v4587 = vunpack.c.l.b16 %v3620
    %v4588 = vunpack.c.h.b16 %v3620
    %v4589 = vunpack.c.l.b16 %v3621
    %v4590 = vunpack.c.h.b16 %v3621
    %v4591 = vunpack.c.l.b16 %v3622
    %v4592 = vunpack.c.h.b16 %v3622
    %v4593 = vunpack.c.l.b16 %v3623
    %v4594 = vunpack.c.h.b16 %v3623
    %v4595 = vunpack.c.l.b16 %v3624
    %v4596 = vunpack.c.h.b16 %v3624
    %v4597 = vunpack.c.l.b16 %v3625
    %v4598 = vunpack.c.h.b16 %v3625
    %v4599 = vunpack.c.l.b16 %v3626
    %v4600 = vunpack.c.h.b16 %v3626
    %v4601 = vunpack.c.l.b16 %v3627
    %v4602 = vunpack.c.h.b16 %v3627
    %v4603 = vunpack.c.l.b16 %v3628
    %v4604 = vunpack.c.h.b16 %v3628
    %v4605 = vunpack.c.l.b16 %v3629
    %v4606 = vunpack.c.h.b16 %v3629
    %v4607 = vunpack.c.l.b16 %v3630
    %v4608 = vunpack.c.h.b16 %v3630
    %v4609 = vunpack.c.l.b16 %v3631
    %v4610 = vunpack.c.h.b16 %v3631
    %v4611 = vunpack.c.l.b16 %v3632
    %v4612 = vunpack.c.h.b16 %v3632
    %v4613 = vunpack.c.l.b16 %v3633
    %v4614 = vunpack.c.h.b16 %v3633
    %v4615 = vunpack.c.l.b16 %v3634
    %v4616 = vunpack.c.h.b16 %v3634
    %v4617 = vunpack.c.l.b16 %v3635
    %v4618 = vunpack.c.h.b16 %v3635
    %v4619 = vunpack.c.l.b16 %v3636
    %v4620 = vunpack.c.h.b16 %v3636
    %v4621 = vunpack.c.l.b16 %v3637
    %v4622 = vunpack.c.h.b16 %v3637
    %v4623 = vunpack.c.l.b16 %v3638
    %v4624 = vunpack.c.h.b16 %v3638
    %v4625 = vunpack.c.l.b16 %v3639
    %v4626 = vunpack.c.h.b16 %v3639
    %v4627 = vunpack.c.l.b16 %v3640
    %v4628 = vunpack.c.h.b16 %v3640
    %v4629 = vunpack.c.l.b16 %v3641
    %v4630 = vunpack.c.h.b16 %v3641
    %v4631 = vunpack.c.l.b16 %v3642
    %v4632 = vunpack.c.h.b16 %v3642
    %v4633 = vunpack.c.l.b16 %v3643
    %v4634 = vunpack.c.h.b16 %v3643
    %v4635 = vunpack.c.l.b16 %v3644
    %v4636 = vunpack.c.h.b16 %v3644
    %v4637 = vunpack.c.l.b16 %v3645
    %v4638 = vunpack.c.h.b16 %v3645
    %v4639 = vunpack.c.l.b16 %v3646
    %v4640 = vunpack.c.h.b16 %v3646
    %v4641 = vunpack.c.l.b16 %v3647
    %v4642 = vunpack.c.h.b16 %v3647
    %v4643 = vunpack.c.l.b16 %v3648
    %v4644 = vunpack.c.h.b16 %v3648
    %v4645 = vunpack.c.l.b16 %v3649
    %v4646 = vunpack.c.h.b16 %v3649
    %v4647 = vunpack.c.l.b16 %v3650
    %v4648 = vunpack.c.h.b16 %v3650
    %v4649 = vunpack.c.l.b16 %v3651
    %v4650 = vunpack.c.h.b16 %v3651
    %v4651 = vunpack.c.l.b16 %v3652
    %v4652 = vunpack.c.h.b16 %v3652
    %v4653 = vunpack.c.l.b16 %v3653
    %v4654 = vunpack.c.h.b16 %v3653
    %v4655 = vunpack.c.l.b16 %v3654
    %v4656 = vunpack.c.h.b16 %v3654
    %v4657 = vunpack.c.l.b16 %v3655
    %v4658 = vunpack.c.h.b16 %v3655
    %v4659 = vunpack.c.l.b16 %v3656
    %v4660 = vunpack.c.h.b16 %v3656
    %v4661 = vunpack.c.l.b16 %v3657
    %v4662 = vunpack.c.h.b16 %v3657
    %v4663 = vunpack.c.l.b16 %v3658
    %v4664 = vunpack.c.h.b16 %v3658
    %v4665 = vunpack.c.l.b16 %v3659
    %v4666 = vunpack.c.h.b16 %v3659
    %v4667 = vunpack.c.l.b16 %v3660
    %v4668 = vunpack.c.h.b16 %v3660
    %v4669 = vunpack.c.l.b16 %v3661
    %v4670 = vunpack.c.h.b16 %v3661
    %v4671 = vunpack.c.l.b16 %v3662
    %v4672 = vunpack.c.h.b16 %v3662
    %v4673 = vunpack.c.l.b16 %v3663
    %v4674 = vunpack.c.h.b16 %v3663
    %v4675 = vunpack.c.l.b16 %v3664
    %v4676 = vunpack.c.h.b16 %v3664
    %v4677 = vunpack.c.l.b16 %v3665
    %v4678 = vunpack.c.h.b16 %v3665
    %v4679 = vunpack.c.l.b16 %v3666
    %v4680 = vunpack.c.h.b16 %v3666
    %v4681 = vunpack.c.l.b16 %v3667
    %v4682 = vunpack.c.h.b16 %v3667
    %v4683 = vunpack.c.l.b16 %v3668
    %v4684 = vunpack.c.h.b16 %v3668
    %v4685 = vunpack.c.l.b16 %v3669
    %v4686 = vunpack.c.h.b16 %v3669
    %v4687 = vunpack.c.l.b16 %v3670
    %v4688 = vunpack.c.h.b16 %v3670
    %v4689 = vunpack.c.l.b16 %v3671
    %v4690 = vunpack.c.h.b16 %v3671
    %v4691 = vunpack.c.l.b16 %v3672
    %v4692 = vunpack.c.h.b16 %v3672
    %v4693 = vunpack.c.l.b16 %v3673
    %v4694 = vunpack.c.h.b16 %v3673
    %v4695 = vunpack.c.l.b16 %v3674
    %v4696 = vunpack.c.h.b16 %v3674
    %v4697 = vunpack.c.l.b16 %v3675
    %v4698 = vunpack.c.h.b16 %v3675
    %v4699 = vunpack.c.l.b16 %v3676
    %v4700 = vunpack.c.h.b16 %v3676
    %v4701 = vunpack.c.l.b16 %v3677
    %v4702 = vunpack.c.h.b16 %v3677
    %v4703 = vunpack.c.l.b16 %v3678
    %v4704 = vunpack.c.h.b16 %v3678
    %v4705 = vunpack.c.l.b16 %v3679
    %v4706 = vunpack.c.h.b16 %v3679
    %v4707 = vunpack.c.l.b16 %v3680
    %v4708 = vunpack.c.h.b16 %v3680
    %v4709 = vunpack.c.l.b16 %v3681
    %v4710 = vunpack.c.h.b16 %v3681
    %v4711 = vunpack.c.l.b16 %v3682
    %v4712 = vunpack.c.h.b16 %v3682
    %v4713 = vunpack.c.l.b16 %v3683
    %v4714 = vunpack.c.h.b16 %v3683
    %v4715 = vunpack.c.l.b16 %v3684
    %v4716 = vunpack.c.h.b16 %v3684
    %v4717 = vunpack.c.l.b16 %v3685
    %v4718 = vunpack.c.h.b16 %v3685
    %v4719 = vunpack.c.l.b16 %v3686
    %v4720 = vunpack.c.h.b16 %v3686
    %v4721 = vunpack.c.l.b16 %v3687
    %v4722 = vunpack.c.h.b16 %v3687
    %v4723 = vunpack.c.l.b16 %v3688
    %v4724 = vunpack.c.h.b16 %v3688
    %v4725 = vunpack.c.l.b16 %v3689
    %v4726 = vunpack.c.h.b16 %v3689
    %v4727 = vunpack.c.l.b16 %v3690
    %v4728 = vunpack.c.h.b16 %v3690
    %v4729 = vunpack.c.l.b16 %v3691
    %v4730 = vunpack.c.h.b16 %v3691
    %v4731 = vunpack.c.l.b16 %v3692
    %v4732 = vunpack.c.h.b16 %v3692
    %v4733 = vunpack.c.l.b16 %v3693
    %v4734 = vunpack.c.h.b16 %v3693
    %v4735 = vunpack.c.l.b16 %v3694
    %v4736 = vunpack.c.h.b16 %v3694
    %v4737 = vunpack.c.l.b16 %v3695
    %v4738 = vunpack.c.h.b16 %v3695
    %v4739 = vunpack.c.l.b16 %v3696
    %v4740 = vunpack.c.h.b16 %v3696
    %v4741 = vunpack.c.l.b16 %v3697
    %v4742 = vunpack.c.h.b16 %v3697
    %v4743 = vunpack.c.l.b16 %v3698
    %v4744 = vunpack.c.h.b16 %v3698
    %v4745 = vunpack.c.l.b16 %v3699
    %v4746 = vunpack.c.h.b16 %v3699
    %v4747 = vunpack.c.l.b16 %v3700
    %v4748 = vunpack.c.h.b16 %v3700
    %v4749 = vunpack.c.l.b16 %v3701
    %v4750 = vunpack.c.h.b16 %v3701
    %v4751 = vunpack.c.l.b16 %v3702
    %v4752 = vunpack.c.h.b16 %v3702
    %v4753 = vunpack.c.l.b16 %v3703
    %v4754 = vunpack.c.h.b16 %v3703
    %v4755 = vunpack.c.l.b16 %v3704
    %v4756 = vunpack.c.h.b16 %v3704
    %v4757 = vunpack.c.l.b16 %v3705
    %v4758 = vunpack.c.h.b16 %v3705
    %v4759 = vunpack.c.l.b16 %v3706
    %v4760 = vunpack.c.h.b16 %v3706
    %v4761 = vunpack.c.l.b16 %v3707
    %v4762 = vunpack.c.h.b16 %v3707
    %v4763 = vunpack.c.l.b16 %v3708
    %v4764 = vunpack.c.h.b16 %v3708
    %v4765 = vunpack.c.l.b16 %v3709
    %v4766 = vunpack.c.h.b16 %v3709
    %v4767 = vpack.c.b16 %v4259, %v4255
    %v4768 = vpack.c.b16 %v4260, %v4256
    %v4769 = vpack.c.b16 %v4261, %v4257
    %v4770 = vpack.c.b16 %v4262, %v4258
    %v4771 = vpack.c.b16 %v4267, %v4263
    %v4772 = vpack.c.b16 %v4268, %v4264
    %v4773 = vpack.c.b16 %v4269, %v4265
    %v4774 = vpack.c.b16 %v4270, %v4266
    %v4775 = vpack.c.b16 %v4275, %v4271
    %v4776 = vpack.c.b16 %v4276, %v4272
    %v4777 = vpack.c.b16 %v4277, %v4273
    %v4778 = vpack.c.b16 %v4278, %v4274
    %v4779 = vpack.c.b16 %v4283, %v4279
    %v4780 = vpack.c.b16 %v4284, %v4280
    %v4781 = vpack.c.b16 %v4285, %v4281
    %v4782 = vpack.c.b16 %v4286, %v4282
    %v4783 = vpack.c.b16 %v4291, %v4287
    %v4784 = vpack.c.b16 %v4292, %v4288
    %v4785 = vpack.c.b16 %v4293, %v4289
    %v4786 = vpack.c.b16 %v4294, %v4290
    %v4787 = vpack.c.b16 %v4299, %v4295
    %v4788 = vpack.c.b16 %v4300, %v4296
    %v4789 = vpack.c.b16 %v4301, %v4297
    %v4790 = vpack.c.b16 %v4302, %v4298
    %v4791 = vpack.c.b16 %v4307, %v4303
    %v4792 = vpack.c.b16 %v4308, %v4304
    %v4793 = vpack.c.b16 %v4309, %v4305
    %v4794 = vpack.c.b16 %v4310, %v4306
    %v4795 = vpack.c.b16 %v4315, %v4311
    %v4796 = vpack.c.b16 %v4316, %v4312
    %v4797 = vpack.c.b16 %v4317, %v4313
    %v4798 = vpack.c.b16 %v4318, %v4314
    %v4799 = vpack.c.b16 %v4323, %v4319
    %v4800 = vpack.c.b16 %v4324, %v4320
    %v4801 = vpack.c.b16 %v4325, %v4321
    %v4802 = vpack.c.b16 %v4326, %v4322
    %v4803 = vpack.c.b16 %v4331, %v4327
    %v4804 = vpack.c.b16 %v4332, %v4328
    %v4805 = vpack.c.b16 %v4333, %v4329
    %v4806 = vpack.c.b16 %v4334, %v4330
    %v4807 = vpack.c.b16 %v4339, %v4335
    %v4808 = vpack.c.b16 %v4340, %v4336
    %v4809 = vpack.c.b16 %v4341, %v4337
    %v4810 = vpack.c.b16 %v4342, %v4338
    %v4811 = vpack.c.b16 %v4347, %v4343
    %v4812 = vpack.c.b16 %v4348, %v4344
    %v4813 = vpack.c.b16 %v4349, %v4345
    %v4814 = vpack.c.b16 %v4350, %v4346
    %v4815 = vpack.c.b16 %v4355, %v4351
    %v4816 = vpack.c.b16 %v4356, %v4352
    %v4817 = vpack.c.b16 %v4357, %v4353
    %v4818 = vpack.c.b16 %v4358, %v4354
    %v4819 = vpack.c.b16 %v4363, %v4359
    %v4820 = vpack.c.b16 %v4364, %v4360
    %v4821 = vpack.c.b16 %v4365, %v4361
    %v4822 = vpack.c.b16 %v4366, %v4362
    %v4823 = vpack.c.b16 %v4371, %v4367
    %v4824 = vpack.c.b16 %v4372, %v4368
    %v4825 = vpack.c.b16 %v4373, %v4369
    %v4826 = vpack.c.b16 %v4374, %v4370
    %v4827 = vpack.c.b16 %v4379, %v4375
    %v4828 = vpack.c.b16 %v4380, %v4376
    %v4829 = vpack.c.b16 %v4381, %v4377
    %v4830 = vpack.c.b16 %v4382, %v4378
    %v4831 = vpack.c.b16 %v4387, %v4383
    %v4832 = vpack.c.b16 %v4388, %v4384
    %v4833 = vpack.c.b16 %v4389, %v4385
    %v4834 = vpack.c.b16 %v4390, %v4386
    %v4835 = vpack.c.b16 %v4395, %v4391
    %v4836 = vpack.c.b16 %v4396, %v4392
    %v4837 = vpack.c.b16 %v4397, %v4393
    %v4838 = vpack.c.b16 %v4398, %v4394
    %v4839 = vpack.c.b16 %v4403, %v4399
    %v4840 = vpack.c.b16 %v4404, %v4400
    %v4841 = vpack.c.b16 %v4405, %v4401
    %v4842 = vpack.c.b16 %v4406, %v4402
    %v4843 = vpack.c.b16 %v4411, %v4407
    %v4844 = vpack.c.b16 %v4412, %v4408
    %v4845 = vpack.c.b16 %v4413, %v4409
    %v4846 = vpack.c.b16 %v4414, %v4410
    %v4847 = vpack.c.b16 %v4419, %v4415
    %v4848 = vpack.c.b16 %v4420, %v4416
    %v4849 = vpack.c.b16 %v4421, %v4417
    %v4850 = vpack.c.b16 %v4422, %v4418
    %v4851 = vpack.c.b16 %v4427, %v4423
    %v4852 = vpack.c.b16 %v4428, %v4424
    %v4853 = vpack.c.b16 %v4429, %v4425
    %v4854 = vpack.c.b16 %v4430, %v4426
    %v4855 = vpack.c.b16 %v4435, %v4431
    %v4856 = vpack.c.b16 %v4436, %v4432
    %v4857 = vpack.c.b16 %v4437, %v4433
    %v4858 = vpack.c.b16 %v4438, %v4434
    %v4859 = vpack.c.b16 %v4443, %v4439
    %v4860 = vpack.c.b16 %v4444, %v4440
    %v4861 = vpack.c.b16 %v4445, %v4441
    %v4862 = vpack.c.b16 %v4446, %v4442
    %v4863 = vpack.c.b16 %v4451, %v4447
    %v4864 = vpack.c.b16 %v4452, %v4448
    %v4865 = vpack.c.b16 %v4453, %v4449
    %v4866 = vpack.c.b16 %v4454, %v4450
    %v4867 = vpack.c.b16 %v4459, %v4455
    %v4868 = vpack.c.b16 %v4460, %v4456
    %v4869 = vpack.c.b16 %v4461, %v4457
    %v4870 = vpack.c.b16 %v4462, %v4458
    %v4871 = vpack.c.b16 %v4467, %v4463
    %v4872 = vpack.c.b16 %v4468, %v4464
    %v4873 = vpack.c.b16 %v4469, %v4465
    %v4874 = vpack.c.b16 %v4470, %v4466
    %v4875 = vpack.c.b16 %v4475, %v4471
    %v4876 = vpack.c.b16 %v4476, %v4472
    %v4877 = vpack.c.b16 %v4477, %v4473
    %v4878 = vpack.c.b16 %v4478, %v4474
    %v4879 = vpack.c.b16 %v4483, %v4479
    %v4880 = vpack.c.b16 %v4484, %v4480
    %v4881 = vpack.c.b16 %v4485, %v4481
    %v4882 = vpack.c.b16 %v4486, %v4482
    %v4883 = vpack.c.b16 %v4491, %v4487
    %v4884 = vpack.c.b16 %v4492, %v4488
    %v4885 = vpack.c.b16 %v4493, %v4489
    %v4886 = vpack.c.b16 %v4494, %v4490
    %v4887 = vpack.c.b16 %v4499, %v4495
    %v4888 = vpack.c.b16 %v4500, %v4496
    %v4889 = vpack.c.b16 %v4501, %v4497
    %v4890 = vpack.c.b16 %v4502, %v4498
    %v4891 = vpack.c.b16 %v4507, %v4503
    %v4892 = vpack.c.b16 %v4508, %v4504
    %v4893 = vpack.c.b16 %v4509, %v4505
    %v4894 = vpack.c.b16 %v4510, %v4506
    %v4895 = vpack.c.b16 %v4515, %v4511
    %v4896 = vpack.c.b16 %v4516, %v4512
    %v4897 = vpack.c.b16 %v4517, %v4513
    %v4898 = vpack.c.b16 %v4518, %v4514
    %v4899 = vpack.c.b16 %v4523, %v4519
    %v4900 = vpack.c.b16 %v4524, %v4520
    %v4901 = vpack.c.b16 %v4525, %v4521
    %v4902 = vpack.c.b16 %v4526, %v4522
    %v4903 = vpack.c.b16 %v4531, %v4527
    %v4904 = vpack.c.b16 %v4532, %v4528
    %v4905 = vpack.c.b16 %v4533, %v4529
    %v4906 = vpack.c.b16 %v4534, %v4530
    %v4907 = vpack.c.b16 %v4539, %v4535
    %v4908 = vpack.c.b16 %v4540, %v4536
    %v4909 = vpack.c.b16 %v4541, %v4537
    %v4910 = vpack.c.b16 %v4542, %v4538
    %v4911 = vpack.c.b16 %v4547, %v4543
    %v4912 = vpack.c.b16 %v4548, %v4544
    %v4913 = vpack.c.b16 %v4549, %v4545
    %v4914 = vpack.c.b16 %v4550, %v4546
    %v4915 = vpack.c.b16 %v4555, %v4551
    %v4916 = vpack.c.b16 %v4556, %v4552
    %v4917 = vpack.c.b16 %v4557, %v4553
    %v4918 = vpack.c.b16 %v4558, %v4554
    %v4919 = vpack.c.b16 %v4563, %v4559
    %v4920 = vpack.c.b16 %v4564, %v4560
    %v4921 = vpack.c.b16 %v4565, %v4561
    %v4922 = vpack.c.b16 %v4566, %v4562
    %v4923 = vpack.c.b16 %v4571, %v4567
    %v4924 = vpack.c.b16 %v4572, %v4568
    %v4925 = vpack.c.b16 %v4573, %v4569
    %v4926 = vpack.c.b16 %v4574, %v4570
    %v4927 = vpack.c.b16 %v4579, %v4575
    %v4928 = vpack.c.b16 %v4580, %v4576
    %v4929 = vpack.c.b16 %v4581, %v4577
    %v4930 = vpack.c.b16 %v4582, %v4578
    %v4931 = vpack.c.b16 %v4587, %v4583
    %v4932 = vpack.c.b16 %v4588, %v4584
    %v4933 = vpack.c.b16 %v4589, %v4585
    %v4934 = vpack.c.b16 %v4590, %v4586
    %v4935 = vpack.c.b16 %v4595, %v4591
    %v4936 = vpack.c.b16 %v4596, %v4592
    %v4937 = vpack.c.b16 %v4597, %v4593
    %v4938 = vpack.c.b16 %v4598, %v4594
    %v4939 = vpack.c.b16 %v4603, %v4599
    %v4940 = vpack.c.b16 %v4604, %v4600
    %v4941 = vpack.c.b16 %v4605, %v4601
    %v4942 = vpack.c.b16 %v4606, %v4602
    %v4943 = vpack.c.b16 %v4611, %v4607
    %v4944 = vpack.c.b16 %v4612, %v4608
    %v4945 = vpack.c.b16 %v4613, %v4609
    %v4946 = vpack.c.b16 %v4614, %v4610
    %v4947 = vpack.c.b16 %v4619, %v4615
    %v4948 = vpack.c.b16 %v4620, %v4616
    %v4949 = vpack.c.b16 %v4621, %v4617
    %v4950 = vpack.c.b16 %v4622, %v4618
    %v4951 = vpack.c.b16 %v4627, %v4623
    %v4952 = vpack.c.b16 %v4628, %v4624
    %v4953 = vpack.c.b16 %v4629, %v4625
    %v4954 = vpack.c.b16 %v4630, %v4626
    %v4955 = vpack.c.b16 %v4635, %v4631
    %v4956 = vpack.c.b16 %v4636, %v4632
    %v4957 = vpack.c.b16 %v4637, %v4633
    %v4958 = vpack.c.b16 %v4638, %v4634
    %v4959 = vpack.c.b16 %v4643, %v4639
    %v4960 = vpack.c.b16 %v4644, %v4640
    %v4961 = vpack.c.b16 %v4645, %v4641
    %v4962 = vpack.c.b16 %v4646, %v4642
    %v4963 = vpack.c.b16 %v4651, %v4647
    %v4964 = vpack.c.b16 %v4652, %v4648
    %v4965 = vpack.c.b16 %v4653, %v4649
    %v4966 = vpack.c.b16 %v4654, %v4650
    %v4967 = vpack.c.b16 %v4659, %v4655
    %v4968 = vpack.c.b16 %v4660, %v4656
    %v4969 = vpack.c.b16 %v4661, %v4657
    %v4970 = vpack.c.b16 %v4662, %v4658
    %v4971 = vpack.c.b16 %v4667, %v4663
    %v4972 = vpack.c.b16 %v4668, %v4664
    %v4973 = vpack.c.b16 %v4669, %v4665
    %v4974 = vpack.c.b16 %v4670, %v4666
    %v4975 = vpack.c.b16 %v4675, %v4671
    %v4976 = vpack.c.b16 %v4676, %v4672
    %v4977 = vpack.c.b16 %v4677, %v4673
    %v4978 = vpack.c.b16 %v4678, %v4674
    %v4979 = vpack.c.b16 %v4683, %v4679
    %v4980 = vpack.c.b16 %v4684, %v4680
    %v4981 = vpack.c.b16 %v4685, %v4681
    %v4982 = vpack.c.b16 %v4686, %v4682
    %v4983 = vpack.c.b16 %v4691, %v4687
    %v4984 = vpack.c.b16 %v4692, %v4688
    %v4985 = vpack.c.b16 %v4693, %v4689
    %v4986 = vpack.c.b16 %v4694, %v4690
    %v4987 = vpack.c.b16 %v4699, %v4695
    %v4988 = vpack.c.b16 %v4700, %v4696
    %v4989 = vpack.c.b16 %v4701, %v4697
    %v4990 = vpack.c.b16 %v4702, %v4698
    %v4991 = vpack.c.b16 %v4707, %v4703
    %v4992 = vpack.c.b16 %v4708, %v4704
    %v4993 = vpack.c.b16 %v4709, %v4705
    %v4994 = vpack.c.b16 %v4710, %v4706
    %v4995 = vpack.c.b16 %v4715, %v4711
    %v4996 = vpack.c.b16 %v4716, %v4712
    %v4997 = vpack.c.b16 %v4717, %v4713
    %v4998 = vpack.c.b16 %v4718, %v4714
    %v4999 = vpack.c.b16 %v4723, %v4719
    %v5000 = vpack.c.b16 %v4724, %v4720
    %v5001 = vpack.c.b16 %v4725, %v4721
    %v5002 = vpack.c.b16 %v4726, %v4722
    %v5003 = vpack.c.b16 %v4731, %v4727
    %v5004 = vpack.c.b16 %v4732, %v4728
    %v5005 = vpack.c.b16 %v4733, %v4729
    %v5006 = vpack.c.b16 %v4734, %v4730
    %v5007 = vpack.c.b16 %v4739, %v4735
    %v5008 = vpack.c.b16 %v4740, %v4736
    %v5009 = vpack.c.b16 %v4741, %v4737
    %v5010 = vpack.c.b16 %v4742, %v4738
    %v5011 = vpack.c.b16 %v4747, %v4743
    %v5012 = vpack.c.b16 %v4748, %v4744
    %v5013 = vpack.c.b16 %v4749, %v4745
    %v5014 = vpack.c.b16 %v4750, %v4746
    %v5015 = vpack.c.b16 %v4755, %v4751
    %v5016 = vpack.c.b16 %v4756, %v4752
    %v5017 = vpack.c.b16 %v4757, %v4753
    %v5018 = vpack.c.b16 %v4758, %v4754
    %v5019 = vpack.c.b16 %v4763, %v4759
    %v5020 = vpack.c.b16 %v4764, %v4760
    %v5021 = vpack.c.b16 %v4765, %v4761
    %v5022 = vpack.c.b16 %v4766, %v4762
    %5279 = vmatprep.subr.bf16.mxu0 %v4768
    %5280 = vmatpush1.bf16.msra.mxu0 %v4767
    %5281 = vmatprep.subr.bf16.mxu0 %v4772
    %5282 = vmatpush1.bf16.msra.mxu0 %v4771
    %5283 = vmatprep.subr.bf16.mxu0 %v4776
    %5284 = vmatpush1.bf16.msra.mxu0 %v4775
    %5285 = vmatprep.subr.bf16.mxu0 %v4780
    %5286 = vmatpush1.bf16.msra.mxu0 %v4779
    %5287 = vmatprep.subr.bf16.mxu0 %v4784
    %5288 = vmatpush1.bf16.msra.mxu0 %v4783
    %5289 = vmatprep.subr.bf16.mxu0 %v4788
    %5290 = vmatpush1.bf16.msra.mxu0 %v4787
    %5291 = vmatprep.subr.bf16.mxu0 %v4792
    %5292 = vmatpush1.bf16.msra.mxu0 %v4791
    %5293 = vmatprep.subr.bf16.mxu0 %v4796
    %5294 = vmatpush1.bf16.msra.mxu0 %v4795
    %5295 = vmatprep.subr.bf16.mxu0 %v4800
    %5296 = vmatpush1.bf16.msra.mxu0 %v4799
    %5297 = vmatprep.subr.bf16.mxu0 %v4804
    %5298 = vmatpush1.bf16.msra.mxu0 %v4803
    %5299 = vmatprep.subr.bf16.mxu0 %v4808
    %5300 = vmatpush1.bf16.msra.mxu0 %v4807
    %5301 = vmatprep.subr.bf16.mxu0 %v4812
    %5302 = vmatpush1.bf16.msra.mxu0 %v4811
    %5303 = vmatprep.subr.bf16.mxu0 %v4816
    %5304 = vmatpush1.bf16.msra.mxu0 %v4815
    %5305 = vmatprep.subr.bf16.mxu0 %v4820
    %5306 = vmatpush1.bf16.msra.mxu0 %v4819
    %5307 = vmatprep.subr.bf16.mxu0 %v4824
    %5308 = vmatpush1.bf16.msra.mxu0 %v4823
    %5309 = vmatprep.subr.bf16.mxu0 %v4828
    %5310 = vmatpush1.bf16.msra.mxu0 %v4827
    %5311 = vmatprep.mubr.bf16.mxu0 %v3971
    %5312 = vmatmul.mubr.bf16.gmra.mrb[0].mxu0 %v3970
    %v5313 = vpop.f32.mrb[0].mxu0
    %v5314 = vadd.f32 %v3982, %v5313
    %v5315 = vpop.f32.mrb[0].mxu0
    %v5316 = vadd.f32 %v3986, %v5315
    %v5317 = vpop.f32.mrb[0].mxu0
    %v5318 = vpop.f32.mrb[0].mxu0
    %5319 = vdwg.mxu0
    %5320 = vmatprep.subr.bf16.mxu0 %v4832
    %5321 = vmatpush1.bf16.msra.mxu0 %v4831
    %5322 = vmatprep.subr.bf16.mxu0 %v4836
    %5323 = vmatpush1.bf16.msra.mxu0 %v4835
    %5324 = vmatprep.subr.bf16.mxu0 %v4840
    %5325 = vmatpush1.bf16.msra.mxu0 %v4839
    %5326 = vmatprep.subr.bf16.mxu0 %v4844
    %5327 = vmatpush1.bf16.msra.mxu0 %v4843
    %5328 = vmatprep.subr.bf16.mxu0 %v4848
    %5329 = vmatpush1.bf16.msra.mxu0 %v4847
    %5330 = vmatprep.subr.bf16.mxu0 %v4852
    %5331 = vmatpush1.bf16.msra.mxu0 %v4851
    %5332 = vmatprep.subr.bf16.mxu0 %v4856
    %5333 = vmatpush1.bf16.msra.mxu0 %v4855
    %5334 = vmatprep.subr.bf16.mxu0 %v4860
    %5335 = vmatpush1.bf16.msra.mxu0 %v4859
    %5336 = vmatprep.subr.bf16.mxu0 %v4864
    %5337 = vmatpush1.bf16.msra.mxu0 %v4863
    %5338 = vmatprep.subr.bf16.mxu0 %v4868
    %5339 = vmatpush1.bf16.msra.mxu0 %v4867
    %5340 = vmatprep.subr.bf16.mxu0 %v4872
    %5341 = vmatpush1.bf16.msra.mxu0 %v4871
    %5342 = vmatprep.subr.bf16.mxu0 %v4876
    %5343 = vmatpush1.bf16.msra.mxu0 %v4875
    %5344 = vmatprep.subr.bf16.mxu0 %v4880
    %5345 = vmatpush1.bf16.msra.mxu0 %v4879
    %5346 = vmatprep.subr.bf16.mxu0 %v4884
    %5347 = vmatpush1.bf16.msra.mxu0 %v4883
    %5348 = vmatprep.subr.bf16.mxu0 %v4888
    %5349 = vmatpush1.bf16.msra.mxu0 %v4887
    %5350 = vmatprep.subr.bf16.mxu0 %v4892
    %5351 = vmatpush1.bf16.msra.mxu0 %v4891
    %5352 = vmatprep.mubr.bf16.mxu0 %v3973
    %5353 = vmatmul.mubr.bf16.gmra.mrb[0].mxu0 %v3972
    %v5354 = vpop.f32.mrb[0].mxu0
    %v5355 = vadd.f32 %v5314, %v5354
    %v5356 = vpop.f32.mrb[0].mxu0
    %v5357 = vadd.f32 %v5316, %v5356
    %v5358 = vpop.f32.mrb[0].mxu0
    %v5359 = vpop.f32.mrb[0].mxu0
    %5360 = vdwg.mxu0
    %5361 = vmatprep.subr.bf16.mxu0 %v4896
    %5362 = vmatpush1.bf16.msra.mxu0 %v4895
    %5363 = vmatprep.subr.bf16.mxu0 %v4900
    %5364 = vmatpush1.bf16.msra.mxu0 %v4899
    %5365 = vmatprep.subr.bf16.mxu0 %v4904
    %5366 = vmatpush1.bf16.msra.mxu0 %v4903
    %5367 = vmatprep.subr.bf16.mxu0 %v4908
    %5368 = vmatpush1.bf16.msra.mxu0 %v4907
    %5369 = vmatprep.subr.bf16.mxu0 %v4912
    %5370 = vmatpush1.bf16.msra.mxu0 %v4911
    %5371 = vmatprep.subr.bf16.mxu0 %v4916
    %5372 = vmatpush1.bf16.msra.mxu0 %v4915
    %5373 = vmatprep.subr.bf16.mxu0 %v4920
    %5374 = vmatpush1.bf16.msra.mxu0 %v4919
    %5375 = vmatprep.subr.bf16.mxu0 %v4924
    %5376 = vmatpush1.bf16.msra.mxu0 %v4923
    %5377 = vmatprep.subr.bf16.mxu0 %v4928
    %5378 = vmatpush1.bf16.msra.mxu0 %v4927
    %5379 = vmatprep.subr.bf16.mxu0 %v4932
    %5380 = vmatpush1.bf16.msra.mxu0 %v4931
    %5381 = vmatprep.subr.bf16.mxu0 %v4936
    %5382 = vmatpush1.bf16.msra.mxu0 %v4935
    %5383 = vmatprep.subr.bf16.mxu0 %v4940
    %5384 = vmatpush1.bf16.msra.mxu0 %v4939
    %5385 = vmatprep.subr.bf16.mxu0 %v4944
    %5386 = vmatpush1.bf16.msra.mxu0 %v4943
    %5387 = vmatprep.subr.bf16.mxu0 %v4948
    %5388 = vmatpush1.bf16.msra.mxu0 %v4947
    %5389 = vmatprep.subr.bf16.mxu0 %v4952
    %5390 = vmatpush1.bf16.msra.mxu0 %v4951
    %5391 = vmatprep.subr.bf16.mxu0 %v4956
    %5392 = vmatpush1.bf16.msra.mxu0 %v4955
    %5393 = vmatprep.mubr.bf16.mxu0 %v3975
    %5394 = vmatmul.mubr.bf16.gmra.mrb[0].mxu0 %v3974
    %v5395 = vpop.f32.mrb[0].mxu0
    %v5396 = vadd.f32 %v5355, %v5395
    %v5397 = vpop.f32.mrb[0].mxu0
    %v5398 = vadd.f32 %v5357, %v5397
    %v5399 = vpop.f32.mrb[0].mxu0
    %v5400 = vpop.f32.mrb[0].mxu0
    %5401 = vdwg.mxu0
    %5402 = vmatprep.subr.bf16.mxu0 %v4960
    %5403 = vmatpush1.bf16.msra.mxu0 %v4959
    %5404 = vmatprep.subr.bf16.mxu0 %v4964
    %5405 = vmatpush1.bf16.msra.mxu0 %v4963
    %5406 = vmatprep.subr.bf16.mxu0 %v4968
    %5407 = vmatpush1.bf16.msra.mxu0 %v4967
    %5408 = vmatprep.subr.bf16.mxu0 %v4972
    %5409 = vmatpush1.bf16.msra.mxu0 %v4971
    %5410 = vmatprep.subr.bf16.mxu0 %v4976
    %5411 = vmatpush1.bf16.msra.mxu0 %v4975
    %5412 = vmatprep.subr.bf16.mxu0 %v4980
    %5413 = vmatpush1.bf16.msra.mxu0 %v4979
    %5414 = vmatprep.subr.bf16.mxu0 %v4984
    %5415 = vmatpush1.bf16.msra.mxu0 %v4983
    %5416 = vmatprep.subr.bf16.mxu0 %v4988
    %5417 = vmatpush1.bf16.msra.mxu0 %v4987
    %5418 = vmatprep.subr.bf16.mxu0 %v4992
    %5419 = vmatpush1.bf16.msra.mxu0 %v4991
    %5420 = vmatprep.subr.bf16.mxu0 %v4996
    %5421 = vmatpush1.bf16.msra.mxu0 %v4995
    %5422 = vmatprep.subr.bf16.mxu0 %v5000
    %5423 = vmatpush1.bf16.msra.mxu0 %v4999
    %5424 = vmatprep.subr.bf16.mxu0 %v5004
    %5425 = vmatpush1.bf16.msra.mxu0 %v5003
    %5426 = vmatprep.subr.bf16.mxu0 %v5008
    %5427 = vmatpush1.bf16.msra.mxu0 %v5007
    %5428 = vmatprep.subr.bf16.mxu0 %v5012
    %5429 = vmatpush1.bf16.msra.mxu0 %v5011
    %5430 = vmatprep.subr.bf16.mxu0 %v5016
    %5431 = vmatpush1.bf16.msra.mxu0 %v5015
    %5432 = vmatprep.subr.bf16.mxu0 %v5020
    %5433 = vmatpush1.bf16.msra.mxu0 %v5019
    %5434 = vmatprep.mubr.bf16.mxu0 %v3977
    %5435 = vmatmul.mubr.bf16.gmra.mrb[0].mxu0 %v3976
    %v5436 = vpop.f32.mrb[0].mxu0
    %v5437 = vadd.f32 %v5396, %v5436
    %v5438 = vpop.f32.mrb[0].mxu0
    %v5439 = vadd.f32 %v5398, %v5438
    %v5440 = vpop.f32.mrb[0].mxu0
    %v5441 = vpop.f32.mrb[0].mxu0
    %5442 = vdwg.mxu0
    %5443 = vmatprep.subr.bf16.mxu0 %v4770
    %5444 = vmatpush1.bf16.msra.mxu0 %v4769
    %5445 = vmatprep.subr.bf16.mxu0 %v4774
    %5446 = vmatpush1.bf16.msra.mxu0 %v4773
    %5447 = vmatprep.subr.bf16.mxu0 %v4778
    %5448 = vmatpush1.bf16.msra.mxu0 %v4777
    %5449 = vmatprep.subr.bf16.mxu0 %v4782
    %5450 = vmatpush1.bf16.msra.mxu0 %v4781
    %5451 = vmatprep.subr.bf16.mxu0 %v4786
    %5452 = vmatpush1.bf16.msra.mxu0 %v4785
    %5453 = vmatprep.subr.bf16.mxu0 %v4790
    %5454 = vmatpush1.bf16.msra.mxu0 %v4789
    %5455 = vmatprep.subr.bf16.mxu0 %v4794
    %5456 = vmatpush1.bf16.msra.mxu0 %v4793
    %5457 = vmatprep.subr.bf16.mxu0 %v4798
    %5458 = vmatpush1.bf16.msra.mxu0 %v4797
    %5459 = vmatprep.subr.bf16.mxu0 %v4802
    %5460 = vmatpush1.bf16.msra.mxu0 %v4801
    %5461 = vmatprep.subr.bf16.mxu0 %v4806
    %5462 = vmatpush1.bf16.msra.mxu0 %v4805
    %5463 = vmatprep.subr.bf16.mxu0 %v4810
    %5464 = vmatpush1.bf16.msra.mxu0 %v4809
    %5465 = vmatprep.subr.bf16.mxu0 %v4814
    %5466 = vmatpush1.bf16.msra.mxu0 %v4813
    %5467 = vmatprep.subr.bf16.mxu0 %v4818
    %5468 = vmatpush1.bf16.msra.mxu0 %v4817
    %5469 = vmatprep.subr.bf16.mxu0 %v4822
    %5470 = vmatpush1.bf16.msra.mxu0 %v4821
    %5471 = vmatprep.subr.bf16.mxu0 %v4826
    %5472 = vmatpush1.bf16.msra.mxu0 %v4825
    %5473 = vmatprep.subr.bf16.mxu0 %v4830
    %5474 = vmatpush1.bf16.msra.mxu0 %v4829
    %5475 = vmatprep.mubr.bf16.mxu0 %v3971
    %5476 = vmatmul.mubr.bf16.gmra.mrb[0].mxu0 %v3970
    %v5477 = vpop.f32.mrb[0].mxu0
    %v5478 = vadd.f32 %v3990, %v5477
    %v5479 = vpop.f32.mrb[0].mxu0
    %v5480 = vadd.f32 %v3994, %v5479
    %v5481 = vpop.f32.mrb[0].mxu0
    %v5482 = vpop.f32.mrb[0].mxu0
    %5483 = vdwg.mxu0
    %5484 = vmatprep.subr.bf16.mxu0 %v4834
    %5485 = vmatpush1.bf16.msra.mxu0 %v4833
    %5486 = vmatprep.subr.bf16.mxu0 %v4838
    %5487 = vmatpush1.bf16.msra.mxu0 %v4837
    %5488 = vmatprep.subr.bf16.mxu0 %v4842
    %5489 = vmatpush1.bf16.msra.mxu0 %v4841
    %5490 = vmatprep.subr.bf16.mxu0 %v4846
    %5491 = vmatpush1.bf16.msra.mxu0 %v4845
    %5492 = vmatprep.subr.bf16.mxu0 %v4850
    %5493 = vmatpush1.bf16.msra.mxu0 %v4849
    %5494 = vmatprep.subr.bf16.mxu0 %v4854
    %5495 = vmatpush1.bf16.msra.mxu0 %v4853
    %5496 = vmatprep.subr.bf16.mxu0 %v4858
    %5497 = vmatpush1.bf16.msra.mxu0 %v4857
    %5498 = vmatprep.subr.bf16.mxu0 %v4862
    %5499 = vmatpush1.bf16.msra.mxu0 %v4861
    %5500 = vmatprep.subr.bf16.mxu0 %v4866
    %5501 = vmatpush1.bf16.msra.mxu0 %v4865
    %5502 = vmatprep.subr.bf16.mxu0 %v4870
    %5503 = vmatpush1.bf16.msra.mxu0 %v4869
    %5504 = vmatprep.subr.bf16.mxu0 %v4874
    %5505 = vmatpush1.bf16.msra.mxu0 %v4873
    %5506 = vmatprep.subr.bf16.mxu0 %v4878
    %5507 = vmatpush1.bf16.msra.mxu0 %v4877
    %5508 = vmatprep.subr.bf16.mxu0 %v4882
    %5509 = vmatpush1.bf16.msra.mxu0 %v4881
    %5510 = vmatprep.subr.bf16.mxu0 %v4886
    %5511 = vmatpush1.bf16.msra.mxu0 %v4885
    %5512 = vmatprep.subr.bf16.mxu0 %v4890
    %5513 = vmatpush1.bf16.msra.mxu0 %v4889
    %5514 = vmatprep.subr.bf16.mxu0 %v4894
    %5515 = vmatpush1.bf16.msra.mxu0 %v4893
    %5516 = vmatprep.mubr.bf16.mxu0 %v3973
    %5517 = vmatmul.mubr.bf16.gmra.mrb[0].mxu0 %v3972
    %v5518 = vpop.f32.mrb[0].mxu0
    %v5519 = vadd.f32 %v5478, %v5518
    %v5520 = vpop.f32.mrb[0].mxu0
    %v5521 = vadd.f32 %v5480, %v5520
    %v5522 = vpop.f32.mrb[0].mxu0
    %v5523 = vpop.f32.mrb[0].mxu0
    %5524 = vdwg.mxu0
    %5525 = vmatprep.subr.bf16.mxu0 %v4898
    %5526 = vmatpush1.bf16.msra.mxu0 %v4897
    %5527 = vmatprep.subr.bf16.mxu0 %v4902
    %5528 = vmatpush1.bf16.msra.mxu0 %v4901
    %5529 = vmatprep.subr.bf16.mxu0 %v4906
    %5530 = vmatpush1.bf16.msra.mxu0 %v4905
    %5531 = vmatprep.subr.bf16.mxu0 %v4910
    %5532 = vmatpush1.bf16.msra.mxu0 %v4909
    %5533 = vmatprep.subr.bf16.mxu0 %v4914
    %5534 = vmatpush1.bf16.msra.mxu0 %v4913
    %5535 = vmatprep.subr.bf16.mxu0 %v4918
    %5536 = vmatpush1.bf16.msra.mxu0 %v4917
    %5537 = vmatprep.subr.bf16.mxu0 %v4922
    %5538 = vmatpush1.bf16.msra.mxu0 %v4921
    %5539 = vmatprep.subr.bf16.mxu0 %v4926
    %5540 = vmatpush1.bf16.msra.mxu0 %v4925
    %5541 = vmatprep.subr.bf16.mxu0 %v4930
    %5542 = vmatpush1.bf16.msra.mxu0 %v4929
    %5543 = vmatprep.subr.bf16.mxu0 %v4934
    %5544 = vmatpush1.bf16.msra.mxu0 %v4933
    %5545 = vmatprep.subr.bf16.mxu0 %v4938
    %5546 = vmatpush1.bf16.msra.mxu0 %v4937
    %5547 = vmatprep.subr.bf16.mxu0 %v4942
    %5548 = vmatpush1.bf16.msra.mxu0 %v4941
    %5549 = vmatprep.subr.bf16.mxu0 %v4946
    %5550 = vmatpush1.bf16.msra.mxu0 %v4945
    %5551 = vmatprep.subr.bf16.mxu0 %v4950
    %5552 = vmatpush1.bf16.msra.mxu0 %v4949
    %5553 = vmatprep.subr.bf16.mxu0 %v4954
    %5554 = vmatpush1.bf16.msra.mxu0 %v4953
    %5555 = vmatprep.subr.bf16.mxu0 %v4958
    %5556 = vmatpush1.bf16.msra.mxu0 %v4957
    %5557 = vmatprep.mubr.bf16.mxu0 %v3975
    %5558 = vmatmul.mubr.bf16.gmra.mrb[0].mxu0 %v3974
    %v5559 = vpop.f32.mrb[0].mxu0
    %v5560 = vadd.f32 %v5519, %v5559
    %v5561 = vpop.f32.mrb[0].mxu0
    %v5562 = vadd.f32 %v5521, %v5561
    %v5563 = vpop.f32.mrb[0].mxu0
    %v5564 = vpop.f32.mrb[0].mxu0
    %5565 = vdwg.mxu0
    %5566 = vmatprep.subr.bf16.mxu0 %v4962
    %5567 = vmatpush1.bf16.msra.mxu0 %v4961
    %5568 = vmatprep.subr.bf16.mxu0 %v4966
    %5569 = vmatpush1.bf16.msra.mxu0 %v4965
    %5570 = vmatprep.subr.bf16.mxu0 %v4970
    %5571 = vmatpush1.bf16.msra.mxu0 %v4969
    %5572 = vmatprep.subr.bf16.mxu0 %v4974
    %5573 = vmatpush1.bf16.msra.mxu0 %v4973
    %5574 = vmatprep.subr.bf16.mxu0 %v4978
    %5575 = vmatpush1.bf16.msra.mxu0 %v4977
    %5576 = vmatprep.subr.bf16.mxu0 %v4982
    %5577 = vmatpush1.bf16.msra.mxu0 %v4981
    %5578 = vmatprep.subr.bf16.mxu0 %v4986
    %5579 = vmatpush1.bf16.msra.mxu0 %v4985
    %5580 = vmatprep.subr.bf16.mxu0 %v4990
    %5581 = vmatpush1.bf16.msra.mxu0 %v4989
    %5582 = vmatprep.subr.bf16.mxu0 %v4994
    %5583 = vmatpush1.bf16.msra.mxu0 %v4993
    %5584 = vmatprep.subr.bf16.mxu0 %v4998
    %5585 = vmatpush1.bf16.msra.mxu0 %v4997
    %5586 = vmatprep.subr.bf16.mxu0 %v5002
    %5587 = vmatpush1.bf16.msra.mxu0 %v5001
    %5588 = vmatprep.subr.bf16.mxu0 %v5006
    %5589 = vmatpush1.bf16.msra.mxu0 %v5005
    %5590 = vmatprep.subr.bf16.mxu0 %v5010
    %5591 = vmatpush1.bf16.msra.mxu0 %v5009
    %5592 = vmatprep.subr.bf16.mxu0 %v5014
    %5593 = vmatpush1.bf16.msra.mxu0 %v5013
    %5594 = vmatprep.subr.bf16.mxu0 %v5018
    %5595 = vmatpush1.bf16.msra.mxu0 %v5017
    %5596 = vmatprep.subr.bf16.mxu0 %v5022
    %5597 = vmatpush1.bf16.msra.mxu0 %v5021
    %5598 = vmatprep.mubr.bf16.mxu0 %v3977
    %5599 = vmatmul.mubr.bf16.gmra.mrb[0].mxu0 %v3976
    %v5600 = vpop.f32.mrb[0].mxu0
    %v5601 = vadd.f32 %v5560, %v5600
    %v5602 = vpop.f32.mrb[0].mxu0
    %v5603 = vadd.f32 %v5562, %v5602
    %v5604 = vpop.f32.mrb[0].mxu0
    %v5605 = vpop.f32.mrb[0].mxu0
    %5606 = vdwg.mxu0
    %v5607 = vmul.f32 %v5437, %v1544
    %v5608 = vmul.f32 %v5439, %v1544
    %v5609 = vmul.f32 %v5601, %v1544
    %v5610 = vmul.f32 %v5603, %v1544
    %v5611 = vsel %vm1550, %v5607, 0.0
    %v5612 = vrot.slane %v5611, 4
    %v5613 = vadd.f32 %v5611, %v5612
    %v5614 = vrot.slane %v5613, 2
    %v5615 = vadd.f32 %v5613, %v5614
    %v5616 = vrot.slane %v5615, 1
    %v5617 = vadd.f32 %v5615, %v5616
    %v5618 = vsel %vm1550, %v5608, 0.0
    %v5619 = vrot.slane %v5618, 4
    %v5620 = vadd.f32 %v5618, %v5619
    %v5621 = vrot.slane %v5620, 2
    %v5622 = vadd.f32 %v5620, %v5621
    %v5623 = vrot.slane %v5622, 1
    %v5624 = vadd.f32 %v5622, %v5623
    %v5625 = vsel %vm1550, %v5609, 0.0
    %v5626 = vrot.slane %v5625, 4
    %v5627 = vadd.f32 %v5625, %v5626
    %v5628 = vrot.slane %v5627, 2
    %v5629 = vadd.f32 %v5627, %v5628
    %v5630 = vrot.slane %v5629, 1
    %v5631 = vadd.f32 %v5629, %v5630
    %v5632 = vsel %vm1550, %v5610, 0.0
    %v5633 = vrot.slane %v5632, 4
    %v5634 = vadd.f32 %v5632, %v5633
    %v5635 = vrot.slane %v5634, 2
    %v5636 = vadd.f32 %v5634, %v5635
    %v5637 = vrot.slane %v5636, 1
    %v5638 = vadd.f32 %v5636, %v5637
    %v5639 = vmul.f32 %v5617, 0.5
    %v5640 = vmul.f32 %v5624, 0.5
    %v5641 = vmul.f32 %v5631, 0.5
    %v5642 = vmul.f32 %v5638, 0.5
    %v5643 = vmul.f32 %v5437, %v1545
    %v5644 = vmul.f32 %v5439, %v1545
    %v5645 = vmul.f32 %v5601, %v1545
    %v5646 = vmul.f32 %v5603, %v1545
    %v5647 = vsel %vm1550, %v5643, 0.0
    %v5648 = vrot.slane %v5647, 4
    %v5649 = vadd.f32 %v5647, %v5648
    %v5650 = vrot.slane %v5649, 2
    %v5651 = vadd.f32 %v5649, %v5650
    %v5652 = vrot.slane %v5651, 1
    %v5653 = vadd.f32 %v5651, %v5652
    %v5654 = vsel %vm1550, %v5644, 0.0
    %v5655 = vrot.slane %v5654, 4
    %v5656 = vadd.f32 %v5654, %v5655
    %v5657 = vrot.slane %v5656, 2
    %v5658 = vadd.f32 %v5656, %v5657
    %v5659 = vrot.slane %v5658, 1
    %v5660 = vadd.f32 %v5658, %v5659
    %v5661 = vsel %vm1550, %v5645, 0.0
    %v5662 = vrot.slane %v5661, 4
    %v5663 = vadd.f32 %v5661, %v5662
    %v5664 = vrot.slane %v5663, 2
    %v5665 = vadd.f32 %v5663, %v5664
    %v5666 = vrot.slane %v5665, 1
    %v5667 = vadd.f32 %v5665, %v5666
    %v5668 = vsel %vm1550, %v5646, 0.0
    %v5669 = vrot.slane %v5668, 4
    %v5670 = vadd.f32 %v5668, %v5669
    %v5671 = vrot.slane %v5670, 2
    %v5672 = vadd.f32 %v5670, %v5671
    %v5673 = vrot.slane %v5672, 1
    %v5674 = vadd.f32 %v5672, %v5673
    %v5675 = vmul.f32 %v5653, 0.5
    %v5676 = vmul.f32 %v5660, 0.5
    %v5677 = vmul.f32 %v5667, 0.5
    %v5678 = vmul.f32 %v5674, 0.5
    %v5679 = vmul.f32 %v1544, %v5639
    %v5680 = vmul.f32 %v1544, %v5640
    %v5681 = vmul.f32 %v1544, %v5641
    %v5682 = vmul.f32 %v1544, %v5642
    %v5683 = vmul.f32 %v1545, %v5675
    %v5684 = vmul.f32 %v1545, %v5676
    %v5685 = vmul.f32 %v1545, %v5677
    %v5686 = vmul.f32 %v1545, %v5678
    %v5687 = vadd.f32 %v5679, %v5683
    %v5688 = vadd.f32 %v5680, %v5684
    %v5689 = vadd.f32 %v5681, %v5685
    %v5690 = vadd.f32 %v5682, %v5686
    %v5691 = vsub.f32 %v5437, %v5639
    %v5692 = vsub.f32 %v5439, %v5640
    %v5693 = vsub.f32 %v5601, %v5641
    %v5694 = vsub.f32 %v5603, %v5642
    %v5695 = vmul.f32 %v5691, %v5691
    %v5696 = vmul.f32 %v5692, %v5692
    %v5697 = vmul.f32 %v5693, %v5693
    %v5698 = vmul.f32 %v5694, %v5694
    %v5699 = vmul.f32 %v5695, %v1544
    %v5700 = vmul.f32 %v5696, %v1544
    %v5701 = vmul.f32 %v5697, %v1544
    %v5702 = vmul.f32 %v5698, %v1544
    %v5703 = vsel %vm1550, %v5699, 0.0
    %v5704 = vrot.slane %v5703, 4
    %v5705 = vadd.f32 %v5703, %v5704
    %v5706 = vrot.slane %v5705, 2
    %v5707 = vadd.f32 %v5705, %v5706
    %v5708 = vrot.slane %v5707, 1
    %v5709 = vadd.f32 %v5707, %v5708
    %v5710 = vsel %vm1550, %v5700, 0.0
    %v5711 = vrot.slane %v5710, 4
    %v5712 = vadd.f32 %v5710, %v5711
    %v5713 = vrot.slane %v5712, 2
    %v5714 = vadd.f32 %v5712, %v5713
    %v5715 = vrot.slane %v5714, 1
    %v5716 = vadd.f32 %v5714, %v5715
    %v5717 = vsel %vm1550, %v5701, 0.0
    %v5718 = vrot.slane %v5717, 4
    %v5719 = vadd.f32 %v5717, %v5718
    %v5720 = vrot.slane %v5719, 2
    %v5721 = vadd.f32 %v5719, %v5720
    %v5722 = vrot.slane %v5721, 1
    %v5723 = vadd.f32 %v5721, %v5722
    %v5724 = vsel %vm1550, %v5702, 0.0
    %v5725 = vrot.slane %v5724, 4
    %v5726 = vadd.f32 %v5724, %v5725
    %v5727 = vrot.slane %v5726, 2
    %v5728 = vadd.f32 %v5726, %v5727
    %v5729 = vrot.slane %v5728, 1
    %v5730 = vadd.f32 %v5728, %v5729
    %v5731 = vmul.f32 %v5709, 0.5
    %v5732 = vmul.f32 %v5716, 0.5
    %v5733 = vmul.f32 %v5723, 0.5
    %v5734 = vmul.f32 %v5730, 0.5
    %v5735 = vsub.f32 %v5437, %v5675
    %v5736 = vsub.f32 %v5439, %v5676
    %v5737 = vsub.f32 %v5601, %v5677
    %v5738 = vsub.f32 %v5603, %v5678
    %v5739 = vmul.f32 %v5735, %v5735
    %v5740 = vmul.f32 %v5736, %v5736
    %v5741 = vmul.f32 %v5737, %v5737
    %v5742 = vmul.f32 %v5738, %v5738
    %v5743 = vmul.f32 %v5739, %v1545
    %v5744 = vmul.f32 %v5740, %v1545
    %v5745 = vmul.f32 %v5741, %v1545
    %v5746 = vmul.f32 %v5742, %v1545
    %v5747 = vsel %vm1550, %v5743, 0.0
    %v5748 = vrot.slane %v5747, 4
    %v5749 = vadd.f32 %v5747, %v5748
    %v5750 = vrot.slane %v5749, 2
    %v5751 = vadd.f32 %v5749, %v5750
    %v5752 = vrot.slane %v5751, 1
    %v5753 = vadd.f32 %v5751, %v5752
    %v5754 = vsel %vm1550, %v5744, 0.0
    %v5755 = vrot.slane %v5754, 4
    %v5756 = vadd.f32 %v5754, %v5755
    %v5757 = vrot.slane %v5756, 2
    %v5758 = vadd.f32 %v5756, %v5757
    %v5759 = vrot.slane %v5758, 1
    %v5760 = vadd.f32 %v5758, %v5759
    %v5761 = vsel %vm1550, %v5745, 0.0
    %v5762 = vrot.slane %v5761, 4
    %v5763 = vadd.f32 %v5761, %v5762
    %v5764 = vrot.slane %v5763, 2
    %v5765 = vadd.f32 %v5763, %v5764
    %v5766 = vrot.slane %v5765, 1
    %v5767 = vadd.f32 %v5765, %v5766
    %v5768 = vsel %vm1550, %v5746, 0.0
    %v5769 = vrot.slane %v5768, 4
    %v5770 = vadd.f32 %v5768, %v5769
    %v5771 = vrot.slane %v5770, 2
    %v5772 = vadd.f32 %v5770, %v5771
    %v5773 = vrot.slane %v5772, 1
    %v5774 = vadd.f32 %v5772, %v5773
    %v5775 = vmul.f32 %v5753, 0.5
    %v5776 = vmul.f32 %v5760, 0.5
    %v5777 = vmul.f32 %v5767, 0.5
    %v5778 = vmul.f32 %v5774, 0.5
    %v5779 = vmul.f32 %v1544, %v5731
    %v5780 = vmul.f32 %v1544, %v5732
    %v5781 = vmul.f32 %v1544, %v5733
    %v5782 = vmul.f32 %v1544, %v5734
    %v5783 = vmul.f32 %v1545, %v5775
    %v5784 = vmul.f32 %v1545, %v5776
    %v5785 = vmul.f32 %v1545, %v5777
    %v5786 = vmul.f32 %v1545, %v5778
    %v5787 = vadd.f32 %v5779, %v5783
    %v5788 = vadd.f32 %v5780, %v5784
    %v5789 = vadd.f32 %v5781, %v5785
    %v5790 = vadd.f32 %v5782, %v5786
    %v5791 = vsub.f32 %v5437, %v5687
    %v5792 = vsub.f32 %v5439, %v5688
    %v5793 = vsub.f32 %v5601, %v5689
    %v5794 = vsub.f32 %v5603, %v5690
    %v5795 = vadd.f32 %v5787, 1e-05
    %v5796 = vadd.f32 %v5788, 1e-05
    %v5797 = vadd.f32 %v5789, 1e-05
    %v5798 = vadd.f32 %v5790, 1e-05
    %v5799 = vrsqrt.pop %v5795
    %v5800 = vrsqrt.pop %v5796
    %v5801 = vrsqrt.pop %v5797
    %v5802 = vrsqrt.pop %v5798
    %v5803 = vmul.f32 %v5791, %v5799
    %v5804 = vmul.f32 %v5792, %v5800
    %v5805 = vmul.f32 %v5793, %v5801
    %v5806 = vmul.f32 %v5794, %v5802
    %v5808 = vlaneseq
    %v5809 = vshrl.u32 %v5808, 7
    %v5810 = vsub.s32 0, %v5809
    %v5811 = vrot.slane %v3711, %v5810
    %v5812 = vlaneseq
    %v5813 = vshrl.u32 %v5812, 7
    %v5814 = vsub.s32 1, %v5813
    %v5815 = vrot.slane %v3711, %v5814
    %v5816 = vlaneseq
    %v5817 = vshrl.u32 %v5816, 7
    %v5818 = vsub.s32 2, %v5817
    %v5819 = vrot.slane %v3711, %v5818
    %v5820 = vlaneseq
    %v5821 = vshrl.u32 %v5820, 7
    %v5822 = vsub.s32 3, %v5821
    %v5823 = vrot.slane %v3711, %v5822
    %v5828 = vmul.f32 %v5803, %v5811
    %v5829 = vmul.f32 %v5804, %v5815
    %v5830 = vmul.f32 %v5805, %v5819
    %v5831 = vmul.f32 %v5806, %v5823
    %v5833 = vlaneseq
    %v5834 = vshrl.u32 %v5833, 7
    %v5835 = vsub.s32 0, %v5834
    %v5836 = vrot.slane %v3712, %v5835
    %v5837 = vlaneseq
    %v5838 = vshrl.u32 %v5837, 7
    %v5839 = vsub.s32 1, %v5838
    %v5840 = vrot.slane %v3712, %v5839
    %v5841 = vlaneseq
    %v5842 = vshrl.u32 %v5841, 7
    %v5843 = vsub.s32 2, %v5842
    %v5844 = vrot.slane %v3712, %v5843
    %v5845 = vlaneseq
    %v5846 = vshrl.u32 %v5845, 7
    %v5847 = vsub.s32 3, %v5846
    %v5848 = vrot.slane %v3712, %v5847
    %v5853 = vadd.f32 %v5828, %v5836
    %v5854 = vadd.f32 %v5829, %v5840
    %v5855 = vadd.f32 %v5830, %v5844
    %v5856 = vadd.f32 %v5831, %v5848
    %v5857 = vmax.f32 %v5853, 0.0
    %v5858 = vmax.f32 %v5854, 0.0
    %v5859 = vmax.f32 %v5855, 0.0
    %v5860 = vmax.f32 %v5856, 0.0
    %v5861 = vpack.c.bf16 %v5857, %v5857
    %v5862 = vpack.c.bf16 %v5858, %v5858
    %v5863 = vpack.c.bf16 %v5859, %v5859
    %v5864 = vpack.c.bf16 %v5860, %v5860
    %v5866 = vlaneseq
    %v5867 = vshrl.u32 %v5866, 7
    %v5868 = vsub.s32 0, %v5867
    %v5869 = vrot.slane %v3969, %v5868
    %v5870 = vlaneseq
    %v5871 = vshrl.u32 %v5870, 7
    %v5872 = vsub.s32 1, %v5871
    %v5873 = vrot.slane %v3969, %v5872
    %v5874 = vlaneseq
    %v5875 = vshrl.u32 %v5874, 7
    %v5876 = vsub.s32 2, %v5875
    %v5877 = vrot.slane %v3969, %v5876
    %v5878 = vlaneseq
    %v5879 = vshrl.u32 %v5878, 7
    %v5880 = vsub.s32 3, %v5879
    %v5881 = vrot.slane %v3969, %v5880
    %v5882 = vlaneseq
    %v5883 = vshrl.u32 %v5882, 7
    %v5884 = vsub.s32 4, %v5883
    %v5885 = vrot.slane %v3969, %v5884
    %v5886 = vlaneseq
    %v5887 = vshrl.u32 %v5886, 7
    %v5888 = vsub.s32 5, %v5887
    %v5889 = vrot.slane %v3969, %v5888
    %v5890 = vlaneseq
    %v5891 = vshrl.u32 %v5890, 7
    %v5892 = vsub.s32 6, %v5891
    %v5893 = vrot.slane %v3969, %v5892
    %v5894 = vlaneseq
    %v5895 = vshrl.u32 %v5894, 7
    %v5896 = vsub.s32 7, %v5895
    %v5897 = vrot.slane %v3969, %v5896
    %v6162 = vunpack.c.l.b16 %v3713
    %v6163 = vunpack.c.h.b16 %v3713
    %v6164 = vunpack.c.l.b16 %v3714
    %v6165 = vunpack.c.h.b16 %v3714
    %v6166 = vunpack.c.l.b16 %v3715
    %v6167 = vunpack.c.h.b16 %v3715
    %v6168 = vunpack.c.l.b16 %v3716
    %v6169 = vunpack.c.h.b16 %v3716
    %v6170 = vunpack.c.l.b16 %v3717
    %v6171 = vunpack.c.h.b16 %v3717
    %v6172 = vunpack.c.l.b16 %v3718
    %v6173 = vunpack.c.h.b16 %v3718
    %v6174 = vunpack.c.l.b16 %v3719
    %v6175 = vunpack.c.h.b16 %v3719
    %v6176 = vunpack.c.l.b16 %v3720
    %v6177 = vunpack.c.h.b16 %v3720
    %v6178 = vunpack.c.l.b16 %v3721
    %v6179 = vunpack.c.h.b16 %v3721
    %v6180 = vunpack.c.l.b16 %v3722
    %v6181 = vunpack.c.h.b16 %v3722
    %v6182 = vunpack.c.l.b16 %v3723
    %v6183 = vunpack.c.h.b16 %v3723
    %v6184 = vunpack.c.l.b16 %v3724
    %v6185 = vunpack.c.h.b16 %v3724
    %v6186 = vunpack.c.l.b16 %v3725
    %v6187 = vunpack.c.h.b16 %v3725
    %v6188 = vunpack.c.l.b16 %v3726
    %v6189 = vunpack.c.h.b16 %v3726
    %v6190 = vunpack.c.l.b16 %v3727
    %v6191 = vunpack.c.h.b16 %v3727
    %v6192 = vunpack.c.l.b16 %v3728
    %v6193 = vunpack.c.h.b16 %v3728
    %v6194 = vunpack.c.l.b16 %v3729
    %v6195 = vunpack.c.h.b16 %v3729
    %v6196 = vunpack.c.l.b16 %v3730
    %v6197 = vunpack.c.h.b16 %v3730
    %v6198 = vunpack.c.l.b16 %v3731
    %v6199 = vunpack.c.h.b16 %v3731
    %v6200 = vunpack.c.l.b16 %v3732
    %v6201 = vunpack.c.h.b16 %v3732
    %v6202 = vunpack.c.l.b16 %v3733
    %v6203 = vunpack.c.h.b16 %v3733
    %v6204 = vunpack.c.l.b16 %v3734
    %v6205 = vunpack.c.h.b16 %v3734
    %v6206 = vunpack.c.l.b16 %v3735
    %v6207 = vunpack.c.h.b16 %v3735
    %v6208 = vunpack.c.l.b16 %v3736
    %v6209 = vunpack.c.h.b16 %v3736
    %v6210 = vunpack.c.l.b16 %v3737
    %v6211 = vunpack.c.h.b16 %v3737
    %v6212 = vunpack.c.l.b16 %v3738
    %v6213 = vunpack.c.h.b16 %v3738
    %v6214 = vunpack.c.l.b16 %v3739
    %v6215 = vunpack.c.h.b16 %v3739
    %v6216 = vunpack.c.l.b16 %v3740
    %v6217 = vunpack.c.h.b16 %v3740
    %v6218 = vunpack.c.l.b16 %v3741
    %v6219 = vunpack.c.h.b16 %v3741
    %v6220 = vunpack.c.l.b16 %v3742
    %v6221 = vunpack.c.h.b16 %v3742
    %v6222 = vunpack.c.l.b16 %v3743
    %v6223 = vunpack.c.h.b16 %v3743
    %v6224 = vunpack.c.l.b16 %v3744
    %v6225 = vunpack.c.h.b16 %v3744
    %v6226 = vunpack.c.l.b16 %v3745
    %v6227 = vunpack.c.h.b16 %v3745
    %v6228 = vunpack.c.l.b16 %v3746
    %v6229 = vunpack.c.h.b16 %v3746
    %v6230 = vunpack.c.l.b16 %v3747
    %v6231 = vunpack.c.h.b16 %v3747
    %v6232 = vunpack.c.l.b16 %v3748
    %v6233 = vunpack.c.h.b16 %v3748
    %v6234 = vunpack.c.l.b16 %v3749
    %v6235 = vunpack.c.h.b16 %v3749
    %v6236 = vunpack.c.l.b16 %v3750
    %v6237 = vunpack.c.h.b16 %v3750
    %v6238 = vunpack.c.l.b16 %v3751
    %v6239 = vunpack.c.h.b16 %v3751
    %v6240 = vunpack.c.l.b16 %v3752
    %v6241 = vunpack.c.h.b16 %v3752
    %v6242 = vunpack.c.l.b16 %v3753
    %v6243 = vunpack.c.h.b16 %v3753
    %v6244 = vunpack.c.l.b16 %v3754
    %v6245 = vunpack.c.h.b16 %v3754
    %v6246 = vunpack.c.l.b16 %v3755
    %v6247 = vunpack.c.h.b16 %v3755
    %v6248 = vunpack.c.l.b16 %v3756
    %v6249 = vunpack.c.h.b16 %v3756
    %v6250 = vunpack.c.l.b16 %v3757
    %v6251 = vunpack.c.h.b16 %v3757
    %v6252 = vunpack.c.l.b16 %v3758
    %v6253 = vunpack.c.h.b16 %v3758
    %v6254 = vunpack.c.l.b16 %v3759
    %v6255 = vunpack.c.h.b16 %v3759
    %v6256 = vunpack.c.l.b16 %v3760
    %v6257 = vunpack.c.h.b16 %v3760
    %v6258 = vunpack.c.l.b16 %v3761
    %v6259 = vunpack.c.h.b16 %v3761
    %v6260 = vunpack.c.l.b16 %v3762
    %v6261 = vunpack.c.h.b16 %v3762
    %v6262 = vunpack.c.l.b16 %v3763
    %v6263 = vunpack.c.h.b16 %v3763
    %v6264 = vunpack.c.l.b16 %v3764
    %v6265 = vunpack.c.h.b16 %v3764
    %v6266 = vunpack.c.l.b16 %v3765
    %v6267 = vunpack.c.h.b16 %v3765
    %v6268 = vunpack.c.l.b16 %v3766
    %v6269 = vunpack.c.h.b16 %v3766
    %v6270 = vunpack.c.l.b16 %v3767
    %v6271 = vunpack.c.h.b16 %v3767
    %v6272 = vunpack.c.l.b16 %v3768
    %v6273 = vunpack.c.h.b16 %v3768
    %v6274 = vunpack.c.l.b16 %v3769
    %v6275 = vunpack.c.h.b16 %v3769
    %v6276 = vunpack.c.l.b16 %v3770
    %v6277 = vunpack.c.h.b16 %v3770
    %v6278 = vunpack.c.l.b16 %v3771
    %v6279 = vunpack.c.h.b16 %v3771
    %v6280 = vunpack.c.l.b16 %v3772
    %v6281 = vunpack.c.h.b16 %v3772
    %v6282 = vunpack.c.l.b16 %v3773
    %v6283 = vunpack.c.h.b16 %v3773
    %v6284 = vunpack.c.l.b16 %v3774
    %v6285 = vunpack.c.h.b16 %v3774
    %v6286 = vunpack.c.l.b16 %v3775
    %v6287 = vunpack.c.h.b16 %v3775
    %v6288 = vunpack.c.l.b16 %v3776
    %v6289 = vunpack.c.h.b16 %v3776
    %v6290 = vunpack.c.l.b16 %v3777
    %v6291 = vunpack.c.h.b16 %v3777
    %v6292 = vunpack.c.l.b16 %v3778
    %v6293 = vunpack.c.h.b16 %v3778
    %v6294 = vunpack.c.l.b16 %v3779
    %v6295 = vunpack.c.h.b16 %v3779
    %v6296 = vunpack.c.l.b16 %v3780
    %v6297 = vunpack.c.h.b16 %v3780
    %v6298 = vunpack.c.l.b16 %v3781
    %v6299 = vunpack.c.h.b16 %v3781
    %v6300 = vunpack.c.l.b16 %v3782
    %v6301 = vunpack.c.h.b16 %v3782
    %v6302 = vunpack.c.l.b16 %v3783
    %v6303 = vunpack.c.h.b16 %v3783
    %v6304 = vunpack.c.l.b16 %v3784
    %v6305 = vunpack.c.h.b16 %v3784
    %v6306 = vunpack.c.l.b16 %v3785
    %v6307 = vunpack.c.h.b16 %v3785
    %v6308 = vunpack.c.l.b16 %v3786
    %v6309 = vunpack.c.h.b16 %v3786
    %v6310 = vunpack.c.l.b16 %v3787
    %v6311 = vunpack.c.h.b16 %v3787
    %v6312 = vunpack.c.l.b16 %v3788
    %v6313 = vunpack.c.h.b16 %v3788
    %v6314 = vunpack.c.l.b16 %v3789
    %v6315 = vunpack.c.h.b16 %v3789
    %v6316 = vunpack.c.l.b16 %v3790
    %v6317 = vunpack.c.h.b16 %v3790
    %v6318 = vunpack.c.l.b16 %v3791
    %v6319 = vunpack.c.h.b16 %v3791
    %v6320 = vunpack.c.l.b16 %v3792
    %v6321 = vunpack.c.h.b16 %v3792
    %v6322 = vunpack.c.l.b16 %v3793
    %v6323 = vunpack.c.h.b16 %v3793
    %v6324 = vunpack.c.l.b16 %v3794
    %v6325 = vunpack.c.h.b16 %v3794
    %v6326 = vunpack.c.l.b16 %v3795
    %v6327 = vunpack.c.h.b16 %v3795
    %v6328 = vunpack.c.l.b16 %v3796
    %v6329 = vunpack.c.h.b16 %v3796
    %v6330 = vunpack.c.l.b16 %v3797
    %v6331 = vunpack.c.h.b16 %v3797
    %v6332 = vunpack.c.l.b16 %v3798
    %v6333 = vunpack.c.h.b16 %v3798
    %v6334 = vunpack.c.l.b16 %v3799
    %v6335 = vunpack.c.h.b16 %v3799
    %v6336 = vunpack.c.l.b16 %v3800
    %v6337 = vunpack.c.h.b16 %v3800
    %v6338 = vunpack.c.l.b16 %v3801
    %v6339 = vunpack.c.h.b16 %v3801
    %v6340 = vunpack.c.l.b16 %v3802
    %v6341 = vunpack.c.h.b16 %v3802
    %v6342 = vunpack.c.l.b16 %v3803
    %v6343 = vunpack.c.h.b16 %v3803
    %v6344 = vunpack.c.l.b16 %v3804
    %v6345 = vunpack.c.h.b16 %v3804
    %v6346 = vunpack.c.l.b16 %v3805
    %v6347 = vunpack.c.h.b16 %v3805
    %v6348 = vunpack.c.l.b16 %v3806
    %v6349 = vunpack.c.h.b16 %v3806
    %v6350 = vunpack.c.l.b16 %v3807
    %v6351 = vunpack.c.h.b16 %v3807
    %v6352 = vunpack.c.l.b16 %v3808
    %v6353 = vunpack.c.h.b16 %v3808
    %v6354 = vunpack.c.l.b16 %v3809
    %v6355 = vunpack.c.h.b16 %v3809
    %v6356 = vunpack.c.l.b16 %v3810
    %v6357 = vunpack.c.h.b16 %v3810
    %v6358 = vunpack.c.l.b16 %v3811
    %v6359 = vunpack.c.h.b16 %v3811
    %v6360 = vunpack.c.l.b16 %v3812
    %v6361 = vunpack.c.h.b16 %v3812
    %v6362 = vunpack.c.l.b16 %v3813
    %v6363 = vunpack.c.h.b16 %v3813
    %v6364 = vunpack.c.l.b16 %v3814
    %v6365 = vunpack.c.h.b16 %v3814
    %v6366 = vunpack.c.l.b16 %v3815
    %v6367 = vunpack.c.h.b16 %v3815
    %v6368 = vunpack.c.l.b16 %v3816
    %v6369 = vunpack.c.h.b16 %v3816
    %v6370 = vunpack.c.l.b16 %v3817
    %v6371 = vunpack.c.h.b16 %v3817
    %v6372 = vunpack.c.l.b16 %v3818
    %v6373 = vunpack.c.h.b16 %v3818
    %v6374 = vunpack.c.l.b16 %v3819
    %v6375 = vunpack.c.h.b16 %v3819
    %v6376 = vunpack.c.l.b16 %v3820
    %v6377 = vunpack.c.h.b16 %v3820
    %v6378 = vunpack.c.l.b16 %v3821
    %v6379 = vunpack.c.h.b16 %v3821
    %v6380 = vunpack.c.l.b16 %v3822
    %v6381 = vunpack.c.h.b16 %v3822
    %v6382 = vunpack.c.l.b16 %v3823
    %v6383 = vunpack.c.h.b16 %v3823
    %v6384 = vunpack.c.l.b16 %v3824
    %v6385 = vunpack.c.h.b16 %v3824
    %v6386 = vunpack.c.l.b16 %v3825
    %v6387 = vunpack.c.h.b16 %v3825
    %v6388 = vunpack.c.l.b16 %v3826
    %v6389 = vunpack.c.h.b16 %v3826
    %v6390 = vunpack.c.l.b16 %v3827
    %v6391 = vunpack.c.h.b16 %v3827
    %v6392 = vunpack.c.l.b16 %v3828
    %v6393 = vunpack.c.h.b16 %v3828
    %v6394 = vunpack.c.l.b16 %v3829
    %v6395 = vunpack.c.h.b16 %v3829
    %v6396 = vunpack.c.l.b16 %v3830
    %v6397 = vunpack.c.h.b16 %v3830
    %v6398 = vunpack.c.l.b16 %v3831
    %v6399 = vunpack.c.h.b16 %v3831
    %v6400 = vunpack.c.l.b16 %v3832
    %v6401 = vunpack.c.h.b16 %v3832
    %v6402 = vunpack.c.l.b16 %v3833
    %v6403 = vunpack.c.h.b16 %v3833
    %v6404 = vunpack.c.l.b16 %v3834
    %v6405 = vunpack.c.h.b16 %v3834
    %v6406 = vunpack.c.l.b16 %v3835
    %v6407 = vunpack.c.h.b16 %v3835
    %v6408 = vunpack.c.l.b16 %v3836
    %v6409 = vunpack.c.h.b16 %v3836
    %v6410 = vunpack.c.l.b16 %v3837
    %v6411 = vunpack.c.h.b16 %v3837
    %v6412 = vunpack.c.l.b16 %v3838
    %v6413 = vunpack.c.h.b16 %v3838
    %v6414 = vunpack.c.l.b16 %v3839
    %v6415 = vunpack.c.h.b16 %v3839
    %v6416 = vunpack.c.l.b16 %v3840
    %v6417 = vunpack.c.h.b16 %v3840
    %v6418 = vunpack.c.l.b16 %v3841
    %v6419 = vunpack.c.h.b16 %v3841
    %v6420 = vunpack.c.l.b16 %v3842
    %v6421 = vunpack.c.h.b16 %v3842
    %v6422 = vunpack.c.l.b16 %v3843
    %v6423 = vunpack.c.h.b16 %v3843
    %v6424 = vunpack.c.l.b16 %v3844
    %v6425 = vunpack.c.h.b16 %v3844
    %v6426 = vunpack.c.l.b16 %v3845
    %v6427 = vunpack.c.h.b16 %v3845
    %v6428 = vunpack.c.l.b16 %v3846
    %v6429 = vunpack.c.h.b16 %v3846
    %v6430 = vunpack.c.l.b16 %v3847
    %v6431 = vunpack.c.h.b16 %v3847
    %v6432 = vunpack.c.l.b16 %v3848
    %v6433 = vunpack.c.h.b16 %v3848
    %v6434 = vunpack.c.l.b16 %v3849
    %v6435 = vunpack.c.h.b16 %v3849
    %v6436 = vunpack.c.l.b16 %v3850
    %v6437 = vunpack.c.h.b16 %v3850
    %v6438 = vunpack.c.l.b16 %v3851
    %v6439 = vunpack.c.h.b16 %v3851
    %v6440 = vunpack.c.l.b16 %v3852
    %v6441 = vunpack.c.h.b16 %v3852
    %v6442 = vunpack.c.l.b16 %v3853
    %v6443 = vunpack.c.h.b16 %v3853
    %v6444 = vunpack.c.l.b16 %v3854
    %v6445 = vunpack.c.h.b16 %v3854
    %v6446 = vunpack.c.l.b16 %v3855
    %v6447 = vunpack.c.h.b16 %v3855
    %v6448 = vunpack.c.l.b16 %v3856
    %v6449 = vunpack.c.h.b16 %v3856
    %v6450 = vunpack.c.l.b16 %v3857
    %v6451 = vunpack.c.h.b16 %v3857
    %v6452 = vunpack.c.l.b16 %v3858
    %v6453 = vunpack.c.h.b16 %v3858
    %v6454 = vunpack.c.l.b16 %v3859
    %v6455 = vunpack.c.h.b16 %v3859
    %v6456 = vunpack.c.l.b16 %v3860
    %v6457 = vunpack.c.h.b16 %v3860
    %v6458 = vunpack.c.l.b16 %v3861
    %v6459 = vunpack.c.h.b16 %v3861
    %v6460 = vunpack.c.l.b16 %v3862
    %v6461 = vunpack.c.h.b16 %v3862
    %v6462 = vunpack.c.l.b16 %v3863
    %v6463 = vunpack.c.h.b16 %v3863
    %v6464 = vunpack.c.l.b16 %v3864
    %v6465 = vunpack.c.h.b16 %v3864
    %v6466 = vunpack.c.l.b16 %v3865
    %v6467 = vunpack.c.h.b16 %v3865
    %v6468 = vunpack.c.l.b16 %v3866
    %v6469 = vunpack.c.h.b16 %v3866
    %v6470 = vunpack.c.l.b16 %v3867
    %v6471 = vunpack.c.h.b16 %v3867
    %v6472 = vunpack.c.l.b16 %v3868
    %v6473 = vunpack.c.h.b16 %v3868
    %v6474 = vunpack.c.l.b16 %v3869
    %v6475 = vunpack.c.h.b16 %v3869
    %v6476 = vunpack.c.l.b16 %v3870
    %v6477 = vunpack.c.h.b16 %v3870
    %v6478 = vunpack.c.l.b16 %v3871
    %v6479 = vunpack.c.h.b16 %v3871
    %v6480 = vunpack.c.l.b16 %v3872
    %v6481 = vunpack.c.h.b16 %v3872
    %v6482 = vunpack.c.l.b16 %v3873
    %v6483 = vunpack.c.h.b16 %v3873
    %v6484 = vunpack.c.l.b16 %v3874
    %v6485 = vunpack.c.h.b16 %v3874
    %v6486 = vunpack.c.l.b16 %v3875
    %v6487 = vunpack.c.h.b16 %v3875
    %v6488 = vunpack.c.l.b16 %v3876
    %v6489 = vunpack.c.h.b16 %v3876
    %v6490 = vunpack.c.l.b16 %v3877
    %v6491 = vunpack.c.h.b16 %v3877
    %v6492 = vunpack.c.l.b16 %v3878
    %v6493 = vunpack.c.h.b16 %v3878
    %v6494 = vunpack.c.l.b16 %v3879
    %v6495 = vunpack.c.h.b16 %v3879
    %v6496 = vunpack.c.l.b16 %v3880
    %v6497 = vunpack.c.h.b16 %v3880
    %v6498 = vunpack.c.l.b16 %v3881
    %v6499 = vunpack.c.h.b16 %v3881
    %v6500 = vunpack.c.l.b16 %v3882
    %v6501 = vunpack.c.h.b16 %v3882
    %v6502 = vunpack.c.l.b16 %v3883
    %v6503 = vunpack.c.h.b16 %v3883
    %v6504 = vunpack.c.l.b16 %v3884
    %v6505 = vunpack.c.h.b16 %v3884
    %v6506 = vunpack.c.l.b16 %v3885
    %v6507 = vunpack.c.h.b16 %v3885
    %v6508 = vunpack.c.l.b16 %v3886
    %v6509 = vunpack.c.h.b16 %v3886
    %v6510 = vunpack.c.l.b16 %v3887
    %v6511 = vunpack.c.h.b16 %v3887
    %v6512 = vunpack.c.l.b16 %v3888
    %v6513 = vunpack.c.h.b16 %v3888
    %v6514 = vunpack.c.l.b16 %v3889
    %v6515 = vunpack.c.h.b16 %v3889
    %v6516 = vunpack.c.l.b16 %v3890
    %v6517 = vunpack.c.h.b16 %v3890
    %v6518 = vunpack.c.l.b16 %v3891
    %v6519 = vunpack.c.h.b16 %v3891
    %v6520 = vunpack.c.l.b16 %v3892
    %v6521 = vunpack.c.h.b16 %v3892
    %v6522 = vunpack.c.l.b16 %v3893
    %v6523 = vunpack.c.h.b16 %v3893
    %v6524 = vunpack.c.l.b16 %v3894
    %v6525 = vunpack.c.h.b16 %v3894
    %v6526 = vunpack.c.l.b16 %v3895
    %v6527 = vunpack.c.h.b16 %v3895
    %v6528 = vunpack.c.l.b16 %v3896
    %v6529 = vunpack.c.h.b16 %v3896
    %v6530 = vunpack.c.l.b16 %v3897
    %v6531 = vunpack.c.h.b16 %v3897
    %v6532 = vunpack.c.l.b16 %v3898
    %v6533 = vunpack.c.h.b16 %v3898
    %v6534 = vunpack.c.l.b16 %v3899
    %v6535 = vunpack.c.h.b16 %v3899
    %v6536 = vunpack.c.l.b16 %v3900
    %v6537 = vunpack.c.h.b16 %v3900
    %v6538 = vunpack.c.l.b16 %v3901
    %v6539 = vunpack.c.h.b16 %v3901
    %v6540 = vunpack.c.l.b16 %v3902
    %v6541 = vunpack.c.h.b16 %v3902
    %v6542 = vunpack.c.l.b16 %v3903
    %v6543 = vunpack.c.h.b16 %v3903
    %v6544 = vunpack.c.l.b16 %v3904
    %v6545 = vunpack.c.h.b16 %v3904
    %v6546 = vunpack.c.l.b16 %v3905
    %v6547 = vunpack.c.h.b16 %v3905
    %v6548 = vunpack.c.l.b16 %v3906
    %v6549 = vunpack.c.h.b16 %v3906
    %v6550 = vunpack.c.l.b16 %v3907
    %v6551 = vunpack.c.h.b16 %v3907
    %v6552 = vunpack.c.l.b16 %v3908
    %v6553 = vunpack.c.h.b16 %v3908
    %v6554 = vunpack.c.l.b16 %v3909
    %v6555 = vunpack.c.h.b16 %v3909
    %v6556 = vunpack.c.l.b16 %v3910
    %v6557 = vunpack.c.h.b16 %v3910
    %v6558 = vunpack.c.l.b16 %v3911
    %v6559 = vunpack.c.h.b16 %v3911
    %v6560 = vunpack.c.l.b16 %v3912
    %v6561 = vunpack.c.h.b16 %v3912
    %v6562 = vunpack.c.l.b16 %v3913
    %v6563 = vunpack.c.h.b16 %v3913
    %v6564 = vunpack.c.l.b16 %v3914
    %v6565 = vunpack.c.h.b16 %v3914
    %v6566 = vunpack.c.l.b16 %v3915
    %v6567 = vunpack.c.h.b16 %v3915
    %v6568 = vunpack.c.l.b16 %v3916
    %v6569 = vunpack.c.h.b16 %v3916
    %v6570 = vunpack.c.l.b16 %v3917
    %v6571 = vunpack.c.h.b16 %v3917
    %v6572 = vunpack.c.l.b16 %v3918
    %v6573 = vunpack.c.h.b16 %v3918
    %v6574 = vunpack.c.l.b16 %v3919
    %v6575 = vunpack.c.h.b16 %v3919
    %v6576 = vunpack.c.l.b16 %v3920
    %v6577 = vunpack.c.h.b16 %v3920
    %v6578 = vunpack.c.l.b16 %v3921
    %v6579 = vunpack.c.h.b16 %v3921
    %v6580 = vunpack.c.l.b16 %v3922
    %v6581 = vunpack.c.h.b16 %v3922
    %v6582 = vunpack.c.l.b16 %v3923
    %v6583 = vunpack.c.h.b16 %v3923
    %v6584 = vunpack.c.l.b16 %v3924
    %v6585 = vunpack.c.h.b16 %v3924
    %v6586 = vunpack.c.l.b16 %v3925
    %v6587 = vunpack.c.h.b16 %v3925
    %v6588 = vunpack.c.l.b16 %v3926
    %v6589 = vunpack.c.h.b16 %v3926
    %v6590 = vunpack.c.l.b16 %v3927
    %v6591 = vunpack.c.h.b16 %v3927
    %v6592 = vunpack.c.l.b16 %v3928
    %v6593 = vunpack.c.h.b16 %v3928
    %v6594 = vunpack.c.l.b16 %v3929
    %v6595 = vunpack.c.h.b16 %v3929
    %v6596 = vunpack.c.l.b16 %v3930
    %v6597 = vunpack.c.h.b16 %v3930
    %v6598 = vunpack.c.l.b16 %v3931
    %v6599 = vunpack.c.h.b16 %v3931
    %v6600 = vunpack.c.l.b16 %v3932
    %v6601 = vunpack.c.h.b16 %v3932
    %v6602 = vunpack.c.l.b16 %v3933
    %v6603 = vunpack.c.h.b16 %v3933
    %v6604 = vunpack.c.l.b16 %v3934
    %v6605 = vunpack.c.h.b16 %v3934
    %v6606 = vunpack.c.l.b16 %v3935
    %v6607 = vunpack.c.h.b16 %v3935
    %v6608 = vunpack.c.l.b16 %v3936
    %v6609 = vunpack.c.h.b16 %v3936
    %v6610 = vunpack.c.l.b16 %v3937
    %v6611 = vunpack.c.h.b16 %v3937
    %v6612 = vunpack.c.l.b16 %v3938
    %v6613 = vunpack.c.h.b16 %v3938
    %v6614 = vunpack.c.l.b16 %v3939
    %v6615 = vunpack.c.h.b16 %v3939
    %v6616 = vunpack.c.l.b16 %v3940
    %v6617 = vunpack.c.h.b16 %v3940
    %v6618 = vunpack.c.l.b16 %v3941
    %v6619 = vunpack.c.h.b16 %v3941
    %v6620 = vunpack.c.l.b16 %v3942
    %v6621 = vunpack.c.h.b16 %v3942
    %v6622 = vunpack.c.l.b16 %v3943
    %v6623 = vunpack.c.h.b16 %v3943
    %v6624 = vunpack.c.l.b16 %v3944
    %v6625 = vunpack.c.h.b16 %v3944
    %v6626 = vunpack.c.l.b16 %v3945
    %v6627 = vunpack.c.h.b16 %v3945
    %v6628 = vunpack.c.l.b16 %v3946
    %v6629 = vunpack.c.h.b16 %v3946
    %v6630 = vunpack.c.l.b16 %v3947
    %v6631 = vunpack.c.h.b16 %v3947
    %v6632 = vunpack.c.l.b16 %v3948
    %v6633 = vunpack.c.h.b16 %v3948
    %v6634 = vunpack.c.l.b16 %v3949
    %v6635 = vunpack.c.h.b16 %v3949
    %v6636 = vunpack.c.l.b16 %v3950
    %v6637 = vunpack.c.h.b16 %v3950
    %v6638 = vunpack.c.l.b16 %v3951
    %v6639 = vunpack.c.h.b16 %v3951
    %v6640 = vunpack.c.l.b16 %v3952
    %v6641 = vunpack.c.h.b16 %v3952
    %v6642 = vunpack.c.l.b16 %v3953
    %v6643 = vunpack.c.h.b16 %v3953
    %v6644 = vunpack.c.l.b16 %v3954
    %v6645 = vunpack.c.h.b16 %v3954
    %v6646 = vunpack.c.l.b16 %v3955
    %v6647 = vunpack.c.h.b16 %v3955
    %v6648 = vunpack.c.l.b16 %v3956
    %v6649 = vunpack.c.h.b16 %v3956
    %v6650 = vunpack.c.l.b16 %v3957
    %v6651 = vunpack.c.h.b16 %v3957
    %v6652 = vunpack.c.l.b16 %v3958
    %v6653 = vunpack.c.h.b16 %v3958
    %v6654 = vunpack.c.l.b16 %v3959
    %v6655 = vunpack.c.h.b16 %v3959
    %v6656 = vunpack.c.l.b16 %v3960
    %v6657 = vunpack.c.h.b16 %v3960
    %v6658 = vunpack.c.l.b16 %v3961
    %v6659 = vunpack.c.h.b16 %v3961
    %v6660 = vunpack.c.l.b16 %v3962
    %v6661 = vunpack.c.h.b16 %v3962
    %v6662 = vunpack.c.l.b16 %v3963
    %v6663 = vunpack.c.h.b16 %v3963
    %v6664 = vunpack.c.l.b16 %v3964
    %v6665 = vunpack.c.h.b16 %v3964
    %v6666 = vunpack.c.l.b16 %v3965
    %v6667 = vunpack.c.h.b16 %v3965
    %v6668 = vunpack.c.l.b16 %v3966
    %v6669 = vunpack.c.h.b16 %v3966
    %v6670 = vunpack.c.l.b16 %v3967
    %v6671 = vunpack.c.h.b16 %v3967
    %v6672 = vunpack.c.l.b16 %v3968
    %v6673 = vunpack.c.h.b16 %v3968
    %v6674 = vpack.c.b16 %v6170, %v6162
    %v6675 = vpack.c.b16 %v6171, %v6163
    %v6676 = vpack.c.b16 %v6172, %v6164
    %v6677 = vpack.c.b16 %v6173, %v6165
    %v6678 = vpack.c.b16 %v6174, %v6166
    %v6679 = vpack.c.b16 %v6175, %v6167
    %v6680 = vpack.c.b16 %v6176, %v6168
    %v6681 = vpack.c.b16 %v6177, %v6169
    %v6682 = vpack.c.b16 %v6186, %v6178
    %v6683 = vpack.c.b16 %v6187, %v6179
    %v6684 = vpack.c.b16 %v6188, %v6180
    %v6685 = vpack.c.b16 %v6189, %v6181
    %v6686 = vpack.c.b16 %v6190, %v6182
    %v6687 = vpack.c.b16 %v6191, %v6183
    %v6688 = vpack.c.b16 %v6192, %v6184
    %v6689 = vpack.c.b16 %v6193, %v6185
    %v6690 = vpack.c.b16 %v6202, %v6194
    %v6691 = vpack.c.b16 %v6203, %v6195
    %v6692 = vpack.c.b16 %v6204, %v6196
    %v6693 = vpack.c.b16 %v6205, %v6197
    %v6694 = vpack.c.b16 %v6206, %v6198
    %v6695 = vpack.c.b16 %v6207, %v6199
    %v6696 = vpack.c.b16 %v6208, %v6200
    %v6697 = vpack.c.b16 %v6209, %v6201
    %v6698 = vpack.c.b16 %v6218, %v6210
    %v6699 = vpack.c.b16 %v6219, %v6211
    %v6700 = vpack.c.b16 %v6220, %v6212
    %v6701 = vpack.c.b16 %v6221, %v6213
    %v6702 = vpack.c.b16 %v6222, %v6214
    %v6703 = vpack.c.b16 %v6223, %v6215
    %v6704 = vpack.c.b16 %v6224, %v6216
    %v6705 = vpack.c.b16 %v6225, %v6217
    %v6706 = vpack.c.b16 %v6234, %v6226
    %v6707 = vpack.c.b16 %v6235, %v6227
    %v6708 = vpack.c.b16 %v6236, %v6228
    %v6709 = vpack.c.b16 %v6237, %v6229
    %v6710 = vpack.c.b16 %v6238, %v6230
    %v6711 = vpack.c.b16 %v6239, %v6231
    %v6712 = vpack.c.b16 %v6240, %v6232
    %v6713 = vpack.c.b16 %v6241, %v6233
    %v6714 = vpack.c.b16 %v6250, %v6242
    %v6715 = vpack.c.b16 %v6251, %v6243
    %v6716 = vpack.c.b16 %v6252, %v6244
    %v6717 = vpack.c.b16 %v6253, %v6245
    %v6718 = vpack.c.b16 %v6254, %v6246
    %v6719 = vpack.c.b16 %v6255, %v6247
    %v6720 = vpack.c.b16 %v6256, %v6248
    %v6721 = vpack.c.b16 %v6257, %v6249
    %v6722 = vpack.c.b16 %v6266, %v6258
    %v6723 = vpack.c.b16 %v6267, %v6259
    %v6724 = vpack.c.b16 %v6268, %v6260
    %v6725 = vpack.c.b16 %v6269, %v6261
    %v6726 = vpack.c.b16 %v6270, %v6262
    %v6727 = vpack.c.b16 %v6271, %v6263
    %v6728 = vpack.c.b16 %v6272, %v6264
    %v6729 = vpack.c.b16 %v6273, %v6265
    %v6730 = vpack.c.b16 %v6282, %v6274
    %v6731 = vpack.c.b16 %v6283, %v6275
    %v6732 = vpack.c.b16 %v6284, %v6276
    %v6733 = vpack.c.b16 %v6285, %v6277
    %v6734 = vpack.c.b16 %v6286, %v6278
    %v6735 = vpack.c.b16 %v6287, %v6279
    %v6736 = vpack.c.b16 %v6288, %v6280
    %v6737 = vpack.c.b16 %v6289, %v6281
    %v6738 = vpack.c.b16 %v6298, %v6290
    %v6739 = vpack.c.b16 %v6299, %v6291
    %v6740 = vpack.c.b16 %v6300, %v6292
    %v6741 = vpack.c.b16 %v6301, %v6293
    %v6742 = vpack.c.b16 %v6302, %v6294
    %v6743 = vpack.c.b16 %v6303, %v6295
    %v6744 = vpack.c.b16 %v6304, %v6296
    %v6745 = vpack.c.b16 %v6305, %v6297
    %v6746 = vpack.c.b16 %v6314, %v6306
    %v6747 = vpack.c.b16 %v6315, %v6307
    %v6748 = vpack.c.b16 %v6316, %v6308
    %v6749 = vpack.c.b16 %v6317, %v6309
    %v6750 = vpack.c.b16 %v6318, %v6310
    %v6751 = vpack.c.b16 %v6319, %v6311
    %v6752 = vpack.c.b16 %v6320, %v6312
    %v6753 = vpack.c.b16 %v6321, %v6313
    %v6754 = vpack.c.b16 %v6330, %v6322
    %v6755 = vpack.c.b16 %v6331, %v6323
    %v6756 = vpack.c.b16 %v6332, %v6324
    %v6757 = vpack.c.b16 %v6333, %v6325
    %v6758 = vpack.c.b16 %v6334, %v6326
    %v6759 = vpack.c.b16 %v6335, %v6327
    %v6760 = vpack.c.b16 %v6336, %v6328
    %v6761 = vpack.c.b16 %v6337, %v6329
    %v6762 = vpack.c.b16 %v6346, %v6338
    %v6763 = vpack.c.b16 %v6347, %v6339
    %v6764 = vpack.c.b16 %v6348, %v6340
    %v6765 = vpack.c.b16 %v6349, %v6341
    %v6766 = vpack.c.b16 %v6350, %v6342
    %v6767 = vpack.c.b16 %v6351, %v6343
    %v6768 = vpack.c.b16 %v6352, %v6344
    %v6769 = vpack.c.b16 %v6353, %v6345
    %v6770 = vpack.c.b16 %v6362, %v6354
    %v6771 = vpack.c.b16 %v6363, %v6355
    %v6772 = vpack.c.b16 %v6364, %v6356
    %v6773 = vpack.c.b16 %v6365, %v6357
    %v6774 = vpack.c.b16 %v6366, %v6358
    %v6775 = vpack.c.b16 %v6367, %v6359
    %v6776 = vpack.c.b16 %v6368, %v6360
    %v6777 = vpack.c.b16 %v6369, %v6361
    %v6778 = vpack.c.b16 %v6378, %v6370
    %v6779 = vpack.c.b16 %v6379, %v6371
    %v6780 = vpack.c.b16 %v6380, %v6372
    %v6781 = vpack.c.b16 %v6381, %v6373
    %v6782 = vpack.c.b16 %v6382, %v6374
    %v6783 = vpack.c.b16 %v6383, %v6375
    %v6784 = vpack.c.b16 %v6384, %v6376
    %v6785 = vpack.c.b16 %v6385, %v6377
    %v6786 = vpack.c.b16 %v6394, %v6386
    %v6787 = vpack.c.b16 %v6395, %v6387
    %v6788 = vpack.c.b16 %v6396, %v6388
    %v6789 = vpack.c.b16 %v6397, %v6389
    %v6790 = vpack.c.b16 %v6398, %v6390
    %v6791 = vpack.c.b16 %v6399, %v6391
    %v6792 = vpack.c.b16 %v6400, %v6392
    %v6793 = vpack.c.b16 %v6401, %v6393
    %v6794 = vpack.c.b16 %v6410, %v6402
    %v6795 = vpack.c.b16 %v6411, %v6403
    %v6796 = vpack.c.b16 %v6412, %v6404
    %v6797 = vpack.c.b16 %v6413, %v6405
    %v6798 = vpack.c.b16 %v6414, %v6406
    %v6799 = vpack.c.b16 %v6415, %v6407
    %v6800 = vpack.c.b16 %v6416, %v6408
    %v6801 = vpack.c.b16 %v6417, %v6409
    %v6802 = vpack.c.b16 %v6426, %v6418
    %v6803 = vpack.c.b16 %v6427, %v6419
    %v6804 = vpack.c.b16 %v6428, %v6420
    %v6805 = vpack.c.b16 %v6429, %v6421
    %v6806 = vpack.c.b16 %v6430, %v6422
    %v6807 = vpack.c.b16 %v6431, %v6423
    %v6808 = vpack.c.b16 %v6432, %v6424
    %v6809 = vpack.c.b16 %v6433, %v6425
    %v6810 = vpack.c.b16 %v6442, %v6434
    %v6811 = vpack.c.b16 %v6443, %v6435
    %v6812 = vpack.c.b16 %v6444, %v6436
    %v6813 = vpack.c.b16 %v6445, %v6437
    %v6814 = vpack.c.b16 %v6446, %v6438
    %v6815 = vpack.c.b16 %v6447, %v6439
    %v6816 = vpack.c.b16 %v6448, %v6440
    %v6817 = vpack.c.b16 %v6449, %v6441
    %v6818 = vpack.c.b16 %v6458, %v6450
    %v6819 = vpack.c.b16 %v6459, %v6451
    %v6820 = vpack.c.b16 %v6460, %v6452
    %v6821 = vpack.c.b16 %v6461, %v6453
    %v6822 = vpack.c.b16 %v6462, %v6454
    %v6823 = vpack.c.b16 %v6463, %v6455
    %v6824 = vpack.c.b16 %v6464, %v6456
    %v6825 = vpack.c.b16 %v6465, %v6457
    %v6826 = vpack.c.b16 %v6474, %v6466
    %v6827 = vpack.c.b16 %v6475, %v6467
    %v6828 = vpack.c.b16 %v6476, %v6468
    %v6829 = vpack.c.b16 %v6477, %v6469
    %v6830 = vpack.c.b16 %v6478, %v6470
    %v6831 = vpack.c.b16 %v6479, %v6471
    %v6832 = vpack.c.b16 %v6480, %v6472
    %v6833 = vpack.c.b16 %v6481, %v6473
    %v6834 = vpack.c.b16 %v6490, %v6482
    %v6835 = vpack.c.b16 %v6491, %v6483
    %v6836 = vpack.c.b16 %v6492, %v6484
    %v6837 = vpack.c.b16 %v6493, %v6485
    %v6838 = vpack.c.b16 %v6494, %v6486
    %v6839 = vpack.c.b16 %v6495, %v6487
    %v6840 = vpack.c.b16 %v6496, %v6488
    %v6841 = vpack.c.b16 %v6497, %v6489
    %v6842 = vpack.c.b16 %v6506, %v6498
    %v6843 = vpack.c.b16 %v6507, %v6499
    %v6844 = vpack.c.b16 %v6508, %v6500
    %v6845 = vpack.c.b16 %v6509, %v6501
    %v6846 = vpack.c.b16 %v6510, %v6502
    %v6847 = vpack.c.b16 %v6511, %v6503
    %v6848 = vpack.c.b16 %v6512, %v6504
    %v6849 = vpack.c.b16 %v6513, %v6505
    %v6850 = vpack.c.b16 %v6522, %v6514
    %v6851 = vpack.c.b16 %v6523, %v6515
    %v6852 = vpack.c.b16 %v6524, %v6516
    %v6853 = vpack.c.b16 %v6525, %v6517
    %v6854 = vpack.c.b16 %v6526, %v6518
    %v6855 = vpack.c.b16 %v6527, %v6519
    %v6856 = vpack.c.b16 %v6528, %v6520
    %v6857 = vpack.c.b16 %v6529, %v6521
    %v6858 = vpack.c.b16 %v6538, %v6530
    %v6859 = vpack.c.b16 %v6539, %v6531
    %v6860 = vpack.c.b16 %v6540, %v6532
    %v6861 = vpack.c.b16 %v6541, %v6533
    %v6862 = vpack.c.b16 %v6542, %v6534
    %v6863 = vpack.c.b16 %v6543, %v6535
    %v6864 = vpack.c.b16 %v6544, %v6536
    %v6865 = vpack.c.b16 %v6545, %v6537
    %v6866 = vpack.c.b16 %v6554, %v6546
    %v6867 = vpack.c.b16 %v6555, %v6547
    %v6868 = vpack.c.b16 %v6556, %v6548
    %v6869 = vpack.c.b16 %v6557, %v6549
    %v6870 = vpack.c.b16 %v6558, %v6550
    %v6871 = vpack.c.b16 %v6559, %v6551
    %v6872 = vpack.c.b16 %v6560, %v6552
    %v6873 = vpack.c.b16 %v6561, %v6553
    %v6874 = vpack.c.b16 %v6570, %v6562
    %v6875 = vpack.c.b16 %v6571, %v6563
    %v6876 = vpack.c.b16 %v6572, %v6564
    %v6877 = vpack.c.b16 %v6573, %v6565
    %v6878 = vpack.c.b16 %v6574, %v6566
    %v6879 = vpack.c.b16 %v6575, %v6567
    %v6880 = vpack.c.b16 %v6576, %v6568
    %v6881 = vpack.c.b16 %v6577, %v6569
    %v6882 = vpack.c.b16 %v6586, %v6578
    %v6883 = vpack.c.b16 %v6587, %v6579
    %v6884 = vpack.c.b16 %v6588, %v6580
    %v6885 = vpack.c.b16 %v6589, %v6581
    %v6886 = vpack.c.b16 %v6590, %v6582
    %v6887 = vpack.c.b16 %v6591, %v6583
    %v6888 = vpack.c.b16 %v6592, %v6584
    %v6889 = vpack.c.b16 %v6593, %v6585
    %v6890 = vpack.c.b16 %v6602, %v6594
    %v6891 = vpack.c.b16 %v6603, %v6595
    %v6892 = vpack.c.b16 %v6604, %v6596
    %v6893 = vpack.c.b16 %v6605, %v6597
    %v6894 = vpack.c.b16 %v6606, %v6598
    %v6895 = vpack.c.b16 %v6607, %v6599
    %v6896 = vpack.c.b16 %v6608, %v6600
    %v6897 = vpack.c.b16 %v6609, %v6601
    %v6898 = vpack.c.b16 %v6618, %v6610
    %v6899 = vpack.c.b16 %v6619, %v6611
    %v6900 = vpack.c.b16 %v6620, %v6612
    %v6901 = vpack.c.b16 %v6621, %v6613
    %v6902 = vpack.c.b16 %v6622, %v6614
    %v6903 = vpack.c.b16 %v6623, %v6615
    %v6904 = vpack.c.b16 %v6624, %v6616
    %v6905 = vpack.c.b16 %v6625, %v6617
    %v6906 = vpack.c.b16 %v6634, %v6626
    %v6907 = vpack.c.b16 %v6635, %v6627
    %v6908 = vpack.c.b16 %v6636, %v6628
    %v6909 = vpack.c.b16 %v6637, %v6629
    %v6910 = vpack.c.b16 %v6638, %v6630
    %v6911 = vpack.c.b16 %v6639, %v6631
    %v6912 = vpack.c.b16 %v6640, %v6632
    %v6913 = vpack.c.b16 %v6641, %v6633
    %v6914 = vpack.c.b16 %v6650, %v6642
    %v6915 = vpack.c.b16 %v6651, %v6643
    %v6916 = vpack.c.b16 %v6652, %v6644
    %v6917 = vpack.c.b16 %v6653, %v6645
    %v6918 = vpack.c.b16 %v6654, %v6646
    %v6919 = vpack.c.b16 %v6655, %v6647
    %v6920 = vpack.c.b16 %v6656, %v6648
    %v6921 = vpack.c.b16 %v6657, %v6649
    %v6922 = vpack.c.b16 %v6666, %v6658
    %v6923 = vpack.c.b16 %v6667, %v6659
    %v6924 = vpack.c.b16 %v6668, %v6660
    %v6925 = vpack.c.b16 %v6669, %v6661
    %v6926 = vpack.c.b16 %v6670, %v6662
    %v6927 = vpack.c.b16 %v6671, %v6663
    %v6928 = vpack.c.b16 %v6672, %v6664
    %v6929 = vpack.c.b16 %v6673, %v6665
    %7186 = vmatprep.subr.bf16.mxu0 %v6675
    %7187 = vmatpush1.bf16.msra.mxu0 %v6674
    %7188 = vmatprep.subr.bf16.mxu0 %v6683
    %7189 = vmatpush1.bf16.msra.mxu0 %v6682
    %7190 = vmatprep.subr.bf16.mxu0 %v6691
    %7191 = vmatpush1.bf16.msra.mxu0 %v6690
    %7192 = vmatprep.subr.bf16.mxu0 %v6699
    %7193 = vmatpush1.bf16.msra.mxu0 %v6698
    %7194 = vmatprep.subr.bf16.mxu0 %v6707
    %7195 = vmatpush1.bf16.msra.mxu0 %v6706
    %7196 = vmatprep.subr.bf16.mxu0 %v6715
    %7197 = vmatpush1.bf16.msra.mxu0 %v6714
    %7198 = vmatprep.subr.bf16.mxu0 %v6723
    %7199 = vmatpush1.bf16.msra.mxu0 %v6722
    %7200 = vmatprep.subr.bf16.mxu0 %v6731
    %7201 = vmatpush1.bf16.msra.mxu0 %v6730
    %7202 = vmatprep.subr.bf16.mxu0 %v6739
    %7203 = vmatpush1.bf16.msra.mxu0 %v6738
    %7204 = vmatprep.subr.bf16.mxu0 %v6747
    %7205 = vmatpush1.bf16.msra.mxu0 %v6746
    %7206 = vmatprep.subr.bf16.mxu0 %v6755
    %7207 = vmatpush1.bf16.msra.mxu0 %v6754
    %7208 = vmatprep.subr.bf16.mxu0 %v6763
    %7209 = vmatpush1.bf16.msra.mxu0 %v6762
    %7210 = vmatprep.subr.bf16.mxu0 %v6771
    %7211 = vmatpush1.bf16.msra.mxu0 %v6770
    %7212 = vmatprep.subr.bf16.mxu0 %v6779
    %7213 = vmatpush1.bf16.msra.mxu0 %v6778
    %7214 = vmatprep.subr.bf16.mxu0 %v6787
    %7215 = vmatpush1.bf16.msra.mxu0 %v6786
    %7216 = vmatprep.subr.bf16.mxu0 %v6795
    %7217 = vmatpush1.bf16.msra.mxu0 %v6794
    %7218 = vmatprep.mubr.bf16.mxu0 %v5862
    %7219 = vmatmul.mubr.bf16.gmra.mrb[0].mxu0 %v5861
    %v7220 = vpop.f32.mrb[0].mxu0
    %v7221 = vadd.f32 %v5869, %v7220
    %v7222 = vpop.f32.mrb[0].mxu0
    %v7223 = vadd.f32 %v5873, %v7222
    %v7224 = vpop.f32.mrb[0].mxu0
    %v7225 = vpop.f32.mrb[0].mxu0
    %7226 = vdwg.mxu0
    %7227 = vmatprep.subr.bf16.mxu0 %v6803
    %7228 = vmatpush1.bf16.msra.mxu0 %v6802
    %7229 = vmatprep.subr.bf16.mxu0 %v6811
    %7230 = vmatpush1.bf16.msra.mxu0 %v6810
    %7231 = vmatprep.subr.bf16.mxu0 %v6819
    %7232 = vmatpush1.bf16.msra.mxu0 %v6818
    %7233 = vmatprep.subr.bf16.mxu0 %v6827
    %7234 = vmatpush1.bf16.msra.mxu0 %v6826
    %7235 = vmatprep.subr.bf16.mxu0 %v6835
    %7236 = vmatpush1.bf16.msra.mxu0 %v6834
    %7237 = vmatprep.subr.bf16.mxu0 %v6843
    %7238 = vmatpush1.bf16.msra.mxu0 %v6842
    %7239 = vmatprep.subr.bf16.mxu0 %v6851
    %7240 = vmatpush1.bf16.msra.mxu0 %v6850
    %7241 = vmatprep.subr.bf16.mxu0 %v6859
    %7242 = vmatpush1.bf16.msra.mxu0 %v6858
    %7243 = vmatprep.subr.bf16.mxu0 %v6867
    %7244 = vmatpush1.bf16.msra.mxu0 %v6866
    %7245 = vmatprep.subr.bf16.mxu0 %v6875
    %7246 = vmatpush1.bf16.msra.mxu0 %v6874
    %7247 = vmatprep.subr.bf16.mxu0 %v6883
    %7248 = vmatpush1.bf16.msra.mxu0 %v6882
    %7249 = vmatprep.subr.bf16.mxu0 %v6891
    %7250 = vmatpush1.bf16.msra.mxu0 %v6890
    %7251 = vmatprep.subr.bf16.mxu0 %v6899
    %7252 = vmatpush1.bf16.msra.mxu0 %v6898
    %7253 = vmatprep.subr.bf16.mxu0 %v6907
    %7254 = vmatpush1.bf16.msra.mxu0 %v6906
    %7255 = vmatprep.subr.bf16.mxu0 %v6915
    %7256 = vmatpush1.bf16.msra.mxu0 %v6914
    %7257 = vmatprep.subr.bf16.mxu0 %v6923
    %7258 = vmatpush1.bf16.msra.mxu0 %v6922
    %7259 = vmatprep.mubr.bf16.mxu0 %v5864
    %7260 = vmatmul.mubr.bf16.gmra.mrb[0].mxu0 %v5863
    %v7261 = vpop.f32.mrb[0].mxu0
    %v7262 = vadd.f32 %v7221, %v7261
    %v7263 = vpop.f32.mrb[0].mxu0
    %v7264 = vadd.f32 %v7223, %v7263
    %v7265 = vpop.f32.mrb[0].mxu0
    %v7266 = vpop.f32.mrb[0].mxu0
    %7267 = vdwg.mxu0
    %7268 = vmatprep.subr.bf16.mxu0 %v6677
    %7269 = vmatpush1.bf16.msra.mxu0 %v6676
    %7270 = vmatprep.subr.bf16.mxu0 %v6685
    %7271 = vmatpush1.bf16.msra.mxu0 %v6684
    %7272 = vmatprep.subr.bf16.mxu0 %v6693
    %7273 = vmatpush1.bf16.msra.mxu0 %v6692
    %7274 = vmatprep.subr.bf16.mxu0 %v6701
    %7275 = vmatpush1.bf16.msra.mxu0 %v6700
    %7276 = vmatprep.subr.bf16.mxu0 %v6709
    %7277 = vmatpush1.bf16.msra.mxu0 %v6708
    %7278 = vmatprep.subr.bf16.mxu0 %v6717
    %7279 = vmatpush1.bf16.msra.mxu0 %v6716
    %7280 = vmatprep.subr.bf16.mxu0 %v6725
    %7281 = vmatpush1.bf16.msra.mxu0 %v6724
    %7282 = vmatprep.subr.bf16.mxu0 %v6733
    %7283 = vmatpush1.bf16.msra.mxu0 %v6732
    %7284 = vmatprep.subr.bf16.mxu0 %v6741
    %7285 = vmatpush1.bf16.msra.mxu0 %v6740
    %7286 = vmatprep.subr.bf16.mxu0 %v6749
    %7287 = vmatpush1.bf16.msra.mxu0 %v6748
    %7288 = vmatprep.subr.bf16.mxu0 %v6757
    %7289 = vmatpush1.bf16.msra.mxu0 %v6756
    %7290 = vmatprep.subr.bf16.mxu0 %v6765
    %7291 = vmatpush1.bf16.msra.mxu0 %v6764
    %7292 = vmatprep.subr.bf16.mxu0 %v6773
    %7293 = vmatpush1.bf16.msra.mxu0 %v6772
    %7294 = vmatprep.subr.bf16.mxu0 %v6781
    %7295 = vmatpush1.bf16.msra.mxu0 %v6780
    %7296 = vmatprep.subr.bf16.mxu0 %v6789
    %7297 = vmatpush1.bf16.msra.mxu0 %v6788
    %7298 = vmatprep.subr.bf16.mxu0 %v6797
    %7299 = vmatpush1.bf16.msra.mxu0 %v6796
    %7300 = vmatprep.mubr.bf16.mxu0 %v5862
    %7301 = vmatmul.mubr.bf16.gmra.mrb[0].mxu0 %v5861
    %v7302 = vpop.f32.mrb[0].mxu0
    %v7303 = vadd.f32 %v5877, %v7302
    %v7304 = vpop.f32.mrb[0].mxu0
    %v7305 = vadd.f32 %v5881, %v7304
    %v7306 = vpop.f32.mrb[0].mxu0
    %v7307 = vpop.f32.mrb[0].mxu0
    %7308 = vdwg.mxu0
    %7309 = vmatprep.subr.bf16.mxu0 %v6805
    %7310 = vmatpush1.bf16.msra.mxu0 %v6804
    %7311 = vmatprep.subr.bf16.mxu0 %v6813
    %7312 = vmatpush1.bf16.msra.mxu0 %v6812
    %7313 = vmatprep.subr.bf16.mxu0 %v6821
    %7314 = vmatpush1.bf16.msra.mxu0 %v6820
    %7315 = vmatprep.subr.bf16.mxu0 %v6829
    %7316 = vmatpush1.bf16.msra.mxu0 %v6828
    %7317 = vmatprep.subr.bf16.mxu0 %v6837
    %7318 = vmatpush1.bf16.msra.mxu0 %v6836
    %7319 = vmatprep.subr.bf16.mxu0 %v6845
    %7320 = vmatpush1.bf16.msra.mxu0 %v6844
    %7321 = vmatprep.subr.bf16.mxu0 %v6853
    %7322 = vmatpush1.bf16.msra.mxu0 %v6852
    %7323 = vmatprep.subr.bf16.mxu0 %v6861
    %7324 = vmatpush1.bf16.msra.mxu0 %v6860
    %7325 = vmatprep.subr.bf16.mxu0 %v6869
    %7326 = vmatpush1.bf16.msra.mxu0 %v6868
    %7327 = vmatprep.subr.bf16.mxu0 %v6877
    %7328 = vmatpush1.bf16.msra.mxu0 %v6876
    %7329 = vmatprep.subr.bf16.mxu0 %v6885
    %7330 = vmatpush1.bf16.msra.mxu0 %v6884
    %7331 = vmatprep.subr.bf16.mxu0 %v6893
    %7332 = vmatpush1.bf16.msra.mxu0 %v6892
    %7333 = vmatprep.subr.bf16.mxu0 %v6901
    %7334 = vmatpush1.bf16.msra.mxu0 %v6900
    %7335 = vmatprep.subr.bf16.mxu0 %v6909
    %7336 = vmatpush1.bf16.msra.mxu0 %v6908
    %7337 = vmatprep.subr.bf16.mxu0 %v6917
    %7338 = vmatpush1.bf16.msra.mxu0 %v6916
    %7339 = vmatprep.subr.bf16.mxu0 %v6925
    %7340 = vmatpush1.bf16.msra.mxu0 %v6924
    %7341 = vmatprep.mubr.bf16.mxu0 %v5864
    %7342 = vmatmul.mubr.bf16.gmra.mrb[0].mxu0 %v5863
    %v7343 = vpop.f32.mrb[0].mxu0
    %v7344 = vadd.f32 %v7303, %v7343
    %v7345 = vpop.f32.mrb[0].mxu0
    %v7346 = vadd.f32 %v7305, %v7345
    %v7347 = vpop.f32.mrb[0].mxu0
    %v7348 = vpop.f32.mrb[0].mxu0
    %7349 = vdwg.mxu0
    %7350 = vmatprep.subr.bf16.mxu0 %v6679
    %7351 = vmatpush1.bf16.msra.mxu0 %v6678
    %7352 = vmatprep.subr.bf16.mxu0 %v6687
    %7353 = vmatpush1.bf16.msra.mxu0 %v6686
    %7354 = vmatprep.subr.bf16.mxu0 %v6695
    %7355 = vmatpush1.bf16.msra.mxu0 %v6694
    %7356 = vmatprep.subr.bf16.mxu0 %v6703
    %7357 = vmatpush1.bf16.msra.mxu0 %v6702
    %7358 = vmatprep.subr.bf16.mxu0 %v6711
    %7359 = vmatpush1.bf16.msra.mxu0 %v6710
    %7360 = vmatprep.subr.bf16.mxu0 %v6719
    %7361 = vmatpush1.bf16.msra.mxu0 %v6718
    %7362 = vmatprep.subr.bf16.mxu0 %v6727
    %7363 = vmatpush1.bf16.msra.mxu0 %v6726
    %7364 = vmatprep.subr.bf16.mxu0 %v6735
    %7365 = vmatpush1.bf16.msra.mxu0 %v6734
    %7366 = vmatprep.subr.bf16.mxu0 %v6743
    %7367 = vmatpush1.bf16.msra.mxu0 %v6742
    %7368 = vmatprep.subr.bf16.mxu0 %v6751
    %7369 = vmatpush1.bf16.msra.mxu0 %v6750
    %7370 = vmatprep.subr.bf16.mxu0 %v6759
    %7371 = vmatpush1.bf16.msra.mxu0 %v6758
    %7372 = vmatprep.subr.bf16.mxu0 %v6767
    %7373 = vmatpush1.bf16.msra.mxu0 %v6766
    %7374 = vmatprep.subr.bf16.mxu0 %v6775
    %7375 = vmatpush1.bf16.msra.mxu0 %v6774
    %7376 = vmatprep.subr.bf16.mxu0 %v6783
    %7377 = vmatpush1.bf16.msra.mxu0 %v6782
    %7378 = vmatprep.subr.bf16.mxu0 %v6791
    %7379 = vmatpush1.bf16.msra.mxu0 %v6790
    %7380 = vmatprep.subr.bf16.mxu0 %v6799
    %7381 = vmatpush1.bf16.msra.mxu0 %v6798
    %7382 = vmatprep.mubr.bf16.mxu0 %v5862
    %7383 = vmatmul.mubr.bf16.gmra.mrb[0].mxu0 %v5861
    %v7384 = vpop.f32.mrb[0].mxu0
    %v7385 = vadd.f32 %v5885, %v7384
    %v7386 = vpop.f32.mrb[0].mxu0
    %v7387 = vadd.f32 %v5889, %v7386
    %v7388 = vpop.f32.mrb[0].mxu0
    %v7389 = vpop.f32.mrb[0].mxu0
    %7390 = vdwg.mxu0
    %7391 = vmatprep.subr.bf16.mxu0 %v6807
    %7392 = vmatpush1.bf16.msra.mxu0 %v6806
    %7393 = vmatprep.subr.bf16.mxu0 %v6815
    %7394 = vmatpush1.bf16.msra.mxu0 %v6814
    %7395 = vmatprep.subr.bf16.mxu0 %v6823
    %7396 = vmatpush1.bf16.msra.mxu0 %v6822
    %7397 = vmatprep.subr.bf16.mxu0 %v6831
    %7398 = vmatpush1.bf16.msra.mxu0 %v6830
    %7399 = vmatprep.subr.bf16.mxu0 %v6839
    %7400 = vmatpush1.bf16.msra.mxu0 %v6838
    %7401 = vmatprep.subr.bf16.mxu0 %v6847
    %7402 = vmatpush1.bf16.msra.mxu0 %v6846
    %7403 = vmatprep.subr.bf16.mxu0 %v6855
    %7404 = vmatpush1.bf16.msra.mxu0 %v6854
    %7405 = vmatprep.subr.bf16.mxu0 %v6863
    %7406 = vmatpush1.bf16.msra.mxu0 %v6862
    %7407 = vmatprep.subr.bf16.mxu0 %v6871
    %7408 = vmatpush1.bf16.msra.mxu0 %v6870
    %7409 = vmatprep.subr.bf16.mxu0 %v6879
    %7410 = vmatpush1.bf16.msra.mxu0 %v6878
    %7411 = vmatprep.subr.bf16.mxu0 %v6887
    %7412 = vmatpush1.bf16.msra.mxu0 %v6886
    %7413 = vmatprep.subr.bf16.mxu0 %v6895
    %7414 = vmatpush1.bf16.msra.mxu0 %v6894
    %7415 = vmatprep.subr.bf16.mxu0 %v6903
    %7416 = vmatpush1.bf16.msra.mxu0 %v6902
    %7417 = vmatprep.subr.bf16.mxu0 %v6911
    %7418 = vmatpush1.bf16.msra.mxu0 %v6910
    %7419 = vmatprep.subr.bf16.mxu0 %v6919
    %7420 = vmatpush1.bf16.msra.mxu0 %v6918
    %7421 = vmatprep.subr.bf16.mxu0 %v6927
    %7422 = vmatpush1.bf16.msra.mxu0 %v6926
    %7423 = vmatprep.mubr.bf16.mxu0 %v5864
    %7424 = vmatmul.mubr.bf16.gmra.mrb[0].mxu0 %v5863
    %v7425 = vpop.f32.mrb[0].mxu0
    %v7426 = vadd.f32 %v7385, %v7425
    %v7427 = vpop.f32.mrb[0].mxu0
    %v7428 = vadd.f32 %v7387, %v7427
    %v7429 = vpop.f32.mrb[0].mxu0
    %v7430 = vpop.f32.mrb[0].mxu0
    %7431 = vdwg.mxu0
    %7432 = vmatprep.subr.bf16.mxu0 %v6681
    %7433 = vmatpush1.bf16.msra.mxu0 %v6680
    %7434 = vmatprep.subr.bf16.mxu0 %v6689
    %7435 = vmatpush1.bf16.msra.mxu0 %v6688
    %7436 = vmatprep.subr.bf16.mxu0 %v6697
    %7437 = vmatpush1.bf16.msra.mxu0 %v6696
    %7438 = vmatprep.subr.bf16.mxu0 %v6705
    %7439 = vmatpush1.bf16.msra.mxu0 %v6704
    %7440 = vmatprep.subr.bf16.mxu0 %v6713
    %7441 = vmatpush1.bf16.msra.mxu0 %v6712
    %7442 = vmatprep.subr.bf16.mxu0 %v6721
    %7443 = vmatpush1.bf16.msra.mxu0 %v6720
    %7444 = vmatprep.subr.bf16.mxu0 %v6729
    %7445 = vmatpush1.bf16.msra.mxu0 %v6728
    %7446 = vmatprep.subr.bf16.mxu0 %v6737
    %7447 = vmatpush1.bf16.msra.mxu0 %v6736
    %7448 = vmatprep.subr.bf16.mxu0 %v6745
    %7449 = vmatpush1.bf16.msra.mxu0 %v6744
    %7450 = vmatprep.subr.bf16.mxu0 %v6753
    %7451 = vmatpush1.bf16.msra.mxu0 %v6752
    %7452 = vmatprep.subr.bf16.mxu0 %v6761
    %7453 = vmatpush1.bf16.msra.mxu0 %v6760
    %7454 = vmatprep.subr.bf16.mxu0 %v6769
    %7455 = vmatpush1.bf16.msra.mxu0 %v6768
    %7456 = vmatprep.subr.bf16.mxu0 %v6777
    %7457 = vmatpush1.bf16.msra.mxu0 %v6776
    %7458 = vmatprep.subr.bf16.mxu0 %v6785
    %7459 = vmatpush1.bf16.msra.mxu0 %v6784
    %7460 = vmatprep.subr.bf16.mxu0 %v6793
    %7461 = vmatpush1.bf16.msra.mxu0 %v6792
    %7462 = vmatprep.subr.bf16.mxu0 %v6801
    %7463 = vmatpush1.bf16.msra.mxu0 %v6800
    %7464 = vmatprep.mubr.bf16.mxu0 %v5862
    %7465 = vmatmul.mubr.bf16.gmra.mrb[0].mxu0 %v5861
    %v7466 = vpop.f32.mrb[0].mxu0
    %v7467 = vadd.f32 %v5893, %v7466
    %v7468 = vpop.f32.mrb[0].mxu0
    %v7469 = vadd.f32 %v5897, %v7468
    %v7470 = vpop.f32.mrb[0].mxu0
    %v7471 = vpop.f32.mrb[0].mxu0
    %7472 = vdwg.mxu0
    %7473 = vmatprep.subr.bf16.mxu0 %v6809
    %7474 = vmatpush1.bf16.msra.mxu0 %v6808
    %7475 = vmatprep.subr.bf16.mxu0 %v6817
    %7476 = vmatpush1.bf16.msra.mxu0 %v6816
    %7477 = vmatprep.subr.bf16.mxu0 %v6825
    %7478 = vmatpush1.bf16.msra.mxu0 %v6824
    %7479 = vmatprep.subr.bf16.mxu0 %v6833
    %7480 = vmatpush1.bf16.msra.mxu0 %v6832
    %7481 = vmatprep.subr.bf16.mxu0 %v6841
    %7482 = vmatpush1.bf16.msra.mxu0 %v6840
    %7483 = vmatprep.subr.bf16.mxu0 %v6849
    %7484 = vmatpush1.bf16.msra.mxu0 %v6848
    %7485 = vmatprep.subr.bf16.mxu0 %v6857
    %7486 = vmatpush1.bf16.msra.mxu0 %v6856
    %7487 = vmatprep.subr.bf16.mxu0 %v6865
    %7488 = vmatpush1.bf16.msra.mxu0 %v6864
    %7489 = vmatprep.subr.bf16.mxu0 %v6873
    %7490 = vmatpush1.bf16.msra.mxu0 %v6872
    %7491 = vmatprep.subr.bf16.mxu0 %v6881
    %7492 = vmatpush1.bf16.msra.mxu0 %v6880
    %7493 = vmatprep.subr.bf16.mxu0 %v6889
    %7494 = vmatpush1.bf16.msra.mxu0 %v6888
    %7495 = vmatprep.subr.bf16.mxu0 %v6897
    %7496 = vmatpush1.bf16.msra.mxu0 %v6896
    %7497 = vmatprep.subr.bf16.mxu0 %v6905
    %7498 = vmatpush1.bf16.msra.mxu0 %v6904
    %7499 = vmatprep.subr.bf16.mxu0 %v6913
    %7500 = vmatpush1.bf16.msra.mxu0 %v6912
    %7501 = vmatprep.subr.bf16.mxu0 %v6921
    %7502 = vmatpush1.bf16.msra.mxu0 %v6920
    %7503 = vmatprep.subr.bf16.mxu0 %v6929
    %7504 = vmatpush1.bf16.msra.mxu0 %v6928
    %7505 = vmatprep.mubr.bf16.mxu0 %v5864
    %7506 = vmatmul.mubr.bf16.gmra.mrb[0].mxu0 %v5863
    %v7507 = vpop.f32.mrb[0].mxu0
    %v7508 = vadd.f32 %v7467, %v7507
    %v7509 = vpop.f32.mrb[0].mxu0
    %v7510 = vadd.f32 %v7469, %v7509
    %v7511 = vpop.f32.mrb[0].mxu0
    %v7512 = vpop.f32.mrb[0].mxu0
    %7513 = vdwg.mxu0
    %v7514 = vmul.f32 %v7262, %v7262
    %v7515 = vmul.f32 %v7264, %v7264
    %v7516 = vmul.f32 %v7344, %v7344
    %v7517 = vmul.f32 %v7346, %v7346
    %v7518 = vmul.f32 %v7426, %v7426
    %v7519 = vmul.f32 %v7428, %v7428
    %v7520 = vmul.f32 %v7508, %v7508
    %v7521 = vmul.f32 %v7510, %v7510
    %v7522 = vsel %vm1550, %v7514, 0.0
    %v7523 = vsel %vm1550, %v7515, 0.0
    %v7524 = vadd.f32 %v7522, %v7523
    %v7525 = vsel %vm1550, %v7516, 0.0
    %v7526 = vadd.f32 %v7524, %v7525
    %v7527 = vsel %vm1550, %v7517, 0.0
    %v7528 = vadd.f32 %v7526, %v7527
    %v7529 = vsel %vm1550, %v7518, 0.0
    %v7530 = vadd.f32 %v7528, %v7529
    %v7531 = vsel %vm1550, %v7519, 0.0
    %v7532 = vadd.f32 %v7530, %v7531
    %v7533 = vsel %vm1550, %v7520, 0.0
    %v7534 = vadd.f32 %v7532, %v7533
    %v7535 = vsel %vm1550, %v7521, 0.0
    %v7536 = vadd.f32 %v7534, %v7535
    %7537 = vadd.xlane.f32.xlu0 %v7536
    %v7538 = vpop.xlane.xlu0 %7537
    %v7539 = vrsqrt.pop %v7538
    %v7540 = vmul.f32 %v7538, %v7539
    %vm7541 = vcmp.eq.f32.partialorder %v7538, inf
    %v7542 = vsel %vm7541, %v7538, %v7540
    %vm7543 = vcmp.eq.f32.partialorder %v7538, 0.0
    %v7544 = vand.u32 %v7538, 2147483648
    %v7545 = vsel %vm7543, %v7544, %v7542
    %v7546 = vmax.f32 %v7545, 1e-12
    %v7547 = vrcp.pop %v7546
    %v7548 = vmul.f32 %v7262, %v7547
    %v7549 = vmul.f32 %v7264, %v7547
    %v7550 = vmul.f32 %v7344, %v7547
    %v7551 = vmul.f32 %v7346, %v7547
    %v7552 = vmul.f32 %v7426, %v7547
    %v7553 = vmul.f32 %v7428, %v7547
    %v7554 = vmul.f32 %v7508, %v7547
    %v7555 = vmul.f32 %v7510, %v7547
    %v7556 = vld [vmem:[%s15] sm:$0xff]
    %v7557 = vld [vmem:[%s15 + $0x8] sm:$0xff]
    %v7558 = vld [vmem:[%s15 + $0x10] sm:$0xff]
    %v7559 = vld [vmem:[%s15 + $0x18] sm:$0xff]
    %v7560 = vmul.f32 %v7556, %v7556
    %v7561 = vmul.f32 %v7557, %v7557
    %v7562 = vmul.f32 %v7558, %v7558
    %v7563 = vmul.f32 %v7559, %v7559
    %v7568 = vcombine.high %v7560, %v7560
    %v7569 = vcombine.high %v7561, %v7561
    %v7570 = vcombine.high %v7562, %v7562
    %v7571 = vcombine.high %v7563, %v7563
    %v7576 = vsel %vm1550, %v7560, 0.0
    %v7577 = vsel %vm1550, %v7568, 0.0
    %v7578 = vadd.f32 %v7576, %v7577
    %v7579 = vsel %vm1550, %v7561, 0.0
    %v7580 = vadd.f32 %v7578, %v7579
    %v7581 = vsel %vm1550, %v7569, 0.0
    %v7582 = vadd.f32 %v7580, %v7581
    %v7583 = vsel %vm1550, %v7562, 0.0
    %v7584 = vadd.f32 %v7582, %v7583
    %v7585 = vsel %vm1550, %v7570, 0.0
    %v7586 = vadd.f32 %v7584, %v7585
    %v7587 = vsel %vm1550, %v7563, 0.0
    %v7588 = vadd.f32 %v7586, %v7587
    %v7589 = vsel %vm1550, %v7571, 0.0
    %v7590 = vadd.f32 %v7588, %v7589
    %7591 = vadd.xlane.f32.xlu0 %v7590
    %v7592 = vpop.xlane.xlu0 %7591
    %v7593 = vrsqrt.pop %v7592
    %v7594 = vmul.f32 %v7592, %v7593
    %vm7595 = vcmp.eq.f32.partialorder %v7592, inf
    %v7596 = vsel %vm7595, %v7592, %v7594
    %vm7597 = vcmp.eq.f32.partialorder %v7592, 0.0
    %v7598 = vand.u32 %v7592, 2147483648
    %v7599 = vsel %vm7597, %v7598, %v7596
    %v7600 = vmax.f32 %v7599, 1e-12
    %v7603 = vunpack.c.l.s4 839922192
    %v7604 = vunpack.c.0.s8 %v7603
    %v7605 = vlaneseq
    %v7606 = vshrl.u32 %v7605, 7
    %v7607 = vsub.s32 %v7604, %v7606
    %v7608 = vrot.slane %v7600, %v7607
    %v7610 = vrcp.pop %v7608
    %v7611 = vmul.f32 %v7556, %v7610
    %v7612 = vmul.f32 %v7557, %v7610
    %v7613 = vmul.f32 %v7558, %v7610
    %v7614 = vmul.f32 %v7559, %v7610
    %v7619 = vcombine.high %v7611, %v7611
    %v7620 = vcombine.high %v7612, %v7612
    %v7621 = vcombine.high %v7613, %v7613
    %v7622 = vcombine.high %v7614, %v7614
    %v7627 = vmul.f32 %v7548, %v7611
    %v7628 = vmul.f32 %v7549, %v7619
    %v7629 = vmul.f32 %v7550, %v7612
    %v7630 = vmul.f32 %v7551, %v7620
    %v7631 = vmul.f32 %v7552, %v7613
    %v7632 = vmul.f32 %v7553, %v7621
    %v7633 = vmul.f32 %v7554, %v7614
    %v7634 = vmul.f32 %v7555, %v7622
    %v7635 = vsel %vm1550, %v7627, 0.0
    %v7636 = vsel %vm1550, %v7628, 0.0
    %v7637 = vadd.f32 %v7635, %v7636
    %v7638 = vsel %vm1550, %v7629, 0.0
    %v7639 = vadd.f32 %v7637, %v7638
    %v7640 = vsel %vm1550, %v7630, 0.0
    %v7641 = vadd.f32 %v7639, %v7640
    %v7642 = vsel %vm1550, %v7631, 0.0
    %v7643 = vadd.f32 %v7641, %v7642
    %v7644 = vsel %vm1550, %v7632, 0.0
    %v7645 = vadd.f32 %v7643, %v7644
    %v7646 = vsel %vm1550, %v7633, 0.0
    %v7647 = vadd.f32 %v7645, %v7646
    %v7648 = vsel %vm1550, %v7634, 0.0
    %v7649 = vadd.f32 %v7647, %v7648
    %7650 = vadd.xlane.f32.xlu0 %v7649
    %v7651 = vpop.xlane.xlu0 %7650
    %v7652 = vmul.f32 %v7651, 2.0
    %v7653 = vsub.f32 2.0, %v7652
    %vm7654 = vcmask 3072
    %v7655 = vsel %vm7654, %v7653, 0.0
    %7656 = vadd.xlane.f32.xlu0 %v7655
    %v7657 = vpop.xlane.xlu0 %7656
    %v7658 = vrot.slane %v7657, 4
    %v7659 = vadd.f32 %v7657, %v7658
    %v7660 = vrot.slane %v7659, 2
    %v7661 = vadd.f32 %v7659, %v7660
    %v7662 = vrot.slane %v7661, 1
    %v7663 = vadd.f32 %v7661, %v7662
    %s7664 = vtos %v7663
    %s7665 = smul.f32 %s7664, 0.5
    %s7666 = scalar_lea.smem [#allocation5], 0
    %7667 = sst [smem:[%s7666]] %s7665
    // Predicated region
    $region66: #{byol_forward.3} parent=1 // pred_check
      _
    $region67: #{byol_forward.3} parent=1 // pred_check_branch
      %7669 = sbr.rel (0) target = $region69
    $region68: #{byol_forward.3} parent=1 // pred_region
      %s7671 = ssub.s32 128, 128
      %7672 = vsyncadd [#allocation3], %s7671
      %s7674 = sshll.u32 [#allocation2], 4
      %s7675 = int_to_ptr.vmem [resolvable:$true] %s7674
      %7677 = dma.vmem_to_hbm [thread:$0]  %s7675, 128, %s16, [#allocation3]
    $region69: #{byol_forward.3} parent=1 // pred_fallthru
      _
    // Predicated region
    $region70: #{byol_forward.3} parent=1 // pred_check
      _
    $region71: #{byol_forward.3} parent=1 // pred_check_branch
      %7679 = sbr.rel (0) target = $region73
    $region72: #{byol_forward.3} parent=1 // pred_region
      %s7681 = ssub.s32 16, 16
      %7682 = vsyncadd [#allocation4], %s7681
      %7685 = dma.smem_to_hbm [#allocation5], 16, %s17, [#allocation4]
    $region73: #{byol_forward.3} parent=1 // pred_fallthru
      _
    // Predicated region
    $region74: #{byol_forward.3} parent=1 // pred_check
      _
    $region75: #{byol_forward.3} parent=1 // pred_check_branch
      %7687 = sbr.rel (0) target = $region77
    $region76: #{byol_forward.3} parent=1 // pred_region
      %7688 = dma.done [#allocation3], 128
    $region77: #{byol_forward.3} parent=1 // pred_fallthru
      _
    // Predicated region
    $region78: #{byol_forward.3} parent=1 // pred_check
      _
    $region79: #{byol_forward.3} parent=1 // pred_check_branch
      %7690 = sbr.rel (0) target = $region81
    $region80: #{byol_forward.3} parent=1 // pred_region
      %7691 = dma.done [#allocation4], 16
    $region81: #{byol_forward.3} parent=1 // pred_fallthru
      _
    %7692 = sfence
    %7693 = vsyncpa [#allocation3], 1
    %7694 = vsyncpa [#allocation4], 1

</llo_original>
